<compile_context>
chip_gen: v6e
topology: v6e:2x2x1
jax: 0.10.0
libtpu: 0.0.40
codegen_flags: <defaults>
</compile_context>

<pallas_src>
import functools

import jax
import jax.numpy as jnp
from jax.experimental import pallas as pl
from jax.experimental.pallas import tpu as pltpu


def _round_up(x, m):
    return (x + m - 1) // m * m


# ---------------------------------------------------------------------------
# Matmul + bias (+ optional ReLU) kernels: y = relu(x @ w + b)
# ---------------------------------------------------------------------------
def _mm_bias_kernel(x_ref, w_ref, b_ref, o_ref, *, apply_relu):
    # Full-K contraction in one step: no accumulator scratch needed.
    r = jnp.dot(x_ref[...], w_ref[...], preferred_element_type=jnp.float32)
    r = r + b_ref[...]
    if apply_relu:
        r = jnp.maximum(r, 0.0)
    o_ref[...] = r.astype(o_ref.dtype)


def _mm_bias_acc_kernel(x_ref, w_ref, b_ref, o_ref, acc_ref, *, apply_relu):
    # K-tiled contraction with f32 accumulator (k is the innermost grid axis).
    @pl.when(pl.program_id(2) == 0)
    def _():
        acc_ref[...] = jnp.zeros_like(acc_ref)

    acc_ref[...] += jnp.dot(x_ref[...], w_ref[...],
                            preferred_element_type=jnp.float32)

    @pl.when(pl.program_id(2) == pl.num_programs(2) - 1)
    def _():
        r = acc_ref[...] + b_ref[...]
        if apply_relu:
            r = jnp.maximum(r, 0.0)
        o_ref[...] = r.astype(o_ref.dtype)


def linear_pallas(x, w, b, *, apply_relu, tm, tn=None, tk=None,
                  out_dtype=jnp.float32):
    """y = (relu)(x:(M,K) @ w:(K,N) + b:(N,)).  x and w must share a dtype."""
    M, K = x.shape
    _, N = w.shape
    Np = _round_up(N, 128)
    if tn is None:
        tn = Np
    Mp = _round_up(M, tm)
    if tk is None:
        tk = K                       # full-K: no padding, no K grid axis
    Kp = _round_up(K, tk)

    xp = jnp.pad(x, ((0, Mp - M), (0, Kp - K)))
    wp = jnp.pad(w, ((0, Kp - K), (0, Np - N)))
    bp = jnp.pad(b.astype(jnp.float32), (0, Np - N)).reshape(1, Np)

    k_steps = Kp // tk
    if k_steps == 1:
        grid = (Mp // tm, Np // tn)
        kernel = functools.partial(_mm_bias_kernel, apply_relu=apply_relu)
        in_specs = [pl.BlockSpec((tm, Kp), lambda i, j: (i, 0)),
                    pl.BlockSpec((Kp, tn), lambda i, j: (0, j)),
                    pl.BlockSpec((1, tn), lambda i, j: (0, j))]
        out_specs = pl.BlockSpec((tm, tn), lambda i, j: (i, j))
        scratch = []
        dims = ("parallel", "parallel")
    else:
        grid = (Mp // tm, Np // tn, k_steps)
        kernel = functools.partial(_mm_bias_acc_kernel, apply_relu=apply_relu)
        in_specs = [pl.BlockSpec((tm, tk), lambda i, j, k: (i, k)),
                    pl.BlockSpec((tk, tn), lambda i, j, k: (k, j)),
                    pl.BlockSpec((1, tn), lambda i, j, k: (0, j))]
        out_specs = pl.BlockSpec((tm, tn), lambda i, j, k: (i, j))
        scratch = [pltpu.VMEM((tm, tn), jnp.float32)]
        dims = ("parallel", "parallel", "arbitrary")

    out = pl.pallas_call(
        kernel,
        out_shape=jax.ShapeDtypeStruct((Mp, Np), out_dtype),
        grid_spec=pltpu.PrefetchScalarGridSpec(
            num_scalar_prefetch=0,
            grid=grid,
            in_specs=in_specs,
            out_specs=out_specs,
            scratch_shapes=scratch),
        compiler_params=pltpu.CompilerParams(dimension_semantics=dims),
    )(xp, wp, bp)
    return out[:M, :N]


# ---------------------------------------------------------------------------
# MaxPool2d(kernel=2, stride=2) kernel (NHWC). Input is regrouped by a free
# row-major reshape only (no XLA transpose copy): (N,H,W,C) -> (N,Ho,2,Wo,2*C).
# The dh window offset is a major block dim; the dw offset lands in the lane
# dim as two 128-wide (vreg-aligned) halves, so the in-kernel max is cheap.
# ---------------------------------------------------------------------------
def _maxpool_kernel(x_ref, o_ref, *, C):
    x = x_ref[...]                                   # (1, Ho, 2, Wo, 2*C)
    m = jnp.maximum(x[:, :, 0], x[:, :, 1])          # (1, Ho, Wo, 2*C)
    o_ref[...] = jnp.maximum(m[..., :C], m[..., C:])  # (1, Ho, Wo, C)


def maxpool2x2_pallas(y):
    # y: (N, H, W, C), H and W even, C a multiple of 128.
    N, H, W, C = y.shape
    Ho, Wo = H // 2, W // 2
    z = y.reshape(N, Ho, 2, Wo, 2 * C)               # free reshape, no copy
    return pl.pallas_call(
        functools.partial(_maxpool_kernel, C=C),
        out_shape=jax.ShapeDtypeStruct((N, Ho, Wo, C), y.dtype),
        grid_spec=pltpu.PrefetchScalarGridSpec(
            num_scalar_prefetch=0,
            grid=(N,),
            in_specs=[pl.BlockSpec((1, Ho, 2, Wo, 2 * C),
                                   lambda n: (n, 0, 0, 0, 0))],
            out_specs=pl.BlockSpec((1, Ho, Wo, C), lambda n: (n, 0, 0, 0)),
        ),
        compiler_params=pltpu.CompilerParams(
            dimension_semantics=("parallel",)),
    )(z)


# ---------------------------------------------------------------------------
# im2col for 3x3 conv, stride 1, padding 1 (JAX glue; matmul is the hot path).
# ---------------------------------------------------------------------------
def _im2col_3x3(x_nhwc):
    N, H, W, C = x_nhwc.shape
    xp = jnp.pad(x_nhwc, ((0, 0), (1, 1), (1, 1), (0, 0)))
    cols = []
    for dy in range(3):
        for dx in range(3):
            cols.append(xp[:, dy:dy + H, dx:dx + W, :])
    patches = jnp.stack(cols, axis=3)            # (N, H, W, 9, C)
    return patches.reshape(N * H * W, 9 * C)     # tap-major, then cin


# ---------------------------------------------------------------------------
# Parameters (deterministic, PyTorch-default-like uniform(-1/sqrt(fan_in), ..))
# Conv weights stored as (ky, kx, cin, cout) reshaped to (9*cin, cout),
# matching the im2col feature order. Linear weights stored as (in, out).
# conv2 / fc1 weights are kept in bf16 (f32 accumulation in the kernels):
# halves the HBM traffic of the memory-bound fc1 and uses the native bf16 MXU.
# ---------------------------------------------------------------------------
def init_params(key):
    ks = jax.random.split(key, 8)

    def u(k, shape, fan_in):
        bound = float(fan_in) ** -0.5
        return jax.random.uniform(k, shape, jnp.float32, -bound, bound)

    return {
        "w1": u(ks[0], (3, 3, 1, 128), 9).reshape(9, 128),
        "b1": u(ks[1], (128,), 9),
        "w2": u(ks[2], (3, 3, 128, 128), 9 * 128).reshape(9 * 128, 128)
              .astype(jnp.bfloat16),
        "b2": u(ks[3], (128,), 9 * 128),
        "wfc1": u(ks[4], (14 * 14 * 128, 1024), 14 * 14 * 128)
                .astype(jnp.bfloat16),
        "bfc1": u(ks[5], (1024,), 14 * 14 * 128),
        "wfc2": u(ks[6], (1024, 10), 1024),
        "bfc2": u(ks[7], (10,), 1024),
    }


# ---------------------------------------------------------------------------
# Forward pass
# ---------------------------------------------------------------------------
def simplenet_forward(x_nchw, params):
    N, _, H, W = x_nchw.shape
    x = jnp.transpose(x_nchw, (0, 2, 3, 1))                      # NHWC

    # conv1 (1 -> 128) + ReLU: im2col matmul, K=9 left unpadded (full-K block).
    p1 = _im2col_3x3(x)                                          # (N*H*W, 9) f32
    y1 = linear_pallas(p1, params["w1"], params["b1"], apply_relu=True,
                       tm=224, out_dtype=jnp.bfloat16)
    y1 = y1.reshape(N, H, W, 128)

    # conv2 (128 -> 128) + ReLU: full-K (1152) single-step contraction, bf16.
    p2 = _im2col_3x3(y1)                                         # (N*H*W, 1152) bf16
    y2 = linear_pallas(p2, params["w2"], params["b2"], apply_relu=True,
                       tm=224, out_dtype=jnp.bfloat16)
    y2 = y2.reshape(N, H, W, 128)

    # MaxPool2d(2, 2)
    y3 = maxpool2x2_pallas(y2)                                   # (N, 14, 14, 128)

    # flatten exactly like PyTorch's x.view(-1, 14*14*128) on NCHW
    flat = jnp.transpose(y3, (0, 3, 1, 2)).reshape(N, 14 * 14 * 128)

    # fc1: bf16 weights/activations, large weight blocks (tk=3584, tn=512)
    # -> 14 grid steps, 2 parallel N tiles (both v7x TCs), ~7 MiB VMEM.
    h = linear_pallas(flat, params["wfc1"], params["bfc1"], apply_relu=True,
                      tm=8, tn=512, tk=3584)
    # TODO(synk): nn.Dropout(p=0.5) is identity in eval/inference mode; training-mode RNG dropout not implemented.
    out = linear_pallas(h, params["wfc2"], params["bfc2"], apply_relu=False,
                        tm=8)
    return out                                                   # (N, 10) f32


if __name__ == "__main__":
    key = jax.random.PRNGKey(0)
    pkey, xkey = jax.random.split(key)
    params = init_params(pkey)

    # Small batch=2; spatial 28x28 with 1 channel is implied by the hard-coded
    # 14*14*128 flatten in the PyTorch module.
    x = jax.random.normal(xkey, (2, 1, 28, 28), dtype=jnp.float32)

    fwd = jax.jit(simplenet_forward)
    out = fwd(x, params)
    jax.block_until_ready(out)

    assert out.shape == (2, 10) and out.dtype == jnp.float32
    print("KERNEL_OK")
</pallas_src>

<mosaic_0001>
module attributes {stable_mosaic.version = 11 : i64} {
  func.func @_mm_bias_kernel(%arg0: i32, %arg1: i32, %arg2: memref<224x9xf32, #tpu.memory_space<vmem>>, %arg3: memref<9x128xf32, #tpu.memory_space<vmem>>, %arg4: memref<1x128xf32, #tpu.memory_space<vmem>>, %arg5: memref<224x128xbf16, #tpu.memory_space<vmem>>) attributes {dimension_semantics = [#tpu.dimension_semantics<parallel>, #tpu.dimension_semantics<parallel>], iteration_bounds = array<i64: 7, 1>, scalar_prefetch = 0 : i64, scratch_operands = 0 : i64, tpu.core_type = #tpu.core_type<tc>, window_params = [{transform_indices = @transform_0, window_bounds = array<i64: 224, 9>}, {transform_indices = @transform_1, window_bounds = array<i64: 9, 128>}, {transform_indices = @transform_2, window_bounds = array<i64: 1, 128>}, {transform_indices = @transform_3, window_bounds = array<i64: 224, 128>}]} {
    %c0 = arith.constant 0 : index
    %c0_0 = arith.constant 0 : index
    %0 = vector.load %arg2[%c0, %c0_0] : memref<224x9xf32, #tpu.memory_space<vmem>>, vector<224x9xf32>
    %c0_1 = arith.constant 0 : index
    %c0_2 = arith.constant 0 : index
    %1 = vector.load %arg3[%c0_1, %c0_2] : memref<9x128xf32, #tpu.memory_space<vmem>>, vector<9x128xf32>
    %cst = arith.constant dense<0.000000e+00> : vector<224x128xf32>
    %2 = tpu.matmul %0, %1, %cst {dimension_numbers = #tpu.dot_dimension_numbers<[1], [0], [0], [1], [0, 0, 1, 1], [], []>} : vector<224x9xf32>, vector<9x128xf32>, vector<224x128xf32> -> vector<224x128xf32>
    %c0_3 = arith.constant 0 : index
    %c0_4 = arith.constant 0 : index
    %3 = vector.load %arg4[%c0_3, %c0_4] : memref<1x128xf32, #tpu.memory_space<vmem>>, vector<1x128xf32>
    %4 = vector.broadcast %3 : vector<1x128xf32> to vector<224x128xf32>
    %5 = arith.addf %2, %4 : vector<224x128xf32>
    %cst_5 = arith.constant 0.000000e+00 : f32
    %6 = vector.broadcast %cst_5 : f32 to vector<224x128xf32>
    %7 = arith.maximumf %5, %6 : vector<224x128xf32>
    %8 = arith.truncf %7 : vector<224x128xf32> to vector<224x128xbf16>
    %c0_6 = arith.constant 0 : index
    %c0_7 = arith.constant 0 : index
    %9 = vector.load %arg5[%c0_6, %c0_7] : memref<224x128xbf16, #tpu.memory_space<vmem>>, vector<224x128xbf16>
    tpu.vector_store %arg5[%c0_6, %c0_7], %8 {strides = array<i32>} : memref<224x128xbf16, #tpu.memory_space<vmem>>, vector<224x128xbf16>,
    return
  }
  func.func @transform_0(%arg0: i32, %arg1: i32) -> (i32, i32) {
    %c0_i32 = arith.constant 0 : i32
    %c0_i32_0 = arith.constant 0 : i32
    return %arg0, %c0_i32 : i32, i32
  }
  func.func @transform_1(%arg0: i32, %arg1: i32) -> (i32, i32) {
    %c0_i32 = arith.constant 0 : i32
    %c0_i32_0 = arith.constant 0 : i32
    return %c0_i32, %arg1 : i32, i32
  }
  func.func @transform_2(%arg0: i32, %arg1: i32) -> (i32, i32) {
    %c0_i32 = arith.constant 0 : i32
    %c0_i32_0 = arith.constant 0 : i32
    return %c0_i32, %arg1 : i32, i32
  }
  func.func @transform_3(%arg0: i32, %arg1: i32) -> (i32, i32) {
    %c0_i32 = arith.constant 0 : i32
    return %arg0, %arg1 : i32, i32
  }
}

module attributes {stable_mosaic.version = 11 : i64} {
  func.func @_mm_bias_kernel(%arg0: i32, %arg1: i32, %arg2: memref<224x1152xbf16, #tpu.memory_space<vmem>>, %arg3: memref<1152x128xbf16, #tpu.memory_space<vmem>>, %arg4: memref<1x128xf32, #tpu.memory_space<vmem>>, %arg5: memref<224x128xbf16, #tpu.memory_space<vmem>>) attributes {dimension_semantics = [#tpu.dimension_semantics<parallel>, #tpu.dimension_semantics<parallel>], iteration_bounds = array<i64: 7, 1>, scalar_prefetch = 0 : i64, scratch_operands = 0 : i64, tpu.core_type = #tpu.core_type<tc>, window_params = [{transform_indices = @transform_0, window_bounds = array<i64: 224, 1152>}, {transform_indices = @transform_1, window_bounds = array<i64: 1152, 128>}, {transform_indices = @transform_2, window_bounds = array<i64: 1, 128>}, {transform_indices = @transform_3, window_bounds = array<i64: 224, 128>}]} {
    %c0 = arith.constant 0 : index
    %c0_0 = arith.constant 0 : index
    %0 = vector.load %arg2[%c0, %c0_0] : memref<224x1152xbf16, #tpu.memory_space<vmem>>, vector<224x1152xbf16>
    %c0_1 = arith.constant 0 : index
    %c0_2 = arith.constant 0 : index
    %1 = vector.load %arg3[%c0_1, %c0_2] : memref<1152x128xbf16, #tpu.memory_space<vmem>>, vector<1152x128xbf16>
    %cst = arith.constant dense<0.000000e+00> : vector<224x128xf32>
    %2 = tpu.matmul %0, %1, %cst {dimension_numbers = #tpu.dot_dimension_numbers<[1], [0], [0], [1], [0, 0, 1, 1], [], []>} : vector<224x1152xbf16>, vector<1152x128xbf16>, vector<224x128xf32> -> vector<224x128xf32>
    %c0_3 = arith.constant 0 : index
    %c0_4 = arith.constant 0 : index
    %3 = vector.load %arg4[%c0_3, %c0_4] : memref<1x128xf32, #tpu.memory_space<vmem>>, vector<1x128xf32>
    %4 = vector.broadcast %3 : vector<1x128xf32> to vector<224x128xf32>
    %5 = arith.addf %2, %4 : vector<224x128xf32>
    %cst_5 = arith.constant 0.000000e+00 : f32
    %6 = vector.broadcast %cst_5 : f32 to vector<224x128xf32>
    %7 = arith.maximumf %5, %6 : vector<224x128xf32>
    %8 = arith.truncf %7 : vector<224x128xf32> to vector<224x128xbf16>
    %c0_6 = arith.constant 0 : index
    %c0_7 = arith.constant 0 : index
    %9 = vector.load %arg5[%c0_6, %c0_7] : memref<224x128xbf16, #tpu.memory_space<vmem>>, vector<224x128xbf16>
    tpu.vector_store %arg5[%c0_6, %c0_7], %8 {strides = array<i32>} : memref<224x128xbf16, #tpu.memory_space<vmem>>, vector<224x128xbf16>,
    return
  }
  func.func @transform_0(%arg0: i32, %arg1: i32) -> (i32, i32) {
    %c0_i32 = arith.constant 0 : i32
    %c0_i32_0 = arith.constant 0 : i32
    return %arg0, %c0_i32 : i32, i32
  }
  func.func @transform_1(%arg0: i32, %arg1: i32) -> (i32, i32) {
    %c0_i32 = arith.constant 0 : i32
    %c0_i32_0 = arith.constant 0 : i32
    return %c0_i32, %arg1 : i32, i32
  }
  func.func @transform_2(%arg0: i32, %arg1: i32) -> (i32, i32) {
    %c0_i32 = arith.constant 0 : i32
    %c0_i32_0 = arith.constant 0 : i32
    return %c0_i32, %arg1 : i32, i32
  }
  func.func @transform_3(%arg0: i32, %arg1: i32) -> (i32, i32) {
    %c0_i32 = arith.constant 0 : i32
    return %arg0, %arg1 : i32, i32
  }
}

module attributes {stable_mosaic.version = 11 : i64} {
  func.func @_maxpool_kernel(%arg0: i32, %arg1: memref<1x14x2x14x256xbf16, #tpu.memory_space<vmem>>, %arg2: memref<1x14x14x128xbf16, #tpu.memory_space<vmem>>) attributes {dimension_semantics = [#tpu.dimension_semantics<parallel>], iteration_bounds = array<i64: 2>, scalar_prefetch = 0 : i64, scratch_operands = 0 : i64, tpu.core_type = #tpu.core_type<tc>, window_params = [{transform_indices = @transform_0, window_bounds = array<i64: 1, 14, 2, 14, 256>}, {transform_indices = @transform_1, window_bounds = array<i64: 1, 14, 14, 128>}]} {
    %c0 = arith.constant 0 : index
    %c0_0 = arith.constant 0 : index
    %c0_1 = arith.constant 0 : index
    %c0_2 = arith.constant 0 : index
    %c0_3 = arith.constant 0 : index
    %0 = vector.load %arg1[%c0, %c0_0, %c0_1, %c0_2, %c0_3] : memref<1x14x2x14x256xbf16, #tpu.memory_space<vmem>>, vector<1x14x2x14x256xbf16>
    %1 = vector.extract_strided_slice %0 {offsets = [0, 0, 0, 0, 0], sizes = [1, 14, 1, 14, 256], strides = [1, 1, 1, 1, 1]} : vector<1x14x2x14x256xbf16> to vector<1x14x1x14x256xbf16>
    %2 = vector.shape_cast %1 : vector<1x14x1x14x256xbf16> to vector<1x14x14x256xbf16>
    %3 = vector.extract_strided_slice %0 {offsets = [0, 0, 1, 0, 0], sizes = [1, 14, 1, 14, 256], strides = [1, 1, 1, 1, 1]} : vector<1x14x2x14x256xbf16> to vector<1x14x1x14x256xbf16>
    %4 = vector.shape_cast %3 : vector<1x14x1x14x256xbf16> to vector<1x14x14x256xbf16>
    %5 = arith.maximumf %2, %4 : vector<1x14x14x256xbf16>
    %6 = vector.extract_strided_slice %5 {offsets = [0, 0, 0, 0], sizes = [1, 14, 14, 128], strides = [1, 1, 1, 1]} : vector<1x14x14x256xbf16> to vector<1x14x14x128xbf16>
    %7 = vector.extract_strided_slice %5 {offsets = [0, 0, 0, 128], sizes = [1, 14, 14, 128], strides = [1, 1, 1, 1]} : vector<1x14x14x256xbf16> to vector<1x14x14x128xbf16>
    %8 = arith.maximumf %6, %7 : vector<1x14x14x128xbf16>
    %c0_4 = arith.constant 0 : index
    %c0_5 = arith.constant 0 : index
    %c0_6 = arith.constant 0 : index
    %c0_7 = arith.constant 0 : index
    %9 = vector.load %arg2[%c0_4, %c0_5, %c0_6, %c0_7] : memref<1x14x14x128xbf16, #tpu.memory_space<vmem>>, vector<1x14x14x128xbf16>
    tpu.vector_store %arg2[%c0_4, %c0_5, %c0_6, %c0_7], %8 {strides = array<i32>} : memref<1x14x14x128xbf16, #tpu.memory_space<vmem>>, vector<1x14x14x128xbf16>,
    return
  }
  func.func @transform_0(%arg0: i32) -> (i32, i32, i32, i32, i32) {
    %c0_i32 = arith.constant 0 : i32
    %c0_i32_0 = arith.constant 0 : i32
    %c0_i32_1 = arith.constant 0 : i32
    %c0_i32_2 = arith.constant 0 : i32
    %c0_i32_3 = arith.constant 0 : i32
    return %arg0, %c0_i32, %c0_i32_0, %c0_i32_1, %c0_i32_2 : i32, i32, i32, i32, i32
  }
  func.func @transform_1(%arg0: i32) -> (i32, i32, i32, i32) {
    %c0_i32 = arith.constant 0 : i32
    %c0_i32_0 = arith.constant 0 : i32
    %c0_i32_1 = arith.constant 0 : i32
    %c0_i32_2 = arith.constant 0 : i32
    return %arg0, %c0_i32, %c0_i32_0, %c0_i32_1 : i32, i32, i32, i32
  }
}

module attributes {stable_mosaic.version = 11 : i64} {
  func.func @_mm_bias_acc_kernel(%arg0: i32, %arg1: i32, %arg2: i32, %arg3: memref<8x3584xbf16, #tpu.memory_space<vmem>>, %arg4: memref<3584x512xbf16, #tpu.memory_space<vmem>>, %arg5: memref<1x512xf32, #tpu.memory_space<vmem>>, %arg6: memref<8x512xf32, #tpu.memory_space<vmem>>, %arg7: memref<8x512xf32, #tpu.memory_space<vmem>>) attributes {dimension_semantics = [#tpu.dimension_semantics<parallel>, #tpu.dimension_semantics<parallel>, #tpu.dimension_semantics<arbitrary>], iteration_bounds = array<i64: 1, 2, 7>, scalar_prefetch = 0 : i64, scratch_operands = 1 : i64, tpu.core_type = #tpu.core_type<tc>, window_params = [{transform_indices = @transform_0, window_bounds = array<i64: 8, 3584>}, {transform_indices = @transform_1, window_bounds = array<i64: 3584, 512>}, {transform_indices = @transform_2, window_bounds = array<i64: 1, 512>}, {transform_indices = @transform_3, window_bounds = array<i64: 8, 512>}]} {
    %c0_i32 = arith.constant 0 : i32
    %0 = arith.cmpi eq, %arg2, %c0_i32 : i32
    %1 = arith.extui %0 : i1 to i32
    %c0_i32_0 = arith.constant 0 : i32
    %2 = arith.cmpi ne, %1, %c0_i32_0 : i32
    scf.if %2 {
      %cst_9 = arith.constant 0.000000e+00 : f32
      %12 = vector.broadcast %cst_9 : f32 to vector<8x512xf32>
      %c0_10 = arith.constant 0 : index
      %c0_11 = arith.constant 0 : index
      %13 = vector.load %arg7[%c0_10, %c0_11] : memref<8x512xf32, #tpu.memory_space<vmem>>, vector<8x512xf32>
      tpu.vector_store %arg7[%c0_10, %c0_11], %12 {strides = array<i32>} : memref<8x512xf32, #tpu.memory_space<vmem>>, vector<8x512xf32>,
    } else {
    }
    %c0 = arith.constant 0 : index
    %c0_1 = arith.constant 0 : index
    %3 = vector.load %arg7[%c0, %c0_1] : memref<8x512xf32, #tpu.memory_space<vmem>>, vector<8x512xf32>
    %c0_2 = arith.constant 0 : index
    %c0_3 = arith.constant 0 : index
    %4 = vector.load %arg3[%c0_2, %c0_3] : memref<8x3584xbf16, #tpu.memory_space<vmem>>, vector<8x3584xbf16>
    %c0_4 = arith.constant 0 : index
    %c0_5 = arith.constant 0 : index
    %5 = vector.load %arg4[%c0_4, %c0_5] : memref<3584x512xbf16, #tpu.memory_space<vmem>>, vector<3584x512xbf16>
    %cst = arith.constant dense<0.000000e+00> : vector<8x512xf32>
    %6 = tpu.matmul %4, %5, %cst {dimension_numbers = #tpu.dot_dimension_numbers<[1], [0], [0], [1], [0, 0, 1, 1], [], []>} : vector<8x3584xbf16>, vector<3584x512xbf16>, vector<8x512xf32> -> vector<8x512xf32>
    %7 = arith.addf %3, %6 : vector<8x512xf32>
    %c0_6 = arith.constant 0 : index
    %c0_7 = arith.constant 0 : index
    %8 = vector.load %arg7[%c0_6, %c0_7] : memref<8x512xf32, #tpu.memory_space<vmem>>, vector<8x512xf32>
    tpu.vector_store %arg7[%c0_6, %c0_7], %7 {strides = array<i32>} : memref<8x512xf32, #tpu.memory_space<vmem>>, vector<8x512xf32>,
    %c6_i32 = arith.constant 6 : i32
    %9 = arith.cmpi eq, %arg2, %c6_i32 : i32
    %10 = arith.extui %9 : i1 to i32
    %c0_i32_8 = arith.constant 0 : i32
    %11 = arith.cmpi ne, %10, %c0_i32_8 : i32
    scf.if %11 {
      %c0_9 = arith.constant 0 : index
      %c0_10 = arith.constant 0 : index
      %12 = vector.load %arg7[%c0_9, %c0_10] : memref<8x512xf32, #tpu.memory_space<vmem>>, vector<8x512xf32>
      %c0_11 = arith.constant 0 : index
      %c0_12 = arith.constant 0 : index
      %13 = vector.load %arg5[%c0_11, %c0_12] : memref<1x512xf32, #tpu.memory_space<vmem>>, vector<1x512xf32>
      %14 = vector.broadcast %13 : vector<1x512xf32> to vector<8x512xf32>
      %15 = arith.addf %12, %14 : vector<8x512xf32>
      %cst_13 = arith.constant 0.000000e+00 : f32
      %16 = vector.broadcast %cst_13 : f32 to vector<8x512xf32>
      %17 = arith.maximumf %15, %16 : vector<8x512xf32>
      %c0_14 = arith.constant 0 : index
      %c0_15 = arith.constant 0 : index
      %18 = vector.load %arg6[%c0_14, %c0_15] : memref<8x512xf32, #tpu.memory_space<vmem>>, vector<8x512xf32>
      tpu.vector_store %arg6[%c0_14, %c0_15], %17 {strides = array<i32>} : memref<8x512xf32, #tpu.memory_space<vmem>>, vector<8x512xf32>,
    } else {
    }
    return
  }
  func.func @transform_0(%arg0: i32, %arg1: i32, %arg2: i32) -> (i32, i32) {
    %c0_i32 = arith.constant 0 : i32
    return %arg0, %arg2 : i32, i32
  }
  func.func @transform_1(%arg0: i32, %arg1: i32, %arg2: i32) -> (i32, i32) {
    %c0_i32 = arith.constant 0 : i32
    return %arg2, %arg1 : i32, i32
  }
  func.func @transform_2(%arg0: i32, %arg1: i32, %arg2: i32) -> (i32, i32) {
    %c0_i32 = arith.constant 0 : i32
    %c0_i32_0 = arith.constant 0 : i32
    return %c0_i32, %arg1 : i32, i32
  }
  func.func @transform_3(%arg0: i32, %arg1: i32, %arg2: i32) -> (i32, i32) {
    %c0_i32 = arith.constant 0 : i32
    return %arg0, %arg1 : i32, i32
  }
}

module attributes {stable_mosaic.version = 11 : i64} {
  func.func @_mm_bias_kernel(%arg0: i32, %arg1: i32, %arg2: memref<8x1024xf32, #tpu.memory_space<vmem>>, %arg3: memref<1024x128xf32, #tpu.memory_space<vmem>>, %arg4: memref<1x128xf32, #tpu.memory_space<vmem>>, %arg5: memref<8x128xf32, #tpu.memory_space<vmem>>) attributes {dimension_semantics = [#tpu.dimension_semantics<parallel>, #tpu.dimension_semantics<parallel>], iteration_bounds = array<i64: 1, 1>, scalar_prefetch = 0 : i64, scratch_operands = 0 : i64, tpu.core_type = #tpu.core_type<tc>, window_params = [{transform_indices = @transform_0, window_bounds = array<i64: 8, 1024>}, {transform_indices = @transform_1, window_bounds = array<i64: 1024, 128>}, {transform_indices = @transform_2, window_bounds = array<i64: 1, 128>}, {transform_indices = @transform_3, window_bounds = array<i64: 8, 128>}]} {
    %c0 = arith.constant 0 : index
    %c0_0 = arith.constant 0 : index
    %0 = vector.load %arg2[%c0, %c0_0] : memref<8x1024xf32, #tpu.memory_space<vmem>>, vector<8x1024xf32>
    %c0_1 = arith.constant 0 : index
    %c0_2 = arith.constant 0 : index
    %1 = vector.load %arg3[%c0_1, %c0_2] : memref<1024x128xf32, #tpu.memory_space<vmem>>, vector<1024x128xf32>
    %cst = arith.constant dense<0.000000e+00> : vector<8x128xf32>
    %2 = tpu.matmul %0, %1, %cst {dimension_numbers = #tpu.dot_dimension_numbers<[1], [0], [0], [1], [0, 0, 1, 1], [], []>} : vector<8x1024xf32>, vector<1024x128xf32>, vector<8x128xf32> -> vector<8x128xf32>
    %c0_3 = arith.constant 0 : index
    %c0_4 = arith.constant 0 : index
    %3 = vector.load %arg4[%c0_3, %c0_4] : memref<1x128xf32, #tpu.memory_space<vmem>>, vector<1x128xf32>
    %4 = vector.broadcast %3 : vector<1x128xf32> to vector<8x128xf32>
    %5 = arith.addf %2, %4 : vector<8x128xf32>
    %c0_5 = arith.constant 0 : index
    %c0_6 = arith.constant 0 : index
    %6 = vector.load %arg5[%c0_5, %c0_6] : memref<8x128xf32, #tpu.memory_space<vmem>>, vector<8x128xf32>
    tpu.vector_store %arg5[%c0_5, %c0_6], %5 {strides = array<i32>} : memref<8x128xf32, #tpu.memory_space<vmem>>, vector<8x128xf32>,
    return
  }
  func.func @transform_0(%arg0: i32, %arg1: i32) -> (i32, i32) {
    %c0_i32 = arith.constant 0 : i32
    %c0_i32_0 = arith.constant 0 : i32
    return %arg0, %c0_i32 : i32, i32
  }
  func.func @transform_1(%arg0: i32, %arg1: i32) -> (i32, i32) {
    %c0_i32 = arith.constant 0 : i32
    %c0_i32_0 = arith.constant 0 : i32
    return %c0_i32, %arg1 : i32, i32
  }
  func.func @transform_2(%arg0: i32, %arg1: i32) -> (i32, i32) {
    %c0_i32 = arith.constant 0 : i32
    %c0_i32_0 = arith.constant 0 : i32
    return %c0_i32, %arg1 : i32, i32
  }
  func.func @transform_3(%arg0: i32, %arg1: i32) -> (i32, i32) {
    %c0_i32 = arith.constant 0 : i32
    return %arg0, %arg1 : i32, i32
  }
}

</mosaic_0001>

<llo_original>
// kernel: simplenet_forward.5
$region0: #{simplenet_forward.5}
  #allocation0 [shape = 'u32[]', space=smem, size = 0x4, offset = 0x4, fixed_abs, tag = 'smem constant byte address 0x4 - core index']
  #allocation1 [shape = 'u32[144,128]{1,0:T(1,128)}', space=vmem, size = 0x12000, scoped, tag = 'internal scratch']
  %s0 = inlined_call_operand.vmem [shape: f32[1568,9], index: 0, kind: input, shape index: {}]
  %s1 = inlined_call_operand.hbm [shape: f32[9,128], index: 1, kind: input, shape index: {}]
  %s2 = inlined_call_operand.hbm [shape: f32[1,128], index: 2, kind: input, shape index: {}]
  %s3 = inlined_call_operand.vmem [shape: bf16[1568,128], index: 3, kind: output, shape index: {}]
  %s4 = sld [smem:[#allocation0]]
  $region53: #{simplenet_forward.5} parent=0
    _
  %s6 = ssub.s32 1, %s4
  %s7 = scalar_select 0, %s6, %s4
  $region1: #{simplenet_forward.5} parent=0
    #allocation2 [shape = 'u8[8192]{0}', space=vmem, size = 0x2000, scoped, tag = 'input window, operand 1, single buffered']
    #allocation3 [shape = 's32[2]{0}', space=sflag, size = 0x8, scoped, tag = 'scoped memory for simplenet_forward.5']
    #allocation4 [shape = 'u8[512]{0}', space=vmem, size = 0x400, scoped, tag = 'input window, operand 2, single buffered']
    #allocation5 [shape = 's32[1]{0}', space=sflag, size = 0x4, scoped, tag = 'scoped memory for simplenet_forward.5']
    %8 = vsyncpa [#allocation3], 0
    %9 = vsyncpa [#allocation5], 0
    loop: start=0, step=1, limit=9
    $region2: #{simplenet_forward.5} parent=1 // loop_pre_header
      _
    $region3: #{simplenet_forward.5} parent=1 // loop_header
      %s11 = sphi 0, %s15
      %p12 = scmp.ge.s32.totalorder %s11, 9
      %s18 = sphi 0, %s30
      %s19 = sphi 0, %s26
      %s20 = sphi 0, %s18
      %s21 = sphi 0, %s19
      %s22 = sphi 0, %s20
      %s23 = sphi 0, %s21
      %s33 = sphi 0, %s35
      %s36 = sphi 0, %s33
      %s37 = sphi 0, %s36
      %s53 = sphi 0, %s37
      %s59 = sphi 0, %s61
      %s62 = sphi 0, %s59
      %s63 = sphi 0, %s62
      %s79 = sphi 0, %s63
      %s85 = sphi 0, %s87
      %s88 = sphi 0, %s85
      %s89 = sphi 0, %s88
      %s105 = sphi 0, %s89
      %s113 = sphi 0, %s115
      %s116 = sphi 0, %s113
      %s117 = sphi 0, %s116
      %s133 = sphi 0, %s117
    $region4: #{simplenet_forward.5} parent=1 // loop_header_branch
      %14 = sbr.rel (%p12) target = $region8
    $region5: #{simplenet_forward.5} parent=1 // loop_body
      %s16 = ssub.s32 %s11, 1
      %s17 = ssub.s32 %s11, 2
      %s24 = sadd.s32 1, %s19
      %p25 = scmp.ge.s32.totalorder %s24, 1
      %s26 = scalar_select %p25, 0, %s24
      %s27 = sadd.s32 1, %s18
      %s28 = scalar_select %p25, %s27, %s18
      %p29 = scmp.ge.s32.totalorder %s28, 7
      %s30 = scalar_select %p29, 0, %s28
      %s31 = ssub.s32 %s18, %s30
      %p32 = scmp.eq.s32.totalorder %s31, 0
      %s34 = sadd.s32 %s33, 1
      %s35 = scalar_select %p32, %s33, %s34
      %p38 = pneg %p32
      %p39 = scmp.eq.s32.totalorder %s11, 6
      %p40 = por %p38, %p39
      %p41 = scmp.ne.s32.totalorder %s33, %s36
      %p42 = scmp.eq.s32.totalorder %s11, 0
      %p43 = por %p41, %p42
      %p44 = scmp.ne.s32.totalorder %s33, %s36
      %p45 = scmp.eq.s32.totalorder %s16, 6
      %p46 = por %p44, %p45
      %p47 = scmp.ne.s32.totalorder %s36, %s37
      %p48 = scmp.eq.s32.totalorder %s16, 0
      %p49 = por %p47, %p48
      %p50 = scmp.ne.s32.totalorder %s36, %s37
      %p51 = scmp.eq.s32.totalorder %s17, 6
      %p52 = por %p50, %p51
      %p54 = scmp.ne.s32.totalorder %s37, %s53
      %p55 = scmp.eq.s32.totalorder %s17, 0
      %p56 = por %p54, %p55
      %s57 = ssub.s32 %s19, %s26
      %p58 = scmp.eq.s32.totalorder %s57, 0
      %s60 = sadd.s32 %s59, 1
      %s61 = scalar_select %p58, %s59, %s60
      %p64 = pneg %p58
      %p65 = scmp.eq.s32.totalorder %s11, 6
      %p66 = por %p64, %p65
      %p67 = scmp.ne.s32.totalorder %s59, %s62
      %p68 = scmp.eq.s32.totalorder %s11, 0
      %p69 = por %p67, %p68
      %p70 = scmp.ne.s32.totalorder %s59, %s62
      %p71 = scmp.eq.s32.totalorder %s16, 6
      %p72 = por %p70, %p71
      %p73 = scmp.ne.s32.totalorder %s62, %s63
      %p74 = scmp.eq.s32.totalorder %s16, 0
      %p75 = por %p73, %p74
      %p76 = scmp.ne.s32.totalorder %s62, %s63
      %p77 = scmp.eq.s32.totalorder %s17, 6
      %p78 = por %p76, %p77
      %p80 = scmp.ne.s32.totalorder %s63, %s79
      %p81 = scmp.eq.s32.totalorder %s17, 0
      %p82 = por %p80, %p81
      %s83 = ssub.s32 %s19, %s26
      %p84 = scmp.eq.s32.totalorder %s83, 0
      %s86 = sadd.s32 %s85, 1
      %s87 = scalar_select %p84, %s85, %s86
      %p90 = pneg %p84
      %p91 = scmp.eq.s32.totalorder %s11, 6
      %p92 = por %p90, %p91
      %p93 = scmp.ne.s32.totalorder %s85, %s88
      %p94 = scmp.eq.s32.totalorder %s11, 0
      %p95 = por %p93, %p94
      %p96 = scmp.ne.s32.totalorder %s85, %s88
      %p97 = scmp.eq.s32.totalorder %s16, 6
      %p98 = por %p96, %p97
      %p99 = scmp.ne.s32.totalorder %s88, %s89
      %p100 = scmp.eq.s32.totalorder %s16, 0
      %p101 = por %p99, %p100
      %p102 = scmp.ne.s32.totalorder %s88, %s89
      %p103 = scmp.eq.s32.totalorder %s17, 6
      %p104 = por %p102, %p103
      %p106 = scmp.ne.s32.totalorder %s89, %s105
      %p107 = scmp.eq.s32.totalorder %s17, 0
      %p108 = por %p106, %p107
      %s109 = ssub.s32 %s18, %s30
      %s110 = ssub.s32 %s19, %s26
      %s111 = sor.u32 %s109, %s110
      %p112 = scmp.eq.s32.totalorder %s111, 0
      %s114 = sadd.s32 %s113, 1
      %s115 = scalar_select %p112, %s113, %s114
      %p118 = pneg %p112
      %p119 = scmp.eq.s32.totalorder %s11, 6
      %p120 = por %p118, %p119
      %p121 = scmp.ne.s32.totalorder %s113, %s116
      %p122 = scmp.eq.s32.totalorder %s11, 0
      %p123 = por %p121, %p122
      %p124 = scmp.ne.s32.totalorder %s113, %s116
      %p125 = scmp.eq.s32.totalorder %s16, 6
      %p126 = por %p124, %p125
      %p127 = scmp.ne.s32.totalorder %s116, %s117
      %p128 = scmp.eq.s32.totalorder %s16, 0
      %p129 = por %p127, %p128
      %p130 = scmp.ne.s32.totalorder %s116, %s117
      %p131 = scmp.eq.s32.totalorder %s17, 6
      %p132 = por %p130, %p131
      %p134 = scmp.ne.s32.totalorder %s117, %s133
      %p135 = scmp.eq.s32.totalorder %s17, 0
      %p136 = por %p134, %p135
      %p137 = scmp.le.s32.totalorder 1, %s11
      %p138 = scmp.lt.s32.totalorder %s11, 8
      %p139 = pnand %p137, %p138
      %p140 = pneg %p139
      // Predicated region
      $region9: #{simplenet_forward.5} parent=5 // pred_check
        _
      $region10: #{simplenet_forward.5} parent=5 // pred_check_branch
        %142 = sbr.rel (%p139) target = $region12
      $region11: #{simplenet_forward.5} parent=5 // pred_region
        %s143 = ssub.s32 %s11, 1
        // Predicated region
        $region13: #{simplenet_forward.5} parent=11 // pred_check
          %p144 = pneg %p75
        $region14: #{simplenet_forward.5} parent=11 // pred_check_branch
          %146 = sbr.rel (%p144) target = $region16
        $region15: #{simplenet_forward.5} parent=11 // pred_region
          %s148 = ssub.s32 256, 256
          %149 = vsyncadd [#allocation3], %s148
          %s150 = smul.addr %s21, 128
          %s151 = scalar_lea.hbm %s1, %s150
          %s152 = sshll.u32 [#allocation2], 4
          %s153 = int_to_ptr.vmem [resolvable:$true] %s152
          %158 = dma.hbm_to_vmem [thread:$0]  %s151, 256, %s153, [#allocation3], 128, 128, 8
        $region16: #{simplenet_forward.5} parent=11 // pred_fallthru
          _
        // Predicated region
        $region17: #{simplenet_forward.5} parent=11 // pred_check
          %p159 = pneg %p101
        $region18: #{simplenet_forward.5} parent=11 // pred_check_branch
          %161 = sbr.rel (%p159) target = $region20
        $region19: #{simplenet_forward.5} parent=11 // pred_region
          %s163 = ssub.s32 16, 16
          %164 = vsyncadd [#allocation5], %s163
          %s165 = smul.addr %s21, 16
          %s166 = scalar_lea.hbm %s2, %s165
          %s168 = sshll.u32 [#allocation4], 4
          %s169 = int_to_ptr.vmem [resolvable:$true] %s168
          %171 = dma.hbm_to_vmem [thread:$0]  %s166, 16, %s169, [#allocation5]
        $region20: #{simplenet_forward.5} parent=11 // pred_fallthru
          _
      $region12: #{simplenet_forward.5} parent=5 // pred_fallthru
        _
      %p172 = scmp.lt.s32.totalorder %s11, 7
      // Predicated region
      $region21: #{simplenet_forward.5} parent=5 // pred_check
        %p173 = pneg %p172
      $region22: #{simplenet_forward.5} parent=5 // pred_check_branch
        %175 = sbr.rel (%p173) target = $region24
      $region23: #{simplenet_forward.5} parent=5 // pred_region
        // Predicated region
        $region25: #{simplenet_forward.5} parent=23 // pred_check
          %p176 = pneg %p43
        $region26: #{simplenet_forward.5} parent=23 // pred_check_branch
          %178 = sbr.rel (%p176) target = $region28
        $region27: #{simplenet_forward.5} parent=23 // pred_region
          %s179 = smul.u32 28, %s18
          %p180 = scmp.lt.s32.totalorder %s179, 195
          %s181 = scalar_select %p180, %s179, 195
          %s182 = smul.addr %s181, 8
          %s183 = scalar_lea.vmem %s0, %s182
          %s184 = smul.u32 28, %s18
        $region28: #{simplenet_forward.5} parent=23 // pred_fallthru
          _
      $region24: #{simplenet_forward.5} parent=5 // pred_fallthru
        _
      %p185 = scmp.le.s32.totalorder 1, %s11
      %p186 = scmp.lt.s32.totalorder %s11, 8
      %p187 = pnand %p185, %p186
      %p188 = pneg %p187
      // Predicated region
      $region29: #{simplenet_forward.5} parent=5 // pred_check
        _
      $region30: #{simplenet_forward.5} parent=5 // pred_check_branch
        %190 = sbr.rel (%p187) target = $region32
      $region31: #{simplenet_forward.5} parent=5 // pred_region
        %s191 = ssub.s32 %s11, 1
        // Predicated region
        $region33: #{simplenet_forward.5} parent=31 // pred_check
          %p192 = pneg %p75
        $region34: #{simplenet_forward.5} parent=31 // pred_check_branch
          %194 = sbr.rel (%p192) target = $region36
        $region35: #{simplenet_forward.5} parent=31 // pred_region
          %195 = dma.done [#allocation3], 256
        $region36: #{simplenet_forward.5} parent=31 // pred_fallthru
          _
        // Predicated region
        $region37: #{simplenet_forward.5} parent=31 // pred_check
          %p196 = pneg %p101
        $region38: #{simplenet_forward.5} parent=31 // pred_check_branch
          %198 = sbr.rel (%p196) target = $region40
        $region39: #{simplenet_forward.5} parent=31 // pred_region
          %199 = dma.done [#allocation5], 16
        $region40: #{simplenet_forward.5} parent=31 // pred_fallthru
          _
        %s200 = smul.u32 28, %s20
        %p201 = scmp.lt.s32.totalorder %s200, 195
        %s202 = scalar_select %p201, %s200, 195
        %s203 = smul.addr %s202, 8
        %s204 = scalar_lea.vmem %s0, %s203
        %p205 = pneg %p49
        %p206 = pneg %p46
        %p207 = pneg %p75
        %p208 = pneg %p72
        %p209 = pneg %p101
        %p210 = pneg %p98
        %p211 = pneg %p129
        %p212 = pneg %p126
        %s213 = smul.u32 28, %s20
        %p214 = scmp.lt.s32.totalorder %s213, 195
        %s215 = scalar_select %p214, %s213, 195
        %p216 = scmp.lt.s32.totalorder %s21, 0
        %s217 = scalar_select %p216, %s21, 0
        %s218 = sadd.s32 %s217, %s215
        %s219 = smul.addr %s218, 4
        %s220 = scalar_lea.vmem %s3, %s219
        %s221 = smul.u32 28, %s20
        %p222 = scmp.lt.s32.totalorder %s221, 195
        %s223 = scalar_select %p222, %s221, 195
        %s224 = smul.addr %s223, 8
        %s225 = scalar_lea.vmem %s0, %s224
        %s226 = smul.u32 28, %s20
        %s227 = smul.u32 28, %s20
        %p228 = scmp.lt.s32.totalorder %s227, 195
        %s229 = scalar_select %p228, %s227, 195
        %p230 = scmp.lt.s32.totalorder %s21, 0
        %s231 = scalar_select %p230, %s21, 0
        %s232 = sadd.s32 %s231, %s229
        %s233 = smul.addr %s232, 4
        %s234 = scalar_lea.vmem %s3, %s233
        %s235 = smul.u32 28, %s20
        %v236 = vld [vmem:[%s225] sm:$0xff]
        %v237 = vld [vmem:[%s225 + $0x8] sm:$0xff]
        %v238 = vld [vmem:[%s225 + $0x10] sm:$0xff]
        %v239 = vld [vmem:[%s225 + $0x18] sm:$0xff]
        %v240 = vld [vmem:[%s225 + $0x20] sm:$0xff]
        %v241 = vld [vmem:[%s225 + $0x28] sm:$0xff]
        %v242 = vld [vmem:[%s225 + $0x30] sm:$0xff]
        %v243 = vld [vmem:[%s225 + $0x38] sm:$0xff]
        %v244 = vld [vmem:[%s225 + $0x40] sm:$0xff]
        %v245 = vld [vmem:[%s225 + $0x48] sm:$0xff]
        %v246 = vld [vmem:[%s225 + $0x50] sm:$0xff]
        %v247 = vld [vmem:[%s225 + $0x58] sm:$0xff]
        %v248 = vld [vmem:[%s225 + $0x60] sm:$0xff]
        %v249 = vld [vmem:[%s225 + $0x68] sm:$0xff]
        %v250 = vld [vmem:[%s225 + $0x70] sm:$0xff]
        %v251 = vld [vmem:[%s225 + $0x78] sm:$0xff]
        %v252 = vld [vmem:[%s225 + $0x80] sm:$0xff]
        %v253 = vld [vmem:[%s225 + $0x88] sm:$0xff]
        %v254 = vld [vmem:[%s225 + $0x90] sm:$0xff]
        %v255 = vld [vmem:[%s225 + $0x98] sm:$0xff]
        %v256 = vld [vmem:[%s225 + $0xa0] sm:$0xff]
        %v257 = vld [vmem:[%s225 + $0xa8] sm:$0xff]
        %v258 = vld [vmem:[%s225 + $0xb0] sm:$0xff]
        %v259 = vld [vmem:[%s225 + $0xb8] sm:$0xff]
        %v260 = vld [vmem:[%s225 + $0xc0] sm:$0xff]
        %v261 = vld [vmem:[%s225 + $0xc8] sm:$0xff]
        %v262 = vld [vmem:[%s225 + $0xd0] sm:$0xff]
        %v263 = vld [vmem:[%s225 + $0xd8] sm:$0xff]
        %v264 = vld [vmem:[#allocation2] sm:$0xff]
        %v265 = vld [vmem:[#allocation2 + $0x8] sm:$0x1]
        %v266 = vld [vmem:[#allocation4] sm:$0x1]
        %v268 = vlaneseq
        %v269 = vshrl.u32 %v268, 7
        %v270 = vsub.s32 0, %v269
        %v271 = vrot.slane %v266, %v270
        %vm273 = vcmask 72704
        %v275 = vsel %vm273, %v236, 0
        %v278 = vsel %vm273, %v237, 0
        %v281 = vsel %vm273, %v238, 0
        %v284 = vsel %vm273, %v239, 0
        %v287 = vsel %vm273, %v240, 0
        %v290 = vsel %vm273, %v241, 0
        %v293 = vsel %vm273, %v242, 0
        %v296 = vsel %vm273, %v243, 0
        %v299 = vsel %vm273, %v244, 0
        %v302 = vsel %vm273, %v245, 0
        %v305 = vsel %vm273, %v246, 0
        %v308 = vsel %vm273, %v247, 0
        %v311 = vsel %vm273, %v248, 0
        %v314 = vsel %vm273, %v249, 0
        %v317 = vsel %vm273, %v250, 0
        %v320 = vsel %vm273, %v251, 0
        %v323 = vsel %vm273, %v252, 0
        %v326 = vsel %vm273, %v253, 0
        %v329 = vsel %vm273, %v254, 0
        %v332 = vsel %vm273, %v255, 0
        %v335 = vsel %vm273, %v256, 0
        %v338 = vsel %vm273, %v257, 0
        %v341 = vsel %vm273, %v258, 0
        %v344 = vsel %vm273, %v259, 0
        %v347 = vsel %vm273, %v260, 0
        %v350 = vsel %vm273, %v261, 0
        %v353 = vsel %vm273, %v262, 0
        %v356 = vsel %vm273, %v263, 0
        %vm358 = vcmask 1040384
        %v360 = vsel %vm358, %v265, 0
        %362 = vmatprep.subr.mxu0 0.0
        %363 = vmatpush1.msra.mxu0 0.0
        %364 = vmatprep.subr.mxu0 0.0
        %365 = vmatpush1.msra.mxu0 0.0
        %366 = vmatprep.subr.mxu0 0.0
        %367 = vmatpush1.msra.mxu0 0.0
        %368 = vmatprep.subr.mxu0 0.0
        %369 = vmatpush1.msra.mxu0 0.0
        %370 = vmatprep.subr.mxu0 0.0
        %371 = vmatpush1.msra.mxu0 0.0
        %372 = vmatprep.subr.mxu0 0.0
        %373 = vmatpush1.msra.mxu0 0.0
        %374 = vmatprep.subr.mxu0 0.0
        %375 = vmatpush1.msra.mxu0 0.0
        %376 = vmatprep.subr.mxu0 0.0
        %377 = vmatpush1.msra.mxu0 0.0
        %378 = vmatprep.subr.mxu0 0.0
        %379 = vmatpush1.msra.mxu0 0.0
        %380 = vmatprep.subr.mxu0 0.0
        %381 = vmatpush1.msra.mxu0 0.0
        %382 = vmatprep.subr.mxu0 0.0
        %383 = vmatpush1.msra.mxu0 0.0
        %384 = vmatprep.subr.mxu0 0.0
        %385 = vmatpush1.msra.mxu0 0.0
        %386 = vmatprep.subr.mxu0 0.0
        %387 = vmatpush1.msra.mxu0 0.0
        %388 = vmatprep.subr.mxu0 0.0
        %389 = vmatpush1.msra.mxu0 0.0
        %390 = vmatprep.subr.mxu0 0.0
        %391 = vmatpush1.msra.mxu0 %v360
        %392 = vmatprep.subr.mxu0 0.0
        %393 = vmatpush1.msra.mxu0 %v264
        %394 = vmatprep.subr.mxu0 0.0
        %395 = vmatpush2.msra.mxu0 0.0
        %396 = vmatprep.subr.mxu0 0.0
        %397 = vmatpush2.msra.mxu0 0.0
        %398 = vmatprep.subr.mxu0 0.0
        %399 = vmatpush2.msra.mxu0 0.0
        %400 = vmatprep.subr.mxu0 0.0
        %401 = vmatpush2.msra.mxu0 0.0
        %402 = vmatprep.subr.mxu0 0.0
        %403 = vmatpush2.msra.mxu0 0.0
        %404 = vmatprep.subr.mxu0 0.0
        %405 = vmatpush2.msra.mxu0 0.0
        %406 = vmatprep.subr.mxu0 0.0
        %407 = vmatpush2.msra.mxu0 0.0
        %408 = vmatprep.subr.mxu0 0.0
        %409 = vmatpush2.msra.mxu0 0.0
        %410 = vmatprep.subr.mxu0 0.0
        %411 = vmatpush2.msra.mxu0 0.0
        %412 = vmatprep.subr.mxu0 0.0
        %413 = vmatpush2.msra.mxu0 0.0
        %414 = vmatprep.subr.mxu0 0.0
        %415 = vmatpush2.msra.mxu0 0.0
        %416 = vmatprep.subr.mxu0 0.0
        %417 = vmatpush2.msra.mxu0 0.0
        %418 = vmatprep.subr.mxu0 0.0
        %419 = vmatpush2.msra.mxu0 0.0
        %420 = vmatprep.subr.mxu0 0.0
        %421 = vmatpush2.msra.mxu0 0.0
        %422 = vmatprep.subr.mxu0 0.0
        %423 = vmatpush2.msra.mxu0 0.0
        %424 = vmatprep.subr.mxu0 0.0
        %425 = vmatpush2.msra.mxu0 0.0
        %426 = vmatprep.mubr.f32.mxu0 0.0
        %427 = vmatmul.mubr.f32.gmra.mxu0 %v275
        %v428 = vpop.f32.mrf.mxu0
        %v429 = vadd.f32 %v271, %v428
        %v430 = vpop.f32.mrf.mxu0
        %431 = vmatprep.mubr.f32.mxu0 0.0
        %432 = vmatmul.mubr.f32.gmra.mxu0 %v278
        %v433 = vpop.f32.mrf.mxu0
        %v434 = vadd.f32 %v271, %v433
        %v435 = vpop.f32.mrf.mxu0
        %436 = vmatprep.mubr.f32.mxu0 0.0
        %437 = vmatmul.mubr.f32.gmra.mxu0 %v281
        %v438 = vpop.f32.mrf.mxu0
        %v439 = vadd.f32 %v271, %v438
        %v440 = vpop.f32.mrf.mxu0
        %441 = vmatprep.mubr.f32.mxu0 0.0
        %442 = vmatmul.mubr.f32.gmra.mxu0 %v284
        %v443 = vpop.f32.mrf.mxu0
        %v444 = vadd.f32 %v271, %v443
        %v445 = vpop.f32.mrf.mxu0
        %446 = vmatprep.mubr.f32.mxu0 0.0
        %447 = vmatmul.mubr.f32.gmra.mxu0 %v287
        %v448 = vpop.f32.mrf.mxu0
        %v449 = vadd.f32 %v271, %v448
        %v450 = vpop.f32.mrf.mxu0
        %451 = vmatprep.mubr.f32.mxu0 0.0
        %452 = vmatmul.mubr.f32.gmra.mxu0 %v290
        %v453 = vpop.f32.mrf.mxu0
        %v454 = vadd.f32 %v271, %v453
        %v455 = vpop.f32.mrf.mxu0
        %456 = vmatprep.mubr.f32.mxu0 0.0
        %457 = vmatmul.mubr.f32.gmra.mxu0 %v293
        %v458 = vpop.f32.mrf.mxu0
        %v459 = vadd.f32 %v271, %v458
        %v460 = vpop.f32.mrf.mxu0
        %461 = vmatprep.mubr.f32.mxu0 0.0
        %462 = vmatmul.mubr.f32.gmra.mxu0 %v296
        %v463 = vpop.f32.mrf.mxu0
        %v464 = vadd.f32 %v271, %v463
        %v465 = vpop.f32.mrf.mxu0
        %466 = vmatprep.mubr.f32.mxu0 0.0
        %467 = vmatmul.mubr.f32.gmra.mxu0 %v299
        %v468 = vpop.f32.mrf.mxu0
        %v469 = vadd.f32 %v271, %v468
        %v470 = vpop.f32.mrf.mxu0
        %471 = vmatprep.mubr.f32.mxu0 0.0
        %472 = vmatmul.mubr.f32.gmra.mxu0 %v302
        %v473 = vpop.f32.mrf.mxu0
        %v474 = vadd.f32 %v271, %v473
        %v475 = vpop.f32.mrf.mxu0
        %476 = vmatprep.mubr.f32.mxu0 0.0
        %477 = vmatmul.mubr.f32.gmra.mxu0 %v305
        %v478 = vpop.f32.mrf.mxu0
        %v479 = vadd.f32 %v271, %v478
        %v480 = vpop.f32.mrf.mxu0
        %481 = vmatprep.mubr.f32.mxu0 0.0
        %482 = vmatmul.mubr.f32.gmra.mxu0 %v308
        %v483 = vpop.f32.mrf.mxu0
        %v484 = vadd.f32 %v271, %v483
        %v485 = vpop.f32.mrf.mxu0
        %486 = vmatprep.mubr.f32.mxu0 0.0
        %487 = vmatmul.mubr.f32.gmra.mxu0 %v311
        %v488 = vpop.f32.mrf.mxu0
        %v489 = vadd.f32 %v271, %v488
        %v490 = vpop.f32.mrf.mxu0
        %491 = vmatprep.mubr.f32.mxu0 0.0
        %492 = vmatmul.mubr.f32.gmra.mxu0 %v314
        %v493 = vpop.f32.mrf.mxu0
        %v494 = vadd.f32 %v271, %v493
        %v495 = vpop.f32.mrf.mxu0
        %496 = vmatprep.mubr.f32.mxu0 0.0
        %497 = vmatmul.mubr.f32.gmra.mxu0 %v317
        %v498 = vpop.f32.mrf.mxu0
        %v499 = vadd.f32 %v271, %v498
        %v500 = vpop.f32.mrf.mxu0
        %501 = vmatprep.mubr.f32.mxu0 0.0
        %502 = vmatmul.mubr.f32.gmra.mxu0 %v320
        %v503 = vpop.f32.mrf.mxu0
        %v504 = vadd.f32 %v271, %v503
        %v505 = vpop.f32.mrf.mxu0
        %506 = vmatprep.mubr.f32.mxu0 0.0
        %507 = vmatmul.mubr.f32.gmra.mxu0 %v323
        %v508 = vpop.f32.mrf.mxu0
        %v509 = vadd.f32 %v271, %v508
        %v510 = vpop.f32.mrf.mxu0
        %511 = vmatprep.mubr.f32.mxu0 0.0
        %512 = vmatmul.mubr.f32.gmra.mxu0 %v326
        %v513 = vpop.f32.mrf.mxu0
        %v514 = vadd.f32 %v271, %v513
        %v515 = vpop.f32.mrf.mxu0
        %516 = vmatprep.mubr.f32.mxu0 0.0
        %517 = vmatmul.mubr.f32.gmra.mxu0 %v329
        %v518 = vpop.f32.mrf.mxu0
        %v519 = vadd.f32 %v271, %v518
        %v520 = vpop.f32.mrf.mxu0
        %521 = vmatprep.mubr.f32.mxu0 0.0
        %522 = vmatmul.mubr.f32.gmra.mxu0 %v332
        %v523 = vpop.f32.mrf.mxu0
        %v524 = vadd.f32 %v271, %v523
        %v525 = vpop.f32.mrf.mxu0
        %526 = vmatprep.mubr.f32.mxu0 0.0
        %527 = vmatmul.mubr.f32.gmra.mxu0 %v335
        %v528 = vpop.f32.mrf.mxu0
        %v529 = vadd.f32 %v271, %v528
        %v530 = vpop.f32.mrf.mxu0
        %531 = vmatprep.mubr.f32.mxu0 0.0
        %532 = vmatmul.mubr.f32.gmra.mxu0 %v338
        %v533 = vpop.f32.mrf.mxu0
        %v534 = vadd.f32 %v271, %v533
        %v535 = vpop.f32.mrf.mxu0
        %536 = vmatprep.mubr.f32.mxu0 0.0
        %537 = vmatmul.mubr.f32.gmra.mxu0 %v341
        %v538 = vpop.f32.mrf.mxu0
        %v539 = vadd.f32 %v271, %v538
        %v540 = vpop.f32.mrf.mxu0
        %541 = vmatprep.mubr.f32.mxu0 0.0
        %542 = vmatmul.mubr.f32.gmra.mxu0 %v344
        %v543 = vpop.f32.mrf.mxu0
        %v544 = vadd.f32 %v271, %v543
        %v545 = vpop.f32.mrf.mxu0
        %546 = vmatprep.mubr.f32.mxu0 0.0
        %547 = vmatmul.mubr.f32.gmra.mxu0 %v347
        %v548 = vpop.f32.mrf.mxu0
        %v549 = vadd.f32 %v271, %v548
        %v550 = vpop.f32.mrf.mxu0
        %551 = vmatprep.mubr.f32.mxu0 0.0
        %552 = vmatmul.mubr.f32.gmra.mxu0 %v350
        %v553 = vpop.f32.mrf.mxu0
        %v554 = vadd.f32 %v271, %v553
        %v555 = vpop.f32.mrf.mxu0
        %556 = vmatprep.mubr.f32.mxu0 0.0
        %557 = vmatmul.mubr.f32.gmra.mxu0 %v353
        %v558 = vpop.f32.mrf.mxu0
        %v559 = vadd.f32 %v271, %v558
        %v560 = vpop.f32.mrf.mxu0
        %561 = vmatprep.mubr.f32.mxu0 0.0
        %562 = vmatmul.mubr.f32.gmra.mxu0 %v356
        %v563 = vpop.f32.mrf.mxu0
        %v564 = vadd.f32 %v271, %v563
        %v565 = vpop.f32.mrf.mxu0
        %566 = vdwg.mxu0
        %v567 = vmax.f32 %v429, 0.0
        %v568 = vmax.f32 %v434, 0.0
        %v569 = vmax.f32 %v439, 0.0
        %v570 = vmax.f32 %v444, 0.0
        %v571 = vmax.f32 %v449, 0.0
        %v572 = vmax.f32 %v454, 0.0
        %v573 = vmax.f32 %v459, 0.0
        %v574 = vmax.f32 %v464, 0.0
        %v575 = vmax.f32 %v469, 0.0
        %v576 = vmax.f32 %v474, 0.0
        %v577 = vmax.f32 %v479, 0.0
        %v578 = vmax.f32 %v484, 0.0
        %v579 = vmax.f32 %v489, 0.0
        %v580 = vmax.f32 %v494, 0.0
        %v581 = vmax.f32 %v499, 0.0
        %v582 = vmax.f32 %v504, 0.0
        %v583 = vmax.f32 %v509, 0.0
        %v584 = vmax.f32 %v514, 0.0
        %v585 = vmax.f32 %v519, 0.0
        %v586 = vmax.f32 %v524, 0.0
        %v587 = vmax.f32 %v529, 0.0
        %v588 = vmax.f32 %v534, 0.0
        %v589 = vmax.f32 %v539, 0.0
        %v590 = vmax.f32 %v544, 0.0
        %v591 = vmax.f32 %v549, 0.0
        %v592 = vmax.f32 %v554, 0.0
        %v593 = vmax.f32 %v559, 0.0
        %v594 = vmax.f32 %v564, 0.0
        %v595 = vpack.c.bf16 %v568, %v567
        %v596 = vpack.c.bf16 %v570, %v569
        %v597 = vpack.c.bf16 %v572, %v571
        %v598 = vpack.c.bf16 %v574, %v573
        %v599 = vpack.c.bf16 %v576, %v575
        %v600 = vpack.c.bf16 %v578, %v577
        %v601 = vpack.c.bf16 %v580, %v579
        %v602 = vpack.c.bf16 %v582, %v581
        %v603 = vpack.c.bf16 %v584, %v583
        %v604 = vpack.c.bf16 %v586, %v585
        %v605 = vpack.c.bf16 %v588, %v587
        %v606 = vpack.c.bf16 %v590, %v589
        %v607 = vpack.c.bf16 %v592, %v591
        %v608 = vpack.c.bf16 %v594, %v593
        %v623 = vunpack.c.l.b16 %v595
        %v624 = vunpack.c.h.b16 %v595
        %v625 = vunpack.c.l.b16 %v596
        %v626 = vunpack.c.h.b16 %v596
        %v627 = vunpack.c.l.b16 %v597
        %v628 = vunpack.c.h.b16 %v597
        %v629 = vunpack.c.l.b16 %v598
        %v630 = vunpack.c.h.b16 %v598
        %v631 = vunpack.c.l.b16 %v599
        %v632 = vunpack.c.h.b16 %v599
        %v633 = vunpack.c.l.b16 %v600
        %v634 = vunpack.c.h.b16 %v600
        %v635 = vunpack.c.l.b16 %v601
        %v636 = vunpack.c.h.b16 %v601
        %v637 = vunpack.c.l.b16 %v602
        %v638 = vunpack.c.h.b16 %v602
        %v639 = vunpack.c.l.b16 %v603
        %v640 = vunpack.c.h.b16 %v603
        %v641 = vunpack.c.l.b16 %v604
        %v642 = vunpack.c.h.b16 %v604
        %v643 = vunpack.c.l.b16 %v605
        %v644 = vunpack.c.h.b16 %v605
        %v645 = vunpack.c.l.b16 %v606
        %v646 = vunpack.c.h.b16 %v606
        %v647 = vunpack.c.l.b16 %v607
        %v648 = vunpack.c.h.b16 %v607
        %v649 = vunpack.c.l.b16 %v608
        %v650 = vunpack.c.h.b16 %v608
        %v651 = vpack.c.b16 %v623, %v623
        %v652 = vpack.c.b16 %v624, %v624
        %v653 = vpack.c.b16 %v625, %v625
        %v654 = vpack.c.b16 %v626, %v626
        %v655 = vpack.c.b16 %v627, %v627
        %v656 = vpack.c.b16 %v628, %v628
        %v657 = vpack.c.b16 %v629, %v629
        %v658 = vpack.c.b16 %v630, %v630
        %v659 = vpack.c.b16 %v631, %v631
        %v660 = vpack.c.b16 %v632, %v632
        %v661 = vpack.c.b16 %v633, %v633
        %v662 = vpack.c.b16 %v634, %v634
        %v663 = vpack.c.b16 %v635, %v635
        %v664 = vpack.c.b16 %v636, %v636
        %v665 = vpack.c.b16 %v637, %v637
        %v666 = vpack.c.b16 %v638, %v638
        %v667 = vpack.c.b16 %v639, %v639
        %v668 = vpack.c.b16 %v640, %v640
        %v669 = vpack.c.b16 %v641, %v641
        %v670 = vpack.c.b16 %v642, %v642
        %v671 = vpack.c.b16 %v643, %v643
        %v672 = vpack.c.b16 %v644, %v644
        %v673 = vpack.c.b16 %v645, %v645
        %v674 = vpack.c.b16 %v646, %v646
        %v675 = vpack.c.b16 %v647, %v647
        %v676 = vpack.c.b16 %v648, %v648
        %v677 = vpack.c.b16 %v649, %v649
        %v678 = vpack.c.b16 %v650, %v650
        %707 = vst [vmem:[%s234] sm:$0xf] %v651
        %708 = vst [vmem:[%s234 + $0x4] sm:$0xf] %v652
        %709 = vst [vmem:[%s234 + $0x8] sm:$0xf] %v653
        %710 = vst [vmem:[%s234 + $0xc] sm:$0xf] %v654
        %711 = vst [vmem:[%s234 + $0x10] sm:$0xf] %v655
        %712 = vst [vmem:[%s234 + $0x14] sm:$0xf] %v656
        %713 = vst [vmem:[%s234 + $0x18] sm:$0xf] %v657
        %714 = vst [vmem:[%s234 + $0x1c] sm:$0xf] %v658
        %715 = vst [vmem:[%s234 + $0x20] sm:$0xf] %v659
        %716 = vst [vmem:[%s234 + $0x24] sm:$0xf] %v660
        %717 = vst [vmem:[%s234 + $0x28] sm:$0xf] %v661
        %718 = vst [vmem:[%s234 + $0x2c] sm:$0xf] %v662
        %719 = vst [vmem:[%s234 + $0x30] sm:$0xf] %v663
        %720 = vst [vmem:[%s234 + $0x34] sm:$0xf] %v664
        %721 = vst [vmem:[%s234 + $0x38] sm:$0xf] %v665
        %722 = vst [vmem:[%s234 + $0x3c] sm:$0xf] %v666
        %723 = vst [vmem:[%s234 + $0x40] sm:$0xf] %v667
        %724 = vst [vmem:[%s234 + $0x44] sm:$0xf] %v668
        %725 = vst [vmem:[%s234 + $0x48] sm:$0xf] %v669
        %726 = vst [vmem:[%s234 + $0x4c] sm:$0xf] %v670
        %727 = vst [vmem:[%s234 + $0x50] sm:$0xf] %v671
        %728 = vst [vmem:[%s234 + $0x54] sm:$0xf] %v672
        %729 = vst [vmem:[%s234 + $0x58] sm:$0xf] %v673
        %730 = vst [vmem:[%s234 + $0x5c] sm:$0xf] %v674
        %731 = vst [vmem:[%s234 + $0x60] sm:$0xf] %v675
        %732 = vst [vmem:[%s234 + $0x64] sm:$0xf] %v676
        %733 = vst [vmem:[%s234 + $0x68] sm:$0xf] %v677
        %734 = vst [vmem:[%s234 + $0x6c] sm:$0xf] %v678
        %s735 = smul.u32 28, %s20
        %p736 = scmp.lt.s32.totalorder %s735, 195
        %s737 = scalar_select %p736, %s735, 195
        %p738 = scmp.lt.s32.totalorder %s21, 0
        %s739 = scalar_select %p738, %s21, 0
        %s740 = sadd.s32 %s739, %s737
        %s741 = smul.addr %s740, 4
        %s742 = scalar_lea.vmem %s3, %s741
        // Predicated region
        $region41: #{simplenet_forward.5} parent=31 // pred_check
          %p743 = pneg %p126
        $region42: #{simplenet_forward.5} parent=31 // pred_check_branch
          %745 = sbr.rel (%p743) target = $region44
        $region43: #{simplenet_forward.5} parent=31 // pred_region
          %s746 = smul.u32 28, %s20
        $region44: #{simplenet_forward.5} parent=31 // pred_fallthru
          _
      $region32: #{simplenet_forward.5} parent=5 // pred_fallthru
        _
      %p747 = scmp.le.s32.totalorder 2, %s11
      // Predicated region
      $region45: #{simplenet_forward.5} parent=5 // pred_check
        %p748 = pneg %p747
      $region46: #{simplenet_forward.5} parent=5 // pred_check_branch
        %750 = sbr.rel (%p748) target = $region48
      $region47: #{simplenet_forward.5} parent=5 // pred_region
        %s751 = ssub.s32 %s11, 2
        // Predicated region
        $region49: #{simplenet_forward.5} parent=47 // pred_check
          %p752 = pneg %p132
        $region50: #{simplenet_forward.5} parent=47 // pred_check_branch
          %754 = sbr.rel (%p752) target = $region52
        $region51: #{simplenet_forward.5} parent=47 // pred_region
          %s755 = smul.u32 28, %s22
          %p756 = scmp.lt.s32.totalorder %s755, 195
          %s757 = scalar_select %p756, %s755, 195
          %p758 = scmp.lt.s32.totalorder %s23, 0
          %s759 = scalar_select %p758, %s23, 0
          %s760 = sadd.s32 %s759, %s757
          %s761 = smul.addr %s760, 4
          %s762 = scalar_lea.vmem %s3, %s761
        $region52: #{simplenet_forward.5} parent=47 // pred_fallthru
          _
      $region48: #{simplenet_forward.5} parent=5 // pred_fallthru
        _
    $region6: #{simplenet_forward.5} parent=1 // loop_footer
      %s15 = sadd.s32 1, %s11
    $region7: #{simplenet_forward.5} parent=1 // loop_footer_branch
      %10 = sbr.rel target = $region3
    $region8: #{simplenet_forward.5} parent=1 // loop_exit
      _
    %763 = vsyncpa [#allocation3], 1
    %s764 = scalar_lea.sflag [#allocation3], 1
    %765 = vsyncpa %s764, 1
    %766 = vsyncpa [#allocation5], 1

// kernel: simplenet_forward.6
$region0: #{simplenet_forward.6}
  #allocation0 [shape = 'u32[]', space=smem, size = 0x4, offset = 0x4, fixed_abs, tag = 'smem constant byte address 0x4 - core index']
  #allocation1 [shape = 'u32[144,128]{1,0:T(1,128)}', space=vmem, size = 0x12000, scoped, tag = 'internal scratch']
  %s0 = inlined_call_operand.vmem [shape: bf16[1568,1152], index: 0, kind: input, shape index: {}]
  %s1 = inlined_call_operand.vmem [shape: bf16[1152,128], index: 1, kind: input, shape index: {}]
  %s2 = inlined_call_operand.vmem [shape: f32[1,128], index: 2, kind: input, shape index: {}]
  %s3 = inlined_call_operand.vmem [shape: bf16[1568,128], index: 3, kind: output, shape index: {}]
  %s4 = sld [smem:[#allocation0]]
  $region45: #{simplenet_forward.6} parent=0
    _
  %s6 = ssub.s32 1, %s4
  %s7 = scalar_select 0, %s6, %s4
  loop: start=0, step=1, limit=9
  $region2: #{simplenet_forward.6} parent=0 // loop_pre_header
    _
  $region3: #{simplenet_forward.6} parent=0 // loop_header
    %s9 = sphi 0, %s13
    %p10 = scmp.ge.s32.totalorder %s9, 9
    %s16 = sphi 0, %s28
    %s17 = sphi 0, %s24
    %s18 = sphi 0, %s16
    %s19 = sphi 0, %s17
    %s20 = sphi 0, %s18
    %s21 = sphi 0, %s19
    %s31 = sphi 0, %s33
    %s34 = sphi 0, %s31
    %s35 = sphi 0, %s34
    %s51 = sphi 0, %s35
    %s57 = sphi 0, %s59
    %s60 = sphi 0, %s57
    %s61 = sphi 0, %s60
    %s77 = sphi 0, %s61
    %s83 = sphi 0, %s85
    %s86 = sphi 0, %s83
    %s87 = sphi 0, %s86
    %s103 = sphi 0, %s87
    %s111 = sphi 0, %s113
    %s114 = sphi 0, %s111
    %s115 = sphi 0, %s114
    %s131 = sphi 0, %s115
  $region4: #{simplenet_forward.6} parent=0 // loop_header_branch
    %12 = sbr.rel (%p10) target = $region8
  $region5: #{simplenet_forward.6} parent=0 // loop_body
    %s14 = ssub.s32 %s9, 1
    %s15 = ssub.s32 %s9, 2
    %s22 = sadd.s32 1, %s17
    %p23 = scmp.ge.s32.totalorder %s22, 1
    %s24 = scalar_select %p23, 0, %s22
    %s25 = sadd.s32 1, %s16
    %s26 = scalar_select %p23, %s25, %s16
    %p27 = scmp.ge.s32.totalorder %s26, 7
    %s28 = scalar_select %p27, 0, %s26
    %s29 = ssub.s32 %s16, %s28
    %p30 = scmp.eq.s32.totalorder %s29, 0
    %s32 = sadd.s32 %s31, 1
    %s33 = scalar_select %p30, %s31, %s32
    %p36 = pneg %p30
    %p37 = scmp.eq.s32.totalorder %s9, 6
    %p38 = por %p36, %p37
    %p39 = scmp.ne.s32.totalorder %s31, %s34
    %p40 = scmp.eq.s32.totalorder %s9, 0
    %p41 = por %p39, %p40
    %p42 = scmp.ne.s32.totalorder %s31, %s34
    %p43 = scmp.eq.s32.totalorder %s14, 6
    %p44 = por %p42, %p43
    %p45 = scmp.ne.s32.totalorder %s34, %s35
    %p46 = scmp.eq.s32.totalorder %s14, 0
    %p47 = por %p45, %p46
    %p48 = scmp.ne.s32.totalorder %s34, %s35
    %p49 = scmp.eq.s32.totalorder %s15, 6
    %p50 = por %p48, %p49
    %p52 = scmp.ne.s32.totalorder %s35, %s51
    %p53 = scmp.eq.s32.totalorder %s15, 0
    %p54 = por %p52, %p53
    %s55 = ssub.s32 %s17, %s24
    %p56 = scmp.eq.s32.totalorder %s55, 0
    %s58 = sadd.s32 %s57, 1
    %s59 = scalar_select %p56, %s57, %s58
    %p62 = pneg %p56
    %p63 = scmp.eq.s32.totalorder %s9, 6
    %p64 = por %p62, %p63
    %p65 = scmp.ne.s32.totalorder %s57, %s60
    %p66 = scmp.eq.s32.totalorder %s9, 0
    %p67 = por %p65, %p66
    %p68 = scmp.ne.s32.totalorder %s57, %s60
    %p69 = scmp.eq.s32.totalorder %s14, 6
    %p70 = por %p68, %p69
    %p71 = scmp.ne.s32.totalorder %s60, %s61
    %p72 = scmp.eq.s32.totalorder %s14, 0
    %p73 = por %p71, %p72
    %p74 = scmp.ne.s32.totalorder %s60, %s61
    %p75 = scmp.eq.s32.totalorder %s15, 6
    %p76 = por %p74, %p75
    %p78 = scmp.ne.s32.totalorder %s61, %s77
    %p79 = scmp.eq.s32.totalorder %s15, 0
    %p80 = por %p78, %p79
    %s81 = ssub.s32 %s17, %s24
    %p82 = scmp.eq.s32.totalorder %s81, 0
    %s84 = sadd.s32 %s83, 1
    %s85 = scalar_select %p82, %s83, %s84
    %p88 = pneg %p82
    %p89 = scmp.eq.s32.totalorder %s9, 6
    %p90 = por %p88, %p89
    %p91 = scmp.ne.s32.totalorder %s83, %s86
    %p92 = scmp.eq.s32.totalorder %s9, 0
    %p93 = por %p91, %p92
    %p94 = scmp.ne.s32.totalorder %s83, %s86
    %p95 = scmp.eq.s32.totalorder %s14, 6
    %p96 = por %p94, %p95
    %p97 = scmp.ne.s32.totalorder %s86, %s87
    %p98 = scmp.eq.s32.totalorder %s14, 0
    %p99 = por %p97, %p98
    %p100 = scmp.ne.s32.totalorder %s86, %s87
    %p101 = scmp.eq.s32.totalorder %s15, 6
    %p102 = por %p100, %p101
    %p104 = scmp.ne.s32.totalorder %s87, %s103
    %p105 = scmp.eq.s32.totalorder %s15, 0
    %p106 = por %p104, %p105
    %s107 = ssub.s32 %s16, %s28
    %s108 = ssub.s32 %s17, %s24
    %s109 = sor.u32 %s107, %s108
    %p110 = scmp.eq.s32.totalorder %s109, 0
    %s112 = sadd.s32 %s111, 1
    %s113 = scalar_select %p110, %s111, %s112
    %p116 = pneg %p110
    %p117 = scmp.eq.s32.totalorder %s9, 6
    %p118 = por %p116, %p117
    %p119 = scmp.ne.s32.totalorder %s111, %s114
    %p120 = scmp.eq.s32.totalorder %s9, 0
    %p121 = por %p119, %p120
    %p122 = scmp.ne.s32.totalorder %s111, %s114
    %p123 = scmp.eq.s32.totalorder %s14, 6
    %p124 = por %p122, %p123
    %p125 = scmp.ne.s32.totalorder %s114, %s115
    %p126 = scmp.eq.s32.totalorder %s14, 0
    %p127 = por %p125, %p126
    %p128 = scmp.ne.s32.totalorder %s114, %s115
    %p129 = scmp.eq.s32.totalorder %s15, 6
    %p130 = por %p128, %p129
    %p132 = scmp.ne.s32.totalorder %s115, %s131
    %p133 = scmp.eq.s32.totalorder %s15, 0
    %p134 = por %p132, %p133
    %p135 = scmp.le.s32.totalorder 1, %s9
    %p136 = scmp.lt.s32.totalorder %s9, 8
    %p137 = pnand %p135, %p136
    %p138 = pneg %p137
    // Predicated region
    $region9: #{simplenet_forward.6} parent=5 // pred_check
      _
    $region10: #{simplenet_forward.6} parent=5 // pred_check_branch
      %140 = sbr.rel (%p137) target = $region12
    $region11: #{simplenet_forward.6} parent=5 // pred_region
      %s141 = ssub.s32 %s9, 1
      // Predicated region
      $region13: #{simplenet_forward.6} parent=11 // pred_check
        %p142 = pneg %p73
      $region14: #{simplenet_forward.6} parent=11 // pred_check_branch
        %144 = sbr.rel (%p142) target = $region16
      $region15: #{simplenet_forward.6} parent=11 // pred_region
        %p145 = scmp.lt.s32.totalorder %s19, 0
        %s146 = scalar_select %p145, %s19, 0
        %s147 = smul.addr %s146, 4
        %s148 = scalar_lea.vmem %s1, %s147
      $region16: #{simplenet_forward.6} parent=11 // pred_fallthru
        _
      // Predicated region
      $region17: #{simplenet_forward.6} parent=11 // pred_check
        %p149 = pneg %p99
      $region18: #{simplenet_forward.6} parent=11 // pred_check_branch
        %151 = sbr.rel (%p149) target = $region20
      $region19: #{simplenet_forward.6} parent=11 // pred_region
        %p152 = scmp.lt.s32.totalorder %s19, 0
        %s153 = scalar_select %p152, %s19, 0
        %s154 = scalar_lea.vmem %s2, %s153
      $region20: #{simplenet_forward.6} parent=11 // pred_fallthru
        _
    $region12: #{simplenet_forward.6} parent=5 // pred_fallthru
      _
    %p155 = scmp.lt.s32.totalorder %s9, 7
    // Predicated region
    $region21: #{simplenet_forward.6} parent=5 // pred_check
      %p156 = pneg %p155
    $region22: #{simplenet_forward.6} parent=5 // pred_check_branch
      %158 = sbr.rel (%p156) target = $region24
    $region23: #{simplenet_forward.6} parent=5 // pred_region
      // Predicated region
      $region25: #{simplenet_forward.6} parent=23 // pred_check
        %p159 = pneg %p41
      $region26: #{simplenet_forward.6} parent=23 // pred_check_branch
        %161 = sbr.rel (%p159) target = $region28
      $region27: #{simplenet_forward.6} parent=23 // pred_region
        %s162 = smul.u32 28, %s16
        %p163 = scmp.lt.s32.totalorder %s162, 195
        %s164 = scalar_select %p163, %s162, 195
        %s165 = smul.addr %s164, 9
        %s166 = smul.addr %s165, 4
        %s167 = scalar_lea.vmem %s0, %s166
        %s168 = smul.u32 28, %s16
      $region28: #{simplenet_forward.6} parent=23 // pred_fallthru
        _
    $region24: #{simplenet_forward.6} parent=5 // pred_fallthru
      _
    %p169 = scmp.le.s32.totalorder 1, %s9
    %p170 = scmp.lt.s32.totalorder %s9, 8
    %p171 = pnand %p169, %p170
    %p172 = pneg %p171
    // Predicated region
    $region29: #{simplenet_forward.6} parent=5 // pred_check
      _
    $region30: #{simplenet_forward.6} parent=5 // pred_check_branch
      %174 = sbr.rel (%p171) target = $region32
    $region31: #{simplenet_forward.6} parent=5 // pred_region
      %s175 = ssub.s32 %s9, 1
      %s176 = smul.u32 28, %s18
      %p177 = scmp.lt.s32.totalorder %s176, 195
      %s178 = scalar_select %p177, %s176, 195
      %s179 = smul.addr %s178, 9
      %s180 = smul.addr %s179, 4
      %s181 = scalar_lea.vmem %s0, %s180
      %p182 = pneg %p47
      %p183 = pneg %p44
      %p184 = scmp.lt.s32.totalorder %s19, 0
      %s185 = scalar_select %p184, %s19, 0
      %s186 = smul.addr %s185, 4
      %s187 = scalar_lea.vmem %s1, %s186
      %p188 = pneg %p73
      %p189 = pneg %p70
      %p190 = scmp.lt.s32.totalorder %s19, 0
      %s191 = scalar_select %p190, %s19, 0
      %s192 = scalar_lea.vmem %s2, %s191
      %p193 = pneg %p99
      %p194 = pneg %p96
      %p195 = pneg %p127
      %p196 = pneg %p124
      %s197 = smul.u32 28, %s18
      %p198 = scmp.lt.s32.totalorder %s197, 195
      %s199 = scalar_select %p198, %s197, 195
      %p200 = scmp.lt.s32.totalorder %s19, 0
      %s201 = scalar_select %p200, %s19, 0
      %s202 = sadd.s32 %s201, %s199
      %s203 = smul.addr %s202, 4
      %s204 = scalar_lea.vmem %s3, %s203
      %s205 = smul.u32 28, %s18
      %p206 = scmp.lt.s32.totalorder %s205, 195
      %s207 = scalar_select %p206, %s205, 195
      %s208 = smul.addr %s207, 9
      %s209 = smul.addr %s208, 4
      %s210 = scalar_lea.vmem %s0, %s209
      %s211 = smul.u32 28, %s18
      %p212 = scmp.lt.s32.totalorder %s19, 0
      %s213 = scalar_select %p212, %s19, 0
      %s214 = smul.addr %s213, 4
      %s215 = scalar_lea.vmem %s1, %s214
      %p216 = scmp.lt.s32.totalorder %s19, 0
      %s217 = scalar_select %p216, %s19, 0
      %s218 = scalar_lea.vmem %s2, %s217
      %s219 = smul.u32 28, %s18
      %p220 = scmp.lt.s32.totalorder %s219, 195
      %s221 = scalar_select %p220, %s219, 195
      %p222 = scmp.lt.s32.totalorder %s19, 0
      %s223 = scalar_select %p222, %s19, 0
      %s224 = sadd.s32 %s223, %s221
      %s225 = smul.addr %s224, 4
      %s226 = scalar_lea.vmem %s3, %s225
      %s227 = smul.u32 28, %s18
      %v229 = vld [vmem:[%s210] sm:$0xff]
      %v230 = vld [vmem:[%s210 + $0x8] sm:$0xff]
      %v231 = vld [vmem:[%s210 + $0x10] sm:$0xff]
      %v232 = vld [vmem:[%s210 + $0x18] sm:$0xff]
      %v233 = vld [vmem:[%s210 + $0x20] sm:$0xf]
      %v234 = vld [vmem:[%s210 + $0x24] sm:$0xff]
      %v235 = vld [vmem:[%s210 + $0x2c] sm:$0xff]
      %v236 = vld [vmem:[%s210 + $0x34] sm:$0xff]
      %v237 = vld [vmem:[%s210 + $0x3c] sm:$0xff]
      %v238 = vld [vmem:[%s210 + $0x44] sm:$0xf]
      %v239 = vld [vmem:[%s210 + $0x48] sm:$0xff]
      %v240 = vld [vmem:[%s210 + $0x50] sm:$0xff]
      %v241 = vld [vmem:[%s210 + $0x58] sm:$0xff]
      %v242 = vld [vmem:[%s210 + $0x60] sm:$0xff]
      %v243 = vld [vmem:[%s210 + $0x68] sm:$0xf]
      %v244 = vld [vmem:[%s210 + $0x6c] sm:$0xff]
      %v245 = vld [vmem:[%s210 + $0x74] sm:$0xff]
      %v246 = vld [vmem:[%s210 + $0x7c] sm:$0xff]
      %v247 = vld [vmem:[%s210 + $0x84] sm:$0xff]
      %v248 = vld [vmem:[%s210 + $0x8c] sm:$0xf]
      %v249 = vld [vmem:[%s210 + $0x90] sm:$0xff]
      %v250 = vld [vmem:[%s210 + $0x98] sm:$0xff]
      %v251 = vld [vmem:[%s210 + $0xa0] sm:$0xff]
      %v252 = vld [vmem:[%s210 + $0xa8] sm:$0xff]
      %v253 = vld [vmem:[%s210 + $0xb0] sm:$0xf]
      %v254 = vld [vmem:[%s210 + $0xb4] sm:$0xff]
      %v255 = vld [vmem:[%s210 + $0xbc] sm:$0xff]
      %v256 = vld [vmem:[%s210 + $0xc4] sm:$0xff]
      %v257 = vld [vmem:[%s210 + $0xcc] sm:$0xff]
      %v258 = vld [vmem:[%s210 + $0xd4] sm:$0xf]
      %v259 = vld [vmem:[%s210 + $0xd8] sm:$0xff]
      %v260 = vld [vmem:[%s210 + $0xe0] sm:$0xff]
      %v261 = vld [vmem:[%s210 + $0xe8] sm:$0xff]
      %v262 = vld [vmem:[%s210 + $0xf0] sm:$0xff]
      %v263 = vld [vmem:[%s210 + $0xf8] sm:$0xf]
      %v264 = vld [vmem:[%s210 + $0xfc] sm:$0xff]
      %v265 = vld [vmem:[%s210 + $0x104] sm:$0xff]
      %v266 = vld [vmem:[%s210 + $0x10c] sm:$0xff]
      %v267 = vld [vmem:[%s210 + $0x114] sm:$0xff]
      %v268 = vld [vmem:[%s210 + $0x11c] sm:$0xf]
      %v269 = vld [vmem:[%s210 + $0x120] sm:$0xff]
      %v270 = vld [vmem:[%s210 + $0x128] sm:$0xff]
      %v271 = vld [vmem:[%s210 + $0x130] sm:$0xff]
      %v272 = vld [vmem:[%s210 + $0x138] sm:$0xff]
      %v273 = vld [vmem:[%s210 + $0x140] sm:$0xf]
      %v274 = vld [vmem:[%s210 + $0x144] sm:$0xff]
      %v275 = vld [vmem:[%s210 + $0x14c] sm:$0xff]
      %v276 = vld [vmem:[%s210 + $0x154] sm:$0xff]
      %v277 = vld [vmem:[%s210 + $0x15c] sm:$0xff]
      %v278 = vld [vmem:[%s210 + $0x164] sm:$0xf]
      %v279 = vld [vmem:[%s210 + $0x168] sm:$0xff]
      %v280 = vld [vmem:[%s210 + $0x170] sm:$0xff]
      %v281 = vld [vmem:[%s210 + $0x178] sm:$0xff]
      %v282 = vld [vmem:[%s210 + $0x180] sm:$0xff]
      %v283 = vld [vmem:[%s210 + $0x188] sm:$0xf]
      %v284 = vld [vmem:[%s210 + $0x18c] sm:$0xff]
      %v285 = vld [vmem:[%s210 + $0x194] sm:$0xff]
      %v286 = vld [vmem:[%s210 + $0x19c] sm:$0xff]
      %v287 = vld [vmem:[%s210 + $0x1a4] sm:$0xff]
      %v288 = vld [vmem:[%s210 + $0x1ac] sm:$0xf]
      %v289 = vld [vmem:[%s210 + $0x1b0] sm:$0xff]
      %v290 = vld [vmem:[%s210 + $0x1b8] sm:$0xff]
      %v291 = vld [vmem:[%s210 + $0x1c0] sm:$0xff]
      %v292 = vld [vmem:[%s210 + $0x1c8] sm:$0xff]
      %v293 = vld [vmem:[%s210 + $0x1d0] sm:$0xf]
      %v294 = vld [vmem:[%s210 + $0x1d4] sm:$0xff]
      %v295 = vld [vmem:[%s210 + $0x1dc] sm:$0xff]
      %v296 = vld [vmem:[%s210 + $0x1e4] sm:$0xff]
      %v297 = vld [vmem:[%s210 + $0x1ec] sm:$0xff]
      %v298 = vld [vmem:[%s210 + $0x1f4] sm:$0xf]
      %v299 = vld [vmem:[%s210 + $0x1f8] sm:$0xff]
      %v300 = vld [vmem:[%s210 + $0x200] sm:$0xff]
      %v301 = vld [vmem:[%s210 + $0x208] sm:$0xff]
      %v302 = vld [vmem:[%s210 + $0x210] sm:$0xff]
      %v303 = vld [vmem:[%s210 + $0x218] sm:$0xf]
      %v304 = vld [vmem:[%s210 + $0x21c] sm:$0xff]
      %v305 = vld [vmem:[%s210 + $0x224] sm:$0xff]
      %v306 = vld [vmem:[%s210 + $0x22c] sm:$0xff]
      %v307 = vld [vmem:[%s210 + $0x234] sm:$0xff]
      %v308 = vld [vmem:[%s210 + $0x23c] sm:$0xf]
      %v309 = vld [vmem:[%s210 + $0x240] sm:$0xff]
      %v310 = vld [vmem:[%s210 + $0x248] sm:$0xff]
      %v311 = vld [vmem:[%s210 + $0x250] sm:$0xff]
      %v312 = vld [vmem:[%s210 + $0x258] sm:$0xff]
      %v313 = vld [vmem:[%s210 + $0x260] sm:$0xf]
      %v314 = vld [vmem:[%s210 + $0x264] sm:$0xff]
      %v315 = vld [vmem:[%s210 + $0x26c] sm:$0xff]
      %v316 = vld [vmem:[%s210 + $0x274] sm:$0xff]
      %v317 = vld [vmem:[%s210 + $0x27c] sm:$0xff]
      %v318 = vld [vmem:[%s210 + $0x284] sm:$0xf]
      %v319 = vld [vmem:[%s210 + $0x288] sm:$0xff]
      %v320 = vld [vmem:[%s210 + $0x290] sm:$0xff]
      %v321 = vld [vmem:[%s210 + $0x298] sm:$0xff]
      %v322 = vld [vmem:[%s210 + $0x2a0] sm:$0xff]
      %v323 = vld [vmem:[%s210 + $0x2a8] sm:$0xf]
      %v324 = vld [vmem:[%s210 + $0x2ac] sm:$0xff]
      %v325 = vld [vmem:[%s210 + $0x2b4] sm:$0xff]
      %v326 = vld [vmem:[%s210 + $0x2bc] sm:$0xff]
      %v327 = vld [vmem:[%s210 + $0x2c4] sm:$0xff]
      %v328 = vld [vmem:[%s210 + $0x2cc] sm:$0xf]
      %v329 = vld [vmem:[%s210 + $0x2d0] sm:$0xff]
      %v330 = vld [vmem:[%s210 + $0x2d8] sm:$0xff]
      %v331 = vld [vmem:[%s210 + $0x2e0] sm:$0xff]
      %v332 = vld [vmem:[%s210 + $0x2e8] sm:$0xff]
      %v333 = vld [vmem:[%s210 + $0x2f0] sm:$0xf]
      %v334 = vld [vmem:[%s210 + $0x2f4] sm:$0xff]
      %v335 = vld [vmem:[%s210 + $0x2fc] sm:$0xff]
      %v336 = vld [vmem:[%s210 + $0x304] sm:$0xff]
      %v337 = vld [vmem:[%s210 + $0x30c] sm:$0xff]
      %v338 = vld [vmem:[%s210 + $0x314] sm:$0xf]
      %v339 = vld [vmem:[%s210 + $0x318] sm:$0xff]
      %v340 = vld [vmem:[%s210 + $0x320] sm:$0xff]
      %v341 = vld [vmem:[%s210 + $0x328] sm:$0xff]
      %v342 = vld [vmem:[%s210 + $0x330] sm:$0xff]
      %v343 = vld [vmem:[%s210 + $0x338] sm:$0xf]
      %v344 = vld [vmem:[%s210 + $0x33c] sm:$0xff]
      %v345 = vld [vmem:[%s210 + $0x344] sm:$0xff]
      %v346 = vld [vmem:[%s210 + $0x34c] sm:$0xff]
      %v347 = vld [vmem:[%s210 + $0x354] sm:$0xff]
      %v348 = vld [vmem:[%s210 + $0x35c] sm:$0xf]
      %v349 = vld [vmem:[%s210 + $0x360] sm:$0xff]
      %v350 = vld [vmem:[%s210 + $0x368] sm:$0xff]
      %v351 = vld [vmem:[%s210 + $0x370] sm:$0xff]
      %v352 = vld [vmem:[%s210 + $0x378] sm:$0xff]
      %v353 = vld [vmem:[%s210 + $0x380] sm:$0xf]
      %v354 = vld [vmem:[%s210 + $0x384] sm:$0xff]
      %v355 = vld [vmem:[%s210 + $0x38c] sm:$0xff]
      %v356 = vld [vmem:[%s210 + $0x394] sm:$0xff]
      %v357 = vld [vmem:[%s210 + $0x39c] sm:$0xff]
      %v358 = vld [vmem:[%s210 + $0x3a4] sm:$0xf]
      %v359 = vld [vmem:[%s210 + $0x3a8] sm:$0xff]
      %v360 = vld [vmem:[%s210 + $0x3b0] sm:$0xff]
      %v361 = vld [vmem:[%s210 + $0x3b8] sm:$0xff]
      %v362 = vld [vmem:[%s210 + $0x3c0] sm:$0xff]
      %v363 = vld [vmem:[%s210 + $0x3c8] sm:$0xf]
      %v364 = vld [vmem:[%s210 + $0x3cc] sm:$0xff]
      %v365 = vld [vmem:[%s210 + $0x3d4] sm:$0xff]
      %v366 = vld [vmem:[%s210 + $0x3dc] sm:$0xff]
      %v367 = vld [vmem:[%s210 + $0x3e4] sm:$0xff]
      %v368 = vld [vmem:[%s210 + $0x3ec] sm:$0xf]
      %v369 = vld [vmem:[%s215] sm:$0xf]
      %v370 = vld [vmem:[%s215 + $0x4] sm:$0xf]
      %v371 = vld [vmem:[%s215 + $0x8] sm:$0xf]
      %v372 = vld [vmem:[%s215 + $0xc] sm:$0xf]
      %v373 = vld [vmem:[%s215 + $0x10] sm:$0xf]
      %v374 = vld [vmem:[%s215 + $0x14] sm:$0xf]
      %v375 = vld [vmem:[%s215 + $0x18] sm:$0xf]
      %v376 = vld [vmem:[%s215 + $0x1c] sm:$0xf]
      %v377 = vld [vmem:[%s215 + $0x20] sm:$0xf]
      %v378 = vld [vmem:[%s215 + $0x24] sm:$0xf]
      %v379 = vld [vmem:[%s215 + $0x28] sm:$0xf]
      %v380 = vld [vmem:[%s215 + $0x2c] sm:$0xf]
      %v381 = vld [vmem:[%s215 + $0x30] sm:$0xf]
      %v382 = vld [vmem:[%s215 + $0x34] sm:$0xf]
      %v383 = vld [vmem:[%s215 + $0x38] sm:$0xf]
      %v384 = vld [vmem:[%s215 + $0x3c] sm:$0xf]
      %v385 = vld [vmem:[%s215 + $0x40] sm:$0xf]
      %v386 = vld [vmem:[%s215 + $0x44] sm:$0xf]
      %v387 = vld [vmem:[%s215 + $0x48] sm:$0xf]
      %v388 = vld [vmem:[%s215 + $0x4c] sm:$0xf]
      %v389 = vld [vmem:[%s215 + $0x50] sm:$0xf]
      %v390 = vld [vmem:[%s215 + $0x54] sm:$0xf]
      %v391 = vld [vmem:[%s215 + $0x58] sm:$0xf]
      %v392 = vld [vmem:[%s215 + $0x5c] sm:$0xf]
      %v393 = vld [vmem:[%s215 + $0x60] sm:$0xf]
      %v394 = vld [vmem:[%s215 + $0x64] sm:$0xf]
      %v395 = vld [vmem:[%s215 + $0x68] sm:$0xf]
      %v396 = vld [vmem:[%s215 + $0x6c] sm:$0xf]
      %v397 = vld [vmem:[%s215 + $0x70] sm:$0xf]
      %v398 = vld [vmem:[%s215 + $0x74] sm:$0xf]
      %v399 = vld [vmem:[%s215 + $0x78] sm:$0xf]
      %v400 = vld [vmem:[%s215 + $0x7c] sm:$0xf]
      %v401 = vld [vmem:[%s215 + $0x80] sm:$0xf]
      %v402 = vld [vmem:[%s215 + $0x84] sm:$0xf]
      %v403 = vld [vmem:[%s215 + $0x88] sm:$0xf]
      %v404 = vld [vmem:[%s215 + $0x8c] sm:$0xf]
      %v405 = vld [vmem:[%s215 + $0x90] sm:$0xf]
      %v406 = vld [vmem:[%s215 + $0x94] sm:$0xf]
      %v407 = vld [vmem:[%s215 + $0x98] sm:$0xf]
      %v408 = vld [vmem:[%s215 + $0x9c] sm:$0xf]
      %v409 = vld [vmem:[%s215 + $0xa0] sm:$0xf]
      %v410 = vld [vmem:[%s215 + $0xa4] sm:$0xf]
      %v411 = vld [vmem:[%s215 + $0xa8] sm:$0xf]
      %v412 = vld [vmem:[%s215 + $0xac] sm:$0xf]
      %v413 = vld [vmem:[%s215 + $0xb0] sm:$0xf]
      %v414 = vld [vmem:[%s215 + $0xb4] sm:$0xf]
      %v415 = vld [vmem:[%s215 + $0xb8] sm:$0xf]
      %v416 = vld [vmem:[%s215 + $0xbc] sm:$0xf]
      %v417 = vld [vmem:[%s215 + $0xc0] sm:$0xf]
      %v418 = vld [vmem:[%s215 + $0xc4] sm:$0xf]
      %v419 = vld [vmem:[%s215 + $0xc8] sm:$0xf]
      %v420 = vld [vmem:[%s215 + $0xcc] sm:$0xf]
      %v421 = vld [vmem:[%s215 + $0xd0] sm:$0xf]
      %v422 = vld [vmem:[%s215 + $0xd4] sm:$0xf]
      %v423 = vld [vmem:[%s215 + $0xd8] sm:$0xf]
      %v424 = vld [vmem:[%s215 + $0xdc] sm:$0xf]
      %v425 = vld [vmem:[%s215 + $0xe0] sm:$0xf]
      %v426 = vld [vmem:[%s215 + $0xe4] sm:$0xf]
      %v427 = vld [vmem:[%s215 + $0xe8] sm:$0xf]
      %v428 = vld [vmem:[%s215 + $0xec] sm:$0xf]
      %v429 = vld [vmem:[%s215 + $0xf0] sm:$0xf]
      %v430 = vld [vmem:[%s215 + $0xf4] sm:$0xf]
      %v431 = vld [vmem:[%s215 + $0xf8] sm:$0xf]
      %v432 = vld [vmem:[%s215 + $0xfc] sm:$0xf]
      %v433 = vld [vmem:[%s215 + $0x100] sm:$0xf]
      %v434 = vld [vmem:[%s215 + $0x104] sm:$0xf]
      %v435 = vld [vmem:[%s215 + $0x108] sm:$0xf]
      %v436 = vld [vmem:[%s215 + $0x10c] sm:$0xf]
      %v437 = vld [vmem:[%s215 + $0x110] sm:$0xf]
      %v438 = vld [vmem:[%s215 + $0x114] sm:$0xf]
      %v439 = vld [vmem:[%s215 + $0x118] sm:$0xf]
      %v440 = vld [vmem:[%s215 + $0x11c] sm:$0xf]
      %v441 = vld [vmem:[%s215 + $0x120] sm:$0xf]
      %v442 = vld [vmem:[%s215 + $0x124] sm:$0xf]
      %v443 = vld [vmem:[%s215 + $0x128] sm:$0xf]
      %v444 = vld [vmem:[%s215 + $0x12c] sm:$0xf]
      %v445 = vld [vmem:[%s215 + $0x130] sm:$0xf]
      %v446 = vld [vmem:[%s215 + $0x134] sm:$0xf]
      %v447 = vld [vmem:[%s215 + $0x138] sm:$0xf]
      %v448 = vld [vmem:[%s215 + $0x13c] sm:$0xf]
      %v449 = vld [vmem:[%s215 + $0x140] sm:$0xf]
      %v450 = vld [vmem:[%s215 + $0x144] sm:$0xf]
      %v451 = vld [vmem:[%s215 + $0x148] sm:$0xf]
      %v452 = vld [vmem:[%s215 + $0x14c] sm:$0xf]
      %v453 = vld [vmem:[%s215 + $0x150] sm:$0xf]
      %v454 = vld [vmem:[%s215 + $0x154] sm:$0xf]
      %v455 = vld [vmem:[%s215 + $0x158] sm:$0xf]
      %v456 = vld [vmem:[%s215 + $0x15c] sm:$0xf]
      %v457 = vld [vmem:[%s215 + $0x160] sm:$0xf]
      %v458 = vld [vmem:[%s215 + $0x164] sm:$0xf]
      %v459 = vld [vmem:[%s215 + $0x168] sm:$0xf]
      %v460 = vld [vmem:[%s215 + $0x16c] sm:$0xf]
      %v461 = vld [vmem:[%s215 + $0x170] sm:$0xf]
      %v462 = vld [vmem:[%s215 + $0x174] sm:$0xf]
      %v463 = vld [vmem:[%s215 + $0x178] sm:$0xf]
      %v464 = vld [vmem:[%s215 + $0x17c] sm:$0xf]
      %v465 = vld [vmem:[%s215 + $0x180] sm:$0xf]
      %v466 = vld [vmem:[%s215 + $0x184] sm:$0xf]
      %v467 = vld [vmem:[%s215 + $0x188] sm:$0xf]
      %v468 = vld [vmem:[%s215 + $0x18c] sm:$0xf]
      %v469 = vld [vmem:[%s215 + $0x190] sm:$0xf]
      %v470 = vld [vmem:[%s215 + $0x194] sm:$0xf]
      %v471 = vld [vmem:[%s215 + $0x198] sm:$0xf]
      %v472 = vld [vmem:[%s215 + $0x19c] sm:$0xf]
      %v473 = vld [vmem:[%s215 + $0x1a0] sm:$0xf]
      %v474 = vld [vmem:[%s215 + $0x1a4] sm:$0xf]
      %v475 = vld [vmem:[%s215 + $0x1a8] sm:$0xf]
      %v476 = vld [vmem:[%s215 + $0x1ac] sm:$0xf]
      %v477 = vld [vmem:[%s215 + $0x1b0] sm:$0xf]
      %v478 = vld [vmem:[%s215 + $0x1b4] sm:$0xf]
      %v479 = vld [vmem:[%s215 + $0x1b8] sm:$0xf]
      %v480 = vld [vmem:[%s215 + $0x1bc] sm:$0xf]
      %v481 = vld [vmem:[%s215 + $0x1c0] sm:$0xf]
      %v482 = vld [vmem:[%s215 + $0x1c4] sm:$0xf]
      %v483 = vld [vmem:[%s215 + $0x1c8] sm:$0xf]
      %v484 = vld [vmem:[%s215 + $0x1cc] sm:$0xf]
      %v485 = vld [vmem:[%s215 + $0x1d0] sm:$0xf]
      %v486 = vld [vmem:[%s215 + $0x1d4] sm:$0xf]
      %v487 = vld [vmem:[%s215 + $0x1d8] sm:$0xf]
      %v488 = vld [vmem:[%s215 + $0x1dc] sm:$0xf]
      %v489 = vld [vmem:[%s215 + $0x1e0] sm:$0xf]
      %v490 = vld [vmem:[%s215 + $0x1e4] sm:$0xf]
      %v491 = vld [vmem:[%s215 + $0x1e8] sm:$0xf]
      %v492 = vld [vmem:[%s215 + $0x1ec] sm:$0xf]
      %v493 = vld [vmem:[%s215 + $0x1f0] sm:$0xf]
      %v494 = vld [vmem:[%s215 + $0x1f4] sm:$0xf]
      %v495 = vld [vmem:[%s215 + $0x1f8] sm:$0xf]
      %v496 = vld [vmem:[%s215 + $0x1fc] sm:$0xf]
      %v497 = vld [vmem:[%s215 + $0x200] sm:$0xf]
      %v498 = vld [vmem:[%s215 + $0x204] sm:$0xf]
      %v499 = vld [vmem:[%s215 + $0x208] sm:$0xf]
      %v500 = vld [vmem:[%s215 + $0x20c] sm:$0xf]
      %v501 = vld [vmem:[%s215 + $0x210] sm:$0xf]
      %v502 = vld [vmem:[%s215 + $0x214] sm:$0xf]
      %v503 = vld [vmem:[%s215 + $0x218] sm:$0xf]
      %v504 = vld [vmem:[%s215 + $0x21c] sm:$0xf]
      %v505 = vld [vmem:[%s215 + $0x220] sm:$0xf]
      %v506 = vld [vmem:[%s215 + $0x224] sm:$0xf]
      %v507 = vld [vmem:[%s215 + $0x228] sm:$0xf]
      %v508 = vld [vmem:[%s215 + $0x22c] sm:$0xf]
      %v509 = vld [vmem:[%s215 + $0x230] sm:$0xf]
      %v510 = vld [vmem:[%s215 + $0x234] sm:$0xf]
      %v511 = vld [vmem:[%s215 + $0x238] sm:$0xf]
      %v512 = vld [vmem:[%s215 + $0x23c] sm:$0xf]
      %v513 = vld [vmem:[%s218] sm:$0x1]
      %v515 = vlaneseq
      %v516 = vshrl.u32 %v515, 7
      %v517 = vsub.s32 0, %v516
      %v518 = vrot.slane %v513, %v517
      %v660 = vunpack.c.l.b16 %v229
      %v661 = vunpack.c.h.b16 %v229
      %v662 = vunpack.c.l.b16 %v230
      %v663 = vunpack.c.h.b16 %v230
      %v664 = vunpack.c.l.b16 %v231
      %v665 = vunpack.c.h.b16 %v231
      %v666 = vunpack.c.l.b16 %v232
      %v667 = vunpack.c.h.b16 %v232
      %v668 = vunpack.c.l.b16 %v233
      %v669 = vunpack.c.l.b16 %v234
      %v670 = vunpack.c.h.b16 %v234
      %v671 = vunpack.c.l.b16 %v235
      %v672 = vunpack.c.h.b16 %v235
      %v673 = vunpack.c.l.b16 %v236
      %v674 = vunpack.c.h.b16 %v236
      %v675 = vunpack.c.l.b16 %v237
      %v676 = vunpack.c.h.b16 %v237
      %v677 = vunpack.c.l.b16 %v238
      %v678 = vunpack.c.l.b16 %v239
      %v679 = vunpack.c.h.b16 %v239
      %v680 = vunpack.c.l.b16 %v240
      %v681 = vunpack.c.h.b16 %v240
      %v682 = vunpack.c.l.b16 %v241
      %v683 = vunpack.c.h.b16 %v241
      %v684 = vunpack.c.l.b16 %v242
      %v685 = vunpack.c.h.b16 %v242
      %v686 = vunpack.c.l.b16 %v243
      %v687 = vunpack.c.l.b16 %v244
      %v688 = vunpack.c.h.b16 %v244
      %v689 = vunpack.c.l.b16 %v245
      %v690 = vunpack.c.h.b16 %v245
      %v691 = vunpack.c.l.b16 %v246
      %v692 = vunpack.c.h.b16 %v246
      %v693 = vunpack.c.l.b16 %v247
      %v694 = vunpack.c.h.b16 %v247
      %v695 = vunpack.c.l.b16 %v248
      %v696 = vunpack.c.l.b16 %v249
      %v697 = vunpack.c.h.b16 %v249
      %v698 = vunpack.c.l.b16 %v250
      %v699 = vunpack.c.h.b16 %v250
      %v700 = vunpack.c.l.b16 %v251
      %v701 = vunpack.c.h.b16 %v251
      %v702 = vunpack.c.l.b16 %v252
      %v703 = vunpack.c.h.b16 %v252
      %v704 = vunpack.c.l.b16 %v253
      %v705 = vunpack.c.l.b16 %v254
      %v706 = vunpack.c.h.b16 %v254
      %v707 = vunpack.c.l.b16 %v255
      %v708 = vunpack.c.h.b16 %v255
      %v709 = vunpack.c.l.b16 %v256
      %v710 = vunpack.c.h.b16 %v256
      %v711 = vunpack.c.l.b16 %v257
      %v712 = vunpack.c.h.b16 %v257
      %v713 = vunpack.c.l.b16 %v258
      %v714 = vunpack.c.l.b16 %v259
      %v715 = vunpack.c.h.b16 %v259
      %v716 = vunpack.c.l.b16 %v260
      %v717 = vunpack.c.h.b16 %v260
      %v718 = vunpack.c.l.b16 %v261
      %v719 = vunpack.c.h.b16 %v261
      %v720 = vunpack.c.l.b16 %v262
      %v721 = vunpack.c.h.b16 %v262
      %v722 = vunpack.c.l.b16 %v263
      %v723 = vunpack.c.l.b16 %v264
      %v724 = vunpack.c.h.b16 %v264
      %v725 = vunpack.c.l.b16 %v265
      %v726 = vunpack.c.h.b16 %v265
      %v727 = vunpack.c.l.b16 %v266
      %v728 = vunpack.c.h.b16 %v266
      %v729 = vunpack.c.l.b16 %v267
      %v730 = vunpack.c.h.b16 %v267
      %v731 = vunpack.c.l.b16 %v268
      %v732 = vunpack.c.l.b16 %v269
      %v733 = vunpack.c.h.b16 %v269
      %v734 = vunpack.c.l.b16 %v270
      %v735 = vunpack.c.h.b16 %v270
      %v736 = vunpack.c.l.b16 %v271
      %v737 = vunpack.c.h.b16 %v271
      %v738 = vunpack.c.l.b16 %v272
      %v739 = vunpack.c.h.b16 %v272
      %v740 = vunpack.c.l.b16 %v273
      %v741 = vunpack.c.l.b16 %v274
      %v742 = vunpack.c.h.b16 %v274
      %v743 = vunpack.c.l.b16 %v275
      %v744 = vunpack.c.h.b16 %v275
      %v745 = vunpack.c.l.b16 %v276
      %v746 = vunpack.c.h.b16 %v276
      %v747 = vunpack.c.l.b16 %v277
      %v748 = vunpack.c.h.b16 %v277
      %v749 = vunpack.c.l.b16 %v278
      %v750 = vunpack.c.l.b16 %v279
      %v751 = vunpack.c.h.b16 %v279
      %v752 = vunpack.c.l.b16 %v280
      %v753 = vunpack.c.h.b16 %v280
      %v754 = vunpack.c.l.b16 %v281
      %v755 = vunpack.c.h.b16 %v281
      %v756 = vunpack.c.l.b16 %v282
      %v757 = vunpack.c.h.b16 %v282
      %v758 = vunpack.c.l.b16 %v283
      %v759 = vunpack.c.l.b16 %v284
      %v760 = vunpack.c.h.b16 %v284
      %v761 = vunpack.c.l.b16 %v285
      %v762 = vunpack.c.h.b16 %v285
      %v763 = vunpack.c.l.b16 %v286
      %v764 = vunpack.c.h.b16 %v286
      %v765 = vunpack.c.l.b16 %v287
      %v766 = vunpack.c.h.b16 %v287
      %v767 = vunpack.c.l.b16 %v288
      %v768 = vunpack.c.l.b16 %v289
      %v769 = vunpack.c.h.b16 %v289
      %v770 = vunpack.c.l.b16 %v290
      %v771 = vunpack.c.h.b16 %v290
      %v772 = vunpack.c.l.b16 %v291
      %v773 = vunpack.c.h.b16 %v291
      %v774 = vunpack.c.l.b16 %v292
      %v775 = vunpack.c.h.b16 %v292
      %v776 = vunpack.c.l.b16 %v293
      %v777 = vunpack.c.l.b16 %v294
      %v778 = vunpack.c.h.b16 %v294
      %v779 = vunpack.c.l.b16 %v295
      %v780 = vunpack.c.h.b16 %v295
      %v781 = vunpack.c.l.b16 %v296
      %v782 = vunpack.c.h.b16 %v296
      %v783 = vunpack.c.l.b16 %v297
      %v784 = vunpack.c.h.b16 %v297
      %v785 = vunpack.c.l.b16 %v298
      %v786 = vunpack.c.l.b16 %v299
      %v787 = vunpack.c.h.b16 %v299
      %v788 = vunpack.c.l.b16 %v300
      %v789 = vunpack.c.h.b16 %v300
      %v790 = vunpack.c.l.b16 %v301
      %v791 = vunpack.c.h.b16 %v301
      %v792 = vunpack.c.l.b16 %v302
      %v793 = vunpack.c.h.b16 %v302
      %v794 = vunpack.c.l.b16 %v303
      %v795 = vunpack.c.l.b16 %v304
      %v796 = vunpack.c.h.b16 %v304
      %v797 = vunpack.c.l.b16 %v305
      %v798 = vunpack.c.h.b16 %v305
      %v799 = vunpack.c.l.b16 %v306
      %v800 = vunpack.c.h.b16 %v306
      %v801 = vunpack.c.l.b16 %v307
      %v802 = vunpack.c.h.b16 %v307
      %v803 = vunpack.c.l.b16 %v308
      %v804 = vunpack.c.l.b16 %v309
      %v805 = vunpack.c.h.b16 %v309
      %v806 = vunpack.c.l.b16 %v310
      %v807 = vunpack.c.h.b16 %v310
      %v808 = vunpack.c.l.b16 %v311
      %v809 = vunpack.c.h.b16 %v311
      %v810 = vunpack.c.l.b16 %v312
      %v811 = vunpack.c.h.b16 %v312
      %v812 = vunpack.c.l.b16 %v313
      %v813 = vunpack.c.l.b16 %v314
      %v814 = vunpack.c.h.b16 %v314
      %v815 = vunpack.c.l.b16 %v315
      %v816 = vunpack.c.h.b16 %v315
      %v817 = vunpack.c.l.b16 %v316
      %v818 = vunpack.c.h.b16 %v316
      %v819 = vunpack.c.l.b16 %v317
      %v820 = vunpack.c.h.b16 %v317
      %v821 = vunpack.c.l.b16 %v318
      %v822 = vunpack.c.l.b16 %v319
      %v823 = vunpack.c.h.b16 %v319
      %v824 = vunpack.c.l.b16 %v320
      %v825 = vunpack.c.h.b16 %v320
      %v826 = vunpack.c.l.b16 %v321
      %v827 = vunpack.c.h.b16 %v321
      %v828 = vunpack.c.l.b16 %v322
      %v829 = vunpack.c.h.b16 %v322
      %v830 = vunpack.c.l.b16 %v323
      %v831 = vunpack.c.l.b16 %v324
      %v832 = vunpack.c.h.b16 %v324
      %v833 = vunpack.c.l.b16 %v325
      %v834 = vunpack.c.h.b16 %v325
      %v835 = vunpack.c.l.b16 %v326
      %v836 = vunpack.c.h.b16 %v326
      %v837 = vunpack.c.l.b16 %v327
      %v838 = vunpack.c.h.b16 %v327
      %v839 = vunpack.c.l.b16 %v328
      %v840 = vunpack.c.l.b16 %v329
      %v841 = vunpack.c.h.b16 %v329
      %v842 = vunpack.c.l.b16 %v330
      %v843 = vunpack.c.h.b16 %v330
      %v844 = vunpack.c.l.b16 %v331
      %v845 = vunpack.c.h.b16 %v331
      %v846 = vunpack.c.l.b16 %v332
      %v847 = vunpack.c.h.b16 %v332
      %v848 = vunpack.c.l.b16 %v333
      %v849 = vunpack.c.l.b16 %v334
      %v850 = vunpack.c.h.b16 %v334
      %v851 = vunpack.c.l.b16 %v335
      %v852 = vunpack.c.h.b16 %v335
      %v853 = vunpack.c.l.b16 %v336
      %v854 = vunpack.c.h.b16 %v336
      %v855 = vunpack.c.l.b16 %v337
      %v856 = vunpack.c.h.b16 %v337
      %v857 = vunpack.c.l.b16 %v338
      %v858 = vunpack.c.l.b16 %v339
      %v859 = vunpack.c.h.b16 %v339
      %v860 = vunpack.c.l.b16 %v340
      %v861 = vunpack.c.h.b16 %v340
      %v862 = vunpack.c.l.b16 %v341
      %v863 = vunpack.c.h.b16 %v341
      %v864 = vunpack.c.l.b16 %v342
      %v865 = vunpack.c.h.b16 %v342
      %v866 = vunpack.c.l.b16 %v343
      %v867 = vunpack.c.l.b16 %v344
      %v868 = vunpack.c.h.b16 %v344
      %v869 = vunpack.c.l.b16 %v345
      %v870 = vunpack.c.h.b16 %v345
      %v871 = vunpack.c.l.b16 %v346
      %v872 = vunpack.c.h.b16 %v346
      %v873 = vunpack.c.l.b16 %v347
      %v874 = vunpack.c.h.b16 %v347
      %v875 = vunpack.c.l.b16 %v348
      %v876 = vunpack.c.l.b16 %v349
      %v877 = vunpack.c.h.b16 %v349
      %v878 = vunpack.c.l.b16 %v350
      %v879 = vunpack.c.h.b16 %v350
      %v880 = vunpack.c.l.b16 %v351
      %v881 = vunpack.c.h.b16 %v351
      %v882 = vunpack.c.l.b16 %v352
      %v883 = vunpack.c.h.b16 %v352
      %v884 = vunpack.c.l.b16 %v353
      %v885 = vunpack.c.l.b16 %v354
      %v886 = vunpack.c.h.b16 %v354
      %v887 = vunpack.c.l.b16 %v355
      %v888 = vunpack.c.h.b16 %v355
      %v889 = vunpack.c.l.b16 %v356
      %v890 = vunpack.c.h.b16 %v356
      %v891 = vunpack.c.l.b16 %v357
      %v892 = vunpack.c.h.b16 %v357
      %v893 = vunpack.c.l.b16 %v358
      %v894 = vunpack.c.l.b16 %v359
      %v895 = vunpack.c.h.b16 %v359
      %v896 = vunpack.c.l.b16 %v360
      %v897 = vunpack.c.h.b16 %v360
      %v898 = vunpack.c.l.b16 %v361
      %v899 = vunpack.c.h.b16 %v361
      %v900 = vunpack.c.l.b16 %v362
      %v901 = vunpack.c.h.b16 %v362
      %v902 = vunpack.c.l.b16 %v363
      %v903 = vunpack.c.l.b16 %v364
      %v904 = vunpack.c.h.b16 %v364
      %v905 = vunpack.c.l.b16 %v365
      %v906 = vunpack.c.h.b16 %v365
      %v907 = vunpack.c.l.b16 %v366
      %v908 = vunpack.c.h.b16 %v366
      %v909 = vunpack.c.l.b16 %v367
      %v910 = vunpack.c.h.b16 %v367
      %v911 = vunpack.c.l.b16 %v368
      %v912 = vpack.c.b16 %v669, %v660
      %v913 = vpack.c.b16 %v670, %v661
      %v914 = vpack.c.b16 %v671, %v662
      %v915 = vpack.c.b16 %v672, %v663
      %v916 = vpack.c.b16 %v673, %v664
      %v917 = vpack.c.b16 %v674, %v665
      %v918 = vpack.c.b16 %v675, %v666
      %v919 = vpack.c.b16 %v676, %v667
      %v920 = vpack.c.b16 %v677, %v668
      %v921 = vpack.c.b16 %v687, %v678
      %v922 = vpack.c.b16 %v688, %v679
      %v923 = vpack.c.b16 %v689, %v680
      %v924 = vpack.c.b16 %v690, %v681
      %v925 = vpack.c.b16 %v691, %v682
      %v926 = vpack.c.b16 %v692, %v683
      %v927 = vpack.c.b16 %v693, %v684
      %v928 = vpack.c.b16 %v694, %v685
      %v929 = vpack.c.b16 %v695, %v686
      %v930 = vpack.c.b16 %v705, %v696
      %v931 = vpack.c.b16 %v706, %v697
      %v932 = vpack.c.b16 %v707, %v698
      %v933 = vpack.c.b16 %v708, %v699
      %v934 = vpack.c.b16 %v709, %v700
      %v935 = vpack.c.b16 %v710, %v701
      %v936 = vpack.c.b16 %v711, %v702
      %v937 = vpack.c.b16 %v712, %v703
      %v938 = vpack.c.b16 %v713, %v704
      %v939 = vpack.c.b16 %v723, %v714
      %v940 = vpack.c.b16 %v724, %v715
      %v941 = vpack.c.b16 %v725, %v716
      %v942 = vpack.c.b16 %v726, %v717
      %v943 = vpack.c.b16 %v727, %v718
      %v944 = vpack.c.b16 %v728, %v719
      %v945 = vpack.c.b16 %v729, %v720
      %v946 = vpack.c.b16 %v730, %v721
      %v947 = vpack.c.b16 %v731, %v722
      %v948 = vpack.c.b16 %v741, %v732
      %v949 = vpack.c.b16 %v742, %v733
      %v950 = vpack.c.b16 %v743, %v734
      %v951 = vpack.c.b16 %v744, %v735
      %v952 = vpack.c.b16 %v745, %v736
      %v953 = vpack.c.b16 %v746, %v737
      %v954 = vpack.c.b16 %v747, %v738
      %v955 = vpack.c.b16 %v748, %v739
      %v956 = vpack.c.b16 %v749, %v740
      %v957 = vpack.c.b16 %v759, %v750
      %v958 = vpack.c.b16 %v760, %v751
      %v959 = vpack.c.b16 %v761, %v752
      %v960 = vpack.c.b16 %v762, %v753
      %v961 = vpack.c.b16 %v763, %v754
      %v962 = vpack.c.b16 %v764, %v755
      %v963 = vpack.c.b16 %v765, %v756
      %v964 = vpack.c.b16 %v766, %v757
      %v965 = vpack.c.b16 %v767, %v758
      %v966 = vpack.c.b16 %v777, %v768
      %v967 = vpack.c.b16 %v778, %v769
      %v968 = vpack.c.b16 %v779, %v770
      %v969 = vpack.c.b16 %v780, %v771
      %v970 = vpack.c.b16 %v781, %v772
      %v971 = vpack.c.b16 %v782, %v773
      %v972 = vpack.c.b16 %v783, %v774
      %v973 = vpack.c.b16 %v784, %v775
      %v974 = vpack.c.b16 %v785, %v776
      %v975 = vpack.c.b16 %v795, %v786
      %v976 = vpack.c.b16 %v796, %v787
      %v977 = vpack.c.b16 %v797, %v788
      %v978 = vpack.c.b16 %v798, %v789
      %v979 = vpack.c.b16 %v799, %v790
      %v980 = vpack.c.b16 %v800, %v791
      %v981 = vpack.c.b16 %v801, %v792
      %v982 = vpack.c.b16 %v802, %v793
      %v983 = vpack.c.b16 %v803, %v794
      %v984 = vpack.c.b16 %v813, %v804
      %v985 = vpack.c.b16 %v814, %v805
      %v986 = vpack.c.b16 %v815, %v806
      %v987 = vpack.c.b16 %v816, %v807
      %v988 = vpack.c.b16 %v817, %v808
      %v989 = vpack.c.b16 %v818, %v809
      %v990 = vpack.c.b16 %v819, %v810
      %v991 = vpack.c.b16 %v820, %v811
      %v992 = vpack.c.b16 %v821, %v812
      %v993 = vpack.c.b16 %v831, %v822
      %v994 = vpack.c.b16 %v832, %v823
      %v995 = vpack.c.b16 %v833, %v824
      %v996 = vpack.c.b16 %v834, %v825
      %v997 = vpack.c.b16 %v835, %v826
      %v998 = vpack.c.b16 %v836, %v827
      %v999 = vpack.c.b16 %v837, %v828
      %v1000 = vpack.c.b16 %v838, %v829
      %v1001 = vpack.c.b16 %v839, %v830
      %v1002 = vpack.c.b16 %v849, %v840
      %v1003 = vpack.c.b16 %v850, %v841
      %v1004 = vpack.c.b16 %v851, %v842
      %v1005 = vpack.c.b16 %v852, %v843
      %v1006 = vpack.c.b16 %v853, %v844
      %v1007 = vpack.c.b16 %v854, %v845
      %v1008 = vpack.c.b16 %v855, %v846
      %v1009 = vpack.c.b16 %v856, %v847
      %v1010 = vpack.c.b16 %v857, %v848
      %v1011 = vpack.c.b16 %v867, %v858
      %v1012 = vpack.c.b16 %v868, %v859
      %v1013 = vpack.c.b16 %v869, %v860
      %v1014 = vpack.c.b16 %v870, %v861
      %v1015 = vpack.c.b16 %v871, %v862
      %v1016 = vpack.c.b16 %v872, %v863
      %v1017 = vpack.c.b16 %v873, %v864
      %v1018 = vpack.c.b16 %v874, %v865
      %v1019 = vpack.c.b16 %v875, %v866
      %v1020 = vpack.c.b16 %v885, %v876
      %v1021 = vpack.c.b16 %v886, %v877
      %v1022 = vpack.c.b16 %v887, %v878
      %v1023 = vpack.c.b16 %v888, %v879
      %v1024 = vpack.c.b16 %v889, %v880
      %v1025 = vpack.c.b16 %v890, %v881
      %v1026 = vpack.c.b16 %v891, %v882
      %v1027 = vpack.c.b16 %v892, %v883
      %v1028 = vpack.c.b16 %v893, %v884
      %v1029 = vpack.c.b16 %v903, %v894
      %v1030 = vpack.c.b16 %v904, %v895
      %v1031 = vpack.c.b16 %v905, %v896
      %v1032 = vpack.c.b16 %v906, %v897
      %v1033 = vpack.c.b16 %v907, %v898
      %v1034 = vpack.c.b16 %v908, %v899
      %v1035 = vpack.c.b16 %v909, %v900
      %v1036 = vpack.c.b16 %v910, %v901
      %v1037 = vpack.c.b16 %v911, %v902
      %v1308 = vunpack.c.l.b16 %v369
      %v1309 = vunpack.c.l.b16 %v370
      %v1310 = vunpack.c.l.b16 %v371
      %v1311 = vunpack.c.l.b16 %v372
      %v1312 = vunpack.c.l.b16 %v373
      %v1313 = vunpack.c.l.b16 %v374
      %v1314 = vunpack.c.l.b16 %v375
      %v1315 = vunpack.c.l.b16 %v376
      %v1316 = vunpack.c.l.b16 %v377
      %v1317 = vunpack.c.l.b16 %v378
      %v1318 = vunpack.c.l.b16 %v379
      %v1319 = vunpack.c.l.b16 %v380
      %v1320 = vunpack.c.l.b16 %v381
      %v1321 = vunpack.c.l.b16 %v382
      %v1322 = vunpack.c.l.b16 %v383
      %v1323 = vunpack.c.l.b16 %v384
      %v1324 = vunpack.c.l.b16 %v385
      %v1325 = vunpack.c.l.b16 %v386
      %v1326 = vunpack.c.l.b16 %v387
      %v1327 = vunpack.c.l.b16 %v388
      %v1328 = vunpack.c.l.b16 %v389
      %v1329 = vunpack.c.l.b16 %v390
      %v1330 = vunpack.c.l.b16 %v391
      %v1331 = vunpack.c.l.b16 %v392
      %v1332 = vunpack.c.l.b16 %v393
      %v1333 = vunpack.c.l.b16 %v394
      %v1334 = vunpack.c.l.b16 %v395
      %v1335 = vunpack.c.l.b16 %v396
      %v1336 = vunpack.c.l.b16 %v397
      %v1337 = vunpack.c.l.b16 %v398
      %v1338 = vunpack.c.l.b16 %v399
      %v1339 = vunpack.c.l.b16 %v400
      %v1340 = vunpack.c.l.b16 %v401
      %v1341 = vunpack.c.l.b16 %v402
      %v1342 = vunpack.c.l.b16 %v403
      %v1343 = vunpack.c.l.b16 %v404
      %v1344 = vunpack.c.l.b16 %v405
      %v1345 = vunpack.c.l.b16 %v406
      %v1346 = vunpack.c.l.b16 %v407
      %v1347 = vunpack.c.l.b16 %v408
      %v1348 = vunpack.c.l.b16 %v409
      %v1349 = vunpack.c.l.b16 %v410
      %v1350 = vunpack.c.l.b16 %v411
      %v1351 = vunpack.c.l.b16 %v412
      %v1352 = vunpack.c.l.b16 %v413
      %v1353 = vunpack.c.l.b16 %v414
      %v1354 = vunpack.c.l.b16 %v415
      %v1355 = vunpack.c.l.b16 %v416
      %v1356 = vunpack.c.l.b16 %v417
      %v1357 = vunpack.c.l.b16 %v418
      %v1358 = vunpack.c.l.b16 %v419
      %v1359 = vunpack.c.l.b16 %v420
      %v1360 = vunpack.c.l.b16 %v421
      %v1361 = vunpack.c.l.b16 %v422
      %v1362 = vunpack.c.l.b16 %v423
      %v1363 = vunpack.c.l.b16 %v424
      %v1364 = vunpack.c.l.b16 %v425
      %v1365 = vunpack.c.l.b16 %v426
      %v1366 = vunpack.c.l.b16 %v427
      %v1367 = vunpack.c.l.b16 %v428
      %v1368 = vunpack.c.l.b16 %v429
      %v1369 = vunpack.c.l.b16 %v430
      %v1370 = vunpack.c.l.b16 %v431
      %v1371 = vunpack.c.l.b16 %v432
      %v1372 = vunpack.c.l.b16 %v433
      %v1373 = vunpack.c.l.b16 %v434
      %v1374 = vunpack.c.l.b16 %v435
      %v1375 = vunpack.c.l.b16 %v436
      %v1376 = vunpack.c.l.b16 %v437
      %v1377 = vunpack.c.l.b16 %v438
      %v1378 = vunpack.c.l.b16 %v439
      %v1379 = vunpack.c.l.b16 %v440
      %v1380 = vunpack.c.l.b16 %v441
      %v1381 = vunpack.c.l.b16 %v442
      %v1382 = vunpack.c.l.b16 %v443
      %v1383 = vunpack.c.l.b16 %v444
      %v1384 = vunpack.c.l.b16 %v445
      %v1385 = vunpack.c.l.b16 %v446
      %v1386 = vunpack.c.l.b16 %v447
      %v1387 = vunpack.c.l.b16 %v448
      %v1388 = vunpack.c.l.b16 %v449
      %v1389 = vunpack.c.l.b16 %v450
      %v1390 = vunpack.c.l.b16 %v451
      %v1391 = vunpack.c.l.b16 %v452
      %v1392 = vunpack.c.l.b16 %v453
      %v1393 = vunpack.c.l.b16 %v454
      %v1394 = vunpack.c.l.b16 %v455
      %v1395 = vunpack.c.l.b16 %v456
      %v1396 = vunpack.c.l.b16 %v457
      %v1397 = vunpack.c.l.b16 %v458
      %v1398 = vunpack.c.l.b16 %v459
      %v1399 = vunpack.c.l.b16 %v460
      %v1400 = vunpack.c.l.b16 %v461
      %v1401 = vunpack.c.l.b16 %v462
      %v1402 = vunpack.c.l.b16 %v463
      %v1403 = vunpack.c.l.b16 %v464
      %v1404 = vunpack.c.l.b16 %v465
      %v1405 = vunpack.c.l.b16 %v466
      %v1406 = vunpack.c.l.b16 %v467
      %v1407 = vunpack.c.l.b16 %v468
      %v1408 = vunpack.c.l.b16 %v469
      %v1409 = vunpack.c.l.b16 %v470
      %v1410 = vunpack.c.l.b16 %v471
      %v1411 = vunpack.c.l.b16 %v472
      %v1412 = vunpack.c.l.b16 %v473
      %v1413 = vunpack.c.l.b16 %v474
      %v1414 = vunpack.c.l.b16 %v475
      %v1415 = vunpack.c.l.b16 %v476
      %v1416 = vunpack.c.l.b16 %v477
      %v1417 = vunpack.c.l.b16 %v478
      %v1418 = vunpack.c.l.b16 %v479
      %v1419 = vunpack.c.l.b16 %v480
      %v1420 = vunpack.c.l.b16 %v481
      %v1421 = vunpack.c.l.b16 %v482
      %v1422 = vunpack.c.l.b16 %v483
      %v1423 = vunpack.c.l.b16 %v484
      %v1424 = vunpack.c.l.b16 %v485
      %v1425 = vunpack.c.l.b16 %v486
      %v1426 = vunpack.c.l.b16 %v487
      %v1427 = vunpack.c.l.b16 %v488
      %v1428 = vunpack.c.l.b16 %v489
      %v1429 = vunpack.c.l.b16 %v490
      %v1430 = vunpack.c.l.b16 %v491
      %v1431 = vunpack.c.l.b16 %v492
      %v1432 = vunpack.c.l.b16 %v493
      %v1433 = vunpack.c.l.b16 %v494
      %v1434 = vunpack.c.l.b16 %v495
      %v1435 = vunpack.c.l.b16 %v496
      %v1436 = vunpack.c.l.b16 %v497
      %v1437 = vunpack.c.l.b16 %v498
      %v1438 = vunpack.c.l.b16 %v499
      %v1439 = vunpack.c.l.b16 %v500
      %v1440 = vunpack.c.l.b16 %v501
      %v1441 = vunpack.c.l.b16 %v502
      %v1442 = vunpack.c.l.b16 %v503
      %v1443 = vunpack.c.l.b16 %v504
      %v1444 = vunpack.c.l.b16 %v505
      %v1445 = vunpack.c.l.b16 %v506
      %v1446 = vunpack.c.l.b16 %v507
      %v1447 = vunpack.c.l.b16 %v508
      %v1448 = vunpack.c.l.b16 %v509
      %v1449 = vunpack.c.l.b16 %v510
      %v1450 = vunpack.c.l.b16 %v511
      %v1451 = vunpack.c.l.b16 %v512
      %v1452 = vpack.c.b16 %v1309, %v1308
      %v1453 = vpack.c.b16 %v1311, %v1310
      %v1454 = vpack.c.b16 %v1313, %v1312
      %v1455 = vpack.c.b16 %v1315, %v1314
      %v1456 = vpack.c.b16 %v1317, %v1316
      %v1457 = vpack.c.b16 %v1319, %v1318
      %v1458 = vpack.c.b16 %v1321, %v1320
      %v1459 = vpack.c.b16 %v1323, %v1322
      %v1460 = vpack.c.b16 %v1325, %v1324
      %v1461 = vpack.c.b16 %v1327, %v1326
      %v1462 = vpack.c.b16 %v1329, %v1328
      %v1463 = vpack.c.b16 %v1331, %v1330
      %v1464 = vpack.c.b16 %v1333, %v1332
      %v1465 = vpack.c.b16 %v1335, %v1334
      %v1466 = vpack.c.b16 %v1337, %v1336
      %v1467 = vpack.c.b16 %v1339, %v1338
      %v1468 = vpack.c.b16 %v1341, %v1340
      %v1469 = vpack.c.b16 %v1343, %v1342
      %v1470 = vpack.c.b16 %v1345, %v1344
      %v1471 = vpack.c.b16 %v1347, %v1346
      %v1472 = vpack.c.b16 %v1349, %v1348
      %v1473 = vpack.c.b16 %v1351, %v1350
      %v1474 = vpack.c.b16 %v1353, %v1352
      %v1475 = vpack.c.b16 %v1355, %v1354
      %v1476 = vpack.c.b16 %v1357, %v1356
      %v1477 = vpack.c.b16 %v1359, %v1358
      %v1478 = vpack.c.b16 %v1361, %v1360
      %v1479 = vpack.c.b16 %v1363, %v1362
      %v1480 = vpack.c.b16 %v1365, %v1364
      %v1481 = vpack.c.b16 %v1367, %v1366
      %v1482 = vpack.c.b16 %v1369, %v1368
      %v1483 = vpack.c.b16 %v1371, %v1370
      %v1484 = vpack.c.b16 %v1373, %v1372
      %v1485 = vpack.c.b16 %v1375, %v1374
      %v1486 = vpack.c.b16 %v1377, %v1376
      %v1487 = vpack.c.b16 %v1379, %v1378
      %v1488 = vpack.c.b16 %v1381, %v1380
      %v1489 = vpack.c.b16 %v1383, %v1382
      %v1490 = vpack.c.b16 %v1385, %v1384
      %v1491 = vpack.c.b16 %v1387, %v1386
      %v1492 = vpack.c.b16 %v1389, %v1388
      %v1493 = vpack.c.b16 %v1391, %v1390
      %v1494 = vpack.c.b16 %v1393, %v1392
      %v1495 = vpack.c.b16 %v1395, %v1394
      %v1496 = vpack.c.b16 %v1397, %v1396
      %v1497 = vpack.c.b16 %v1399, %v1398
      %v1498 = vpack.c.b16 %v1401, %v1400
      %v1499 = vpack.c.b16 %v1403, %v1402
      %v1500 = vpack.c.b16 %v1405, %v1404
      %v1501 = vpack.c.b16 %v1407, %v1406
      %v1502 = vpack.c.b16 %v1409, %v1408
      %v1503 = vpack.c.b16 %v1411, %v1410
      %v1504 = vpack.c.b16 %v1413, %v1412
      %v1505 = vpack.c.b16 %v1415, %v1414
      %v1506 = vpack.c.b16 %v1417, %v1416
      %v1507 = vpack.c.b16 %v1419, %v1418
      %v1508 = vpack.c.b16 %v1421, %v1420
      %v1509 = vpack.c.b16 %v1423, %v1422
      %v1510 = vpack.c.b16 %v1425, %v1424
      %v1511 = vpack.c.b16 %v1427, %v1426
      %v1512 = vpack.c.b16 %v1429, %v1428
      %v1513 = vpack.c.b16 %v1431, %v1430
      %v1514 = vpack.c.b16 %v1433, %v1432
      %v1515 = vpack.c.b16 %v1435, %v1434
      %v1516 = vpack.c.b16 %v1437, %v1436
      %v1517 = vpack.c.b16 %v1439, %v1438
      %v1518 = vpack.c.b16 %v1441, %v1440
      %v1519 = vpack.c.b16 %v1443, %v1442
      %v1520 = vpack.c.b16 %v1445, %v1444
      %v1521 = vpack.c.b16 %v1447, %v1446
      %v1522 = vpack.c.b16 %v1449, %v1448
      %v1523 = vpack.c.b16 %v1451, %v1450
      %1596 = vmatprep.subr.bf16.mxu0 0
      %1597 = vmatpush1.bf16.msra.mxu0 %v1459
      %1598 = vmatprep.subr.bf16.mxu0 0
      %1599 = vmatpush1.bf16.msra.mxu0 %v1458
      %1600 = vmatprep.subr.bf16.mxu0 0
      %1601 = vmatpush1.bf16.msra.mxu0 %v1457
      %1602 = vmatprep.subr.bf16.mxu0 0
      %1603 = vmatpush1.bf16.msra.mxu0 %v1456
      %1604 = vmatprep.subr.bf16.mxu0 0
      %1605 = vmatpush1.bf16.msra.mxu0 %v1455
      %1606 = vmatprep.subr.bf16.mxu0 0
      %1607 = vmatpush1.bf16.msra.mxu0 %v1454
      %1608 = vmatprep.subr.bf16.mxu0 0
      %1609 = vmatpush1.bf16.msra.mxu0 %v1453
      %1610 = vmatprep.subr.bf16.mxu0 0
      %1611 = vmatpush1.bf16.msra.mxu0 %v1452
      %1612 = vmatprep.subr.bf16.mxu0 0
      %1613 = vmatpush2.bf16.msra.mxu0 %v1467
      %1614 = vmatprep.subr.bf16.mxu0 0
      %1615 = vmatpush2.bf16.msra.mxu0 %v1466
      %1616 = vmatprep.subr.bf16.mxu0 0
      %1617 = vmatpush2.bf16.msra.mxu0 %v1465
      %1618 = vmatprep.subr.bf16.mxu0 0
      %1619 = vmatpush2.bf16.msra.mxu0 %v1464
      %1620 = vmatprep.subr.bf16.mxu0 0
      %1621 = vmatpush2.bf16.msra.mxu0 %v1463
      %1622 = vmatprep.subr.bf16.mxu0 0
      %1623 = vmatpush2.bf16.msra.mxu0 %v1462
      %1624 = vmatprep.subr.bf16.mxu0 0
      %1625 = vmatpush2.bf16.msra.mxu0 %v1461
      %1626 = vmatprep.subr.bf16.mxu0 0
      %1627 = vmatpush2.bf16.msra.mxu0 %v1460
      %1628 = vmatprep.mubr.bf16.mxu0 %v913
      %1629 = vmatmul.mubr.bf16.gmra.mxu0 %v912
      %v1630 = vpop.f32.mrf.mxu0
      %v1631 = vadd.f32 %v518, %v1630
      %v1632 = vpop.f32.mrf.mxu0
      %v1633 = vpop.f32.mrf.mxu0
      %v1634 = vadd.f32 %v518, %v1633
      %v1635 = vpop.f32.mrf.mxu0
      %1636 = vmatprep.mubr.bf16.mxu0 %v922
      %1637 = vmatmul.mubr.bf16.gmra.mxu0 %v921
      %v1638 = vpop.f32.mrf.mxu0
      %v1639 = vadd.f32 %v518, %v1638
      %v1640 = vpop.f32.mrf.mxu0
      %v1641 = vpop.f32.mrf.mxu0
      %v1642 = vadd.f32 %v518, %v1641
      %v1643 = vpop.f32.mrf.mxu0
      %1644 = vmatprep.mubr.bf16.mxu0 %v931
      %1645 = vmatmul.mubr.bf16.gmra.mxu0 %v930
      %v1646 = vpop.f32.mrf.mxu0
      %v1647 = vadd.f32 %v518, %v1646
      %v1648 = vpop.f32.mrf.mxu0
      %v1649 = vpop.f32.mrf.mxu0
      %v1650 = vadd.f32 %v518, %v1649
      %v1651 = vpop.f32.mrf.mxu0
      %1652 = vmatprep.mubr.bf16.mxu0 %v940
      %1653 = vmatmul.mubr.bf16.gmra.mxu0 %v939
      %v1654 = vpop.f32.mrf.mxu0
      %v1655 = vadd.f32 %v518, %v1654
      %v1656 = vpop.f32.mrf.mxu0
      %v1657 = vpop.f32.mrf.mxu0
      %v1658 = vadd.f32 %v518, %v1657
      %v1659 = vpop.f32.mrf.mxu0
      %1660 = vmatprep.mubr.bf16.mxu0 %v949
      %1661 = vmatmul.mubr.bf16.gmra.mxu0 %v948
      %v1662 = vpop.f32.mrf.mxu0
      %v1663 = vadd.f32 %v518, %v1662
      %v1664 = vpop.f32.mrf.mxu0
      %v1665 = vpop.f32.mrf.mxu0
      %v1666 = vadd.f32 %v518, %v1665
      %v1667 = vpop.f32.mrf.mxu0
      %1668 = vmatprep.mubr.bf16.mxu0 %v958
      %1669 = vmatmul.mubr.bf16.gmra.mxu0 %v957
      %v1670 = vpop.f32.mrf.mxu0
      %v1671 = vadd.f32 %v518, %v1670
      %v1672 = vpop.f32.mrf.mxu0
      %v1673 = vpop.f32.mrf.mxu0
      %v1674 = vadd.f32 %v518, %v1673
      %v1675 = vpop.f32.mrf.mxu0
      %1676 = vmatprep.mubr.bf16.mxu0 %v967
      %1677 = vmatmul.mubr.bf16.gmra.mxu0 %v966
      %v1678 = vpop.f32.mrf.mxu0
      %v1679 = vadd.f32 %v518, %v1678
      %v1680 = vpop.f32.mrf.mxu0
      %v1681 = vpop.f32.mrf.mxu0
      %v1682 = vadd.f32 %v518, %v1681
      %v1683 = vpop.f32.mrf.mxu0
      %1684 = vmatprep.mubr.bf16.mxu0 %v976
      %1685 = vmatmul.mubr.bf16.gmra.mxu0 %v975
      %v1686 = vpop.f32.mrf.mxu0
      %v1687 = vadd.f32 %v518, %v1686
      %v1688 = vpop.f32.mrf.mxu0
      %v1689 = vpop.f32.mrf.mxu0
      %v1690 = vadd.f32 %v518, %v1689
      %v1691 = vpop.f32.mrf.mxu0
      %1692 = vmatprep.mubr.bf16.mxu0 %v985
      %1693 = vmatmul.mubr.bf16.gmra.mxu0 %v984
      %v1694 = vpop.f32.mrf.mxu0
      %v1695 = vadd.f32 %v518, %v1694
      %v1696 = vpop.f32.mrf.mxu0
      %v1697 = vpop.f32.mrf.mxu0
      %v1698 = vadd.f32 %v518, %v1697
      %v1699 = vpop.f32.mrf.mxu0
      %1700 = vmatprep.mubr.bf16.mxu0 %v994
      %1701 = vmatmul.mubr.bf16.gmra.mxu0 %v993
      %v1702 = vpop.f32.mrf.mxu0
      %v1703 = vadd.f32 %v518, %v1702
      %v1704 = vpop.f32.mrf.mxu0
      %v1705 = vpop.f32.mrf.mxu0
      %v1706 = vadd.f32 %v518, %v1705
      %v1707 = vpop.f32.mrf.mxu0
      %1708 = vmatprep.mubr.bf16.mxu0 %v1003
      %1709 = vmatmul.mubr.bf16.gmra.mxu0 %v1002
      %v1710 = vpop.f32.mrf.mxu0
      %v1711 = vadd.f32 %v518, %v1710
      %v1712 = vpop.f32.mrf.mxu0
      %v1713 = vpop.f32.mrf.mxu0
      %v1714 = vadd.f32 %v518, %v1713
      %v1715 = vpop.f32.mrf.mxu0
      %1716 = vmatprep.mubr.bf16.mxu0 %v1012
      %1717 = vmatmul.mubr.bf16.gmra.mxu0 %v1011
      %v1718 = vpop.f32.mrf.mxu0
      %v1719 = vadd.f32 %v518, %v1718
      %v1720 = vpop.f32.mrf.mxu0
      %v1721 = vpop.f32.mrf.mxu0
      %v1722 = vadd.f32 %v518, %v1721
      %v1723 = vpop.f32.mrf.mxu0
      %1724 = vmatprep.mubr.bf16.mxu0 %v1021
      %1725 = vmatmul.mubr.bf16.gmra.mxu0 %v1020
      %v1726 = vpop.f32.mrf.mxu0
      %v1727 = vadd.f32 %v518, %v1726
      %v1728 = vpop.f32.mrf.mxu0
      %v1729 = vpop.f32.mrf.mxu0
      %v1730 = vadd.f32 %v518, %v1729
      %v1731 = vpop.f32.mrf.mxu0
      %1732 = vmatprep.mubr.bf16.mxu0 %v1030
      %1733 = vmatmul.mubr.bf16.gmra.mxu0 %v1029
      %v1734 = vpop.f32.mrf.mxu0
      %v1735 = vadd.f32 %v518, %v1734
      %v1736 = vpop.f32.mrf.mxu0
      %v1737 = vpop.f32.mrf.mxu0
      %v1738 = vadd.f32 %v518, %v1737
      %v1739 = vpop.f32.mrf.mxu0
      %1740 = vdwg.mxu0
      %1741 = vmatprep.subr.bf16.mxu0 0
      %1742 = vmatpush1.bf16.msra.mxu0 %v1475
      %1743 = vmatprep.subr.bf16.mxu0 0
      %1744 = vmatpush1.bf16.msra.mxu0 %v1474
      %1745 = vmatprep.subr.bf16.mxu0 0
      %1746 = vmatpush1.bf16.msra.mxu0 %v1473
      %1747 = vmatprep.subr.bf16.mxu0 0
      %1748 = vmatpush1.bf16.msra.mxu0 %v1472
      %1749 = vmatprep.subr.bf16.mxu0 0
      %1750 = vmatpush1.bf16.msra.mxu0 %v1471
      %1751 = vmatprep.subr.bf16.mxu0 0
      %1752 = vmatpush1.bf16.msra.mxu0 %v1470
      %1753 = vmatprep.subr.bf16.mxu0 0
      %1754 = vmatpush1.bf16.msra.mxu0 %v1469
      %1755 = vmatprep.subr.bf16.mxu0 0
      %1756 = vmatpush1.bf16.msra.mxu0 %v1468
      %1757 = vmatprep.subr.bf16.mxu0 0
      %1758 = vmatpush2.bf16.msra.mxu0 %v1483
      %1759 = vmatprep.subr.bf16.mxu0 0
      %1760 = vmatpush2.bf16.msra.mxu0 %v1482
      %1761 = vmatprep.subr.bf16.mxu0 0
      %1762 = vmatpush2.bf16.msra.mxu0 %v1481
      %1763 = vmatprep.subr.bf16.mxu0 0
      %1764 = vmatpush2.bf16.msra.mxu0 %v1480
      %1765 = vmatprep.subr.bf16.mxu0 0
      %1766 = vmatpush2.bf16.msra.mxu0 %v1479
      %1767 = vmatprep.subr.bf16.mxu0 0
      %1768 = vmatpush2.bf16.msra.mxu0 %v1478
      %1769 = vmatprep.subr.bf16.mxu0 0
      %1770 = vmatpush2.bf16.msra.mxu0 %v1477
      %1771 = vmatprep.subr.bf16.mxu0 0
      %1772 = vmatpush2.bf16.msra.mxu0 %v1476
      %1773 = vmatprep.mubr.bf16.mxu0 %v915
      %1774 = vmatmul.mubr.bf16.gmra.mxu0 %v914
      %v1775 = vpop.f32.mrf.mxu0
      %v1776 = vadd.f32 %v1631, %v1775
      %v1777 = vpop.f32.mrf.mxu0
      %v1778 = vpop.f32.mrf.mxu0
      %v1779 = vadd.f32 %v1634, %v1778
      %v1780 = vpop.f32.mrf.mxu0
      %1781 = vmatprep.mubr.bf16.mxu0 %v924
      %1782 = vmatmul.mubr.bf16.gmra.mxu0 %v923
      %v1783 = vpop.f32.mrf.mxu0
      %v1784 = vadd.f32 %v1639, %v1783
      %v1785 = vpop.f32.mrf.mxu0
      %v1786 = vpop.f32.mrf.mxu0
      %v1787 = vadd.f32 %v1642, %v1786
      %v1788 = vpop.f32.mrf.mxu0
      %1789 = vmatprep.mubr.bf16.mxu0 %v933
      %1790 = vmatmul.mubr.bf16.gmra.mxu0 %v932
      %v1791 = vpop.f32.mrf.mxu0
      %v1792 = vadd.f32 %v1647, %v1791
      %v1793 = vpop.f32.mrf.mxu0
      %v1794 = vpop.f32.mrf.mxu0
      %v1795 = vadd.f32 %v1650, %v1794
      %v1796 = vpop.f32.mrf.mxu0
      %1797 = vmatprep.mubr.bf16.mxu0 %v942
      %1798 = vmatmul.mubr.bf16.gmra.mxu0 %v941
      %v1799 = vpop.f32.mrf.mxu0
      %v1800 = vadd.f32 %v1655, %v1799
      %v1801 = vpop.f32.mrf.mxu0
      %v1802 = vpop.f32.mrf.mxu0
      %v1803 = vadd.f32 %v1658, %v1802
      %v1804 = vpop.f32.mrf.mxu0
      %1805 = vmatprep.mubr.bf16.mxu0 %v951
      %1806 = vmatmul.mubr.bf16.gmra.mxu0 %v950
      %v1807 = vpop.f32.mrf.mxu0
      %v1808 = vadd.f32 %v1663, %v1807
      %v1809 = vpop.f32.mrf.mxu0
      %v1810 = vpop.f32.mrf.mxu0
      %v1811 = vadd.f32 %v1666, %v1810
      %v1812 = vpop.f32.mrf.mxu0
      %1813 = vmatprep.mubr.bf16.mxu0 %v960
      %1814 = vmatmul.mubr.bf16.gmra.mxu0 %v959
      %v1815 = vpop.f32.mrf.mxu0
      %v1816 = vadd.f32 %v1671, %v1815
      %v1817 = vpop.f32.mrf.mxu0
      %v1818 = vpop.f32.mrf.mxu0
      %v1819 = vadd.f32 %v1674, %v1818
      %v1820 = vpop.f32.mrf.mxu0
      %1821 = vmatprep.mubr.bf16.mxu0 %v969
      %1822 = vmatmul.mubr.bf16.gmra.mxu0 %v968
      %v1823 = vpop.f32.mrf.mxu0
      %v1824 = vadd.f32 %v1679, %v1823
      %v1825 = vpop.f32.mrf.mxu0
      %v1826 = vpop.f32.mrf.mxu0
      %v1827 = vadd.f32 %v1682, %v1826
      %v1828 = vpop.f32.mrf.mxu0
      %1829 = vmatprep.mubr.bf16.mxu0 %v978
      %1830 = vmatmul.mubr.bf16.gmra.mxu0 %v977
      %v1831 = vpop.f32.mrf.mxu0
      %v1832 = vadd.f32 %v1687, %v1831
      %v1833 = vpop.f32.mrf.mxu0
      %v1834 = vpop.f32.mrf.mxu0
      %v1835 = vadd.f32 %v1690, %v1834
      %v1836 = vpop.f32.mrf.mxu0
      %1837 = vmatprep.mubr.bf16.mxu0 %v987
      %1838 = vmatmul.mubr.bf16.gmra.mxu0 %v986
      %v1839 = vpop.f32.mrf.mxu0
      %v1840 = vadd.f32 %v1695, %v1839
      %v1841 = vpop.f32.mrf.mxu0
      %v1842 = vpop.f32.mrf.mxu0
      %v1843 = vadd.f32 %v1698, %v1842
      %v1844 = vpop.f32.mrf.mxu0
      %1845 = vmatprep.mubr.bf16.mxu0 %v996
      %1846 = vmatmul.mubr.bf16.gmra.mxu0 %v995
      %v1847 = vpop.f32.mrf.mxu0
      %v1848 = vadd.f32 %v1703, %v1847
      %v1849 = vpop.f32.mrf.mxu0
      %v1850 = vpop.f32.mrf.mxu0
      %v1851 = vadd.f32 %v1706, %v1850
      %v1852 = vpop.f32.mrf.mxu0
      %1853 = vmatprep.mubr.bf16.mxu0 %v1005
      %1854 = vmatmul.mubr.bf16.gmra.mxu0 %v1004
      %v1855 = vpop.f32.mrf.mxu0
      %v1856 = vadd.f32 %v1711, %v1855
      %v1857 = vpop.f32.mrf.mxu0
      %v1858 = vpop.f32.mrf.mxu0
      %v1859 = vadd.f32 %v1714, %v1858
      %v1860 = vpop.f32.mrf.mxu0
      %1861 = vmatprep.mubr.bf16.mxu0 %v1014
      %1862 = vmatmul.mubr.bf16.gmra.mxu0 %v1013
      %v1863 = vpop.f32.mrf.mxu0
      %v1864 = vadd.f32 %v1719, %v1863
      %v1865 = vpop.f32.mrf.mxu0
      %v1866 = vpop.f32.mrf.mxu0
      %v1867 = vadd.f32 %v1722, %v1866
      %v1868 = vpop.f32.mrf.mxu0
      %1869 = vmatprep.mubr.bf16.mxu0 %v1023
      %1870 = vmatmul.mubr.bf16.gmra.mxu0 %v1022
      %v1871 = vpop.f32.mrf.mxu0
      %v1872 = vadd.f32 %v1727, %v1871
      %v1873 = vpop.f32.mrf.mxu0
      %v1874 = vpop.f32.mrf.mxu0
      %v1875 = vadd.f32 %v1730, %v1874
      %v1876 = vpop.f32.mrf.mxu0
      %1877 = vmatprep.mubr.bf16.mxu0 %v1032
      %1878 = vmatmul.mubr.bf16.gmra.mxu0 %v1031
      %v1879 = vpop.f32.mrf.mxu0
      %v1880 = vadd.f32 %v1735, %v1879
      %v1881 = vpop.f32.mrf.mxu0
      %v1882 = vpop.f32.mrf.mxu0
      %v1883 = vadd.f32 %v1738, %v1882
      %v1884 = vpop.f32.mrf.mxu0
      %1885 = vdwg.mxu0
      %1886 = vmatprep.subr.bf16.mxu0 0
      %1887 = vmatpush1.bf16.msra.mxu0 %v1491
      %1888 = vmatprep.subr.bf16.mxu0 0
      %1889 = vmatpush1.bf16.msra.mxu0 %v1490
      %1890 = vmatprep.subr.bf16.mxu0 0
      %1891 = vmatpush1.bf16.msra.mxu0 %v1489
      %1892 = vmatprep.subr.bf16.mxu0 0
      %1893 = vmatpush1.bf16.msra.mxu0 %v1488
      %1894 = vmatprep.subr.bf16.mxu0 0
      %1895 = vmatpush1.bf16.msra.mxu0 %v1487
      %1896 = vmatprep.subr.bf16.mxu0 0
      %1897 = vmatpush1.bf16.msra.mxu0 %v1486
      %1898 = vmatprep.subr.bf16.mxu0 0
      %1899 = vmatpush1.bf16.msra.mxu0 %v1485
      %1900 = vmatprep.subr.bf16.mxu0 0
      %1901 = vmatpush1.bf16.msra.mxu0 %v1484
      %1902 = vmatprep.subr.bf16.mxu0 0
      %1903 = vmatpush2.bf16.msra.mxu0 %v1499
      %1904 = vmatprep.subr.bf16.mxu0 0
      %1905 = vmatpush2.bf16.msra.mxu0 %v1498
      %1906 = vmatprep.subr.bf16.mxu0 0
      %1907 = vmatpush2.bf16.msra.mxu0 %v1497
      %1908 = vmatprep.subr.bf16.mxu0 0
      %1909 = vmatpush2.bf16.msra.mxu0 %v1496
      %1910 = vmatprep.subr.bf16.mxu0 0
      %1911 = vmatpush2.bf16.msra.mxu0 %v1495
      %1912 = vmatprep.subr.bf16.mxu0 0
      %1913 = vmatpush2.bf16.msra.mxu0 %v1494
      %1914 = vmatprep.subr.bf16.mxu0 0
      %1915 = vmatpush2.bf16.msra.mxu0 %v1493
      %1916 = vmatprep.subr.bf16.mxu0 0
      %1917 = vmatpush2.bf16.msra.mxu0 %v1492
      %1918 = vmatprep.mubr.bf16.mxu0 %v917
      %1919 = vmatmul.mubr.bf16.gmra.mxu0 %v916
      %v1920 = vpop.f32.mrf.mxu0
      %v1921 = vadd.f32 %v1776, %v1920
      %v1922 = vpop.f32.mrf.mxu0
      %v1923 = vpop.f32.mrf.mxu0
      %v1924 = vadd.f32 %v1779, %v1923
      %v1925 = vpop.f32.mrf.mxu0
      %1926 = vmatprep.mubr.bf16.mxu0 %v926
      %1927 = vmatmul.mubr.bf16.gmra.mxu0 %v925
      %v1928 = vpop.f32.mrf.mxu0
      %v1929 = vadd.f32 %v1784, %v1928
      %v1930 = vpop.f32.mrf.mxu0
      %v1931 = vpop.f32.mrf.mxu0
      %v1932 = vadd.f32 %v1787, %v1931
      %v1933 = vpop.f32.mrf.mxu0
      %1934 = vmatprep.mubr.bf16.mxu0 %v935
      %1935 = vmatmul.mubr.bf16.gmra.mxu0 %v934
      %v1936 = vpop.f32.mrf.mxu0
      %v1937 = vadd.f32 %v1792, %v1936
      %v1938 = vpop.f32.mrf.mxu0
      %v1939 = vpop.f32.mrf.mxu0
      %v1940 = vadd.f32 %v1795, %v1939
      %v1941 = vpop.f32.mrf.mxu0
      %1942 = vmatprep.mubr.bf16.mxu0 %v944
      %1943 = vmatmul.mubr.bf16.gmra.mxu0 %v943
      %v1944 = vpop.f32.mrf.mxu0
      %v1945 = vadd.f32 %v1800, %v1944
      %v1946 = vpop.f32.mrf.mxu0
      %v1947 = vpop.f32.mrf.mxu0
      %v1948 = vadd.f32 %v1803, %v1947
      %v1949 = vpop.f32.mrf.mxu0
      %1950 = vmatprep.mubr.bf16.mxu0 %v953
      %1951 = vmatmul.mubr.bf16.gmra.mxu0 %v952
      %v1952 = vpop.f32.mrf.mxu0
      %v1953 = vadd.f32 %v1808, %v1952
      %v1954 = vpop.f32.mrf.mxu0
      %v1955 = vpop.f32.mrf.mxu0
      %v1956 = vadd.f32 %v1811, %v1955
      %v1957 = vpop.f32.mrf.mxu0
      %1958 = vmatprep.mubr.bf16.mxu0 %v962
      %1959 = vmatmul.mubr.bf16.gmra.mxu0 %v961
      %v1960 = vpop.f32.mrf.mxu0
      %v1961 = vadd.f32 %v1816, %v1960
      %v1962 = vpop.f32.mrf.mxu0
      %v1963 = vpop.f32.mrf.mxu0
      %v1964 = vadd.f32 %v1819, %v1963
      %v1965 = vpop.f32.mrf.mxu0
      %1966 = vmatprep.mubr.bf16.mxu0 %v971
      %1967 = vmatmul.mubr.bf16.gmra.mxu0 %v970
      %v1968 = vpop.f32.mrf.mxu0
      %v1969 = vadd.f32 %v1824, %v1968
      %v1970 = vpop.f32.mrf.mxu0
      %v1971 = vpop.f32.mrf.mxu0
      %v1972 = vadd.f32 %v1827, %v1971
      %v1973 = vpop.f32.mrf.mxu0
      %1974 = vmatprep.mubr.bf16.mxu0 %v980
      %1975 = vmatmul.mubr.bf16.gmra.mxu0 %v979
      %v1976 = vpop.f32.mrf.mxu0
      %v1977 = vadd.f32 %v1832, %v1976
      %v1978 = vpop.f32.mrf.mxu0
      %v1979 = vpop.f32.mrf.mxu0
      %v1980 = vadd.f32 %v1835, %v1979
      %v1981 = vpop.f32.mrf.mxu0
      %1982 = vmatprep.mubr.bf16.mxu0 %v989
      %1983 = vmatmul.mubr.bf16.gmra.mxu0 %v988
      %v1984 = vpop.f32.mrf.mxu0
      %v1985 = vadd.f32 %v1840, %v1984
      %v1986 = vpop.f32.mrf.mxu0
      %v1987 = vpop.f32.mrf.mxu0
      %v1988 = vadd.f32 %v1843, %v1987
      %v1989 = vpop.f32.mrf.mxu0
      %1990 = vmatprep.mubr.bf16.mxu0 %v998
      %1991 = vmatmul.mubr.bf16.gmra.mxu0 %v997
      %v1992 = vpop.f32.mrf.mxu0
      %v1993 = vadd.f32 %v1848, %v1992
      %v1994 = vpop.f32.mrf.mxu0
      %v1995 = vpop.f32.mrf.mxu0
      %v1996 = vadd.f32 %v1851, %v1995
      %v1997 = vpop.f32.mrf.mxu0
      %1998 = vmatprep.mubr.bf16.mxu0 %v1007
      %1999 = vmatmul.mubr.bf16.gmra.mxu0 %v1006
      %v2000 = vpop.f32.mrf.mxu0
      %v2001 = vadd.f32 %v1856, %v2000
      %v2002 = vpop.f32.mrf.mxu0
      %v2003 = vpop.f32.mrf.mxu0
      %v2004 = vadd.f32 %v1859, %v2003
      %v2005 = vpop.f32.mrf.mxu0
      %2006 = vmatprep.mubr.bf16.mxu0 %v1016
      %2007 = vmatmul.mubr.bf16.gmra.mxu0 %v1015
      %v2008 = vpop.f32.mrf.mxu0
      %v2009 = vadd.f32 %v1864, %v2008
      %v2010 = vpop.f32.mrf.mxu0
      %v2011 = vpop.f32.mrf.mxu0
      %v2012 = vadd.f32 %v1867, %v2011
      %v2013 = vpop.f32.mrf.mxu0
      %2014 = vmatprep.mubr.bf16.mxu0 %v1025
      %2015 = vmatmul.mubr.bf16.gmra.mxu0 %v1024
      %v2016 = vpop.f32.mrf.mxu0
      %v2017 = vadd.f32 %v1872, %v2016
      %v2018 = vpop.f32.mrf.mxu0
      %v2019 = vpop.f32.mrf.mxu0
      %v2020 = vadd.f32 %v1875, %v2019
      %v2021 = vpop.f32.mrf.mxu0
      %2022 = vmatprep.mubr.bf16.mxu0 %v1034
      %2023 = vmatmul.mubr.bf16.gmra.mxu0 %v1033
      %v2024 = vpop.f32.mrf.mxu0
      %v2025 = vadd.f32 %v1880, %v2024
      %v2026 = vpop.f32.mrf.mxu0
      %v2027 = vpop.f32.mrf.mxu0
      %v2028 = vadd.f32 %v1883, %v2027
      %v2029 = vpop.f32.mrf.mxu0
      %2030 = vdwg.mxu0
      %2031 = vmatprep.subr.bf16.mxu0 0
      %2032 = vmatpush1.bf16.msra.mxu0 %v1507
      %2033 = vmatprep.subr.bf16.mxu0 0
      %2034 = vmatpush1.bf16.msra.mxu0 %v1506
      %2035 = vmatprep.subr.bf16.mxu0 0
      %2036 = vmatpush1.bf16.msra.mxu0 %v1505
      %2037 = vmatprep.subr.bf16.mxu0 0
      %2038 = vmatpush1.bf16.msra.mxu0 %v1504
      %2039 = vmatprep.subr.bf16.mxu0 0
      %2040 = vmatpush1.bf16.msra.mxu0 %v1503
      %2041 = vmatprep.subr.bf16.mxu0 0
      %2042 = vmatpush1.bf16.msra.mxu0 %v1502
      %2043 = vmatprep.subr.bf16.mxu0 0
      %2044 = vmatpush1.bf16.msra.mxu0 %v1501
      %2045 = vmatprep.subr.bf16.mxu0 0
      %2046 = vmatpush1.bf16.msra.mxu0 %v1500
      %2047 = vmatprep.subr.bf16.mxu0 0
      %2048 = vmatpush2.bf16.msra.mxu0 %v1515
      %2049 = vmatprep.subr.bf16.mxu0 0
      %2050 = vmatpush2.bf16.msra.mxu0 %v1514
      %2051 = vmatprep.subr.bf16.mxu0 0
      %2052 = vmatpush2.bf16.msra.mxu0 %v1513
      %2053 = vmatprep.subr.bf16.mxu0 0
      %2054 = vmatpush2.bf16.msra.mxu0 %v1512
      %2055 = vmatprep.subr.bf16.mxu0 0
      %2056 = vmatpush2.bf16.msra.mxu0 %v1511
      %2057 = vmatprep.subr.bf16.mxu0 0
      %2058 = vmatpush2.bf16.msra.mxu0 %v1510
      %2059 = vmatprep.subr.bf16.mxu0 0
      %2060 = vmatpush2.bf16.msra.mxu0 %v1509
      %2061 = vmatprep.subr.bf16.mxu0 0
      %2062 = vmatpush2.bf16.msra.mxu0 %v1508
      %2063 = vmatprep.mubr.bf16.mxu0 %v919
      %2064 = vmatmul.mubr.bf16.gmra.mxu0 %v918
      %v2065 = vpop.f32.mrf.mxu0
      %v2066 = vadd.f32 %v1921, %v2065
      %v2067 = vpop.f32.mrf.mxu0
      %v2068 = vpop.f32.mrf.mxu0
      %v2069 = vadd.f32 %v1924, %v2068
      %v2070 = vpop.f32.mrf.mxu0
      %2071 = vmatprep.mubr.bf16.mxu0 %v928
      %2072 = vmatmul.mubr.bf16.gmra.mxu0 %v927
      %v2073 = vpop.f32.mrf.mxu0
      %v2074 = vadd.f32 %v1929, %v2073
      %v2075 = vpop.f32.mrf.mxu0
      %v2076 = vpop.f32.mrf.mxu0
      %v2077 = vadd.f32 %v1932, %v2076
      %v2078 = vpop.f32.mrf.mxu0
      %2079 = vmatprep.mubr.bf16.mxu0 %v937
      %2080 = vmatmul.mubr.bf16.gmra.mxu0 %v936
      %v2081 = vpop.f32.mrf.mxu0
      %v2082 = vadd.f32 %v1937, %v2081
      %v2083 = vpop.f32.mrf.mxu0
      %v2084 = vpop.f32.mrf.mxu0
      %v2085 = vadd.f32 %v1940, %v2084
      %v2086 = vpop.f32.mrf.mxu0
      %2087 = vmatprep.mubr.bf16.mxu0 %v946
      %2088 = vmatmul.mubr.bf16.gmra.mxu0 %v945
      %v2089 = vpop.f32.mrf.mxu0
      %v2090 = vadd.f32 %v1945, %v2089
      %v2091 = vpop.f32.mrf.mxu0
      %v2092 = vpop.f32.mrf.mxu0
      %v2093 = vadd.f32 %v1948, %v2092
      %v2094 = vpop.f32.mrf.mxu0
      %2095 = vmatprep.mubr.bf16.mxu0 %v955
      %2096 = vmatmul.mubr.bf16.gmra.mxu0 %v954
      %v2097 = vpop.f32.mrf.mxu0
      %v2098 = vadd.f32 %v1953, %v2097
      %v2099 = vpop.f32.mrf.mxu0
      %v2100 = vpop.f32.mrf.mxu0
      %v2101 = vadd.f32 %v1956, %v2100
      %v2102 = vpop.f32.mrf.mxu0
      %2103 = vmatprep.mubr.bf16.mxu0 %v964
      %2104 = vmatmul.mubr.bf16.gmra.mxu0 %v963
      %v2105 = vpop.f32.mrf.mxu0
      %v2106 = vadd.f32 %v1961, %v2105
      %v2107 = vpop.f32.mrf.mxu0
      %v2108 = vpop.f32.mrf.mxu0
      %v2109 = vadd.f32 %v1964, %v2108
      %v2110 = vpop.f32.mrf.mxu0
      %2111 = vmatprep.mubr.bf16.mxu0 %v973
      %2112 = vmatmul.mubr.bf16.gmra.mxu0 %v972
      %v2113 = vpop.f32.mrf.mxu0
      %v2114 = vadd.f32 %v1969, %v2113
      %v2115 = vpop.f32.mrf.mxu0
      %v2116 = vpop.f32.mrf.mxu0
      %v2117 = vadd.f32 %v1972, %v2116
      %v2118 = vpop.f32.mrf.mxu0
      %2119 = vmatprep.mubr.bf16.mxu0 %v982
      %2120 = vmatmul.mubr.bf16.gmra.mxu0 %v981
      %v2121 = vpop.f32.mrf.mxu0
      %v2122 = vadd.f32 %v1977, %v2121
      %v2123 = vpop.f32.mrf.mxu0
      %v2124 = vpop.f32.mrf.mxu0
      %v2125 = vadd.f32 %v1980, %v2124
      %v2126 = vpop.f32.mrf.mxu0
      %2127 = vmatprep.mubr.bf16.mxu0 %v991
      %2128 = vmatmul.mubr.bf16.gmra.mxu0 %v990
      %v2129 = vpop.f32.mrf.mxu0
      %v2130 = vadd.f32 %v1985, %v2129
      %v2131 = vpop.f32.mrf.mxu0
      %v2132 = vpop.f32.mrf.mxu0
      %v2133 = vadd.f32 %v1988, %v2132
      %v2134 = vpop.f32.mrf.mxu0
      %2135 = vmatprep.mubr.bf16.mxu0 %v1000
      %2136 = vmatmul.mubr.bf16.gmra.mxu0 %v999
      %v2137 = vpop.f32.mrf.mxu0
      %v2138 = vadd.f32 %v1993, %v2137
      %v2139 = vpop.f32.mrf.mxu0
      %v2140 = vpop.f32.mrf.mxu0
      %v2141 = vadd.f32 %v1996, %v2140
      %v2142 = vpop.f32.mrf.mxu0
      %2143 = vmatprep.mubr.bf16.mxu0 %v1009
      %2144 = vmatmul.mubr.bf16.gmra.mxu0 %v1008
      %v2145 = vpop.f32.mrf.mxu0
      %v2146 = vadd.f32 %v2001, %v2145
      %v2147 = vpop.f32.mrf.mxu0
      %v2148 = vpop.f32.mrf.mxu0
      %v2149 = vadd.f32 %v2004, %v2148
      %v2150 = vpop.f32.mrf.mxu0
      %2151 = vmatprep.mubr.bf16.mxu0 %v1018
      %2152 = vmatmul.mubr.bf16.gmra.mxu0 %v1017
      %v2153 = vpop.f32.mrf.mxu0
      %v2154 = vadd.f32 %v2009, %v2153
      %v2155 = vpop.f32.mrf.mxu0
      %v2156 = vpop.f32.mrf.mxu0
      %v2157 = vadd.f32 %v2012, %v2156
      %v2158 = vpop.f32.mrf.mxu0
      %2159 = vmatprep.mubr.bf16.mxu0 %v1027
      %2160 = vmatmul.mubr.bf16.gmra.mxu0 %v1026
      %v2161 = vpop.f32.mrf.mxu0
      %v2162 = vadd.f32 %v2017, %v2161
      %v2163 = vpop.f32.mrf.mxu0
      %v2164 = vpop.f32.mrf.mxu0
      %v2165 = vadd.f32 %v2020, %v2164
      %v2166 = vpop.f32.mrf.mxu0
      %2167 = vmatprep.mubr.bf16.mxu0 %v1036
      %2168 = vmatmul.mubr.bf16.gmra.mxu0 %v1035
      %v2169 = vpop.f32.mrf.mxu0
      %v2170 = vadd.f32 %v2025, %v2169
      %v2171 = vpop.f32.mrf.mxu0
      %v2172 = vpop.f32.mrf.mxu0
      %v2173 = vadd.f32 %v2028, %v2172
      %v2174 = vpop.f32.mrf.mxu0
      %2175 = vdwg.mxu0
      %2176 = vmatprep.subr.bf16.mxu0 0
      %2177 = vmatpush1.bf16.msra.mxu0 %v1523
      %2178 = vmatprep.subr.bf16.mxu0 0
      %2179 = vmatpush1.bf16.msra.mxu0 %v1522
      %2180 = vmatprep.subr.bf16.mxu0 0
      %2181 = vmatpush1.bf16.msra.mxu0 %v1521
      %2182 = vmatprep.subr.bf16.mxu0 0
      %2183 = vmatpush1.bf16.msra.mxu0 %v1520
      %2184 = vmatprep.subr.bf16.mxu0 0
      %2185 = vmatpush1.bf16.msra.mxu0 %v1519
      %2186 = vmatprep.subr.bf16.mxu0 0
      %2187 = vmatpush1.bf16.msra.mxu0 %v1518
      %2188 = vmatprep.subr.bf16.mxu0 0
      %2189 = vmatpush1.bf16.msra.mxu0 %v1517
      %2190 = vmatprep.subr.bf16.mxu0 0
      %2191 = vmatpush1.bf16.msra.mxu0 %v1516
      %2192 = vmatprep.subr.bf16.mxu0 0
      %2193 = vmatpush2.bf16.msra.mxu0 0
      %2194 = vmatprep.subr.bf16.mxu0 0
      %2195 = vmatpush2.bf16.msra.mxu0 0
      %2196 = vmatprep.subr.bf16.mxu0 0
      %2197 = vmatpush2.bf16.msra.mxu0 0
      %2198 = vmatprep.subr.bf16.mxu0 0
      %2199 = vmatpush2.bf16.msra.mxu0 0
      %2200 = vmatprep.subr.bf16.mxu0 0
      %2201 = vmatpush2.bf16.msra.mxu0 0
      %2202 = vmatprep.subr.bf16.mxu0 0
      %2203 = vmatpush2.bf16.msra.mxu0 0
      %2204 = vmatprep.subr.bf16.mxu0 0
      %2205 = vmatpush2.bf16.msra.mxu0 0
      %2206 = vmatprep.subr.bf16.mxu0 0
      %2207 = vmatpush2.bf16.msra.mxu0 0
      %2208 = vmatprep.mubr.bf16.mxu0 0
      %2209 = vmatmul.mubr.bf16.gmra.mxu0 %v920
      %v2210 = vpop.f32.mrf.mxu0
      %v2211 = vadd.f32 %v2066, %v2210
      %v2212 = vpop.f32.mrf.mxu0
      %v2213 = vpop.f32.mrf.mxu0
      %v2214 = vadd.f32 %v2069, %v2213
      %v2215 = vpop.f32.mrf.mxu0
      %2216 = vmatprep.mubr.bf16.mxu0 0
      %2217 = vmatmul.mubr.bf16.gmra.mxu0 %v929
      %v2218 = vpop.f32.mrf.mxu0
      %v2219 = vadd.f32 %v2074, %v2218
      %v2220 = vpop.f32.mrf.mxu0
      %v2221 = vpop.f32.mrf.mxu0
      %v2222 = vadd.f32 %v2077, %v2221
      %v2223 = vpop.f32.mrf.mxu0
      %2224 = vmatprep.mubr.bf16.mxu0 0
      %2225 = vmatmul.mubr.bf16.gmra.mxu0 %v938
      %v2226 = vpop.f32.mrf.mxu0
      %v2227 = vadd.f32 %v2082, %v2226
      %v2228 = vpop.f32.mrf.mxu0
      %v2229 = vpop.f32.mrf.mxu0
      %v2230 = vadd.f32 %v2085, %v2229
      %v2231 = vpop.f32.mrf.mxu0
      %2232 = vmatprep.mubr.bf16.mxu0 0
      %2233 = vmatmul.mubr.bf16.gmra.mxu0 %v947
      %v2234 = vpop.f32.mrf.mxu0
      %v2235 = vadd.f32 %v2090, %v2234
      %v2236 = vpop.f32.mrf.mxu0
      %v2237 = vpop.f32.mrf.mxu0
      %v2238 = vadd.f32 %v2093, %v2237
      %v2239 = vpop.f32.mrf.mxu0
      %2240 = vmatprep.mubr.bf16.mxu0 0
      %2241 = vmatmul.mubr.bf16.gmra.mxu0 %v956
      %v2242 = vpop.f32.mrf.mxu0
      %v2243 = vadd.f32 %v2098, %v2242
      %v2244 = vpop.f32.mrf.mxu0
      %v2245 = vpop.f32.mrf.mxu0
      %v2246 = vadd.f32 %v2101, %v2245
      %v2247 = vpop.f32.mrf.mxu0
      %2248 = vmatprep.mubr.bf16.mxu0 0
      %2249 = vmatmul.mubr.bf16.gmra.mxu0 %v965
      %v2250 = vpop.f32.mrf.mxu0
      %v2251 = vadd.f32 %v2106, %v2250
      %v2252 = vpop.f32.mrf.mxu0
      %v2253 = vpop.f32.mrf.mxu0
      %v2254 = vadd.f32 %v2109, %v2253
      %v2255 = vpop.f32.mrf.mxu0
      %2256 = vmatprep.mubr.bf16.mxu0 0
      %2257 = vmatmul.mubr.bf16.gmra.mxu0 %v974
      %v2258 = vpop.f32.mrf.mxu0
      %v2259 = vadd.f32 %v2114, %v2258
      %v2260 = vpop.f32.mrf.mxu0
      %v2261 = vpop.f32.mrf.mxu0
      %v2262 = vadd.f32 %v2117, %v2261
      %v2263 = vpop.f32.mrf.mxu0
      %2264 = vmatprep.mubr.bf16.mxu0 0
      %2265 = vmatmul.mubr.bf16.gmra.mxu0 %v983
      %v2266 = vpop.f32.mrf.mxu0
      %v2267 = vadd.f32 %v2122, %v2266
      %v2268 = vpop.f32.mrf.mxu0
      %v2269 = vpop.f32.mrf.mxu0
      %v2270 = vadd.f32 %v2125, %v2269
      %v2271 = vpop.f32.mrf.mxu0
      %2272 = vmatprep.mubr.bf16.mxu0 0
      %2273 = vmatmul.mubr.bf16.gmra.mxu0 %v992
      %v2274 = vpop.f32.mrf.mxu0
      %v2275 = vadd.f32 %v2130, %v2274
      %v2276 = vpop.f32.mrf.mxu0
      %v2277 = vpop.f32.mrf.mxu0
      %v2278 = vadd.f32 %v2133, %v2277
      %v2279 = vpop.f32.mrf.mxu0
      %2280 = vmatprep.mubr.bf16.mxu0 0
      %2281 = vmatmul.mubr.bf16.gmra.mxu0 %v1001
      %v2282 = vpop.f32.mrf.mxu0
      %v2283 = vadd.f32 %v2138, %v2282
      %v2284 = vpop.f32.mrf.mxu0
      %v2285 = vpop.f32.mrf.mxu0
      %v2286 = vadd.f32 %v2141, %v2285
      %v2287 = vpop.f32.mrf.mxu0
      %2288 = vmatprep.mubr.bf16.mxu0 0
      %2289 = vmatmul.mubr.bf16.gmra.mxu0 %v1010
      %v2290 = vpop.f32.mrf.mxu0
      %v2291 = vadd.f32 %v2146, %v2290
      %v2292 = vpop.f32.mrf.mxu0
      %v2293 = vpop.f32.mrf.mxu0
      %v2294 = vadd.f32 %v2149, %v2293
      %v2295 = vpop.f32.mrf.mxu0
      %2296 = vmatprep.mubr.bf16.mxu0 0
      %2297 = vmatmul.mubr.bf16.gmra.mxu0 %v1019
      %v2298 = vpop.f32.mrf.mxu0
      %v2299 = vadd.f32 %v2154, %v2298
      %v2300 = vpop.f32.mrf.mxu0
      %v2301 = vpop.f32.mrf.mxu0
      %v2302 = vadd.f32 %v2157, %v2301
      %v2303 = vpop.f32.mrf.mxu0
      %2304 = vmatprep.mubr.bf16.mxu0 0
      %2305 = vmatmul.mubr.bf16.gmra.mxu0 %v1028
      %v2306 = vpop.f32.mrf.mxu0
      %v2307 = vadd.f32 %v2162, %v2306
      %v2308 = vpop.f32.mrf.mxu0
      %v2309 = vpop.f32.mrf.mxu0
      %v2310 = vadd.f32 %v2165, %v2309
      %v2311 = vpop.f32.mrf.mxu0
      %2312 = vmatprep.mubr.bf16.mxu0 0
      %2313 = vmatmul.mubr.bf16.gmra.mxu0 %v1037
      %v2314 = vpop.f32.mrf.mxu0
      %v2315 = vadd.f32 %v2170, %v2314
      %v2316 = vpop.f32.mrf.mxu0
      %v2317 = vpop.f32.mrf.mxu0
      %v2318 = vadd.f32 %v2173, %v2317
      %v2319 = vpop.f32.mrf.mxu0
      %2320 = vdwg.mxu0
      %v2321 = vmax.f32 %v2211, 0.0
      %v2322 = vmax.f32 %v2214, 0.0
      %v2323 = vmax.f32 %v2219, 0.0
      %v2324 = vmax.f32 %v2222, 0.0
      %v2325 = vmax.f32 %v2227, 0.0
      %v2326 = vmax.f32 %v2230, 0.0
      %v2327 = vmax.f32 %v2235, 0.0
      %v2328 = vmax.f32 %v2238, 0.0
      %v2329 = vmax.f32 %v2243, 0.0
      %v2330 = vmax.f32 %v2246, 0.0
      %v2331 = vmax.f32 %v2251, 0.0
      %v2332 = vmax.f32 %v2254, 0.0
      %v2333 = vmax.f32 %v2259, 0.0
      %v2334 = vmax.f32 %v2262, 0.0
      %v2335 = vmax.f32 %v2267, 0.0
      %v2336 = vmax.f32 %v2270, 0.0
      %v2337 = vmax.f32 %v2275, 0.0
      %v2338 = vmax.f32 %v2278, 0.0
      %v2339 = vmax.f32 %v2283, 0.0
      %v2340 = vmax.f32 %v2286, 0.0
      %v2341 = vmax.f32 %v2291, 0.0
      %v2342 = vmax.f32 %v2294, 0.0
      %v2343 = vmax.f32 %v2299, 0.0
      %v2344 = vmax.f32 %v2302, 0.0
      %v2345 = vmax.f32 %v2307, 0.0
      %v2346 = vmax.f32 %v2310, 0.0
      %v2347 = vmax.f32 %v2315, 0.0
      %v2348 = vmax.f32 %v2318, 0.0
      %v2349 = vpack.c.bf16 %v2322, %v2321
      %v2350 = vpack.c.bf16 %v2324, %v2323
      %v2351 = vpack.c.bf16 %v2326, %v2325
      %v2352 = vpack.c.bf16 %v2328, %v2327
      %v2353 = vpack.c.bf16 %v2330, %v2329
      %v2354 = vpack.c.bf16 %v2332, %v2331
      %v2355 = vpack.c.bf16 %v2334, %v2333
      %v2356 = vpack.c.bf16 %v2336, %v2335
      %v2357 = vpack.c.bf16 %v2338, %v2337
      %v2358 = vpack.c.bf16 %v2340, %v2339
      %v2359 = vpack.c.bf16 %v2342, %v2341
      %v2360 = vpack.c.bf16 %v2344, %v2343
      %v2361 = vpack.c.bf16 %v2346, %v2345
      %v2362 = vpack.c.bf16 %v2348, %v2347
      %v2377 = vunpack.c.l.b16 %v2349
      %v2378 = vunpack.c.h.b16 %v2349
      %v2379 = vunpack.c.l.b16 %v2350
      %v2380 = vunpack.c.h.b16 %v2350
      %v2381 = vunpack.c.l.b16 %v2351
      %v2382 = vunpack.c.h.b16 %v2351
      %v2383 = vunpack.c.l.b16 %v2352
      %v2384 = vunpack.c.h.b16 %v2352
      %v2385 = vunpack.c.l.b16 %v2353
      %v2386 = vunpack.c.h.b16 %v2353
      %v2387 = vunpack.c.l.b16 %v2354
      %v2388 = vunpack.c.h.b16 %v2354
      %v2389 = vunpack.c.l.b16 %v2355
      %v2390 = vunpack.c.h.b16 %v2355
      %v2391 = vunpack.c.l.b16 %v2356
      %v2392 = vunpack.c.h.b16 %v2356
      %v2393 = vunpack.c.l.b16 %v2357
      %v2394 = vunpack.c.h.b16 %v2357
      %v2395 = vunpack.c.l.b16 %v2358
      %v2396 = vunpack.c.h.b16 %v2358
      %v2397 = vunpack.c.l.b16 %v2359
      %v2398 = vunpack.c.h.b16 %v2359
      %v2399 = vunpack.c.l.b16 %v2360
      %v2400 = vunpack.c.h.b16 %v2360
      %v2401 = vunpack.c.l.b16 %v2361
      %v2402 = vunpack.c.h.b16 %v2361
      %v2403 = vunpack.c.l.b16 %v2362
      %v2404 = vunpack.c.h.b16 %v2362
      %v2405 = vpack.c.b16 %v2377, %v2377
      %v2406 = vpack.c.b16 %v2378, %v2378
      %v2407 = vpack.c.b16 %v2379, %v2379
      %v2408 = vpack.c.b16 %v2380, %v2380
      %v2409 = vpack.c.b16 %v2381, %v2381
      %v2410 = vpack.c.b16 %v2382, %v2382
      %v2411 = vpack.c.b16 %v2383, %v2383
      %v2412 = vpack.c.b16 %v2384, %v2384
      %v2413 = vpack.c.b16 %v2385, %v2385
      %v2414 = vpack.c.b16 %v2386, %v2386
      %v2415 = vpack.c.b16 %v2387, %v2387
      %v2416 = vpack.c.b16 %v2388, %v2388
      %v2417 = vpack.c.b16 %v2389, %v2389
      %v2418 = vpack.c.b16 %v2390, %v2390
      %v2419 = vpack.c.b16 %v2391, %v2391
      %v2420 = vpack.c.b16 %v2392, %v2392
      %v2421 = vpack.c.b16 %v2393, %v2393
      %v2422 = vpack.c.b16 %v2394, %v2394
      %v2423 = vpack.c.b16 %v2395, %v2395
      %v2424 = vpack.c.b16 %v2396, %v2396
      %v2425 = vpack.c.b16 %v2397, %v2397
      %v2426 = vpack.c.b16 %v2398, %v2398
      %v2427 = vpack.c.b16 %v2399, %v2399
      %v2428 = vpack.c.b16 %v2400, %v2400
      %v2429 = vpack.c.b16 %v2401, %v2401
      %v2430 = vpack.c.b16 %v2402, %v2402
      %v2431 = vpack.c.b16 %v2403, %v2403
      %v2432 = vpack.c.b16 %v2404, %v2404
      %2461 = vst [vmem:[%s226] sm:$0xf] %v2405
      %2462 = vst [vmem:[%s226 + $0x4] sm:$0xf] %v2406
      %2463 = vst [vmem:[%s226 + $0x8] sm:$0xf] %v2407
      %2464 = vst [vmem:[%s226 + $0xc] sm:$0xf] %v2408
      %2465 = vst [vmem:[%s226 + $0x10] sm:$0xf] %v2409
      %2466 = vst [vmem:[%s226 + $0x14] sm:$0xf] %v2410
      %2467 = vst [vmem:[%s226 + $0x18] sm:$0xf] %v2411
      %2468 = vst [vmem:[%s226 + $0x1c] sm:$0xf] %v2412
      %2469 = vst [vmem:[%s226 + $0x20] sm:$0xf] %v2413
      %2470 = vst [vmem:[%s226 + $0x24] sm:$0xf] %v2414
      %2471 = vst [vmem:[%s226 + $0x28] sm:$0xf] %v2415
      %2472 = vst [vmem:[%s226 + $0x2c] sm:$0xf] %v2416
      %2473 = vst [vmem:[%s226 + $0x30] sm:$0xf] %v2417
      %2474 = vst [vmem:[%s226 + $0x34] sm:$0xf] %v2418
      %2475 = vst [vmem:[%s226 + $0x38] sm:$0xf] %v2419
      %2476 = vst [vmem:[%s226 + $0x3c] sm:$0xf] %v2420
      %2477 = vst [vmem:[%s226 + $0x40] sm:$0xf] %v2421
      %2478 = vst [vmem:[%s226 + $0x44] sm:$0xf] %v2422
      %2479 = vst [vmem:[%s226 + $0x48] sm:$0xf] %v2423
      %2480 = vst [vmem:[%s226 + $0x4c] sm:$0xf] %v2424
      %2481 = vst [vmem:[%s226 + $0x50] sm:$0xf] %v2425
      %2482 = vst [vmem:[%s226 + $0x54] sm:$0xf] %v2426
      %2483 = vst [vmem:[%s226 + $0x58] sm:$0xf] %v2427
      %2484 = vst [vmem:[%s226 + $0x5c] sm:$0xf] %v2428
      %2485 = vst [vmem:[%s226 + $0x60] sm:$0xf] %v2429
      %2486 = vst [vmem:[%s226 + $0x64] sm:$0xf] %v2430
      %2487 = vst [vmem:[%s226 + $0x68] sm:$0xf] %v2431
      %2488 = vst [vmem:[%s226 + $0x6c] sm:$0xf] %v2432
      %s2489 = smul.u32 28, %s18
      %p2490 = scmp.lt.s32.totalorder %s2489, 195
      %s2491 = scalar_select %p2490, %s2489, 195
      %p2492 = scmp.lt.s32.totalorder %s19, 0
      %s2493 = scalar_select %p2492, %s19, 0
      %s2494 = sadd.s32 %s2493, %s2491
      %s2495 = smul.addr %s2494, 4
      %s2496 = scalar_lea.vmem %s3, %s2495
      // Predicated region
      $region33: #{simplenet_forward.6} parent=31 // pred_check
        %p2497 = pneg %p124
      $region34: #{simplenet_forward.6} parent=31 // pred_check_branch
        %2499 = sbr.rel (%p2497) target = $region36
      $region35: #{simplenet_forward.6} parent=31 // pred_region
        %s2500 = smul.u32 28, %s18
      $region36: #{simplenet_forward.6} parent=31 // pred_fallthru
        _
    $region32: #{simplenet_forward.6} parent=5 // pred_fallthru
      _
    %p2501 = scmp.le.s32.totalorder 2, %s9
    // Predicated region
    $region37: #{simplenet_forward.6} parent=5 // pred_check
      %p2502 = pneg %p2501
    $region38: #{simplenet_forward.6} parent=5 // pred_check_branch
      %2504 = sbr.rel (%p2502) target = $region40
    $region39: #{simplenet_forward.6} parent=5 // pred_region
      %s2505 = ssub.s32 %s9, 2
      // Predicated region
      $region41: #{simplenet_forward.6} parent=39 // pred_check
        %p2506 = pneg %p130
      $region42: #{simplenet_forward.6} parent=39 // pred_check_branch
        %2508 = sbr.rel (%p2506) target = $region44
      $region43: #{simplenet_forward.6} parent=39 // pred_region
        %s2509 = smul.u32 28, %s20
        %p2510 = scmp.lt.s32.totalorder %s2509, 195
        %s2511 = scalar_select %p2510, %s2509, 195
        %p2512 = scmp.lt.s32.totalorder %s21, 0
        %s2513 = scalar_select %p2512, %s21, 0
        %s2514 = sadd.s32 %s2513, %s2511
        %s2515 = smul.addr %s2514, 4
        %s2516 = scalar_lea.vmem %s3, %s2515
      $region44: #{simplenet_forward.6} parent=39 // pred_fallthru
        _
    $region40: #{simplenet_forward.6} parent=5 // pred_fallthru
      _
  $region6: #{simplenet_forward.6} parent=0 // loop_footer
    %s13 = sadd.s32 1, %s9
  $region7: #{simplenet_forward.6} parent=0 // loop_footer_branch
    %8 = sbr.rel target = $region3
  $region8: #{simplenet_forward.6} parent=0 // loop_exit
    _

// kernel: simplenet_forward.7
$region0: #{simplenet_forward.7}
  #allocation0 [shape = 'u32[]', space=smem, size = 0x4, offset = 0x4, fixed_abs, tag = 'smem constant byte address 0x4 - core index']
  #allocation1 [shape = 'u32[144,128]{1,0:T(1,128)}', space=vmem, size = 0x12000, scoped, tag = 'internal scratch']
  %s0 = inlined_call_operand.vmem [shape: bf16[2,14,2,14,256], index: 0, kind: input, shape index: {}]
  %s1 = inlined_call_operand.vmem [shape: bf16[2,14,14,128], index: 1, kind: output, shape index: {}]
  %s2 = sld [smem:[#allocation0]]
  $region37: #{simplenet_forward.7} parent=0
    _
  %s4 = ssub.s32 1, %s2
  %s5 = scalar_select 0, %s4, %s2
  loop: start=0, step=1, limit=4
  $region2: #{simplenet_forward.7} parent=0 // loop_pre_header
    _
  $region3: #{simplenet_forward.7} parent=0 // loop_header
    %s7 = sphi 0, %s11
    %p8 = scmp.ge.s32.totalorder %s7, 4
    %s17 = sphi 0, %s19
    %s20 = sphi 0, %s17
    %s21 = sphi 0, %s20
    %s37 = sphi 0, %s21
    %s43 = sphi 0, %s45
    %s46 = sphi 0, %s43
    %s47 = sphi 0, %s46
    %s63 = sphi 0, %s47
  $region4: #{simplenet_forward.7} parent=0 // loop_header_branch
    %10 = sbr.rel (%p8) target = $region8
  $region5: #{simplenet_forward.7} parent=0 // loop_body
    %s12 = ssub.s32 %s7, 1
    %s13 = ssub.s32 %s7, 2
    %s14 = sadd.s32 %s7, 1
    %s15 = ssub.s32 %s7, %s14
    %p16 = scmp.eq.s32.totalorder %s15, 0
    %s18 = sadd.s32 %s17, 1
    %s19 = scalar_select %p16, %s17, %s18
    %p22 = pneg %p16
    %p23 = scmp.eq.s32.totalorder %s7, 1
    %p24 = por %p22, %p23
    %p25 = scmp.ne.s32.totalorder %s17, %s20
    %p26 = scmp.eq.s32.totalorder %s7, 0
    %p27 = por %p25, %p26
    %p28 = scmp.ne.s32.totalorder %s17, %s20
    %p29 = scmp.eq.s32.totalorder %s12, 1
    %p30 = por %p28, %p29
    %p31 = scmp.ne.s32.totalorder %s20, %s21
    %p32 = scmp.eq.s32.totalorder %s12, 0
    %p33 = por %p31, %p32
    %p34 = scmp.ne.s32.totalorder %s20, %s21
    %p35 = scmp.eq.s32.totalorder %s13, 1
    %p36 = por %p34, %p35
    %p38 = scmp.ne.s32.totalorder %s21, %s37
    %p39 = scmp.eq.s32.totalorder %s13, 0
    %p40 = por %p38, %p39
    %s41 = ssub.s32 %s7, %s14
    %p42 = scmp.eq.s32.totalorder %s41, 0
    %s44 = sadd.s32 %s43, 1
    %s45 = scalar_select %p42, %s43, %s44
    %p48 = pneg %p42
    %p49 = scmp.eq.s32.totalorder %s7, 1
    %p50 = por %p48, %p49
    %p51 = scmp.ne.s32.totalorder %s43, %s46
    %p52 = scmp.eq.s32.totalorder %s7, 0
    %p53 = por %p51, %p52
    %p54 = scmp.ne.s32.totalorder %s43, %s46
    %p55 = scmp.eq.s32.totalorder %s12, 1
    %p56 = por %p54, %p55
    %p57 = scmp.ne.s32.totalorder %s46, %s47
    %p58 = scmp.eq.s32.totalorder %s12, 0
    %p59 = por %p57, %p58
    %p60 = scmp.ne.s32.totalorder %s46, %s47
    %p61 = scmp.eq.s32.totalorder %s13, 1
    %p62 = por %p60, %p61
    %p64 = scmp.ne.s32.totalorder %s47, %s63
    %p65 = scmp.eq.s32.totalorder %s13, 0
    %p66 = por %p64, %p65
    %p67 = scmp.le.s32.totalorder 1, %s7
    %p68 = scmp.lt.s32.totalorder %s7, 3
    %p69 = pnand %p67, %p68
    %p70 = pneg %p69
    // Predicated region
    $region9: #{simplenet_forward.7} parent=5 // pred_check
      _
    $region10: #{simplenet_forward.7} parent=5 // pred_check_branch
      %72 = sbr.rel (%p69) target = $region12
    $region11: #{simplenet_forward.7} parent=5 // pred_region
      %s73 = ssub.s32 %s7, 1
    $region12: #{simplenet_forward.7} parent=5 // pred_fallthru
      _
    %p74 = scmp.lt.s32.totalorder %s7, 2
    // Predicated region
    $region13: #{simplenet_forward.7} parent=5 // pred_check
      %p75 = pneg %p74
    $region14: #{simplenet_forward.7} parent=5 // pred_check_branch
      %77 = sbr.rel (%p75) target = $region16
    $region15: #{simplenet_forward.7} parent=5 // pred_region
      // Predicated region
      $region17: #{simplenet_forward.7} parent=15 // pred_check
        %p78 = pneg %p27
      $region18: #{simplenet_forward.7} parent=15 // pred_check_branch
        %80 = sbr.rel (%p78) target = $region20
      $region19: #{simplenet_forward.7} parent=15 // pred_region
        %p81 = scmp.lt.s32.totalorder %s7, 1
        %s82 = scalar_select %p81, %s7, 1
        %s83 = smul.addr %s82, 112
        %s84 = smul.addr %s83, 4
        %s85 = scalar_lea.vmem %s0, %s84
      $region20: #{simplenet_forward.7} parent=15 // pred_fallthru
        _
    $region16: #{simplenet_forward.7} parent=5 // pred_fallthru
      _
    %p86 = scmp.le.s32.totalorder 1, %s7
    %p87 = scmp.lt.s32.totalorder %s7, 3
    %p88 = pnand %p86, %p87
    %p89 = pneg %p88
    // Predicated region
    $region21: #{simplenet_forward.7} parent=5 // pred_check
      _
    $region22: #{simplenet_forward.7} parent=5 // pred_check_branch
      %91 = sbr.rel (%p88) target = $region24
    $region23: #{simplenet_forward.7} parent=5 // pred_region
      %s92 = ssub.s32 %s7, 1
      %p93 = scmp.lt.s32.totalorder %s12, 1
      %s94 = scalar_select %p93, %s12, 1
      %s95 = smul.addr %s94, 112
      %s96 = smul.addr %s95, 4
      %s97 = scalar_lea.vmem %s0, %s96
      %p98 = pneg %p33
      %p99 = pneg %p30
      %p100 = pneg %p59
      %p101 = pneg %p56
      %p102 = scmp.lt.s32.totalorder %s12, 1
      %s103 = scalar_select %p102, %s12, 1
      %s104 = smul.addr %s103, 28
      %s105 = smul.addr %s104, 4
      %s106 = scalar_lea.vmem %s1, %s105
      %p107 = scmp.lt.s32.totalorder %s12, 1
      %s108 = scalar_select %p107, %s12, 1
      %s109 = smul.addr %s108, 112
      %s110 = smul.addr %s109, 4
      %s111 = scalar_lea.vmem %s0, %s110
      %p112 = scmp.lt.s32.totalorder %s12, 1
      %s113 = scalar_select %p112, %s12, 1
      %s114 = smul.addr %s113, 28
      %s115 = smul.addr %s114, 4
      %s116 = scalar_lea.vmem %s1, %s115
      %v117 = vld [vmem:[%s111] sm:$0xff]
      %v118 = vld [vmem:[%s111 + $0x8] sm:$0x77]
      %v119 = vld [vmem:[%s111 + $0x10] sm:$0xff]
      %v120 = vld [vmem:[%s111 + $0x18] sm:$0x77]
      %v121 = vld [vmem:[%s111 + $0x20] sm:$0xff]
      %v122 = vld [vmem:[%s111 + $0x28] sm:$0x77]
      %v123 = vld [vmem:[%s111 + $0x30] sm:$0xff]
      %v124 = vld [vmem:[%s111 + $0x38] sm:$0x77]
      %v125 = vld [vmem:[%s111 + $0x40] sm:$0xff]
      %v126 = vld [vmem:[%s111 + $0x48] sm:$0x77]
      %v127 = vld [vmem:[%s111 + $0x50] sm:$0xff]
      %v128 = vld [vmem:[%s111 + $0x58] sm:$0x77]
      %v129 = vld [vmem:[%s111 + $0x60] sm:$0xff]
      %v130 = vld [vmem:[%s111 + $0x68] sm:$0x77]
      %v131 = vld [vmem:[%s111 + $0x70] sm:$0xff]
      %v132 = vld [vmem:[%s111 + $0x78] sm:$0x77]
      %v133 = vld [vmem:[%s111 + $0x80] sm:$0xff]
      %v134 = vld [vmem:[%s111 + $0x88] sm:$0x77]
      %v135 = vld [vmem:[%s111 + $0x90] sm:$0xff]
      %v136 = vld [vmem:[%s111 + $0x98] sm:$0x77]
      %v137 = vld [vmem:[%s111 + $0xa0] sm:$0xff]
      %v138 = vld [vmem:[%s111 + $0xa8] sm:$0x77]
      %v139 = vld [vmem:[%s111 + $0xb0] sm:$0xff]
      %v140 = vld [vmem:[%s111 + $0xb8] sm:$0x77]
      %v141 = vld [vmem:[%s111 + $0xc0] sm:$0xff]
      %v142 = vld [vmem:[%s111 + $0xc8] sm:$0x77]
      %v143 = vld [vmem:[%s111 + $0xd0] sm:$0xff]
      %v144 = vld [vmem:[%s111 + $0xd8] sm:$0x77]
      %v145 = vld [vmem:[%s111 + $0xe0] sm:$0xff]
      %v146 = vld [vmem:[%s111 + $0xe8] sm:$0x77]
      %v147 = vld [vmem:[%s111 + $0xf0] sm:$0xff]
      %v148 = vld [vmem:[%s111 + $0xf8] sm:$0x77]
      %v149 = vld [vmem:[%s111 + $0x100] sm:$0xff]
      %v150 = vld [vmem:[%s111 + $0x108] sm:$0x77]
      %v151 = vld [vmem:[%s111 + $0x110] sm:$0xff]
      %v152 = vld [vmem:[%s111 + $0x118] sm:$0x77]
      %v153 = vld [vmem:[%s111 + $0x120] sm:$0xff]
      %v154 = vld [vmem:[%s111 + $0x128] sm:$0x77]
      %v155 = vld [vmem:[%s111 + $0x130] sm:$0xff]
      %v156 = vld [vmem:[%s111 + $0x138] sm:$0x77]
      %v157 = vld [vmem:[%s111 + $0x140] sm:$0xff]
      %v158 = vld [vmem:[%s111 + $0x148] sm:$0x77]
      %v159 = vld [vmem:[%s111 + $0x150] sm:$0xff]
      %v160 = vld [vmem:[%s111 + $0x158] sm:$0x77]
      %v161 = vld [vmem:[%s111 + $0x160] sm:$0xff]
      %v162 = vld [vmem:[%s111 + $0x168] sm:$0x77]
      %v163 = vld [vmem:[%s111 + $0x170] sm:$0xff]
      %v164 = vld [vmem:[%s111 + $0x178] sm:$0x77]
      %v165 = vld [vmem:[%s111 + $0x180] sm:$0xff]
      %v166 = vld [vmem:[%s111 + $0x188] sm:$0x77]
      %v167 = vld [vmem:[%s111 + $0x190] sm:$0xff]
      %v168 = vld [vmem:[%s111 + $0x198] sm:$0x77]
      %v169 = vld [vmem:[%s111 + $0x1a0] sm:$0xff]
      %v170 = vld [vmem:[%s111 + $0x1a8] sm:$0x77]
      %v171 = vld [vmem:[%s111 + $0x1b0] sm:$0xff]
      %v172 = vld [vmem:[%s111 + $0x1b8] sm:$0x77]
      %v173 = vmax.bf16 %v117, %v119
      %v174 = vmax.bf16 %v118, %v120
      %v175 = vmax.bf16 %v121, %v123
      %v176 = vmax.bf16 %v122, %v124
      %v177 = vmax.bf16 %v125, %v127
      %v178 = vmax.bf16 %v126, %v128
      %v179 = vmax.bf16 %v129, %v131
      %v180 = vmax.bf16 %v130, %v132
      %v181 = vmax.bf16 %v133, %v135
      %v182 = vmax.bf16 %v134, %v136
      %v183 = vmax.bf16 %v137, %v139
      %v184 = vmax.bf16 %v138, %v140
      %v185 = vmax.bf16 %v141, %v143
      %v186 = vmax.bf16 %v142, %v144
      %v187 = vmax.bf16 %v145, %v147
      %v188 = vmax.bf16 %v146, %v148
      %v189 = vmax.bf16 %v149, %v151
      %v190 = vmax.bf16 %v150, %v152
      %v191 = vmax.bf16 %v153, %v155
      %v192 = vmax.bf16 %v154, %v156
      %v193 = vmax.bf16 %v157, %v159
      %v194 = vmax.bf16 %v158, %v160
      %v195 = vmax.bf16 %v161, %v163
      %v196 = vmax.bf16 %v162, %v164
      %v197 = vmax.bf16 %v165, %v167
      %v198 = vmax.bf16 %v166, %v168
      %v199 = vmax.bf16 %v169, %v171
      %v200 = vmax.bf16 %v170, %v172
      %v229 = vrot.slane %v173, 4
      %v230 = vrot.slane %v174, 4
      %v231 = vrot.slane %v175, 4
      %v232 = vrot.slane %v176, 4
      %v233 = vrot.slane %v177, 4
      %v234 = vrot.slane %v178, 4
      %v235 = vrot.slane %v179, 4
      %v236 = vrot.slane %v180, 4
      %v237 = vrot.slane %v181, 4
      %v238 = vrot.slane %v182, 4
      %v239 = vrot.slane %v183, 4
      %v240 = vrot.slane %v184, 4
      %v241 = vrot.slane %v185, 4
      %v242 = vrot.slane %v186, 4
      %v243 = vrot.slane %v187, 4
      %v244 = vrot.slane %v188, 4
      %v245 = vrot.slane %v189, 4
      %v246 = vrot.slane %v190, 4
      %v247 = vrot.slane %v191, 4
      %v248 = vrot.slane %v192, 4
      %v249 = vrot.slane %v193, 4
      %v250 = vrot.slane %v194, 4
      %v251 = vrot.slane %v195, 4
      %v252 = vrot.slane %v196, 4
      %v253 = vrot.slane %v197, 4
      %v254 = vrot.slane %v198, 4
      %v255 = vrot.slane %v199, 4
      %v256 = vrot.slane %v200, 4
      %v285 = vmax.bf16 %v173, %v229
      %v286 = vmax.bf16 %v174, %v230
      %v287 = vmax.bf16 %v175, %v231
      %v288 = vmax.bf16 %v176, %v232
      %v289 = vmax.bf16 %v177, %v233
      %v290 = vmax.bf16 %v178, %v234
      %v291 = vmax.bf16 %v179, %v235
      %v292 = vmax.bf16 %v180, %v236
      %v293 = vmax.bf16 %v181, %v237
      %v294 = vmax.bf16 %v182, %v238
      %v295 = vmax.bf16 %v183, %v239
      %v296 = vmax.bf16 %v184, %v240
      %v297 = vmax.bf16 %v185, %v241
      %v298 = vmax.bf16 %v186, %v242
      %v299 = vmax.bf16 %v187, %v243
      %v300 = vmax.bf16 %v188, %v244
      %v301 = vmax.bf16 %v189, %v245
      %v302 = vmax.bf16 %v190, %v246
      %v303 = vmax.bf16 %v191, %v247
      %v304 = vmax.bf16 %v192, %v248
      %v305 = vmax.bf16 %v193, %v249
      %v306 = vmax.bf16 %v194, %v250
      %v307 = vmax.bf16 %v195, %v251
      %v308 = vmax.bf16 %v196, %v252
      %v309 = vmax.bf16 %v197, %v253
      %v310 = vmax.bf16 %v198, %v254
      %v311 = vmax.bf16 %v199, %v255
      %v312 = vmax.bf16 %v200, %v256
      %313 = vst [vmem:[%s116] sm:$0xf] %v285
      %314 = vst [vmem:[%s116 + $0x4] sm:$0x7] %v286
      %315 = vst [vmem:[%s116 + $0x8] sm:$0xf] %v287
      %316 = vst [vmem:[%s116 + $0xc] sm:$0x7] %v288
      %317 = vst [vmem:[%s116 + $0x10] sm:$0xf] %v289
      %318 = vst [vmem:[%s116 + $0x14] sm:$0x7] %v290
      %319 = vst [vmem:[%s116 + $0x18] sm:$0xf] %v291
      %320 = vst [vmem:[%s116 + $0x1c] sm:$0x7] %v292
      %321 = vst [vmem:[%s116 + $0x20] sm:$0xf] %v293
      %322 = vst [vmem:[%s116 + $0x24] sm:$0x7] %v294
      %323 = vst [vmem:[%s116 + $0x28] sm:$0xf] %v295
      %324 = vst [vmem:[%s116 + $0x2c] sm:$0x7] %v296
      %325 = vst [vmem:[%s116 + $0x30] sm:$0xf] %v297
      %326 = vst [vmem:[%s116 + $0x34] sm:$0x7] %v298
      %327 = vst [vmem:[%s116 + $0x38] sm:$0xf] %v299
      %328 = vst [vmem:[%s116 + $0x3c] sm:$0x7] %v300
      %329 = vst [vmem:[%s116 + $0x40] sm:$0xf] %v301
      %330 = vst [vmem:[%s116 + $0x44] sm:$0x7] %v302
      %331 = vst [vmem:[%s116 + $0x48] sm:$0xf] %v303
      %332 = vst [vmem:[%s116 + $0x4c] sm:$0x7] %v304
      %333 = vst [vmem:[%s116 + $0x50] sm:$0xf] %v305
      %334 = vst [vmem:[%s116 + $0x54] sm:$0x7] %v306
      %335 = vst [vmem:[%s116 + $0x58] sm:$0xf] %v307
      %336 = vst [vmem:[%s116 + $0x5c] sm:$0x7] %v308
      %337 = vst [vmem:[%s116 + $0x60] sm:$0xf] %v309
      %338 = vst [vmem:[%s116 + $0x64] sm:$0x7] %v310
      %339 = vst [vmem:[%s116 + $0x68] sm:$0xf] %v311
      %340 = vst [vmem:[%s116 + $0x6c] sm:$0x7] %v312
      %p341 = scmp.lt.s32.totalorder %s12, 1
      %s342 = scalar_select %p341, %s12, 1
      %s343 = smul.addr %s342, 28
      %s344 = smul.addr %s343, 4
      %s345 = scalar_lea.vmem %s1, %s344
      // Predicated region
      $region25: #{simplenet_forward.7} parent=23 // pred_check
        %p346 = pneg %p56
      $region26: #{simplenet_forward.7} parent=23 // pred_check_branch
        %348 = sbr.rel (%p346) target = $region28
      $region27: #{simplenet_forward.7} parent=23 // pred_region
        _
      $region28: #{simplenet_forward.7} parent=23 // pred_fallthru
        _
    $region24: #{simplenet_forward.7} parent=5 // pred_fallthru
      _
    %p349 = scmp.le.s32.totalorder 2, %s7
    // Predicated region
    $region29: #{simplenet_forward.7} parent=5 // pred_check
      %p350 = pneg %p349
    $region30: #{simplenet_forward.7} parent=5 // pred_check_branch
      %352 = sbr.rel (%p350) target = $region32
    $region31: #{simplenet_forward.7} parent=5 // pred_region
      %s353 = ssub.s32 %s7, 2
      // Predicated region
      $region33: #{simplenet_forward.7} parent=31 // pred_check
        %p354 = pneg %p62
      $region34: #{simplenet_forward.7} parent=31 // pred_check_branch
        %356 = sbr.rel (%p354) target = $region36
      $region35: #{simplenet_forward.7} parent=31 // pred_region
        %p357 = scmp.lt.s32.totalorder %s13, 1
        %s358 = scalar_select %p357, %s13, 1
        %s359 = smul.addr %s358, 28
        %s360 = smul.addr %s359, 4
        %s361 = scalar_lea.vmem %s1, %s360
      $region36: #{simplenet_forward.7} parent=31 // pred_fallthru
        _
    $region32: #{simplenet_forward.7} parent=5 // pred_fallthru
      _
  $region6: #{simplenet_forward.7} parent=0 // loop_footer
    %s11 = sadd.s32 1, %s7
  $region7: #{simplenet_forward.7} parent=0 // loop_footer_branch
    %6 = sbr.rel target = $region3
  $region8: #{simplenet_forward.7} parent=0 // loop_exit
    _

// kernel: simplenet_forward.8
$region0: #{simplenet_forward.8}
  #allocation0 [shape = 'u32[]', space=smem, size = 0x4, offset = 0x4, fixed_abs, tag = 'smem constant byte address 0x4 - core index']
  #allocation1 [shape = 'u32[144,128]{1,0:T(1,128)}', space=vmem, size = 0x12000, scoped, tag = 'internal scratch']
  #allocation2 [shape = 'f32[8,512]{1,0:T(8,128)}', space=vmem, size = 0x4000, scoped, tag = 'scratch operand']
  %s0 = inlined_call_operand.vmem [shape: bf16[8,25088], index: 0, kind: input, shape index: {}]
  %s1 = inlined_call_operand.hbm [shape: bf16[25088,1024], index: 1, kind: input, shape index: {}]
  %s2 = inlined_call_operand.vmem [shape: f32[1,1024], index: 2, kind: input, shape index: {}]
  %s3 = inlined_call_operand.vmem [shape: f32[8,1024], index: 3, kind: output, shape index: {}]
  %s4 = sld [smem:[#allocation0]]
  $region57: #{simplenet_forward.8} parent=0
    _
  %s6 = ssub.s32 1, %s4
  %s7 = scalar_select 0, %s6, %s4
  $region1: #{simplenet_forward.8} parent=0
    #allocation3 [shape = 'u8[7340032]{0}', space=vmem, size = 0x700000, scoped, tag = 'input window, operand 1']
    #allocation4 [shape = 's32[2]{0}', space=sflag, size = 0x8, scoped, tag = 'scoped memory for simplenet_forward.8']
    %8 = vsyncpa [#allocation4], 0
    %s9 = scalar_lea.sflag [#allocation4], 1
    %10 = vsyncpa %s9, 0
    loop: start=0, step=1, limit=16
    $region2: #{simplenet_forward.8} parent=1 // loop_pre_header
      _
    $region3: #{simplenet_forward.8} parent=1 // loop_header
      %s12 = sphi 0, %s16
      %p13 = scmp.ge.s32.totalorder %s12, 16
      %s19 = sphi 0, %s38
      %s20 = sphi 0, %s34
      %s21 = sphi 0, %s30
      %s22 = sphi 0, %s19
      %s23 = sphi 0, %s20
      %s24 = sphi 0, %s21
      %s25 = sphi 0, %s22
      %s26 = sphi 0, %s23
      %s27 = sphi 0, %s24
      %s43 = sphi 0, %s45
      %s46 = sphi 0, %s43
      %s47 = sphi 0, %s46
      %s63 = sphi 0, %s47
      %s71 = sphi 0, %s73
      %s74 = sphi 0, %s71
      %s75 = sphi 0, %s74
      %s91 = sphi 0, %s75
      %s97 = sphi 0, %s99
      %s100 = sphi 0, %s97
      %s101 = sphi 0, %s100
      %s117 = sphi 0, %s101
      %s125 = sphi 0, %s127
      %s128 = sphi 0, %s125
      %s129 = sphi 0, %s128
      %s145 = sphi 0, %s129
    $region4: #{simplenet_forward.8} parent=1 // loop_header_branch
      %15 = sbr.rel (%p13) target = $region8
    $region5: #{simplenet_forward.8} parent=1 // loop_body
      %s17 = ssub.s32 %s12, 1
      %s18 = ssub.s32 %s12, 2
      %s28 = sadd.s32 1, %s21
      %p29 = scmp.ge.s32.totalorder %s28, 7
      %s30 = scalar_select %p29, 0, %s28
      %s31 = sadd.s32 1, %s20
      %s32 = scalar_select %p29, %s31, %s20
      %p33 = scmp.ge.s32.totalorder %s32, 2
      %s34 = scalar_select %p33, 0, %s32
      %s35 = sadd.s32 1, %s19
      %s36 = scalar_select %p33, %s35, %s19
      %p37 = scmp.ge.s32.totalorder %s36, 1
      %s38 = scalar_select %p37, 0, %s36
      %s39 = ssub.s32 %s19, %s38
      %s40 = ssub.s32 %s21, %s30
      %s41 = sor.u32 %s39, %s40
      %p42 = scmp.eq.s32.totalorder %s41, 0
      %s44 = sadd.s32 %s43, 1
      %s45 = scalar_select %p42, %s43, %s44
      %p48 = pneg %p42
      %p49 = scmp.eq.s32.totalorder %s12, 13
      %p50 = por %p48, %p49
      %p51 = scmp.ne.s32.totalorder %s43, %s46
      %p52 = scmp.eq.s32.totalorder %s12, 0
      %p53 = por %p51, %p52
      %p54 = scmp.ne.s32.totalorder %s43, %s46
      %p55 = scmp.eq.s32.totalorder %s17, 13
      %p56 = por %p54, %p55
      %p57 = scmp.ne.s32.totalorder %s46, %s47
      %p58 = scmp.eq.s32.totalorder %s17, 0
      %p59 = por %p57, %p58
      %p60 = scmp.ne.s32.totalorder %s46, %s47
      %p61 = scmp.eq.s32.totalorder %s18, 13
      %p62 = por %p60, %p61
      %p64 = scmp.ne.s32.totalorder %s47, %s63
      %p65 = scmp.eq.s32.totalorder %s18, 0
      %p66 = por %p64, %p65
      %s67 = ssub.s32 %s21, %s30
      %s68 = ssub.s32 %s20, %s34
      %s69 = sor.u32 %s67, %s68
      %p70 = scmp.eq.s32.totalorder %s69, 0
      %s72 = sadd.s32 %s71, 1
      %s73 = scalar_select %p70, %s71, %s72
      %p76 = pneg %p70
      %p77 = scmp.eq.s32.totalorder %s12, 13
      %p78 = por %p76, %p77
      %p79 = scmp.ne.s32.totalorder %s71, %s74
      %p80 = scmp.eq.s32.totalorder %s12, 0
      %p81 = por %p79, %p80
      %p82 = scmp.ne.s32.totalorder %s71, %s74
      %p83 = scmp.eq.s32.totalorder %s17, 13
      %p84 = por %p82, %p83
      %p85 = scmp.ne.s32.totalorder %s74, %s75
      %p86 = scmp.eq.s32.totalorder %s17, 0
      %p87 = por %p85, %p86
      %p88 = scmp.ne.s32.totalorder %s74, %s75
      %p89 = scmp.eq.s32.totalorder %s18, 13
      %p90 = por %p88, %p89
      %p92 = scmp.ne.s32.totalorder %s75, %s91
      %p93 = scmp.eq.s32.totalorder %s18, 0
      %p94 = por %p92, %p93
      %s95 = ssub.s32 %s20, %s34
      %p96 = scmp.eq.s32.totalorder %s95, 0
      %s98 = sadd.s32 %s97, 1
      %s99 = scalar_select %p96, %s97, %s98
      %p102 = pneg %p96
      %p103 = scmp.eq.s32.totalorder %s12, 13
      %p104 = por %p102, %p103
      %p105 = scmp.ne.s32.totalorder %s97, %s100
      %p106 = scmp.eq.s32.totalorder %s12, 0
      %p107 = por %p105, %p106
      %p108 = scmp.ne.s32.totalorder %s97, %s100
      %p109 = scmp.eq.s32.totalorder %s17, 13
      %p110 = por %p108, %p109
      %p111 = scmp.ne.s32.totalorder %s100, %s101
      %p112 = scmp.eq.s32.totalorder %s17, 0
      %p113 = por %p111, %p112
      %p114 = scmp.ne.s32.totalorder %s100, %s101
      %p115 = scmp.eq.s32.totalorder %s18, 13
      %p116 = por %p114, %p115
      %p118 = scmp.ne.s32.totalorder %s101, %s117
      %p119 = scmp.eq.s32.totalorder %s18, 0
      %p120 = por %p118, %p119
      %s121 = ssub.s32 %s19, %s38
      %s122 = ssub.s32 %s20, %s34
      %s123 = sor.u32 %s121, %s122
      %p124 = scmp.eq.s32.totalorder %s123, 0
      %s126 = sadd.s32 %s125, 1
      %s127 = scalar_select %p124, %s125, %s126
      %p130 = pneg %p124
      %p131 = scmp.eq.s32.totalorder %s12, 13
      %p132 = por %p130, %p131
      %p133 = scmp.ne.s32.totalorder %s125, %s128
      %p134 = scmp.eq.s32.totalorder %s12, 0
      %p135 = por %p133, %p134
      %p136 = scmp.ne.s32.totalorder %s125, %s128
      %p137 = scmp.eq.s32.totalorder %s17, 13
      %p138 = por %p136, %p137
      %p139 = scmp.ne.s32.totalorder %s128, %s129
      %p140 = scmp.eq.s32.totalorder %s17, 0
      %p141 = por %p139, %p140
      %p142 = scmp.ne.s32.totalorder %s128, %s129
      %p143 = scmp.eq.s32.totalorder %s18, 13
      %p144 = por %p142, %p143
      %p146 = scmp.ne.s32.totalorder %s129, %s145
      %p147 = scmp.eq.s32.totalorder %s18, 0
      %p148 = por %p146, %p147
      %p149 = scmp.le.s32.totalorder 1, %s12
      %p150 = scmp.lt.s32.totalorder %s12, 15
      %p151 = pnand %p149, %p150
      %p152 = pneg %p151
      // Predicated region
      $region9: #{simplenet_forward.8} parent=5 // pred_check
        _
      $region10: #{simplenet_forward.8} parent=5 // pred_check_branch
        %154 = sbr.rel (%p151) target = $region12
      $region11: #{simplenet_forward.8} parent=5 // pred_region
        %s155 = ssub.s32 %s12, 1
      $region12: #{simplenet_forward.8} parent=5 // pred_fallthru
        _
      %p156 = scmp.lt.s32.totalorder %s12, 14
      // Predicated region
      $region13: #{simplenet_forward.8} parent=5 // pred_check
        %p157 = pneg %p156
      $region14: #{simplenet_forward.8} parent=5 // pred_check_branch
        %159 = sbr.rel (%p157) target = $region16
      $region15: #{simplenet_forward.8} parent=5 // pred_region
        // Predicated region
        $region17: #{simplenet_forward.8} parent=15 // pred_check
          %p160 = pneg %p53
        $region18: #{simplenet_forward.8} parent=15 // pred_check_branch
          %162 = sbr.rel (%p160) target = $region20
        $region19: #{simplenet_forward.8} parent=15 // pred_region
          %s163 = smul.u32 28, %s21
          %p164 = scmp.lt.s32.totalorder %s19, 0
          %s165 = scalar_select %p164, %s19, 0
          %p166 = scmp.lt.s32.totalorder %s163, 195
          %s167 = scalar_select %p166, %s163, 195
          %s168 = smul.addr %s165, 196
          %s169 = sadd.s32 %s167, %s168
          %s170 = smul.addr %s169, 4
          %s171 = scalar_lea.vmem %s0, %s170
          %s172 = smul.u32 28, %s21
        $region20: #{simplenet_forward.8} parent=15 // pred_fallthru
          _
        // Predicated region
        $region21: #{simplenet_forward.8} parent=15 // pred_check
          %p173 = pneg %p81
        $region22: #{simplenet_forward.8} parent=15 // pred_check_branch
          %175 = sbr.rel (%p173) target = $region24
        $region23: #{simplenet_forward.8} parent=15 // pred_region
          %s176 = sand.u32 %s71, 1
          %s177 = scalar_lea.sflag [#allocation4], %s176
          %s178 = sand.u32 %s71, 1
          %s179 = smul.addr %s178, 7168
          %s180 = scalar_lea.vmem [#allocation3], %s179
          %s181 = smul.u32 448, %s21
          %s182 = smul.u32 4, %s20
          %s184 = ssub.s32 114688, 114688
          %185 = vsyncadd %s177, %s184
          %s186 = smul.addr %s181, 8
          %s187 = sadd.s32 %s182, %s186
          %s188 = smul.addr %s187, 64
          %s189 = scalar_lea.hbm %s1, %s188
          %s190 = sshll.u32 %s180, 4
          %s191 = int_to_ptr.vmem [resolvable:$true] %s190
          %196 = dma.hbm_to_vmem [thread:$0]  %s189, 114688, %s191, %s177, 512, 256, 16
        $region24: #{simplenet_forward.8} parent=15 // pred_fallthru
          _
        // Predicated region
        $region25: #{simplenet_forward.8} parent=15 // pred_check
          %p197 = pneg %p107
        $region26: #{simplenet_forward.8} parent=15 // pred_check_branch
          %199 = sbr.rel (%p197) target = $region28
        $region27: #{simplenet_forward.8} parent=15 // pred_region
          %s200 = smul.u32 4, %s20
          %p201 = scmp.lt.s32.totalorder %s200, 7
          %s202 = scalar_select %p201, %s200, 7
          %s203 = scalar_lea.vmem %s2, %s202
          %s204 = smul.u32 4, %s20
        $region28: #{simplenet_forward.8} parent=15 // pred_fallthru
          _
      $region16: #{simplenet_forward.8} parent=5 // pred_fallthru
        _
      %p205 = scmp.le.s32.totalorder 1, %s12
      %p206 = scmp.lt.s32.totalorder %s12, 15
      %p207 = pnand %p205, %p206
      %p208 = pneg %p207
      // Predicated region
      $region29: #{simplenet_forward.8} parent=5 // pred_check
        _
      $region30: #{simplenet_forward.8} parent=5 // pred_check_branch
        %210 = sbr.rel (%p207) target = $region32
      $region31: #{simplenet_forward.8} parent=5 // pred_region
        %s211 = ssub.s32 %s12, 1
        %s212 = sand.u32 %s74, 1
        %s213 = scalar_lea.sflag [#allocation4], %s212
        %s214 = sand.u32 %s74, 1
        %s215 = smul.addr %s214, 7168
        %s216 = scalar_lea.vmem [#allocation3], %s215
        // Predicated region
        $region33: #{simplenet_forward.8} parent=31 // pred_check
          %p217 = pneg %p87
        $region34: #{simplenet_forward.8} parent=31 // pred_check_branch
          %219 = sbr.rel (%p217) target = $region36
        $region35: #{simplenet_forward.8} parent=31 // pred_region
          %220 = dma.done %s213, 114688
        $region36: #{simplenet_forward.8} parent=31 // pred_fallthru
          _
        %s221 = smul.u32 28, %s24
        %p222 = scmp.lt.s32.totalorder %s22, 0
        %s223 = scalar_select %p222, %s22, 0
        %p224 = scmp.lt.s32.totalorder %s221, 195
        %s225 = scalar_select %p224, %s221, 195
        %s226 = smul.addr %s223, 196
        %s227 = sadd.s32 %s225, %s226
        %s228 = smul.addr %s227, 4
        %s229 = scalar_lea.vmem %s0, %s228
        %p230 = pneg %p59
        %p231 = pneg %p56
        %s232 = sand.u32 %s74, 1
        %s233 = scalar_lea.sflag [#allocation4], %s232
        %s234 = sand.u32 %s74, 1
        %s235 = smul.addr %s234, 7168
        %s236 = scalar_lea.vmem [#allocation3], %s235
        %p237 = pneg %p87
        %p238 = pneg %p84
        %s239 = smul.u32 4, %s23
        %p240 = scmp.lt.s32.totalorder %s239, 7
        %s241 = scalar_select %p240, %s239, 7
        %s242 = scalar_lea.vmem %s2, %s241
        %p243 = pneg %p113
        %p244 = pneg %p110
        %p245 = pneg %p141
        %p246 = pneg %p138
        %s247 = smul.u32 4, %s23
        %p248 = scmp.lt.s32.totalorder %s22, 0
        %s249 = scalar_select %p248, %s22, 0
        %p250 = scmp.lt.s32.totalorder %s247, 7
        %s251 = scalar_select %p250, %s247, 7
        %s252 = smul.addr %s249, 8
        %s253 = sadd.s32 %s251, %s252
        %s254 = smul.addr %s253, 8
        %s255 = scalar_lea.vmem %s3, %s254
        %s256 = smul.u32 28, %s24
        %p257 = scmp.lt.s32.totalorder %s22, 0
        %s258 = scalar_select %p257, %s22, 0
        %p259 = scmp.lt.s32.totalorder %s256, 195
        %s260 = scalar_select %p259, %s256, 195
        %s261 = smul.addr %s258, 196
        %s262 = sadd.s32 %s260, %s261
        %s263 = smul.addr %s262, 4
        %s264 = scalar_lea.vmem %s0, %s263
        %s265 = smul.u32 28, %s24
        %s266 = smul.u32 448, %s24
        %s267 = smul.u32 4, %s23
        %s268 = smul.u32 4, %s23
        %p269 = scmp.lt.s32.totalorder %s268, 7
        %s270 = scalar_select %p269, %s268, 7
        %s271 = scalar_lea.vmem %s2, %s270
        %s272 = smul.u32 4, %s23
        %s273 = smul.u32 4, %s23
        %p274 = scmp.lt.s32.totalorder %s22, 0
        %s275 = scalar_select %p274, %s22, 0
        %p276 = scmp.lt.s32.totalorder %s273, 7
        %s277 = scalar_select %p276, %s273, 7
        %s278 = smul.addr %s275, 8
        %s279 = sadd.s32 %s277, %s278
        %s280 = smul.addr %s279, 8
        %s281 = scalar_lea.vmem %s3, %s280
        %s282 = smul.u32 4, %s23
        %p283 = scmp.eq.s32.totalorder %s24, 0
        // Predicated region
        $region37: #{simplenet_forward.8} parent=31 // pred_check
          %p284 = pneg %p283
        $region38: #{simplenet_forward.8} parent=31 // pred_check_branch
          %286 = sbr.rel (%p284) target = $region40
        $region39: #{simplenet_forward.8} parent=31 // pred_region
          %287 = vst [vmem:[#allocation2] sm:$0xff] 0.0
          %288 = vst [vmem:[#allocation2 + $0x8] sm:$0xff] 0.0
          %289 = vst [vmem:[#allocation2 + $0x10] sm:$0xff] 0.0
          %290 = vst [vmem:[#allocation2 + $0x18] sm:$0xff] 0.0
        $region40: #{simplenet_forward.8} parent=31 // pred_fallthru
          _
        %v291 = vld [vmem:[#allocation2] sm:$0xff]
        %v292 = vld [vmem:[#allocation2 + $0x8] sm:$0xff]
        %v293 = vld [vmem:[#allocation2 + $0x10] sm:$0xff]
        %v294 = vld [vmem:[#allocation2 + $0x18] sm:$0xff]
        %v295 = vld [vmem:[%s264] sm:$0xff]
        %v296 = vld [vmem:[%s264 + $0x8] sm:$0xff]
        %v297 = vld [vmem:[%s264 + $0x10] sm:$0xff]
        %v298 = vld [vmem:[%s264 + $0x18] sm:$0xff]
        %v299 = vld [vmem:[%s264 + $0x20] sm:$0xff]
        %v300 = vld [vmem:[%s264 + $0x28] sm:$0xff]
        %v301 = vld [vmem:[%s264 + $0x30] sm:$0xff]
        %v302 = vld [vmem:[%s264 + $0x38] sm:$0xff]
        %v303 = vld [vmem:[%s264 + $0x40] sm:$0xff]
        %v304 = vld [vmem:[%s264 + $0x48] sm:$0xff]
        %v305 = vld [vmem:[%s264 + $0x50] sm:$0xff]
        %v306 = vld [vmem:[%s264 + $0x58] sm:$0xff]
        %v307 = vld [vmem:[%s264 + $0x60] sm:$0xff]
        %v308 = vld [vmem:[%s264 + $0x68] sm:$0xff]
        %v309 = vld [vmem:[%s216] sm:$0xff]
        %v310 = vld [vmem:[%s216 + $0x8] sm:$0xff]
        %v311 = vld [vmem:[%s216 + $0x10] sm:$0xff]
        %v312 = vld [vmem:[%s216 + $0x18] sm:$0xff]
        %v313 = vld [vmem:[%s216 + $0x20] sm:$0xff]
        %v314 = vld [vmem:[%s216 + $0x28] sm:$0xff]
        %v315 = vld [vmem:[%s216 + $0x30] sm:$0xff]
        %v316 = vld [vmem:[%s216 + $0x38] sm:$0xff]
        %v317 = vld [vmem:[%s216 + $0x40] sm:$0xff]
        %v318 = vld [vmem:[%s216 + $0x48] sm:$0xff]
        %v319 = vld [vmem:[%s216 + $0x50] sm:$0xff]
        %v320 = vld [vmem:[%s216 + $0x58] sm:$0xff]
        %v321 = vld [vmem:[%s216 + $0x60] sm:$0xff]
        %v322 = vld [vmem:[%s216 + $0x68] sm:$0xff]
        %v323 = vld [vmem:[%s216 + $0x70] sm:$0xff]
        %v324 = vld [vmem:[%s216 + $0x78] sm:$0xff]
        %v325 = vld [vmem:[%s216 + $0x80] sm:$0xff]
        %v326 = vld [vmem:[%s216 + $0x88] sm:$0xff]
        %v327 = vld [vmem:[%s216 + $0x90] sm:$0xff]
        %v328 = vld [vmem:[%s216 + $0x98] sm:$0xff]
        %v329 = vld [vmem:[%s216 + $0xa0] sm:$0xff]
        %v330 = vld [vmem:[%s216 + $0xa8] sm:$0xff]
        %v331 = vld [vmem:[%s216 + $0xb0] sm:$0xff]
        %v332 = vld [vmem:[%s216 + $0xb8] sm:$0xff]
        %v333 = vld [vmem:[%s216 + $0xc0] sm:$0xff]
        %v334 = vld [vmem:[%s216 + $0xc8] sm:$0xff]
        %v335 = vld [vmem:[%s216 + $0xd0] sm:$0xff]
        %v336 = vld [vmem:[%s216 + $0xd8] sm:$0xff]
        %v337 = vld [vmem:[%s216 + $0xe0] sm:$0xff]
        %v338 = vld [vmem:[%s216 + $0xe8] sm:$0xff]
        %v339 = vld [vmem:[%s216 + $0xf0] sm:$0xff]
        %v340 = vld [vmem:[%s216 + $0xf8] sm:$0xff]
        %v341 = vld [vmem:[%s216 + $0x100] sm:$0xff]
        %v342 = vld [vmem:[%s216 + $0x108] sm:$0xff]
        %v343 = vld [vmem:[%s216 + $0x110] sm:$0xff]
        %v344 = vld [vmem:[%s216 + $0x118] sm:$0xff]
        %v345 = vld [vmem:[%s216 + $0x120] sm:$0xff]
        %v346 = vld [vmem:[%s216 + $0x128] sm:$0xff]
        %v347 = vld [vmem:[%s216 + $0x130] sm:$0xff]
        %v348 = vld [vmem:[%s216 + $0x138] sm:$0xff]
        %v349 = vld [vmem:[%s216 + $0x140] sm:$0xff]
        %v350 = vld [vmem:[%s216 + $0x148] sm:$0xff]
        %v351 = vld [vmem:[%s216 + $0x150] sm:$0xff]
        %v352 = vld [vmem:[%s216 + $0x158] sm:$0xff]
        %v353 = vld [vmem:[%s216 + $0x160] sm:$0xff]
        %v354 = vld [vmem:[%s216 + $0x168] sm:$0xff]
        %v355 = vld [vmem:[%s216 + $0x170] sm:$0xff]
        %v356 = vld [vmem:[%s216 + $0x178] sm:$0xff]
        %v357 = vld [vmem:[%s216 + $0x180] sm:$0xff]
        %v358 = vld [vmem:[%s216 + $0x188] sm:$0xff]
        %v359 = vld [vmem:[%s216 + $0x190] sm:$0xff]
        %v360 = vld [vmem:[%s216 + $0x198] sm:$0xff]
        %v361 = vld [vmem:[%s216 + $0x1a0] sm:$0xff]
        %v362 = vld [vmem:[%s216 + $0x1a8] sm:$0xff]
        %v363 = vld [vmem:[%s216 + $0x1b0] sm:$0xff]
        %v364 = vld [vmem:[%s216 + $0x1b8] sm:$0xff]
        %v365 = vld [vmem:[%s216 + $0x1c0] sm:$0xff]
        %v366 = vld [vmem:[%s216 + $0x1c8] sm:$0xff]
        %v367 = vld [vmem:[%s216 + $0x1d0] sm:$0xff]
        %v368 = vld [vmem:[%s216 + $0x1d8] sm:$0xff]
        %v369 = vld [vmem:[%s216 + $0x1e0] sm:$0xff]
        %v370 = vld [vmem:[%s216 + $0x1e8] sm:$0xff]
        %v371 = vld [vmem:[%s216 + $0x1f0] sm:$0xff]
        %v372 = vld [vmem:[%s216 + $0x1f8] sm:$0xff]
        %v373 = vld [vmem:[%s216 + $0x200] sm:$0xff]
        %v374 = vld [vmem:[%s216 + $0x208] sm:$0xff]
        %v375 = vld [vmem:[%s216 + $0x210] sm:$0xff]
        %v376 = vld [vmem:[%s216 + $0x218] sm:$0xff]
        %v377 = vld [vmem:[%s216 + $0x220] sm:$0xff]
        %v378 = vld [vmem:[%s216 + $0x228] sm:$0xff]
        %v379 = vld [vmem:[%s216 + $0x230] sm:$0xff]
        %v380 = vld [vmem:[%s216 + $0x238] sm:$0xff]
        %v381 = vld [vmem:[%s216 + $0x240] sm:$0xff]
        %v382 = vld [vmem:[%s216 + $0x248] sm:$0xff]
        %v383 = vld [vmem:[%s216 + $0x250] sm:$0xff]
        %v384 = vld [vmem:[%s216 + $0x258] sm:$0xff]
        %v385 = vld [vmem:[%s216 + $0x260] sm:$0xff]
        %v386 = vld [vmem:[%s216 + $0x268] sm:$0xff]
        %v387 = vld [vmem:[%s216 + $0x270] sm:$0xff]
        %v388 = vld [vmem:[%s216 + $0x278] sm:$0xff]
        %v389 = vld [vmem:[%s216 + $0x280] sm:$0xff]
        %v390 = vld [vmem:[%s216 + $0x288] sm:$0xff]
        %v391 = vld [vmem:[%s216 + $0x290] sm:$0xff]
        %v392 = vld [vmem:[%s216 + $0x298] sm:$0xff]
        %v393 = vld [vmem:[%s216 + $0x2a0] sm:$0xff]
        %v394 = vld [vmem:[%s216 + $0x2a8] sm:$0xff]
        %v395 = vld [vmem:[%s216 + $0x2b0] sm:$0xff]
        %v396 = vld [vmem:[%s216 + $0x2b8] sm:$0xff]
        %v397 = vld [vmem:[%s216 + $0x2c0] sm:$0xff]
        %v398 = vld [vmem:[%s216 + $0x2c8] sm:$0xff]
        %v399 = vld [vmem:[%s216 + $0x2d0] sm:$0xff]
        %v400 = vld [vmem:[%s216 + $0x2d8] sm:$0xff]
        %v401 = vld [vmem:[%s216 + $0x2e0] sm:$0xff]
        %v402 = vld [vmem:[%s216 + $0x2e8] sm:$0xff]
        %v403 = vld [vmem:[%s216 + $0x2f0] sm:$0xff]
        %v404 = vld [vmem:[%s216 + $0x2f8] sm:$0xff]
        %v405 = vld [vmem:[%s216 + $0x300] sm:$0xff]
        %v406 = vld [vmem:[%s216 + $0x308] sm:$0xff]
        %v407 = vld [vmem:[%s216 + $0x310] sm:$0xff]
        %v408 = vld [vmem:[%s216 + $0x318] sm:$0xff]
        %v409 = vld [vmem:[%s216 + $0x320] sm:$0xff]
        %v410 = vld [vmem:[%s216 + $0x328] sm:$0xff]
        %v411 = vld [vmem:[%s216 + $0x330] sm:$0xff]
        %v412 = vld [vmem:[%s216 + $0x338] sm:$0xff]
        %v413 = vld [vmem:[%s216 + $0x340] sm:$0xff]
        %v414 = vld [vmem:[%s216 + $0x348] sm:$0xff]
        %v415 = vld [vmem:[%s216 + $0x350] sm:$0xff]
        %v416 = vld [vmem:[%s216 + $0x358] sm:$0xff]
        %v417 = vld [vmem:[%s216 + $0x360] sm:$0xff]
        %v418 = vld [vmem:[%s216 + $0x368] sm:$0xff]
        %v419 = vld [vmem:[%s216 + $0x370] sm:$0xff]
        %v420 = vld [vmem:[%s216 + $0x378] sm:$0xff]
        %v421 = vld [vmem:[%s216 + $0x380] sm:$0xff]
        %v422 = vld [vmem:[%s216 + $0x388] sm:$0xff]
        %v423 = vld [vmem:[%s216 + $0x390] sm:$0xff]
        %v424 = vld [vmem:[%s216 + $0x398] sm:$0xff]
        %v425 = vld [vmem:[%s216 + $0x3a0] sm:$0xff]
        %v426 = vld [vmem:[%s216 + $0x3a8] sm:$0xff]
        %v427 = vld [vmem:[%s216 + $0x3b0] sm:$0xff]
        %v428 = vld [vmem:[%s216 + $0x3b8] sm:$0xff]
        %v429 = vld [vmem:[%s216 + $0x3c0] sm:$0xff]
        %v430 = vld [vmem:[%s216 + $0x3c8] sm:$0xff]
        %v431 = vld [vmem:[%s216 + $0x3d0] sm:$0xff]
        %v432 = vld [vmem:[%s216 + $0x3d8] sm:$0xff]
        %v433 = vld [vmem:[%s216 + $0x3e0] sm:$0xff]
        %v434 = vld [vmem:[%s216 + $0x3e8] sm:$0xff]
        %v435 = vld [vmem:[%s216 + $0x3f0] sm:$0xff]
        %v436 = vld [vmem:[%s216 + $0x3f8] sm:$0xff]
        %v437 = vld [vmem:[%s216 + $0x400] sm:$0xff]
        %v438 = vld [vmem:[%s216 + $0x408] sm:$0xff]
        %v439 = vld [vmem:[%s216 + $0x410] sm:$0xff]
        %v440 = vld [vmem:[%s216 + $0x418] sm:$0xff]
        %v441 = vld [vmem:[%s216 + $0x420] sm:$0xff]
        %v442 = vld [vmem:[%s216 + $0x428] sm:$0xff]
        %v443 = vld [vmem:[%s216 + $0x430] sm:$0xff]
        %v444 = vld [vmem:[%s216 + $0x438] sm:$0xff]
        %v445 = vld [vmem:[%s216 + $0x440] sm:$0xff]
        %v446 = vld [vmem:[%s216 + $0x448] sm:$0xff]
        %v447 = vld [vmem:[%s216 + $0x450] sm:$0xff]
        %v448 = vld [vmem:[%s216 + $0x458] sm:$0xff]
        %v449 = vld [vmem:[%s216 + $0x460] sm:$0xff]
        %v450 = vld [vmem:[%s216 + $0x468] sm:$0xff]
        %v451 = vld [vmem:[%s216 + $0x470] sm:$0xff]
        %v452 = vld [vmem:[%s216 + $0x478] sm:$0xff]
        %v453 = vld [vmem:[%s216 + $0x480] sm:$0xff]
        %v454 = vld [vmem:[%s216 + $0x488] sm:$0xff]
        %v455 = vld [vmem:[%s216 + $0x490] sm:$0xff]
        %v456 = vld [vmem:[%s216 + $0x498] sm:$0xff]
        %v457 = vld [vmem:[%s216 + $0x4a0] sm:$0xff]
        %v458 = vld [vmem:[%s216 + $0x4a8] sm:$0xff]
        %v459 = vld [vmem:[%s216 + $0x4b0] sm:$0xff]
        %v460 = vld [vmem:[%s216 + $0x4b8] sm:$0xff]
        %v461 = vld [vmem:[%s216 + $0x4c0] sm:$0xff]
        %v462 = vld [vmem:[%s216 + $0x4c8] sm:$0xff]
        %v463 = vld [vmem:[%s216 + $0x4d0] sm:$0xff]
        %v464 = vld [vmem:[%s216 + $0x4d8] sm:$0xff]
        %v465 = vld [vmem:[%s216 + $0x4e0] sm:$0xff]
        %v466 = vld [vmem:[%s216 + $0x4e8] sm:$0xff]
        %v467 = vld [vmem:[%s216 + $0x4f0] sm:$0xff]
        %v468 = vld [vmem:[%s216 + $0x4f8] sm:$0xff]
        %v469 = vld [vmem:[%s216 + $0x500] sm:$0xff]
        %v470 = vld [vmem:[%s216 + $0x508] sm:$0xff]
        %v471 = vld [vmem:[%s216 + $0x510] sm:$0xff]
        %v472 = vld [vmem:[%s216 + $0x518] sm:$0xff]
        %v473 = vld [vmem:[%s216 + $0x520] sm:$0xff]
        %v474 = vld [vmem:[%s216 + $0x528] sm:$0xff]
        %v475 = vld [vmem:[%s216 + $0x530] sm:$0xff]
        %v476 = vld [vmem:[%s216 + $0x538] sm:$0xff]
        %v477 = vld [vmem:[%s216 + $0x540] sm:$0xff]
        %v478 = vld [vmem:[%s216 + $0x548] sm:$0xff]
        %v479 = vld [vmem:[%s216 + $0x550] sm:$0xff]
        %v480 = vld [vmem:[%s216 + $0x558] sm:$0xff]
        %v481 = vld [vmem:[%s216 + $0x560] sm:$0xff]
        %v482 = vld [vmem:[%s216 + $0x568] sm:$0xff]
        %v483 = vld [vmem:[%s216 + $0x570] sm:$0xff]
        %v484 = vld [vmem:[%s216 + $0x578] sm:$0xff]
        %v485 = vld [vmem:[%s216 + $0x580] sm:$0xff]
        %v486 = vld [vmem:[%s216 + $0x588] sm:$0xff]
        %v487 = vld [vmem:[%s216 + $0x590] sm:$0xff]
        %v488 = vld [vmem:[%s216 + $0x598] sm:$0xff]
        %v489 = vld [vmem:[%s216 + $0x5a0] sm:$0xff]
        %v490 = vld [vmem:[%s216 + $0x5a8] sm:$0xff]
        %v491 = vld [vmem:[%s216 + $0x5b0] sm:$0xff]
        %v492 = vld [vmem:[%s216 + $0x5b8] sm:$0xff]
        %v493 = vld [vmem:[%s216 + $0x5c0] sm:$0xff]
        %v494 = vld [vmem:[%s216 + $0x5c8] sm:$0xff]
        %v495 = vld [vmem:[%s216 + $0x5d0] sm:$0xff]
        %v496 = vld [vmem:[%s216 + $0x5d8] sm:$0xff]
        %v497 = vld [vmem:[%s216 + $0x5e0] sm:$0xff]
        %v498 = vld [vmem:[%s216 + $0x5e8] sm:$0xff]
        %v499 = vld [vmem:[%s216 + $0x5f0] sm:$0xff]
        %v500 = vld [vmem:[%s216 + $0x5f8] sm:$0xff]
        %v501 = vld [vmem:[%s216 + $0x600] sm:$0xff]
        %v502 = vld [vmem:[%s216 + $0x608] sm:$0xff]
        %v503 = vld [vmem:[%s216 + $0x610] sm:$0xff]
        %v504 = vld [vmem:[%s216 + $0x618] sm:$0xff]
        %v505 = vld [vmem:[%s216 + $0x620] sm:$0xff]
        %v506 = vld [vmem:[%s216 + $0x628] sm:$0xff]
        %v507 = vld [vmem:[%s216 + $0x630] sm:$0xff]
        %v508 = vld [vmem:[%s216 + $0x638] sm:$0xff]
        %v509 = vld [vmem:[%s216 + $0x640] sm:$0xff]
        %v510 = vld [vmem:[%s216 + $0x648] sm:$0xff]
        %v511 = vld [vmem:[%s216 + $0x650] sm:$0xff]
        %v512 = vld [vmem:[%s216 + $0x658] sm:$0xff]
        %v513 = vld [vmem:[%s216 + $0x660] sm:$0xff]
        %v514 = vld [vmem:[%s216 + $0x668] sm:$0xff]
        %v515 = vld [vmem:[%s216 + $0x670] sm:$0xff]
        %v516 = vld [vmem:[%s216 + $0x678] sm:$0xff]
        %v517 = vld [vmem:[%s216 + $0x680] sm:$0xff]
        %v518 = vld [vmem:[%s216 + $0x688] sm:$0xff]
        %v519 = vld [vmem:[%s216 + $0x690] sm:$0xff]
        %v520 = vld [vmem:[%s216 + $0x698] sm:$0xff]
        %v521 = vld [vmem:[%s216 + $0x6a0] sm:$0xff]
        %v522 = vld [vmem:[%s216 + $0x6a8] sm:$0xff]
        %v523 = vld [vmem:[%s216 + $0x6b0] sm:$0xff]
        %v524 = vld [vmem:[%s216 + $0x6b8] sm:$0xff]
        %v525 = vld [vmem:[%s216 + $0x6c0] sm:$0xff]
        %v526 = vld [vmem:[%s216 + $0x6c8] sm:$0xff]
        %v527 = vld [vmem:[%s216 + $0x6d0] sm:$0xff]
        %v528 = vld [vmem:[%s216 + $0x6d8] sm:$0xff]
        %v529 = vld [vmem:[%s216 + $0x6e0] sm:$0xff]
        %v530 = vld [vmem:[%s216 + $0x6e8] sm:$0xff]
        %v531 = vld [vmem:[%s216 + $0x6f0] sm:$0xff]
        %v532 = vld [vmem:[%s216 + $0x6f8] sm:$0xff]
        %v533 = vld [vmem:[%s216 + $0x700] sm:$0xff]
        %v534 = vld [vmem:[%s216 + $0x708] sm:$0xff]
        %v535 = vld [vmem:[%s216 + $0x710] sm:$0xff]
        %v536 = vld [vmem:[%s216 + $0x718] sm:$0xff]
        %v537 = vld [vmem:[%s216 + $0x720] sm:$0xff]
        %v538 = vld [vmem:[%s216 + $0x728] sm:$0xff]
        %v539 = vld [vmem:[%s216 + $0x730] sm:$0xff]
        %v540 = vld [vmem:[%s216 + $0x738] sm:$0xff]
        %v541 = vld [vmem:[%s216 + $0x740] sm:$0xff]
        %v542 = vld [vmem:[%s216 + $0x748] sm:$0xff]
        %v543 = vld [vmem:[%s216 + $0x750] sm:$0xff]
        %v544 = vld [vmem:[%s216 + $0x758] sm:$0xff]
        %v545 = vld [vmem:[%s216 + $0x760] sm:$0xff]
        %v546 = vld [vmem:[%s216 + $0x768] sm:$0xff]
        %v547 = vld [vmem:[%s216 + $0x770] sm:$0xff]
        %v548 = vld [vmem:[%s216 + $0x778] sm:$0xff]
        %v549 = vld [vmem:[%s216 + $0x780] sm:$0xff]
        %v550 = vld [vmem:[%s216 + $0x788] sm:$0xff]
        %v551 = vld [vmem:[%s216 + $0x790] sm:$0xff]
        %v552 = vld [vmem:[%s216 + $0x798] sm:$0xff]
        %v553 = vld [vmem:[%s216 + $0x7a0] sm:$0xff]
        %v554 = vld [vmem:[%s216 + $0x7a8] sm:$0xff]
        %v555 = vld [vmem:[%s216 + $0x7b0] sm:$0xff]
        %v556 = vld [vmem:[%s216 + $0x7b8] sm:$0xff]
        %v557 = vld [vmem:[%s216 + $0x7c0] sm:$0xff]
        %v558 = vld [vmem:[%s216 + $0x7c8] sm:$0xff]
        %v559 = vld [vmem:[%s216 + $0x7d0] sm:$0xff]
        %v560 = vld [vmem:[%s216 + $0x7d8] sm:$0xff]
        %v561 = vld [vmem:[%s216 + $0x7e0] sm:$0xff]
        %v562 = vld [vmem:[%s216 + $0x7e8] sm:$0xff]
        %v563 = vld [vmem:[%s216 + $0x7f0] sm:$0xff]
        %v564 = vld [vmem:[%s216 + $0x7f8] sm:$0xff]
        %v565 = vld [vmem:[%s216 + $0x800] sm:$0xff]
        %v566 = vld [vmem:[%s216 + $0x808] sm:$0xff]
        %v567 = vld [vmem:[%s216 + $0x810] sm:$0xff]
        %v568 = vld [vmem:[%s216 + $0x818] sm:$0xff]
        %v569 = vld [vmem:[%s216 + $0x820] sm:$0xff]
        %v570 = vld [vmem:[%s216 + $0x828] sm:$0xff]
        %v571 = vld [vmem:[%s216 + $0x830] sm:$0xff]
        %v572 = vld [vmem:[%s216 + $0x838] sm:$0xff]
        %v573 = vld [vmem:[%s216 + $0x840] sm:$0xff]
        %v574 = vld [vmem:[%s216 + $0x848] sm:$0xff]
        %v575 = vld [vmem:[%s216 + $0x850] sm:$0xff]
        %v576 = vld [vmem:[%s216 + $0x858] sm:$0xff]
        %v577 = vld [vmem:[%s216 + $0x860] sm:$0xff]
        %v578 = vld [vmem:[%s216 + $0x868] sm:$0xff]
        %v579 = vld [vmem:[%s216 + $0x870] sm:$0xff]
        %v580 = vld [vmem:[%s216 + $0x878] sm:$0xff]
        %v581 = vld [vmem:[%s216 + $0x880] sm:$0xff]
        %v582 = vld [vmem:[%s216 + $0x888] sm:$0xff]
        %v583 = vld [vmem:[%s216 + $0x890] sm:$0xff]
        %v584 = vld [vmem:[%s216 + $0x898] sm:$0xff]
        %v585 = vld [vmem:[%s216 + $0x8a0] sm:$0xff]
        %v586 = vld [vmem:[%s216 + $0x8a8] sm:$0xff]
        %v587 = vld [vmem:[%s216 + $0x8b0] sm:$0xff]
        %v588 = vld [vmem:[%s216 + $0x8b8] sm:$0xff]
        %v589 = vld [vmem:[%s216 + $0x8c0] sm:$0xff]
        %v590 = vld [vmem:[%s216 + $0x8c8] sm:$0xff]
        %v591 = vld [vmem:[%s216 + $0x8d0] sm:$0xff]
        %v592 = vld [vmem:[%s216 + $0x8d8] sm:$0xff]
        %v593 = vld [vmem:[%s216 + $0x8e0] sm:$0xff]
        %v594 = vld [vmem:[%s216 + $0x8e8] sm:$0xff]
        %v595 = vld [vmem:[%s216 + $0x8f0] sm:$0xff]
        %v596 = vld [vmem:[%s216 + $0x8f8] sm:$0xff]
        %v597 = vld [vmem:[%s216 + $0x900] sm:$0xff]
        %v598 = vld [vmem:[%s216 + $0x908] sm:$0xff]
        %v599 = vld [vmem:[%s216 + $0x910] sm:$0xff]
        %v600 = vld [vmem:[%s216 + $0x918] sm:$0xff]
        %v601 = vld [vmem:[%s216 + $0x920] sm:$0xff]
        %v602 = vld [vmem:[%s216 + $0x928] sm:$0xff]
        %v603 = vld [vmem:[%s216 + $0x930] sm:$0xff]
        %v604 = vld [vmem:[%s216 + $0x938] sm:$0xff]
        %v605 = vld [vmem:[%s216 + $0x940] sm:$0xff]
        %v606 = vld [vmem:[%s216 + $0x948] sm:$0xff]
        %v607 = vld [vmem:[%s216 + $0x950] sm:$0xff]
        %v608 = vld [vmem:[%s216 + $0x958] sm:$0xff]
        %v609 = vld [vmem:[%s216 + $0x960] sm:$0xff]
        %v610 = vld [vmem:[%s216 + $0x968] sm:$0xff]
        %v611 = vld [vmem:[%s216 + $0x970] sm:$0xff]
        %v612 = vld [vmem:[%s216 + $0x978] sm:$0xff]
        %v613 = vld [vmem:[%s216 + $0x980] sm:$0xff]
        %v614 = vld [vmem:[%s216 + $0x988] sm:$0xff]
        %v615 = vld [vmem:[%s216 + $0x990] sm:$0xff]
        %v616 = vld [vmem:[%s216 + $0x998] sm:$0xff]
        %v617 = vld [vmem:[%s216 + $0x9a0] sm:$0xff]
        %v618 = vld [vmem:[%s216 + $0x9a8] sm:$0xff]
        %v619 = vld [vmem:[%s216 + $0x9b0] sm:$0xff]
        %v620 = vld [vmem:[%s216 + $0x9b8] sm:$0xff]
        %v621 = vld [vmem:[%s216 + $0x9c0] sm:$0xff]
        %v622 = vld [vmem:[%s216 + $0x9c8] sm:$0xff]
        %v623 = vld [vmem:[%s216 + $0x9d0] sm:$0xff]
        %v624 = vld [vmem:[%s216 + $0x9d8] sm:$0xff]
        %v625 = vld [vmem:[%s216 + $0x9e0] sm:$0xff]
        %v626 = vld [vmem:[%s216 + $0x9e8] sm:$0xff]
        %v627 = vld [vmem:[%s216 + $0x9f0] sm:$0xff]
        %v628 = vld [vmem:[%s216 + $0x9f8] sm:$0xff]
        %v629 = vld [vmem:[%s216 + $0xa00] sm:$0xff]
        %v630 = vld [vmem:[%s216 + $0xa08] sm:$0xff]
        %v631 = vld [vmem:[%s216 + $0xa10] sm:$0xff]
        %v632 = vld [vmem:[%s216 + $0xa18] sm:$0xff]
        %v633 = vld [vmem:[%s216 + $0xa20] sm:$0xff]
        %v634 = vld [vmem:[%s216 + $0xa28] sm:$0xff]
        %v635 = vld [vmem:[%s216 + $0xa30] sm:$0xff]
        %v636 = vld [vmem:[%s216 + $0xa38] sm:$0xff]
        %v637 = vld [vmem:[%s216 + $0xa40] sm:$0xff]
        %v638 = vld [vmem:[%s216 + $0xa48] sm:$0xff]
        %v639 = vld [vmem:[%s216 + $0xa50] sm:$0xff]
        %v640 = vld [vmem:[%s216 + $0xa58] sm:$0xff]
        %v641 = vld [vmem:[%s216 + $0xa60] sm:$0xff]
        %v642 = vld [vmem:[%s216 + $0xa68] sm:$0xff]
        %v643 = vld [vmem:[%s216 + $0xa70] sm:$0xff]
        %v644 = vld [vmem:[%s216 + $0xa78] sm:$0xff]
        %v645 = vld [vmem:[%s216 + $0xa80] sm:$0xff]
        %v646 = vld [vmem:[%s216 + $0xa88] sm:$0xff]
        %v647 = vld [vmem:[%s216 + $0xa90] sm:$0xff]
        %v648 = vld [vmem:[%s216 + $0xa98] sm:$0xff]
        %v649 = vld [vmem:[%s216 + $0xaa0] sm:$0xff]
        %v650 = vld [vmem:[%s216 + $0xaa8] sm:$0xff]
        %v651 = vld [vmem:[%s216 + $0xab0] sm:$0xff]
        %v652 = vld [vmem:[%s216 + $0xab8] sm:$0xff]
        %v653 = vld [vmem:[%s216 + $0xac0] sm:$0xff]
        %v654 = vld [vmem:[%s216 + $0xac8] sm:$0xff]
        %v655 = vld [vmem:[%s216 + $0xad0] sm:$0xff]
        %v656 = vld [vmem:[%s216 + $0xad8] sm:$0xff]
        %v657 = vld [vmem:[%s216 + $0xae0] sm:$0xff]
        %v658 = vld [vmem:[%s216 + $0xae8] sm:$0xff]
        %v659 = vld [vmem:[%s216 + $0xaf0] sm:$0xff]
        %v660 = vld [vmem:[%s216 + $0xaf8] sm:$0xff]
        %v661 = vld [vmem:[%s216 + $0xb00] sm:$0xff]
        %v662 = vld [vmem:[%s216 + $0xb08] sm:$0xff]
        %v663 = vld [vmem:[%s216 + $0xb10] sm:$0xff]
        %v664 = vld [vmem:[%s216 + $0xb18] sm:$0xff]
        %v665 = vld [vmem:[%s216 + $0xb20] sm:$0xff]
        %v666 = vld [vmem:[%s216 + $0xb28] sm:$0xff]
        %v667 = vld [vmem:[%s216 + $0xb30] sm:$0xff]
        %v668 = vld [vmem:[%s216 + $0xb38] sm:$0xff]
        %v669 = vld [vmem:[%s216 + $0xb40] sm:$0xff]
        %v670 = vld [vmem:[%s216 + $0xb48] sm:$0xff]
        %v671 = vld [vmem:[%s216 + $0xb50] sm:$0xff]
        %v672 = vld [vmem:[%s216 + $0xb58] sm:$0xff]
        %v673 = vld [vmem:[%s216 + $0xb60] sm:$0xff]
        %v674 = vld [vmem:[%s216 + $0xb68] sm:$0xff]
        %v675 = vld [vmem:[%s216 + $0xb70] sm:$0xff]
        %v676 = vld [vmem:[%s216 + $0xb78] sm:$0xff]
        %v677 = vld [vmem:[%s216 + $0xb80] sm:$0xff]
        %v678 = vld [vmem:[%s216 + $0xb88] sm:$0xff]
        %v679 = vld [vmem:[%s216 + $0xb90] sm:$0xff]
        %v680 = vld [vmem:[%s216 + $0xb98] sm:$0xff]
        %v681 = vld [vmem:[%s216 + $0xba0] sm:$0xff]
        %v682 = vld [vmem:[%s216 + $0xba8] sm:$0xff]
        %v683 = vld [vmem:[%s216 + $0xbb0] sm:$0xff]
        %v684 = vld [vmem:[%s216 + $0xbb8] sm:$0xff]
        %v685 = vld [vmem:[%s216 + $0xbc0] sm:$0xff]
        %v686 = vld [vmem:[%s216 + $0xbc8] sm:$0xff]
        %v687 = vld [vmem:[%s216 + $0xbd0] sm:$0xff]
        %v688 = vld [vmem:[%s216 + $0xbd8] sm:$0xff]
        %v689 = vld [vmem:[%s216 + $0xbe0] sm:$0xff]
        %v690 = vld [vmem:[%s216 + $0xbe8] sm:$0xff]
        %v691 = vld [vmem:[%s216 + $0xbf0] sm:$0xff]
        %v692 = vld [vmem:[%s216 + $0xbf8] sm:$0xff]
        %v693 = vld [vmem:[%s216 + $0xc00] sm:$0xff]
        %v694 = vld [vmem:[%s216 + $0xc08] sm:$0xff]
        %v695 = vld [vmem:[%s216 + $0xc10] sm:$0xff]
        %v696 = vld [vmem:[%s216 + $0xc18] sm:$0xff]
        %v697 = vld [vmem:[%s216 + $0xc20] sm:$0xff]
        %v698 = vld [vmem:[%s216 + $0xc28] sm:$0xff]
        %v699 = vld [vmem:[%s216 + $0xc30] sm:$0xff]
        %v700 = vld [vmem:[%s216 + $0xc38] sm:$0xff]
        %v701 = vld [vmem:[%s216 + $0xc40] sm:$0xff]
        %v702 = vld [vmem:[%s216 + $0xc48] sm:$0xff]
        %v703 = vld [vmem:[%s216 + $0xc50] sm:$0xff]
        %v704 = vld [vmem:[%s216 + $0xc58] sm:$0xff]
        %v705 = vld [vmem:[%s216 + $0xc60] sm:$0xff]
        %v706 = vld [vmem:[%s216 + $0xc68] sm:$0xff]
        %v707 = vld [vmem:[%s216 + $0xc70] sm:$0xff]
        %v708 = vld [vmem:[%s216 + $0xc78] sm:$0xff]
        %v709 = vld [vmem:[%s216 + $0xc80] sm:$0xff]
        %v710 = vld [vmem:[%s216 + $0xc88] sm:$0xff]
        %v711 = vld [vmem:[%s216 + $0xc90] sm:$0xff]
        %v712 = vld [vmem:[%s216 + $0xc98] sm:$0xff]
        %v713 = vld [vmem:[%s216 + $0xca0] sm:$0xff]
        %v714 = vld [vmem:[%s216 + $0xca8] sm:$0xff]
        %v715 = vld [vmem:[%s216 + $0xcb0] sm:$0xff]
        %v716 = vld [vmem:[%s216 + $0xcb8] sm:$0xff]
        %v717 = vld [vmem:[%s216 + $0xcc0] sm:$0xff]
        %v718 = vld [vmem:[%s216 + $0xcc8] sm:$0xff]
        %v719 = vld [vmem:[%s216 + $0xcd0] sm:$0xff]
        %v720 = vld [vmem:[%s216 + $0xcd8] sm:$0xff]
        %v721 = vld [vmem:[%s216 + $0xce0] sm:$0xff]
        %v722 = vld [vmem:[%s216 + $0xce8] sm:$0xff]
        %v723 = vld [vmem:[%s216 + $0xcf0] sm:$0xff]
        %v724 = vld [vmem:[%s216 + $0xcf8] sm:$0xff]
        %v725 = vld [vmem:[%s216 + $0xd00] sm:$0xff]
        %v726 = vld [vmem:[%s216 + $0xd08] sm:$0xff]
        %v727 = vld [vmem:[%s216 + $0xd10] sm:$0xff]
        %v728 = vld [vmem:[%s216 + $0xd18] sm:$0xff]
        %v729 = vld [vmem:[%s216 + $0xd20] sm:$0xff]
        %v730 = vld [vmem:[%s216 + $0xd28] sm:$0xff]
        %v731 = vld [vmem:[%s216 + $0xd30] sm:$0xff]
        %v732 = vld [vmem:[%s216 + $0xd38] sm:$0xff]
        %v733 = vld [vmem:[%s216 + $0xd40] sm:$0xff]
        %v734 = vld [vmem:[%s216 + $0xd48] sm:$0xff]
        %v735 = vld [vmem:[%s216 + $0xd50] sm:$0xff]
        %v736 = vld [vmem:[%s216 + $0xd58] sm:$0xff]
        %v737 = vld [vmem:[%s216 + $0xd60] sm:$0xff]
        %v738 = vld [vmem:[%s216 + $0xd68] sm:$0xff]
        %v739 = vld [vmem:[%s216 + $0xd70] sm:$0xff]
        %v740 = vld [vmem:[%s216 + $0xd78] sm:$0xff]
        %v741 = vld [vmem:[%s216 + $0xd80] sm:$0xff]
        %v742 = vld [vmem:[%s216 + $0xd88] sm:$0xff]
        %v743 = vld [vmem:[%s216 + $0xd90] sm:$0xff]
        %v744 = vld [vmem:[%s216 + $0xd98] sm:$0xff]
        %v745 = vld [vmem:[%s216 + $0xda0] sm:$0xff]
        %v746 = vld [vmem:[%s216 + $0xda8] sm:$0xff]
        %v747 = vld [vmem:[%s216 + $0xdb0] sm:$0xff]
        %v748 = vld [vmem:[%s216 + $0xdb8] sm:$0xff]
        %v749 = vld [vmem:[%s216 + $0xdc0] sm:$0xff]
        %v750 = vld [vmem:[%s216 + $0xdc8] sm:$0xff]
        %v751 = vld [vmem:[%s216 + $0xdd0] sm:$0xff]
        %v752 = vld [vmem:[%s216 + $0xdd8] sm:$0xff]
        %v753 = vld [vmem:[%s216 + $0xde0] sm:$0xff]
        %v754 = vld [vmem:[%s216 + $0xde8] sm:$0xff]
        %v755 = vld [vmem:[%s216 + $0xdf0] sm:$0xff]
        %v756 = vld [vmem:[%s216 + $0xdf8] sm:$0xff]
        %v757 = vld [vmem:[%s216 + $0xe00] sm:$0xff]
        %v758 = vld [vmem:[%s216 + $0xe08] sm:$0xff]
        %v759 = vld [vmem:[%s216 + $0xe10] sm:$0xff]
        %v760 = vld [vmem:[%s216 + $0xe18] sm:$0xff]
        %v761 = vld [vmem:[%s216 + $0xe20] sm:$0xff]
        %v762 = vld [vmem:[%s216 + $0xe28] sm:$0xff]
        %v763 = vld [vmem:[%s216 + $0xe30] sm:$0xff]
        %v764 = vld [vmem:[%s216 + $0xe38] sm:$0xff]
        %v765 = vld [vmem:[%s216 + $0xe40] sm:$0xff]
        %v766 = vld [vmem:[%s216 + $0xe48] sm:$0xff]
        %v767 = vld [vmem:[%s216 + $0xe50] sm:$0xff]
        %v768 = vld [vmem:[%s216 + $0xe58] sm:$0xff]
        %v769 = vld [vmem:[%s216 + $0xe60] sm:$0xff]
        %v770 = vld [vmem:[%s216 + $0xe68] sm:$0xff]
        %v771 = vld [vmem:[%s216 + $0xe70] sm:$0xff]
        %v772 = vld [vmem:[%s216 + $0xe78] sm:$0xff]
        %v773 = vld [vmem:[%s216 + $0xe80] sm:$0xff]
        %v774 = vld [vmem:[%s216 + $0xe88] sm:$0xff]
        %v775 = vld [vmem:[%s216 + $0xe90] sm:$0xff]
        %v776 = vld [vmem:[%s216 + $0xe98] sm:$0xff]
        %v777 = vld [vmem:[%s216 + $0xea0] sm:$0xff]
        %v778 = vld [vmem:[%s216 + $0xea8] sm:$0xff]
        %v779 = vld [vmem:[%s216 + $0xeb0] sm:$0xff]
        %v780 = vld [vmem:[%s216 + $0xeb8] sm:$0xff]
        %v781 = vld [vmem:[%s216 + $0xec0] sm:$0xff]
        %v782 = vld [vmem:[%s216 + $0xec8] sm:$0xff]
        %v783 = vld [vmem:[%s216 + $0xed0] sm:$0xff]
        %v784 = vld [vmem:[%s216 + $0xed8] sm:$0xff]
        %v785 = vld [vmem:[%s216 + $0xee0] sm:$0xff]
        %v786 = vld [vmem:[%s216 + $0xee8] sm:$0xff]
        %v787 = vld [vmem:[%s216 + $0xef0] sm:$0xff]
        %v788 = vld [vmem:[%s216 + $0xef8] sm:$0xff]
        %v789 = vld [vmem:[%s216 + $0xf00] sm:$0xff]
        %v790 = vld [vmem:[%s216 + $0xf08] sm:$0xff]
        %v791 = vld [vmem:[%s216 + $0xf10] sm:$0xff]
        %v792 = vld [vmem:[%s216 + $0xf18] sm:$0xff]
        %v793 = vld [vmem:[%s216 + $0xf20] sm:$0xff]
        %v794 = vld [vmem:[%s216 + $0xf28] sm:$0xff]
        %v795 = vld [vmem:[%s216 + $0xf30] sm:$0xff]
        %v796 = vld [vmem:[%s216 + $0xf38] sm:$0xff]
        %v797 = vld [vmem:[%s216 + $0xf40] sm:$0xff]
        %v798 = vld [vmem:[%s216 + $0xf48] sm:$0xff]
        %v799 = vld [vmem:[%s216 + $0xf50] sm:$0xff]
        %v800 = vld [vmem:[%s216 + $0xf58] sm:$0xff]
        %v801 = vld [vmem:[%s216 + $0xf60] sm:$0xff]
        %v802 = vld [vmem:[%s216 + $0xf68] sm:$0xff]
        %v803 = vld [vmem:[%s216 + $0xf70] sm:$0xff]
        %v804 = vld [vmem:[%s216 + $0xf78] sm:$0xff]
        %v805 = vld [vmem:[%s216 + $0xf80] sm:$0xff]
        %v806 = vld [vmem:[%s216 + $0xf88] sm:$0xff]
        %v807 = vld [vmem:[%s216 + $0xf90] sm:$0xff]
        %v808 = vld [vmem:[%s216 + $0xf98] sm:$0xff]
        %v809 = vld [vmem:[%s216 + $0xfa0] sm:$0xff]
        %v810 = vld [vmem:[%s216 + $0xfa8] sm:$0xff]
        %v811 = vld [vmem:[%s216 + $0xfb0] sm:$0xff]
        %v812 = vld [vmem:[%s216 + $0xfb8] sm:$0xff]
        %v813 = vld [vmem:[%s216 + $0xfc0] sm:$0xff]
        %v814 = vld [vmem:[%s216 + $0xfc8] sm:$0xff]
        %v815 = vld [vmem:[%s216 + $0xfd0] sm:$0xff]
        %v816 = vld [vmem:[%s216 + $0xfd8] sm:$0xff]
        %v817 = vld [vmem:[%s216 + $0xfe0] sm:$0xff]
        %v818 = vld [vmem:[%s216 + $0xfe8] sm:$0xff]
        %v819 = vld [vmem:[%s216 + $0xff0] sm:$0xff]
        %v820 = vld [vmem:[%s216 + $0xff8] sm:$0xff]
        %v821 = vld [vmem:[%s216 + $0x1000] sm:$0xff]
        %v822 = vld [vmem:[%s216 + $0x1008] sm:$0xff]
        %v823 = vld [vmem:[%s216 + $0x1010] sm:$0xff]
        %v824 = vld [vmem:[%s216 + $0x1018] sm:$0xff]
        %v825 = vld [vmem:[%s216 + $0x1020] sm:$0xff]
        %v826 = vld [vmem:[%s216 + $0x1028] sm:$0xff]
        %v827 = vld [vmem:[%s216 + $0x1030] sm:$0xff]
        %v828 = vld [vmem:[%s216 + $0x1038] sm:$0xff]
        %v829 = vld [vmem:[%s216 + $0x1040] sm:$0xff]
        %v830 = vld [vmem:[%s216 + $0x1048] sm:$0xff]
        %v831 = vld [vmem:[%s216 + $0x1050] sm:$0xff]
        %v832 = vld [vmem:[%s216 + $0x1058] sm:$0xff]
        %v833 = vld [vmem:[%s216 + $0x1060] sm:$0xff]
        %v834 = vld [vmem:[%s216 + $0x1068] sm:$0xff]
        %v835 = vld [vmem:[%s216 + $0x1070] sm:$0xff]
        %v836 = vld [vmem:[%s216 + $0x1078] sm:$0xff]
        %v837 = vld [vmem:[%s216 + $0x1080] sm:$0xff]
        %v838 = vld [vmem:[%s216 + $0x1088] sm:$0xff]
        %v839 = vld [vmem:[%s216 + $0x1090] sm:$0xff]
        %v840 = vld [vmem:[%s216 + $0x1098] sm:$0xff]
        %v841 = vld [vmem:[%s216 + $0x10a0] sm:$0xff]
        %v842 = vld [vmem:[%s216 + $0x10a8] sm:$0xff]
        %v843 = vld [vmem:[%s216 + $0x10b0] sm:$0xff]
        %v844 = vld [vmem:[%s216 + $0x10b8] sm:$0xff]
        %v845 = vld [vmem:[%s216 + $0x10c0] sm:$0xff]
        %v846 = vld [vmem:[%s216 + $0x10c8] sm:$0xff]
        %v847 = vld [vmem:[%s216 + $0x10d0] sm:$0xff]
        %v848 = vld [vmem:[%s216 + $0x10d8] sm:$0xff]
        %v849 = vld [vmem:[%s216 + $0x10e0] sm:$0xff]
        %v850 = vld [vmem:[%s216 + $0x10e8] sm:$0xff]
        %v851 = vld [vmem:[%s216 + $0x10f0] sm:$0xff]
        %v852 = vld [vmem:[%s216 + $0x10f8] sm:$0xff]
        %v853 = vld [vmem:[%s216 + $0x1100] sm:$0xff]
        %v854 = vld [vmem:[%s216 + $0x1108] sm:$0xff]
        %v855 = vld [vmem:[%s216 + $0x1110] sm:$0xff]
        %v856 = vld [vmem:[%s216 + $0x1118] sm:$0xff]
        %v857 = vld [vmem:[%s216 + $0x1120] sm:$0xff]
        %v858 = vld [vmem:[%s216 + $0x1128] sm:$0xff]
        %v859 = vld [vmem:[%s216 + $0x1130] sm:$0xff]
        %v860 = vld [vmem:[%s216 + $0x1138] sm:$0xff]
        %v861 = vld [vmem:[%s216 + $0x1140] sm:$0xff]
        %v862 = vld [vmem:[%s216 + $0x1148] sm:$0xff]
        %v863 = vld [vmem:[%s216 + $0x1150] sm:$0xff]
        %v864 = vld [vmem:[%s216 + $0x1158] sm:$0xff]
        %v865 = vld [vmem:[%s216 + $0x1160] sm:$0xff]
        %v866 = vld [vmem:[%s216 + $0x1168] sm:$0xff]
        %v867 = vld [vmem:[%s216 + $0x1170] sm:$0xff]
        %v868 = vld [vmem:[%s216 + $0x1178] sm:$0xff]
        %v869 = vld [vmem:[%s216 + $0x1180] sm:$0xff]
        %v870 = vld [vmem:[%s216 + $0x1188] sm:$0xff]
        %v871 = vld [vmem:[%s216 + $0x1190] sm:$0xff]
        %v872 = vld [vmem:[%s216 + $0x1198] sm:$0xff]
        %v873 = vld [vmem:[%s216 + $0x11a0] sm:$0xff]
        %v874 = vld [vmem:[%s216 + $0x11a8] sm:$0xff]
        %v875 = vld [vmem:[%s216 + $0x11b0] sm:$0xff]
        %v876 = vld [vmem:[%s216 + $0x11b8] sm:$0xff]
        %v877 = vld [vmem:[%s216 + $0x11c0] sm:$0xff]
        %v878 = vld [vmem:[%s216 + $0x11c8] sm:$0xff]
        %v879 = vld [vmem:[%s216 + $0x11d0] sm:$0xff]
        %v880 = vld [vmem:[%s216 + $0x11d8] sm:$0xff]
        %v881 = vld [vmem:[%s216 + $0x11e0] sm:$0xff]
        %v882 = vld [vmem:[%s216 + $0x11e8] sm:$0xff]
        %v883 = vld [vmem:[%s216 + $0x11f0] sm:$0xff]
        %v884 = vld [vmem:[%s216 + $0x11f8] sm:$0xff]
        %v885 = vld [vmem:[%s216 + $0x1200] sm:$0xff]
        %v886 = vld [vmem:[%s216 + $0x1208] sm:$0xff]
        %v887 = vld [vmem:[%s216 + $0x1210] sm:$0xff]
        %v888 = vld [vmem:[%s216 + $0x1218] sm:$0xff]
        %v889 = vld [vmem:[%s216 + $0x1220] sm:$0xff]
        %v890 = vld [vmem:[%s216 + $0x1228] sm:$0xff]
        %v891 = vld [vmem:[%s216 + $0x1230] sm:$0xff]
        %v892 = vld [vmem:[%s216 + $0x1238] sm:$0xff]
        %v893 = vld [vmem:[%s216 + $0x1240] sm:$0xff]
        %v894 = vld [vmem:[%s216 + $0x1248] sm:$0xff]
        %v895 = vld [vmem:[%s216 + $0x1250] sm:$0xff]
        %v896 = vld [vmem:[%s216 + $0x1258] sm:$0xff]
        %v897 = vld [vmem:[%s216 + $0x1260] sm:$0xff]
        %v898 = vld [vmem:[%s216 + $0x1268] sm:$0xff]
        %v899 = vld [vmem:[%s216 + $0x1270] sm:$0xff]
        %v900 = vld [vmem:[%s216 + $0x1278] sm:$0xff]
        %v901 = vld [vmem:[%s216 + $0x1280] sm:$0xff]
        %v902 = vld [vmem:[%s216 + $0x1288] sm:$0xff]
        %v903 = vld [vmem:[%s216 + $0x1290] sm:$0xff]
        %v904 = vld [vmem:[%s216 + $0x1298] sm:$0xff]
        %v905 = vld [vmem:[%s216 + $0x12a0] sm:$0xff]
        %v906 = vld [vmem:[%s216 + $0x12a8] sm:$0xff]
        %v907 = vld [vmem:[%s216 + $0x12b0] sm:$0xff]
        %v908 = vld [vmem:[%s216 + $0x12b8] sm:$0xff]
        %v909 = vld [vmem:[%s216 + $0x12c0] sm:$0xff]
        %v910 = vld [vmem:[%s216 + $0x12c8] sm:$0xff]
        %v911 = vld [vmem:[%s216 + $0x12d0] sm:$0xff]
        %v912 = vld [vmem:[%s216 + $0x12d8] sm:$0xff]
        %v913 = vld [vmem:[%s216 + $0x12e0] sm:$0xff]
        %v914 = vld [vmem:[%s216 + $0x12e8] sm:$0xff]
        %v915 = vld [vmem:[%s216 + $0x12f0] sm:$0xff]
        %v916 = vld [vmem:[%s216 + $0x12f8] sm:$0xff]
        %v917 = vld [vmem:[%s216 + $0x1300] sm:$0xff]
        %v918 = vld [vmem:[%s216 + $0x1308] sm:$0xff]
        %v919 = vld [vmem:[%s216 + $0x1310] sm:$0xff]
        %v920 = vld [vmem:[%s216 + $0x1318] sm:$0xff]
        %v921 = vld [vmem:[%s216 + $0x1320] sm:$0xff]
        %v922 = vld [vmem:[%s216 + $0x1328] sm:$0xff]
        %v923 = vld [vmem:[%s216 + $0x1330] sm:$0xff]
        %v924 = vld [vmem:[%s216 + $0x1338] sm:$0xff]
        %v925 = vld [vmem:[%s216 + $0x1340] sm:$0xff]
        %v926 = vld [vmem:[%s216 + $0x1348] sm:$0xff]
        %v927 = vld [vmem:[%s216 + $0x1350] sm:$0xff]
        %v928 = vld [vmem:[%s216 + $0x1358] sm:$0xff]
        %v929 = vld [vmem:[%s216 + $0x1360] sm:$0xff]
        %v930 = vld [vmem:[%s216 + $0x1368] sm:$0xff]
        %v931 = vld [vmem:[%s216 + $0x1370] sm:$0xff]
        %v932 = vld [vmem:[%s216 + $0x1378] sm:$0xff]
        %v933 = vld [vmem:[%s216 + $0x1380] sm:$0xff]
        %v934 = vld [vmem:[%s216 + $0x1388] sm:$0xff]
        %v935 = vld [vmem:[%s216 + $0x1390] sm:$0xff]
        %v936 = vld [vmem:[%s216 + $0x1398] sm:$0xff]
        %v937 = vld [vmem:[%s216 + $0x13a0] sm:$0xff]
        %v938 = vld [vmem:[%s216 + $0x13a8] sm:$0xff]
        %v939 = vld [vmem:[%s216 + $0x13b0] sm:$0xff]
        %v940 = vld [vmem:[%s216 + $0x13b8] sm:$0xff]
        %v941 = vld [vmem:[%s216 + $0x13c0] sm:$0xff]
        %v942 = vld [vmem:[%s216 + $0x13c8] sm:$0xff]
        %v943 = vld [vmem:[%s216 + $0x13d0] sm:$0xff]
        %v944 = vld [vmem:[%s216 + $0x13d8] sm:$0xff]
        %v945 = vld [vmem:[%s216 + $0x13e0] sm:$0xff]
        %v946 = vld [vmem:[%s216 + $0x13e8] sm:$0xff]
        %v947 = vld [vmem:[%s216 + $0x13f0] sm:$0xff]
        %v948 = vld [vmem:[%s216 + $0x13f8] sm:$0xff]
        %v949 = vld [vmem:[%s216 + $0x1400] sm:$0xff]
        %v950 = vld [vmem:[%s216 + $0x1408] sm:$0xff]
        %v951 = vld [vmem:[%s216 + $0x1410] sm:$0xff]
        %v952 = vld [vmem:[%s216 + $0x1418] sm:$0xff]
        %v953 = vld [vmem:[%s216 + $0x1420] sm:$0xff]
        %v954 = vld [vmem:[%s216 + $0x1428] sm:$0xff]
        %v955 = vld [vmem:[%s216 + $0x1430] sm:$0xff]
        %v956 = vld [vmem:[%s216 + $0x1438] sm:$0xff]
        %v957 = vld [vmem:[%s216 + $0x1440] sm:$0xff]
        %v958 = vld [vmem:[%s216 + $0x1448] sm:$0xff]
        %v959 = vld [vmem:[%s216 + $0x1450] sm:$0xff]
        %v960 = vld [vmem:[%s216 + $0x1458] sm:$0xff]
        %v961 = vld [vmem:[%s216 + $0x1460] sm:$0xff]
        %v962 = vld [vmem:[%s216 + $0x1468] sm:$0xff]
        %v963 = vld [vmem:[%s216 + $0x1470] sm:$0xff]
        %v964 = vld [vmem:[%s216 + $0x1478] sm:$0xff]
        %v965 = vld [vmem:[%s216 + $0x1480] sm:$0xff]
        %v966 = vld [vmem:[%s216 + $0x1488] sm:$0xff]
        %v967 = vld [vmem:[%s216 + $0x1490] sm:$0xff]
        %v968 = vld [vmem:[%s216 + $0x1498] sm:$0xff]
        %v969 = vld [vmem:[%s216 + $0x14a0] sm:$0xff]
        %v970 = vld [vmem:[%s216 + $0x14a8] sm:$0xff]
        %v971 = vld [vmem:[%s216 + $0x14b0] sm:$0xff]
        %v972 = vld [vmem:[%s216 + $0x14b8] sm:$0xff]
        %v973 = vld [vmem:[%s216 + $0x14c0] sm:$0xff]
        %v974 = vld [vmem:[%s216 + $0x14c8] sm:$0xff]
        %v975 = vld [vmem:[%s216 + $0x14d0] sm:$0xff]
        %v976 = vld [vmem:[%s216 + $0x14d8] sm:$0xff]
        %v977 = vld [vmem:[%s216 + $0x14e0] sm:$0xff]
        %v978 = vld [vmem:[%s216 + $0x14e8] sm:$0xff]
        %v979 = vld [vmem:[%s216 + $0x14f0] sm:$0xff]
        %v980 = vld [vmem:[%s216 + $0x14f8] sm:$0xff]
        %v981 = vld [vmem:[%s216 + $0x1500] sm:$0xff]
        %v982 = vld [vmem:[%s216 + $0x1508] sm:$0xff]
        %v983 = vld [vmem:[%s216 + $0x1510] sm:$0xff]
        %v984 = vld [vmem:[%s216 + $0x1518] sm:$0xff]
        %v985 = vld [vmem:[%s216 + $0x1520] sm:$0xff]
        %v986 = vld [vmem:[%s216 + $0x1528] sm:$0xff]
        %v987 = vld [vmem:[%s216 + $0x1530] sm:$0xff]
        %v988 = vld [vmem:[%s216 + $0x1538] sm:$0xff]
        %v989 = vld [vmem:[%s216 + $0x1540] sm:$0xff]
        %v990 = vld [vmem:[%s216 + $0x1548] sm:$0xff]
        %v991 = vld [vmem:[%s216 + $0x1550] sm:$0xff]
        %v992 = vld [vmem:[%s216 + $0x1558] sm:$0xff]
        %v993 = vld [vmem:[%s216 + $0x1560] sm:$0xff]
        %v994 = vld [vmem:[%s216 + $0x1568] sm:$0xff]
        %v995 = vld [vmem:[%s216 + $0x1570] sm:$0xff]
        %v996 = vld [vmem:[%s216 + $0x1578] sm:$0xff]
        %v997 = vld [vmem:[%s216 + $0x1580] sm:$0xff]
        %v998 = vld [vmem:[%s216 + $0x1588] sm:$0xff]
        %v999 = vld [vmem:[%s216 + $0x1590] sm:$0xff]
        %v1000 = vld [vmem:[%s216 + $0x1598] sm:$0xff]
        %v1001 = vld [vmem:[%s216 + $0x15a0] sm:$0xff]
        %v1002 = vld [vmem:[%s216 + $0x15a8] sm:$0xff]
        %v1003 = vld [vmem:[%s216 + $0x15b0] sm:$0xff]
        %v1004 = vld [vmem:[%s216 + $0x15b8] sm:$0xff]
        %v1005 = vld [vmem:[%s216 + $0x15c0] sm:$0xff]
        %v1006 = vld [vmem:[%s216 + $0x15c8] sm:$0xff]
        %v1007 = vld [vmem:[%s216 + $0x15d0] sm:$0xff]
        %v1008 = vld [vmem:[%s216 + $0x15d8] sm:$0xff]
        %v1009 = vld [vmem:[%s216 + $0x15e0] sm:$0xff]
        %v1010 = vld [vmem:[%s216 + $0x15e8] sm:$0xff]
        %v1011 = vld [vmem:[%s216 + $0x15f0] sm:$0xff]
        %v1012 = vld [vmem:[%s216 + $0x15f8] sm:$0xff]
        %v1013 = vld [vmem:[%s216 + $0x1600] sm:$0xff]
        %v1014 = vld [vmem:[%s216 + $0x1608] sm:$0xff]
        %v1015 = vld [vmem:[%s216 + $0x1610] sm:$0xff]
        %v1016 = vld [vmem:[%s216 + $0x1618] sm:$0xff]
        %v1017 = vld [vmem:[%s216 + $0x1620] sm:$0xff]
        %v1018 = vld [vmem:[%s216 + $0x1628] sm:$0xff]
        %v1019 = vld [vmem:[%s216 + $0x1630] sm:$0xff]
        %v1020 = vld [vmem:[%s216 + $0x1638] sm:$0xff]
        %v1021 = vld [vmem:[%s216 + $0x1640] sm:$0xff]
        %v1022 = vld [vmem:[%s216 + $0x1648] sm:$0xff]
        %v1023 = vld [vmem:[%s216 + $0x1650] sm:$0xff]
        %v1024 = vld [vmem:[%s216 + $0x1658] sm:$0xff]
        %v1025 = vld [vmem:[%s216 + $0x1660] sm:$0xff]
        %v1026 = vld [vmem:[%s216 + $0x1668] sm:$0xff]
        %v1027 = vld [vmem:[%s216 + $0x1670] sm:$0xff]
        %v1028 = vld [vmem:[%s216 + $0x1678] sm:$0xff]
        %v1029 = vld [vmem:[%s216 + $0x1680] sm:$0xff]
        %v1030 = vld [vmem:[%s216 + $0x1688] sm:$0xff]
        %v1031 = vld [vmem:[%s216 + $0x1690] sm:$0xff]
        %v1032 = vld [vmem:[%s216 + $0x1698] sm:$0xff]
        %v1033 = vld [vmem:[%s216 + $0x16a0] sm:$0xff]
        %v1034 = vld [vmem:[%s216 + $0x16a8] sm:$0xff]
        %v1035 = vld [vmem:[%s216 + $0x16b0] sm:$0xff]
        %v1036 = vld [vmem:[%s216 + $0x16b8] sm:$0xff]
        %v1037 = vld [vmem:[%s216 + $0x16c0] sm:$0xff]
        %v1038 = vld [vmem:[%s216 + $0x16c8] sm:$0xff]
        %v1039 = vld [vmem:[%s216 + $0x16d0] sm:$0xff]
        %v1040 = vld [vmem:[%s216 + $0x16d8] sm:$0xff]
        %v1041 = vld [vmem:[%s216 + $0x16e0] sm:$0xff]
        %v1042 = vld [vmem:[%s216 + $0x16e8] sm:$0xff]
        %v1043 = vld [vmem:[%s216 + $0x16f0] sm:$0xff]
        %v1044 = vld [vmem:[%s216 + $0x16f8] sm:$0xff]
        %v1045 = vld [vmem:[%s216 + $0x1700] sm:$0xff]
        %v1046 = vld [vmem:[%s216 + $0x1708] sm:$0xff]
        %v1047 = vld [vmem:[%s216 + $0x1710] sm:$0xff]
        %v1048 = vld [vmem:[%s216 + $0x1718] sm:$0xff]
        %v1049 = vld [vmem:[%s216 + $0x1720] sm:$0xff]
        %v1050 = vld [vmem:[%s216 + $0x1728] sm:$0xff]
        %v1051 = vld [vmem:[%s216 + $0x1730] sm:$0xff]
        %v1052 = vld [vmem:[%s216 + $0x1738] sm:$0xff]
        %v1053 = vld [vmem:[%s216 + $0x1740] sm:$0xff]
        %v1054 = vld [vmem:[%s216 + $0x1748] sm:$0xff]
        %v1055 = vld [vmem:[%s216 + $0x1750] sm:$0xff]
        %v1056 = vld [vmem:[%s216 + $0x1758] sm:$0xff]
        %v1057 = vld [vmem:[%s216 + $0x1760] sm:$0xff]
        %v1058 = vld [vmem:[%s216 + $0x1768] sm:$0xff]
        %v1059 = vld [vmem:[%s216 + $0x1770] sm:$0xff]
        %v1060 = vld [vmem:[%s216 + $0x1778] sm:$0xff]
        %v1061 = vld [vmem:[%s216 + $0x1780] sm:$0xff]
        %v1062 = vld [vmem:[%s216 + $0x1788] sm:$0xff]
        %v1063 = vld [vmem:[%s216 + $0x1790] sm:$0xff]
        %v1064 = vld [vmem:[%s216 + $0x1798] sm:$0xff]
        %v1065 = vld [vmem:[%s216 + $0x17a0] sm:$0xff]
        %v1066 = vld [vmem:[%s216 + $0x17a8] sm:$0xff]
        %v1067 = vld [vmem:[%s216 + $0x17b0] sm:$0xff]
        %v1068 = vld [vmem:[%s216 + $0x17b8] sm:$0xff]
        %v1069 = vld [vmem:[%s216 + $0x17c0] sm:$0xff]
        %v1070 = vld [vmem:[%s216 + $0x17c8] sm:$0xff]
        %v1071 = vld [vmem:[%s216 + $0x17d0] sm:$0xff]
        %v1072 = vld [vmem:[%s216 + $0x17d8] sm:$0xff]
        %v1073 = vld [vmem:[%s216 + $0x17e0] sm:$0xff]
        %v1074 = vld [vmem:[%s216 + $0x17e8] sm:$0xff]
        %v1075 = vld [vmem:[%s216 + $0x17f0] sm:$0xff]
        %v1076 = vld [vmem:[%s216 + $0x17f8] sm:$0xff]
        %v1077 = vld [vmem:[%s216 + $0x1800] sm:$0xff]
        %v1078 = vld [vmem:[%s216 + $0x1808] sm:$0xff]
        %v1079 = vld [vmem:[%s216 + $0x1810] sm:$0xff]
        %v1080 = vld [vmem:[%s216 + $0x1818] sm:$0xff]
        %v1081 = vld [vmem:[%s216 + $0x1820] sm:$0xff]
        %v1082 = vld [vmem:[%s216 + $0x1828] sm:$0xff]
        %v1083 = vld [vmem:[%s216 + $0x1830] sm:$0xff]
        %v1084 = vld [vmem:[%s216 + $0x1838] sm:$0xff]
        %v1085 = vld [vmem:[%s216 + $0x1840] sm:$0xff]
        %v1086 = vld [vmem:[%s216 + $0x1848] sm:$0xff]
        %v1087 = vld [vmem:[%s216 + $0x1850] sm:$0xff]
        %v1088 = vld [vmem:[%s216 + $0x1858] sm:$0xff]
        %v1089 = vld [vmem:[%s216 + $0x1860] sm:$0xff]
        %v1090 = vld [vmem:[%s216 + $0x1868] sm:$0xff]
        %v1091 = vld [vmem:[%s216 + $0x1870] sm:$0xff]
        %v1092 = vld [vmem:[%s216 + $0x1878] sm:$0xff]
        %v1093 = vld [vmem:[%s216 + $0x1880] sm:$0xff]
        %v1094 = vld [vmem:[%s216 + $0x1888] sm:$0xff]
        %v1095 = vld [vmem:[%s216 + $0x1890] sm:$0xff]
        %v1096 = vld [vmem:[%s216 + $0x1898] sm:$0xff]
        %v1097 = vld [vmem:[%s216 + $0x18a0] sm:$0xff]
        %v1098 = vld [vmem:[%s216 + $0x18a8] sm:$0xff]
        %v1099 = vld [vmem:[%s216 + $0x18b0] sm:$0xff]
        %v1100 = vld [vmem:[%s216 + $0x18b8] sm:$0xff]
        %v1101 = vld [vmem:[%s216 + $0x18c0] sm:$0xff]
        %v1102 = vld [vmem:[%s216 + $0x18c8] sm:$0xff]
        %v1103 = vld [vmem:[%s216 + $0x18d0] sm:$0xff]
        %v1104 = vld [vmem:[%s216 + $0x18d8] sm:$0xff]
        %v1105 = vld [vmem:[%s216 + $0x18e0] sm:$0xff]
        %v1106 = vld [vmem:[%s216 + $0x18e8] sm:$0xff]
        %v1107 = vld [vmem:[%s216 + $0x18f0] sm:$0xff]
        %v1108 = vld [vmem:[%s216 + $0x18f8] sm:$0xff]
        %v1109 = vld [vmem:[%s216 + $0x1900] sm:$0xff]
        %v1110 = vld [vmem:[%s216 + $0x1908] sm:$0xff]
        %v1111 = vld [vmem:[%s216 + $0x1910] sm:$0xff]
        %v1112 = vld [vmem:[%s216 + $0x1918] sm:$0xff]
        %v1113 = vld [vmem:[%s216 + $0x1920] sm:$0xff]
        %v1114 = vld [vmem:[%s216 + $0x1928] sm:$0xff]
        %v1115 = vld [vmem:[%s216 + $0x1930] sm:$0xff]
        %v1116 = vld [vmem:[%s216 + $0x1938] sm:$0xff]
        %v1117 = vld [vmem:[%s216 + $0x1940] sm:$0xff]
        %v1118 = vld [vmem:[%s216 + $0x1948] sm:$0xff]
        %v1119 = vld [vmem:[%s216 + $0x1950] sm:$0xff]
        %v1120 = vld [vmem:[%s216 + $0x1958] sm:$0xff]
        %v1121 = vld [vmem:[%s216 + $0x1960] sm:$0xff]
        %v1122 = vld [vmem:[%s216 + $0x1968] sm:$0xff]
        %v1123 = vld [vmem:[%s216 + $0x1970] sm:$0xff]
        %v1124 = vld [vmem:[%s216 + $0x1978] sm:$0xff]
        %v1125 = vld [vmem:[%s216 + $0x1980] sm:$0xff]
        %v1126 = vld [vmem:[%s216 + $0x1988] sm:$0xff]
        %v1127 = vld [vmem:[%s216 + $0x1990] sm:$0xff]
        %v1128 = vld [vmem:[%s216 + $0x1998] sm:$0xff]
        %v1129 = vld [vmem:[%s216 + $0x19a0] sm:$0xff]
        %v1130 = vld [vmem:[%s216 + $0x19a8] sm:$0xff]
        %v1131 = vld [vmem:[%s216 + $0x19b0] sm:$0xff]
        %v1132 = vld [vmem:[%s216 + $0x19b8] sm:$0xff]
        %v1133 = vld [vmem:[%s216 + $0x19c0] sm:$0xff]
        %v1134 = vld [vmem:[%s216 + $0x19c8] sm:$0xff]
        %v1135 = vld [vmem:[%s216 + $0x19d0] sm:$0xff]
        %v1136 = vld [vmem:[%s216 + $0x19d8] sm:$0xff]
        %v1137 = vld [vmem:[%s216 + $0x19e0] sm:$0xff]
        %v1138 = vld [vmem:[%s216 + $0x19e8] sm:$0xff]
        %v1139 = vld [vmem:[%s216 + $0x19f0] sm:$0xff]
        %v1140 = vld [vmem:[%s216 + $0x19f8] sm:$0xff]
        %v1141 = vld [vmem:[%s216 + $0x1a00] sm:$0xff]
        %v1142 = vld [vmem:[%s216 + $0x1a08] sm:$0xff]
        %v1143 = vld [vmem:[%s216 + $0x1a10] sm:$0xff]
        %v1144 = vld [vmem:[%s216 + $0x1a18] sm:$0xff]
        %v1145 = vld [vmem:[%s216 + $0x1a20] sm:$0xff]
        %v1146 = vld [vmem:[%s216 + $0x1a28] sm:$0xff]
        %v1147 = vld [vmem:[%s216 + $0x1a30] sm:$0xff]
        %v1148 = vld [vmem:[%s216 + $0x1a38] sm:$0xff]
        %v1149 = vld [vmem:[%s216 + $0x1a40] sm:$0xff]
        %v1150 = vld [vmem:[%s216 + $0x1a48] sm:$0xff]
        %v1151 = vld [vmem:[%s216 + $0x1a50] sm:$0xff]
        %v1152 = vld [vmem:[%s216 + $0x1a58] sm:$0xff]
        %v1153 = vld [vmem:[%s216 + $0x1a60] sm:$0xff]
        %v1154 = vld [vmem:[%s216 + $0x1a68] sm:$0xff]
        %v1155 = vld [vmem:[%s216 + $0x1a70] sm:$0xff]
        %v1156 = vld [vmem:[%s216 + $0x1a78] sm:$0xff]
        %v1157 = vld [vmem:[%s216 + $0x1a80] sm:$0xff]
        %v1158 = vld [vmem:[%s216 + $0x1a88] sm:$0xff]
        %v1159 = vld [vmem:[%s216 + $0x1a90] sm:$0xff]
        %v1160 = vld [vmem:[%s216 + $0x1a98] sm:$0xff]
        %v1161 = vld [vmem:[%s216 + $0x1aa0] sm:$0xff]
        %v1162 = vld [vmem:[%s216 + $0x1aa8] sm:$0xff]
        %v1163 = vld [vmem:[%s216 + $0x1ab0] sm:$0xff]
        %v1164 = vld [vmem:[%s216 + $0x1ab8] sm:$0xff]
        %v1165 = vld [vmem:[%s216 + $0x1ac0] sm:$0xff]
        %v1166 = vld [vmem:[%s216 + $0x1ac8] sm:$0xff]
        %v1167 = vld [vmem:[%s216 + $0x1ad0] sm:$0xff]
        %v1168 = vld [vmem:[%s216 + $0x1ad8] sm:$0xff]
        %v1169 = vld [vmem:[%s216 + $0x1ae0] sm:$0xff]
        %v1170 = vld [vmem:[%s216 + $0x1ae8] sm:$0xff]
        %v1171 = vld [vmem:[%s216 + $0x1af0] sm:$0xff]
        %v1172 = vld [vmem:[%s216 + $0x1af8] sm:$0xff]
        %v1173 = vld [vmem:[%s216 + $0x1b00] sm:$0xff]
        %v1174 = vld [vmem:[%s216 + $0x1b08] sm:$0xff]
        %v1175 = vld [vmem:[%s216 + $0x1b10] sm:$0xff]
        %v1176 = vld [vmem:[%s216 + $0x1b18] sm:$0xff]
        %v1177 = vld [vmem:[%s216 + $0x1b20] sm:$0xff]
        %v1178 = vld [vmem:[%s216 + $0x1b28] sm:$0xff]
        %v1179 = vld [vmem:[%s216 + $0x1b30] sm:$0xff]
        %v1180 = vld [vmem:[%s216 + $0x1b38] sm:$0xff]
        %v1181 = vld [vmem:[%s216 + $0x1b40] sm:$0xff]
        %v1182 = vld [vmem:[%s216 + $0x1b48] sm:$0xff]
        %v1183 = vld [vmem:[%s216 + $0x1b50] sm:$0xff]
        %v1184 = vld [vmem:[%s216 + $0x1b58] sm:$0xff]
        %v1185 = vld [vmem:[%s216 + $0x1b60] sm:$0xff]
        %v1186 = vld [vmem:[%s216 + $0x1b68] sm:$0xff]
        %v1187 = vld [vmem:[%s216 + $0x1b70] sm:$0xff]
        %v1188 = vld [vmem:[%s216 + $0x1b78] sm:$0xff]
        %v1189 = vld [vmem:[%s216 + $0x1b80] sm:$0xff]
        %v1190 = vld [vmem:[%s216 + $0x1b88] sm:$0xff]
        %v1191 = vld [vmem:[%s216 + $0x1b90] sm:$0xff]
        %v1192 = vld [vmem:[%s216 + $0x1b98] sm:$0xff]
        %v1193 = vld [vmem:[%s216 + $0x1ba0] sm:$0xff]
        %v1194 = vld [vmem:[%s216 + $0x1ba8] sm:$0xff]
        %v1195 = vld [vmem:[%s216 + $0x1bb0] sm:$0xff]
        %v1196 = vld [vmem:[%s216 + $0x1bb8] sm:$0xff]
        %v1197 = vld [vmem:[%s216 + $0x1bc0] sm:$0xff]
        %v1198 = vld [vmem:[%s216 + $0x1bc8] sm:$0xff]
        %v1199 = vld [vmem:[%s216 + $0x1bd0] sm:$0xff]
        %v1200 = vld [vmem:[%s216 + $0x1bd8] sm:$0xff]
        %v1201 = vld [vmem:[%s216 + $0x1be0] sm:$0xff]
        %v1202 = vld [vmem:[%s216 + $0x1be8] sm:$0xff]
        %v1203 = vld [vmem:[%s216 + $0x1bf0] sm:$0xff]
        %v1204 = vld [vmem:[%s216 + $0x1bf8] sm:$0xff]
        %v1219 = vunpack.c.l.b16 %v295
        %v1220 = vunpack.c.h.b16 %v295
        %v1221 = vunpack.c.l.b16 %v296
        %v1222 = vunpack.c.h.b16 %v296
        %v1223 = vunpack.c.l.b16 %v297
        %v1224 = vunpack.c.h.b16 %v297
        %v1225 = vunpack.c.l.b16 %v298
        %v1226 = vunpack.c.h.b16 %v298
        %v1227 = vunpack.c.l.b16 %v299
        %v1228 = vunpack.c.h.b16 %v299
        %v1229 = vunpack.c.l.b16 %v300
        %v1230 = vunpack.c.h.b16 %v300
        %v1231 = vunpack.c.l.b16 %v301
        %v1232 = vunpack.c.h.b16 %v301
        %v1233 = vunpack.c.l.b16 %v302
        %v1234 = vunpack.c.h.b16 %v302
        %v1235 = vunpack.c.l.b16 %v303
        %v1236 = vunpack.c.h.b16 %v303
        %v1237 = vunpack.c.l.b16 %v304
        %v1238 = vunpack.c.h.b16 %v304
        %v1239 = vunpack.c.l.b16 %v305
        %v1240 = vunpack.c.h.b16 %v305
        %v1241 = vunpack.c.l.b16 %v306
        %v1242 = vunpack.c.h.b16 %v306
        %v1243 = vunpack.c.l.b16 %v307
        %v1244 = vunpack.c.h.b16 %v307
        %v1245 = vunpack.c.l.b16 %v308
        %v1246 = vunpack.c.h.b16 %v308
        %v1247 = vpack.c.b16 %v1219, %v1219
        %v1248 = vpack.c.b16 %v1220, %v1220
        %v1249 = vpack.c.b16 %v1221, %v1221
        %v1250 = vpack.c.b16 %v1222, %v1222
        %v1251 = vpack.c.b16 %v1223, %v1223
        %v1252 = vpack.c.b16 %v1224, %v1224
        %v1253 = vpack.c.b16 %v1225, %v1225
        %v1254 = vpack.c.b16 %v1226, %v1226
        %v1255 = vpack.c.b16 %v1227, %v1227
        %v1256 = vpack.c.b16 %v1228, %v1228
        %v1257 = vpack.c.b16 %v1229, %v1229
        %v1258 = vpack.c.b16 %v1230, %v1230
        %v1259 = vpack.c.b16 %v1231, %v1231
        %v1260 = vpack.c.b16 %v1232, %v1232
        %v1261 = vpack.c.b16 %v1233, %v1233
        %v1262 = vpack.c.b16 %v1234, %v1234
        %v1263 = vpack.c.b16 %v1235, %v1235
        %v1264 = vpack.c.b16 %v1236, %v1236
        %v1265 = vpack.c.b16 %v1237, %v1237
        %v1266 = vpack.c.b16 %v1238, %v1238
        %v1267 = vpack.c.b16 %v1239, %v1239
        %v1268 = vpack.c.b16 %v1240, %v1240
        %v1269 = vpack.c.b16 %v1241, %v1241
        %v1270 = vpack.c.b16 %v1242, %v1242
        %v1271 = vpack.c.b16 %v1243, %v1243
        %v1272 = vpack.c.b16 %v1244, %v1244
        %v1273 = vpack.c.b16 %v1245, %v1245
        %v1274 = vpack.c.b16 %v1246, %v1246
        %v2199 = vunpack.c.l.b16 %v309
        %v2200 = vunpack.c.h.b16 %v309
        %v2201 = vunpack.c.l.b16 %v310
        %v2202 = vunpack.c.h.b16 %v310
        %v2203 = vunpack.c.l.b16 %v311
        %v2204 = vunpack.c.h.b16 %v311
        %v2205 = vunpack.c.l.b16 %v312
        %v2206 = vunpack.c.h.b16 %v312
        %v2207 = vunpack.c.l.b16 %v313
        %v2208 = vunpack.c.h.b16 %v313
        %v2209 = vunpack.c.l.b16 %v314
        %v2210 = vunpack.c.h.b16 %v314
        %v2211 = vunpack.c.l.b16 %v315
        %v2212 = vunpack.c.h.b16 %v315
        %v2213 = vunpack.c.l.b16 %v316
        %v2214 = vunpack.c.h.b16 %v316
        %v2215 = vunpack.c.l.b16 %v317
        %v2216 = vunpack.c.h.b16 %v317
        %v2217 = vunpack.c.l.b16 %v318
        %v2218 = vunpack.c.h.b16 %v318
        %v2219 = vunpack.c.l.b16 %v319
        %v2220 = vunpack.c.h.b16 %v319
        %v2221 = vunpack.c.l.b16 %v320
        %v2222 = vunpack.c.h.b16 %v320
        %v2223 = vunpack.c.l.b16 %v321
        %v2224 = vunpack.c.h.b16 %v321
        %v2225 = vunpack.c.l.b16 %v322
        %v2226 = vunpack.c.h.b16 %v322
        %v2227 = vunpack.c.l.b16 %v323
        %v2228 = vunpack.c.h.b16 %v323
        %v2229 = vunpack.c.l.b16 %v324
        %v2230 = vunpack.c.h.b16 %v324
        %v2231 = vunpack.c.l.b16 %v325
        %v2232 = vunpack.c.h.b16 %v325
        %v2233 = vunpack.c.l.b16 %v326
        %v2234 = vunpack.c.h.b16 %v326
        %v2235 = vunpack.c.l.b16 %v327
        %v2236 = vunpack.c.h.b16 %v327
        %v2237 = vunpack.c.l.b16 %v328
        %v2238 = vunpack.c.h.b16 %v328
        %v2239 = vunpack.c.l.b16 %v329
        %v2240 = vunpack.c.h.b16 %v329
        %v2241 = vunpack.c.l.b16 %v330
        %v2242 = vunpack.c.h.b16 %v330
        %v2243 = vunpack.c.l.b16 %v331
        %v2244 = vunpack.c.h.b16 %v331
        %v2245 = vunpack.c.l.b16 %v332
        %v2246 = vunpack.c.h.b16 %v332
        %v2247 = vunpack.c.l.b16 %v333
        %v2248 = vunpack.c.h.b16 %v333
        %v2249 = vunpack.c.l.b16 %v334
        %v2250 = vunpack.c.h.b16 %v334
        %v2251 = vunpack.c.l.b16 %v335
        %v2252 = vunpack.c.h.b16 %v335
        %v2253 = vunpack.c.l.b16 %v336
        %v2254 = vunpack.c.h.b16 %v336
        %v2255 = vunpack.c.l.b16 %v337
        %v2256 = vunpack.c.h.b16 %v337
        %v2257 = vunpack.c.l.b16 %v338
        %v2258 = vunpack.c.h.b16 %v338
        %v2259 = vunpack.c.l.b16 %v339
        %v2260 = vunpack.c.h.b16 %v339
        %v2261 = vunpack.c.l.b16 %v340
        %v2262 = vunpack.c.h.b16 %v340
        %v2263 = vunpack.c.l.b16 %v341
        %v2264 = vunpack.c.h.b16 %v341
        %v2265 = vunpack.c.l.b16 %v342
        %v2266 = vunpack.c.h.b16 %v342
        %v2267 = vunpack.c.l.b16 %v343
        %v2268 = vunpack.c.h.b16 %v343
        %v2269 = vunpack.c.l.b16 %v344
        %v2270 = vunpack.c.h.b16 %v344
        %v2271 = vunpack.c.l.b16 %v345
        %v2272 = vunpack.c.h.b16 %v345
        %v2273 = vunpack.c.l.b16 %v346
        %v2274 = vunpack.c.h.b16 %v346
        %v2275 = vunpack.c.l.b16 %v347
        %v2276 = vunpack.c.h.b16 %v347
        %v2277 = vunpack.c.l.b16 %v348
        %v2278 = vunpack.c.h.b16 %v348
        %v2279 = vunpack.c.l.b16 %v349
        %v2280 = vunpack.c.h.b16 %v349
        %v2281 = vunpack.c.l.b16 %v350
        %v2282 = vunpack.c.h.b16 %v350
        %v2283 = vunpack.c.l.b16 %v351
        %v2284 = vunpack.c.h.b16 %v351
        %v2285 = vunpack.c.l.b16 %v352
        %v2286 = vunpack.c.h.b16 %v352
        %v2287 = vunpack.c.l.b16 %v353
        %v2288 = vunpack.c.h.b16 %v353
        %v2289 = vunpack.c.l.b16 %v354
        %v2290 = vunpack.c.h.b16 %v354
        %v2291 = vunpack.c.l.b16 %v355
        %v2292 = vunpack.c.h.b16 %v355
        %v2293 = vunpack.c.l.b16 %v356
        %v2294 = vunpack.c.h.b16 %v356
        %v2295 = vunpack.c.l.b16 %v357
        %v2296 = vunpack.c.h.b16 %v357
        %v2297 = vunpack.c.l.b16 %v358
        %v2298 = vunpack.c.h.b16 %v358
        %v2299 = vunpack.c.l.b16 %v359
        %v2300 = vunpack.c.h.b16 %v359
        %v2301 = vunpack.c.l.b16 %v360
        %v2302 = vunpack.c.h.b16 %v360
        %v2303 = vunpack.c.l.b16 %v361
        %v2304 = vunpack.c.h.b16 %v361
        %v2305 = vunpack.c.l.b16 %v362
        %v2306 = vunpack.c.h.b16 %v362
        %v2307 = vunpack.c.l.b16 %v363
        %v2308 = vunpack.c.h.b16 %v363
        %v2309 = vunpack.c.l.b16 %v364
        %v2310 = vunpack.c.h.b16 %v364
        %v2311 = vunpack.c.l.b16 %v365
        %v2312 = vunpack.c.h.b16 %v365
        %v2313 = vunpack.c.l.b16 %v366
        %v2314 = vunpack.c.h.b16 %v366
        %v2315 = vunpack.c.l.b16 %v367
        %v2316 = vunpack.c.h.b16 %v367
        %v2317 = vunpack.c.l.b16 %v368
        %v2318 = vunpack.c.h.b16 %v368
        %v2319 = vunpack.c.l.b16 %v369
        %v2320 = vunpack.c.h.b16 %v369
        %v2321 = vunpack.c.l.b16 %v370
        %v2322 = vunpack.c.h.b16 %v370
        %v2323 = vunpack.c.l.b16 %v371
        %v2324 = vunpack.c.h.b16 %v371
        %v2325 = vunpack.c.l.b16 %v372
        %v2326 = vunpack.c.h.b16 %v372
        %v2327 = vunpack.c.l.b16 %v373
        %v2328 = vunpack.c.h.b16 %v373
        %v2329 = vunpack.c.l.b16 %v374
        %v2330 = vunpack.c.h.b16 %v374
        %v2331 = vunpack.c.l.b16 %v375
        %v2332 = vunpack.c.h.b16 %v375
        %v2333 = vunpack.c.l.b16 %v376
        %v2334 = vunpack.c.h.b16 %v376
        %v2335 = vunpack.c.l.b16 %v377
        %v2336 = vunpack.c.h.b16 %v377
        %v2337 = vunpack.c.l.b16 %v378
        %v2338 = vunpack.c.h.b16 %v378
        %v2339 = vunpack.c.l.b16 %v379
        %v2340 = vunpack.c.h.b16 %v379
        %v2341 = vunpack.c.l.b16 %v380
        %v2342 = vunpack.c.h.b16 %v380
        %v2343 = vunpack.c.l.b16 %v381
        %v2344 = vunpack.c.h.b16 %v381
        %v2345 = vunpack.c.l.b16 %v382
        %v2346 = vunpack.c.h.b16 %v382
        %v2347 = vunpack.c.l.b16 %v383
        %v2348 = vunpack.c.h.b16 %v383
        %v2349 = vunpack.c.l.b16 %v384
        %v2350 = vunpack.c.h.b16 %v384
        %v2351 = vunpack.c.l.b16 %v385
        %v2352 = vunpack.c.h.b16 %v385
        %v2353 = vunpack.c.l.b16 %v386
        %v2354 = vunpack.c.h.b16 %v386
        %v2355 = vunpack.c.l.b16 %v387
        %v2356 = vunpack.c.h.b16 %v387
        %v2357 = vunpack.c.l.b16 %v388
        %v2358 = vunpack.c.h.b16 %v388
        %v2359 = vunpack.c.l.b16 %v389
        %v2360 = vunpack.c.h.b16 %v389
        %v2361 = vunpack.c.l.b16 %v390
        %v2362 = vunpack.c.h.b16 %v390
        %v2363 = vunpack.c.l.b16 %v391
        %v2364 = vunpack.c.h.b16 %v391
        %v2365 = vunpack.c.l.b16 %v392
        %v2366 = vunpack.c.h.b16 %v392
        %v2367 = vunpack.c.l.b16 %v393
        %v2368 = vunpack.c.h.b16 %v393
        %v2369 = vunpack.c.l.b16 %v394
        %v2370 = vunpack.c.h.b16 %v394
        %v2371 = vunpack.c.l.b16 %v395
        %v2372 = vunpack.c.h.b16 %v395
        %v2373 = vunpack.c.l.b16 %v396
        %v2374 = vunpack.c.h.b16 %v396
        %v2375 = vunpack.c.l.b16 %v397
        %v2376 = vunpack.c.h.b16 %v397
        %v2377 = vunpack.c.l.b16 %v398
        %v2378 = vunpack.c.h.b16 %v398
        %v2379 = vunpack.c.l.b16 %v399
        %v2380 = vunpack.c.h.b16 %v399
        %v2381 = vunpack.c.l.b16 %v400
        %v2382 = vunpack.c.h.b16 %v400
        %v2383 = vunpack.c.l.b16 %v401
        %v2384 = vunpack.c.h.b16 %v401
        %v2385 = vunpack.c.l.b16 %v402
        %v2386 = vunpack.c.h.b16 %v402
        %v2387 = vunpack.c.l.b16 %v403
        %v2388 = vunpack.c.h.b16 %v403
        %v2389 = vunpack.c.l.b16 %v404
        %v2390 = vunpack.c.h.b16 %v404
        %v2391 = vunpack.c.l.b16 %v405
        %v2392 = vunpack.c.h.b16 %v405
        %v2393 = vunpack.c.l.b16 %v406
        %v2394 = vunpack.c.h.b16 %v406
        %v2395 = vunpack.c.l.b16 %v407
        %v2396 = vunpack.c.h.b16 %v407
        %v2397 = vunpack.c.l.b16 %v408
        %v2398 = vunpack.c.h.b16 %v408
        %v2399 = vunpack.c.l.b16 %v409
        %v2400 = vunpack.c.h.b16 %v409
        %v2401 = vunpack.c.l.b16 %v410
        %v2402 = vunpack.c.h.b16 %v410
        %v2403 = vunpack.c.l.b16 %v411
        %v2404 = vunpack.c.h.b16 %v411
        %v2405 = vunpack.c.l.b16 %v412
        %v2406 = vunpack.c.h.b16 %v412
        %v2407 = vunpack.c.l.b16 %v413
        %v2408 = vunpack.c.h.b16 %v413
        %v2409 = vunpack.c.l.b16 %v414
        %v2410 = vunpack.c.h.b16 %v414
        %v2411 = vunpack.c.l.b16 %v415
        %v2412 = vunpack.c.h.b16 %v415
        %v2413 = vunpack.c.l.b16 %v416
        %v2414 = vunpack.c.h.b16 %v416
        %v2415 = vunpack.c.l.b16 %v417
        %v2416 = vunpack.c.h.b16 %v417
        %v2417 = vunpack.c.l.b16 %v418
        %v2418 = vunpack.c.h.b16 %v418
        %v2419 = vunpack.c.l.b16 %v419
        %v2420 = vunpack.c.h.b16 %v419
        %v2421 = vunpack.c.l.b16 %v420
        %v2422 = vunpack.c.h.b16 %v420
        %v2423 = vunpack.c.l.b16 %v421
        %v2424 = vunpack.c.h.b16 %v421
        %v2425 = vunpack.c.l.b16 %v422
        %v2426 = vunpack.c.h.b16 %v422
        %v2427 = vunpack.c.l.b16 %v423
        %v2428 = vunpack.c.h.b16 %v423
        %v2429 = vunpack.c.l.b16 %v424
        %v2430 = vunpack.c.h.b16 %v424
        %v2431 = vunpack.c.l.b16 %v425
        %v2432 = vunpack.c.h.b16 %v425
        %v2433 = vunpack.c.l.b16 %v426
        %v2434 = vunpack.c.h.b16 %v426
        %v2435 = vunpack.c.l.b16 %v427
        %v2436 = vunpack.c.h.b16 %v427
        %v2437 = vunpack.c.l.b16 %v428
        %v2438 = vunpack.c.h.b16 %v428
        %v2439 = vunpack.c.l.b16 %v429
        %v2440 = vunpack.c.h.b16 %v429
        %v2441 = vunpack.c.l.b16 %v430
        %v2442 = vunpack.c.h.b16 %v430
        %v2443 = vunpack.c.l.b16 %v431
        %v2444 = vunpack.c.h.b16 %v431
        %v2445 = vunpack.c.l.b16 %v432
        %v2446 = vunpack.c.h.b16 %v432
        %v2447 = vunpack.c.l.b16 %v433
        %v2448 = vunpack.c.h.b16 %v433
        %v2449 = vunpack.c.l.b16 %v434
        %v2450 = vunpack.c.h.b16 %v434
        %v2451 = vunpack.c.l.b16 %v435
        %v2452 = vunpack.c.h.b16 %v435
        %v2453 = vunpack.c.l.b16 %v436
        %v2454 = vunpack.c.h.b16 %v436
        %v2455 = vunpack.c.l.b16 %v437
        %v2456 = vunpack.c.h.b16 %v437
        %v2457 = vunpack.c.l.b16 %v438
        %v2458 = vunpack.c.h.b16 %v438
        %v2459 = vunpack.c.l.b16 %v439
        %v2460 = vunpack.c.h.b16 %v439
        %v2461 = vunpack.c.l.b16 %v440
        %v2462 = vunpack.c.h.b16 %v440
        %v2463 = vunpack.c.l.b16 %v441
        %v2464 = vunpack.c.h.b16 %v441
        %v2465 = vunpack.c.l.b16 %v442
        %v2466 = vunpack.c.h.b16 %v442
        %v2467 = vunpack.c.l.b16 %v443
        %v2468 = vunpack.c.h.b16 %v443
        %v2469 = vunpack.c.l.b16 %v444
        %v2470 = vunpack.c.h.b16 %v444
        %v2471 = vunpack.c.l.b16 %v445
        %v2472 = vunpack.c.h.b16 %v445
        %v2473 = vunpack.c.l.b16 %v446
        %v2474 = vunpack.c.h.b16 %v446
        %v2475 = vunpack.c.l.b16 %v447
        %v2476 = vunpack.c.h.b16 %v447
        %v2477 = vunpack.c.l.b16 %v448
        %v2478 = vunpack.c.h.b16 %v448
        %v2479 = vunpack.c.l.b16 %v449
        %v2480 = vunpack.c.h.b16 %v449
        %v2481 = vunpack.c.l.b16 %v450
        %v2482 = vunpack.c.h.b16 %v450
        %v2483 = vunpack.c.l.b16 %v451
        %v2484 = vunpack.c.h.b16 %v451
        %v2485 = vunpack.c.l.b16 %v452
        %v2486 = vunpack.c.h.b16 %v452
        %v2487 = vunpack.c.l.b16 %v453
        %v2488 = vunpack.c.h.b16 %v453
        %v2489 = vunpack.c.l.b16 %v454
        %v2490 = vunpack.c.h.b16 %v454
        %v2491 = vunpack.c.l.b16 %v455
        %v2492 = vunpack.c.h.b16 %v455
        %v2493 = vunpack.c.l.b16 %v456
        %v2494 = vunpack.c.h.b16 %v456
        %v2495 = vunpack.c.l.b16 %v457
        %v2496 = vunpack.c.h.b16 %v457
        %v2497 = vunpack.c.l.b16 %v458
        %v2498 = vunpack.c.h.b16 %v458
        %v2499 = vunpack.c.l.b16 %v459
        %v2500 = vunpack.c.h.b16 %v459
        %v2501 = vunpack.c.l.b16 %v460
        %v2502 = vunpack.c.h.b16 %v460
        %v2503 = vunpack.c.l.b16 %v461
        %v2504 = vunpack.c.h.b16 %v461
        %v2505 = vunpack.c.l.b16 %v462
        %v2506 = vunpack.c.h.b16 %v462
        %v2507 = vunpack.c.l.b16 %v463
        %v2508 = vunpack.c.h.b16 %v463
        %v2509 = vunpack.c.l.b16 %v464
        %v2510 = vunpack.c.h.b16 %v464
        %v2511 = vunpack.c.l.b16 %v465
        %v2512 = vunpack.c.h.b16 %v465
        %v2513 = vunpack.c.l.b16 %v466
        %v2514 = vunpack.c.h.b16 %v466
        %v2515 = vunpack.c.l.b16 %v467
        %v2516 = vunpack.c.h.b16 %v467
        %v2517 = vunpack.c.l.b16 %v468
        %v2518 = vunpack.c.h.b16 %v468
        %v2519 = vunpack.c.l.b16 %v469
        %v2520 = vunpack.c.h.b16 %v469
        %v2521 = vunpack.c.l.b16 %v470
        %v2522 = vunpack.c.h.b16 %v470
        %v2523 = vunpack.c.l.b16 %v471
        %v2524 = vunpack.c.h.b16 %v471
        %v2525 = vunpack.c.l.b16 %v472
        %v2526 = vunpack.c.h.b16 %v472
        %v2527 = vunpack.c.l.b16 %v473
        %v2528 = vunpack.c.h.b16 %v473
        %v2529 = vunpack.c.l.b16 %v474
        %v2530 = vunpack.c.h.b16 %v474
        %v2531 = vunpack.c.l.b16 %v475
        %v2532 = vunpack.c.h.b16 %v475
        %v2533 = vunpack.c.l.b16 %v476
        %v2534 = vunpack.c.h.b16 %v476
        %v2535 = vunpack.c.l.b16 %v477
        %v2536 = vunpack.c.h.b16 %v477
        %v2537 = vunpack.c.l.b16 %v478
        %v2538 = vunpack.c.h.b16 %v478
        %v2539 = vunpack.c.l.b16 %v479
        %v2540 = vunpack.c.h.b16 %v479
        %v2541 = vunpack.c.l.b16 %v480
        %v2542 = vunpack.c.h.b16 %v480
        %v2543 = vunpack.c.l.b16 %v481
        %v2544 = vunpack.c.h.b16 %v481
        %v2545 = vunpack.c.l.b16 %v482
        %v2546 = vunpack.c.h.b16 %v482
        %v2547 = vunpack.c.l.b16 %v483
        %v2548 = vunpack.c.h.b16 %v483
        %v2549 = vunpack.c.l.b16 %v484
        %v2550 = vunpack.c.h.b16 %v484
        %v2551 = vunpack.c.l.b16 %v485
        %v2552 = vunpack.c.h.b16 %v485
        %v2553 = vunpack.c.l.b16 %v486
        %v2554 = vunpack.c.h.b16 %v486
        %v2555 = vunpack.c.l.b16 %v487
        %v2556 = vunpack.c.h.b16 %v487
        %v2557 = vunpack.c.l.b16 %v488
        %v2558 = vunpack.c.h.b16 %v488
        %v2559 = vunpack.c.l.b16 %v489
        %v2560 = vunpack.c.h.b16 %v489
        %v2561 = vunpack.c.l.b16 %v490
        %v2562 = vunpack.c.h.b16 %v490
        %v2563 = vunpack.c.l.b16 %v491
        %v2564 = vunpack.c.h.b16 %v491
        %v2565 = vunpack.c.l.b16 %v492
        %v2566 = vunpack.c.h.b16 %v492
        %v2567 = vunpack.c.l.b16 %v493
        %v2568 = vunpack.c.h.b16 %v493
        %v2569 = vunpack.c.l.b16 %v494
        %v2570 = vunpack.c.h.b16 %v494
        %v2571 = vunpack.c.l.b16 %v495
        %v2572 = vunpack.c.h.b16 %v495
        %v2573 = vunpack.c.l.b16 %v496
        %v2574 = vunpack.c.h.b16 %v496
        %v2575 = vunpack.c.l.b16 %v497
        %v2576 = vunpack.c.h.b16 %v497
        %v2577 = vunpack.c.l.b16 %v498
        %v2578 = vunpack.c.h.b16 %v498
        %v2579 = vunpack.c.l.b16 %v499
        %v2580 = vunpack.c.h.b16 %v499
        %v2581 = vunpack.c.l.b16 %v500
        %v2582 = vunpack.c.h.b16 %v500
        %v2583 = vunpack.c.l.b16 %v501
        %v2584 = vunpack.c.h.b16 %v501
        %v2585 = vunpack.c.l.b16 %v502
        %v2586 = vunpack.c.h.b16 %v502
        %v2587 = vunpack.c.l.b16 %v503
        %v2588 = vunpack.c.h.b16 %v503
        %v2589 = vunpack.c.l.b16 %v504
        %v2590 = vunpack.c.h.b16 %v504
        %v2591 = vunpack.c.l.b16 %v505
        %v2592 = vunpack.c.h.b16 %v505
        %v2593 = vunpack.c.l.b16 %v506
        %v2594 = vunpack.c.h.b16 %v506
        %v2595 = vunpack.c.l.b16 %v507
        %v2596 = vunpack.c.h.b16 %v507
        %v2597 = vunpack.c.l.b16 %v508
        %v2598 = vunpack.c.h.b16 %v508
        %v2599 = vunpack.c.l.b16 %v509
        %v2600 = vunpack.c.h.b16 %v509
        %v2601 = vunpack.c.l.b16 %v510
        %v2602 = vunpack.c.h.b16 %v510
        %v2603 = vunpack.c.l.b16 %v511
        %v2604 = vunpack.c.h.b16 %v511
        %v2605 = vunpack.c.l.b16 %v512
        %v2606 = vunpack.c.h.b16 %v512
        %v2607 = vunpack.c.l.b16 %v513
        %v2608 = vunpack.c.h.b16 %v513
        %v2609 = vunpack.c.l.b16 %v514
        %v2610 = vunpack.c.h.b16 %v514
        %v2611 = vunpack.c.l.b16 %v515
        %v2612 = vunpack.c.h.b16 %v515
        %v2613 = vunpack.c.l.b16 %v516
        %v2614 = vunpack.c.h.b16 %v516
        %v2615 = vunpack.c.l.b16 %v517
        %v2616 = vunpack.c.h.b16 %v517
        %v2617 = vunpack.c.l.b16 %v518
        %v2618 = vunpack.c.h.b16 %v518
        %v2619 = vunpack.c.l.b16 %v519
        %v2620 = vunpack.c.h.b16 %v519
        %v2621 = vunpack.c.l.b16 %v520
        %v2622 = vunpack.c.h.b16 %v520
        %v2623 = vunpack.c.l.b16 %v521
        %v2624 = vunpack.c.h.b16 %v521
        %v2625 = vunpack.c.l.b16 %v522
        %v2626 = vunpack.c.h.b16 %v522
        %v2627 = vunpack.c.l.b16 %v523
        %v2628 = vunpack.c.h.b16 %v523
        %v2629 = vunpack.c.l.b16 %v524
        %v2630 = vunpack.c.h.b16 %v524
        %v2631 = vunpack.c.l.b16 %v525
        %v2632 = vunpack.c.h.b16 %v525
        %v2633 = vunpack.c.l.b16 %v526
        %v2634 = vunpack.c.h.b16 %v526
        %v2635 = vunpack.c.l.b16 %v527
        %v2636 = vunpack.c.h.b16 %v527
        %v2637 = vunpack.c.l.b16 %v528
        %v2638 = vunpack.c.h.b16 %v528
        %v2639 = vunpack.c.l.b16 %v529
        %v2640 = vunpack.c.h.b16 %v529
        %v2641 = vunpack.c.l.b16 %v530
        %v2642 = vunpack.c.h.b16 %v530
        %v2643 = vunpack.c.l.b16 %v531
        %v2644 = vunpack.c.h.b16 %v531
        %v2645 = vunpack.c.l.b16 %v532
        %v2646 = vunpack.c.h.b16 %v532
        %v2647 = vunpack.c.l.b16 %v533
        %v2648 = vunpack.c.h.b16 %v533
        %v2649 = vunpack.c.l.b16 %v534
        %v2650 = vunpack.c.h.b16 %v534
        %v2651 = vunpack.c.l.b16 %v535
        %v2652 = vunpack.c.h.b16 %v535
        %v2653 = vunpack.c.l.b16 %v536
        %v2654 = vunpack.c.h.b16 %v536
        %v2655 = vunpack.c.l.b16 %v537
        %v2656 = vunpack.c.h.b16 %v537
        %v2657 = vunpack.c.l.b16 %v538
        %v2658 = vunpack.c.h.b16 %v538
        %v2659 = vunpack.c.l.b16 %v539
        %v2660 = vunpack.c.h.b16 %v539
        %v2661 = vunpack.c.l.b16 %v540
        %v2662 = vunpack.c.h.b16 %v540
        %v2663 = vunpack.c.l.b16 %v541
        %v2664 = vunpack.c.h.b16 %v541
        %v2665 = vunpack.c.l.b16 %v542
        %v2666 = vunpack.c.h.b16 %v542
        %v2667 = vunpack.c.l.b16 %v543
        %v2668 = vunpack.c.h.b16 %v543
        %v2669 = vunpack.c.l.b16 %v544
        %v2670 = vunpack.c.h.b16 %v544
        %v2671 = vunpack.c.l.b16 %v545
        %v2672 = vunpack.c.h.b16 %v545
        %v2673 = vunpack.c.l.b16 %v546
        %v2674 = vunpack.c.h.b16 %v546
        %v2675 = vunpack.c.l.b16 %v547
        %v2676 = vunpack.c.h.b16 %v547
        %v2677 = vunpack.c.l.b16 %v548
        %v2678 = vunpack.c.h.b16 %v548
        %v2679 = vunpack.c.l.b16 %v549
        %v2680 = vunpack.c.h.b16 %v549
        %v2681 = vunpack.c.l.b16 %v550
        %v2682 = vunpack.c.h.b16 %v550
        %v2683 = vunpack.c.l.b16 %v551
        %v2684 = vunpack.c.h.b16 %v551
        %v2685 = vunpack.c.l.b16 %v552
        %v2686 = vunpack.c.h.b16 %v552
        %v2687 = vunpack.c.l.b16 %v553
        %v2688 = vunpack.c.h.b16 %v553
        %v2689 = vunpack.c.l.b16 %v554
        %v2690 = vunpack.c.h.b16 %v554
        %v2691 = vunpack.c.l.b16 %v555
        %v2692 = vunpack.c.h.b16 %v555
        %v2693 = vunpack.c.l.b16 %v556
        %v2694 = vunpack.c.h.b16 %v556
        %v2695 = vunpack.c.l.b16 %v557
        %v2696 = vunpack.c.h.b16 %v557
        %v2697 = vunpack.c.l.b16 %v558
        %v2698 = vunpack.c.h.b16 %v558
        %v2699 = vunpack.c.l.b16 %v559
        %v2700 = vunpack.c.h.b16 %v559
        %v2701 = vunpack.c.l.b16 %v560
        %v2702 = vunpack.c.h.b16 %v560
        %v2703 = vunpack.c.l.b16 %v561
        %v2704 = vunpack.c.h.b16 %v561
        %v2705 = vunpack.c.l.b16 %v562
        %v2706 = vunpack.c.h.b16 %v562
        %v2707 = vunpack.c.l.b16 %v563
        %v2708 = vunpack.c.h.b16 %v563
        %v2709 = vunpack.c.l.b16 %v564
        %v2710 = vunpack.c.h.b16 %v564
        %v2711 = vunpack.c.l.b16 %v565
        %v2712 = vunpack.c.h.b16 %v565
        %v2713 = vunpack.c.l.b16 %v566
        %v2714 = vunpack.c.h.b16 %v566
        %v2715 = vunpack.c.l.b16 %v567
        %v2716 = vunpack.c.h.b16 %v567
        %v2717 = vunpack.c.l.b16 %v568
        %v2718 = vunpack.c.h.b16 %v568
        %v2719 = vunpack.c.l.b16 %v569
        %v2720 = vunpack.c.h.b16 %v569
        %v2721 = vunpack.c.l.b16 %v570
        %v2722 = vunpack.c.h.b16 %v570
        %v2723 = vunpack.c.l.b16 %v571
        %v2724 = vunpack.c.h.b16 %v571
        %v2725 = vunpack.c.l.b16 %v572
        %v2726 = vunpack.c.h.b16 %v572
        %v2727 = vunpack.c.l.b16 %v573
        %v2728 = vunpack.c.h.b16 %v573
        %v2729 = vunpack.c.l.b16 %v574
        %v2730 = vunpack.c.h.b16 %v574
        %v2731 = vunpack.c.l.b16 %v575
        %v2732 = vunpack.c.h.b16 %v575
        %v2733 = vunpack.c.l.b16 %v576
        %v2734 = vunpack.c.h.b16 %v576
        %v2735 = vunpack.c.l.b16 %v577
        %v2736 = vunpack.c.h.b16 %v577
        %v2737 = vunpack.c.l.b16 %v578
        %v2738 = vunpack.c.h.b16 %v578
        %v2739 = vunpack.c.l.b16 %v579
        %v2740 = vunpack.c.h.b16 %v579
        %v2741 = vunpack.c.l.b16 %v580
        %v2742 = vunpack.c.h.b16 %v580
        %v2743 = vunpack.c.l.b16 %v581
        %v2744 = vunpack.c.h.b16 %v581
        %v2745 = vunpack.c.l.b16 %v582
        %v2746 = vunpack.c.h.b16 %v582
        %v2747 = vunpack.c.l.b16 %v583
        %v2748 = vunpack.c.h.b16 %v583
        %v2749 = vunpack.c.l.b16 %v584
        %v2750 = vunpack.c.h.b16 %v584
        %v2751 = vunpack.c.l.b16 %v585
        %v2752 = vunpack.c.h.b16 %v585
        %v2753 = vunpack.c.l.b16 %v586
        %v2754 = vunpack.c.h.b16 %v586
        %v2755 = vunpack.c.l.b16 %v587
        %v2756 = vunpack.c.h.b16 %v587
        %v2757 = vunpack.c.l.b16 %v588
        %v2758 = vunpack.c.h.b16 %v588
        %v2759 = vunpack.c.l.b16 %v589
        %v2760 = vunpack.c.h.b16 %v589
        %v2761 = vunpack.c.l.b16 %v590
        %v2762 = vunpack.c.h.b16 %v590
        %v2763 = vunpack.c.l.b16 %v591
        %v2764 = vunpack.c.h.b16 %v591
        %v2765 = vunpack.c.l.b16 %v592
        %v2766 = vunpack.c.h.b16 %v592
        %v2767 = vunpack.c.l.b16 %v593
        %v2768 = vunpack.c.h.b16 %v593
        %v2769 = vunpack.c.l.b16 %v594
        %v2770 = vunpack.c.h.b16 %v594
        %v2771 = vunpack.c.l.b16 %v595
        %v2772 = vunpack.c.h.b16 %v595
        %v2773 = vunpack.c.l.b16 %v596
        %v2774 = vunpack.c.h.b16 %v596
        %v2775 = vunpack.c.l.b16 %v597
        %v2776 = vunpack.c.h.b16 %v597
        %v2777 = vunpack.c.l.b16 %v598
        %v2778 = vunpack.c.h.b16 %v598
        %v2779 = vunpack.c.l.b16 %v599
        %v2780 = vunpack.c.h.b16 %v599
        %v2781 = vunpack.c.l.b16 %v600
        %v2782 = vunpack.c.h.b16 %v600
        %v2783 = vunpack.c.l.b16 %v601
        %v2784 = vunpack.c.h.b16 %v601
        %v2785 = vunpack.c.l.b16 %v602
        %v2786 = vunpack.c.h.b16 %v602
        %v2787 = vunpack.c.l.b16 %v603
        %v2788 = vunpack.c.h.b16 %v603
        %v2789 = vunpack.c.l.b16 %v604
        %v2790 = vunpack.c.h.b16 %v604
        %v2791 = vunpack.c.l.b16 %v605
        %v2792 = vunpack.c.h.b16 %v605
        %v2793 = vunpack.c.l.b16 %v606
        %v2794 = vunpack.c.h.b16 %v606
        %v2795 = vunpack.c.l.b16 %v607
        %v2796 = vunpack.c.h.b16 %v607
        %v2797 = vunpack.c.l.b16 %v608
        %v2798 = vunpack.c.h.b16 %v608
        %v2799 = vunpack.c.l.b16 %v609
        %v2800 = vunpack.c.h.b16 %v609
        %v2801 = vunpack.c.l.b16 %v610
        %v2802 = vunpack.c.h.b16 %v610
        %v2803 = vunpack.c.l.b16 %v611
        %v2804 = vunpack.c.h.b16 %v611
        %v2805 = vunpack.c.l.b16 %v612
        %v2806 = vunpack.c.h.b16 %v612
        %v2807 = vunpack.c.l.b16 %v613
        %v2808 = vunpack.c.h.b16 %v613
        %v2809 = vunpack.c.l.b16 %v614
        %v2810 = vunpack.c.h.b16 %v614
        %v2811 = vunpack.c.l.b16 %v615
        %v2812 = vunpack.c.h.b16 %v615
        %v2813 = vunpack.c.l.b16 %v616
        %v2814 = vunpack.c.h.b16 %v616
        %v2815 = vunpack.c.l.b16 %v617
        %v2816 = vunpack.c.h.b16 %v617
        %v2817 = vunpack.c.l.b16 %v618
        %v2818 = vunpack.c.h.b16 %v618
        %v2819 = vunpack.c.l.b16 %v619
        %v2820 = vunpack.c.h.b16 %v619
        %v2821 = vunpack.c.l.b16 %v620
        %v2822 = vunpack.c.h.b16 %v620
        %v2823 = vunpack.c.l.b16 %v621
        %v2824 = vunpack.c.h.b16 %v621
        %v2825 = vunpack.c.l.b16 %v622
        %v2826 = vunpack.c.h.b16 %v622
        %v2827 = vunpack.c.l.b16 %v623
        %v2828 = vunpack.c.h.b16 %v623
        %v2829 = vunpack.c.l.b16 %v624
        %v2830 = vunpack.c.h.b16 %v624
        %v2831 = vunpack.c.l.b16 %v625
        %v2832 = vunpack.c.h.b16 %v625
        %v2833 = vunpack.c.l.b16 %v626
        %v2834 = vunpack.c.h.b16 %v626
        %v2835 = vunpack.c.l.b16 %v627
        %v2836 = vunpack.c.h.b16 %v627
        %v2837 = vunpack.c.l.b16 %v628
        %v2838 = vunpack.c.h.b16 %v628
        %v2839 = vunpack.c.l.b16 %v629
        %v2840 = vunpack.c.h.b16 %v629
        %v2841 = vunpack.c.l.b16 %v630
        %v2842 = vunpack.c.h.b16 %v630
        %v2843 = vunpack.c.l.b16 %v631
        %v2844 = vunpack.c.h.b16 %v631
        %v2845 = vunpack.c.l.b16 %v632
        %v2846 = vunpack.c.h.b16 %v632
        %v2847 = vunpack.c.l.b16 %v633
        %v2848 = vunpack.c.h.b16 %v633
        %v2849 = vunpack.c.l.b16 %v634
        %v2850 = vunpack.c.h.b16 %v634
        %v2851 = vunpack.c.l.b16 %v635
        %v2852 = vunpack.c.h.b16 %v635
        %v2853 = vunpack.c.l.b16 %v636
        %v2854 = vunpack.c.h.b16 %v636
        %v2855 = vunpack.c.l.b16 %v637
        %v2856 = vunpack.c.h.b16 %v637
        %v2857 = vunpack.c.l.b16 %v638
        %v2858 = vunpack.c.h.b16 %v638
        %v2859 = vunpack.c.l.b16 %v639
        %v2860 = vunpack.c.h.b16 %v639
        %v2861 = vunpack.c.l.b16 %v640
        %v2862 = vunpack.c.h.b16 %v640
        %v2863 = vunpack.c.l.b16 %v641
        %v2864 = vunpack.c.h.b16 %v641
        %v2865 = vunpack.c.l.b16 %v642
        %v2866 = vunpack.c.h.b16 %v642
        %v2867 = vunpack.c.l.b16 %v643
        %v2868 = vunpack.c.h.b16 %v643
        %v2869 = vunpack.c.l.b16 %v644
        %v2870 = vunpack.c.h.b16 %v644
        %v2871 = vunpack.c.l.b16 %v645
        %v2872 = vunpack.c.h.b16 %v645
        %v2873 = vunpack.c.l.b16 %v646
        %v2874 = vunpack.c.h.b16 %v646
        %v2875 = vunpack.c.l.b16 %v647
        %v2876 = vunpack.c.h.b16 %v647
        %v2877 = vunpack.c.l.b16 %v648
        %v2878 = vunpack.c.h.b16 %v648
        %v2879 = vunpack.c.l.b16 %v649
        %v2880 = vunpack.c.h.b16 %v649
        %v2881 = vunpack.c.l.b16 %v650
        %v2882 = vunpack.c.h.b16 %v650
        %v2883 = vunpack.c.l.b16 %v651
        %v2884 = vunpack.c.h.b16 %v651
        %v2885 = vunpack.c.l.b16 %v652
        %v2886 = vunpack.c.h.b16 %v652
        %v2887 = vunpack.c.l.b16 %v653
        %v2888 = vunpack.c.h.b16 %v653
        %v2889 = vunpack.c.l.b16 %v654
        %v2890 = vunpack.c.h.b16 %v654
        %v2891 = vunpack.c.l.b16 %v655
        %v2892 = vunpack.c.h.b16 %v655
        %v2893 = vunpack.c.l.b16 %v656
        %v2894 = vunpack.c.h.b16 %v656
        %v2895 = vunpack.c.l.b16 %v657
        %v2896 = vunpack.c.h.b16 %v657
        %v2897 = vunpack.c.l.b16 %v658
        %v2898 = vunpack.c.h.b16 %v658
        %v2899 = vunpack.c.l.b16 %v659
        %v2900 = vunpack.c.h.b16 %v659
        %v2901 = vunpack.c.l.b16 %v660
        %v2902 = vunpack.c.h.b16 %v660
        %v2903 = vunpack.c.l.b16 %v661
        %v2904 = vunpack.c.h.b16 %v661
        %v2905 = vunpack.c.l.b16 %v662
        %v2906 = vunpack.c.h.b16 %v662
        %v2907 = vunpack.c.l.b16 %v663
        %v2908 = vunpack.c.h.b16 %v663
        %v2909 = vunpack.c.l.b16 %v664
        %v2910 = vunpack.c.h.b16 %v664
        %v2911 = vunpack.c.l.b16 %v665
        %v2912 = vunpack.c.h.b16 %v665
        %v2913 = vunpack.c.l.b16 %v666
        %v2914 = vunpack.c.h.b16 %v666
        %v2915 = vunpack.c.l.b16 %v667
        %v2916 = vunpack.c.h.b16 %v667
        %v2917 = vunpack.c.l.b16 %v668
        %v2918 = vunpack.c.h.b16 %v668
        %v2919 = vunpack.c.l.b16 %v669
        %v2920 = vunpack.c.h.b16 %v669
        %v2921 = vunpack.c.l.b16 %v670
        %v2922 = vunpack.c.h.b16 %v670
        %v2923 = vunpack.c.l.b16 %v671
        %v2924 = vunpack.c.h.b16 %v671
        %v2925 = vunpack.c.l.b16 %v672
        %v2926 = vunpack.c.h.b16 %v672
        %v2927 = vunpack.c.l.b16 %v673
        %v2928 = vunpack.c.h.b16 %v673
        %v2929 = vunpack.c.l.b16 %v674
        %v2930 = vunpack.c.h.b16 %v674
        %v2931 = vunpack.c.l.b16 %v675
        %v2932 = vunpack.c.h.b16 %v675
        %v2933 = vunpack.c.l.b16 %v676
        %v2934 = vunpack.c.h.b16 %v676
        %v2935 = vunpack.c.l.b16 %v677
        %v2936 = vunpack.c.h.b16 %v677
        %v2937 = vunpack.c.l.b16 %v678
        %v2938 = vunpack.c.h.b16 %v678
        %v2939 = vunpack.c.l.b16 %v679
        %v2940 = vunpack.c.h.b16 %v679
        %v2941 = vunpack.c.l.b16 %v680
        %v2942 = vunpack.c.h.b16 %v680
        %v2943 = vunpack.c.l.b16 %v681
        %v2944 = vunpack.c.h.b16 %v681
        %v2945 = vunpack.c.l.b16 %v682
        %v2946 = vunpack.c.h.b16 %v682
        %v2947 = vunpack.c.l.b16 %v683
        %v2948 = vunpack.c.h.b16 %v683
        %v2949 = vunpack.c.l.b16 %v684
        %v2950 = vunpack.c.h.b16 %v684
        %v2951 = vunpack.c.l.b16 %v685
        %v2952 = vunpack.c.h.b16 %v685
        %v2953 = vunpack.c.l.b16 %v686
        %v2954 = vunpack.c.h.b16 %v686
        %v2955 = vunpack.c.l.b16 %v687
        %v2956 = vunpack.c.h.b16 %v687
        %v2957 = vunpack.c.l.b16 %v688
        %v2958 = vunpack.c.h.b16 %v688
        %v2959 = vunpack.c.l.b16 %v689
        %v2960 = vunpack.c.h.b16 %v689
        %v2961 = vunpack.c.l.b16 %v690
        %v2962 = vunpack.c.h.b16 %v690
        %v2963 = vunpack.c.l.b16 %v691
        %v2964 = vunpack.c.h.b16 %v691
        %v2965 = vunpack.c.l.b16 %v692
        %v2966 = vunpack.c.h.b16 %v692
        %v2967 = vunpack.c.l.b16 %v693
        %v2968 = vunpack.c.h.b16 %v693
        %v2969 = vunpack.c.l.b16 %v694
        %v2970 = vunpack.c.h.b16 %v694
        %v2971 = vunpack.c.l.b16 %v695
        %v2972 = vunpack.c.h.b16 %v695
        %v2973 = vunpack.c.l.b16 %v696
        %v2974 = vunpack.c.h.b16 %v696
        %v2975 = vunpack.c.l.b16 %v697
        %v2976 = vunpack.c.h.b16 %v697
        %v2977 = vunpack.c.l.b16 %v698
        %v2978 = vunpack.c.h.b16 %v698
        %v2979 = vunpack.c.l.b16 %v699
        %v2980 = vunpack.c.h.b16 %v699
        %v2981 = vunpack.c.l.b16 %v700
        %v2982 = vunpack.c.h.b16 %v700
        %v2983 = vunpack.c.l.b16 %v701
        %v2984 = vunpack.c.h.b16 %v701
        %v2985 = vunpack.c.l.b16 %v702
        %v2986 = vunpack.c.h.b16 %v702
        %v2987 = vunpack.c.l.b16 %v703
        %v2988 = vunpack.c.h.b16 %v703
        %v2989 = vunpack.c.l.b16 %v704
        %v2990 = vunpack.c.h.b16 %v704
        %v2991 = vunpack.c.l.b16 %v705
        %v2992 = vunpack.c.h.b16 %v705
        %v2993 = vunpack.c.l.b16 %v706
        %v2994 = vunpack.c.h.b16 %v706
        %v2995 = vunpack.c.l.b16 %v707
        %v2996 = vunpack.c.h.b16 %v707
        %v2997 = vunpack.c.l.b16 %v708
        %v2998 = vunpack.c.h.b16 %v708
        %v2999 = vunpack.c.l.b16 %v709
        %v3000 = vunpack.c.h.b16 %v709
        %v3001 = vunpack.c.l.b16 %v710
        %v3002 = vunpack.c.h.b16 %v710
        %v3003 = vunpack.c.l.b16 %v711
        %v3004 = vunpack.c.h.b16 %v711
        %v3005 = vunpack.c.l.b16 %v712
        %v3006 = vunpack.c.h.b16 %v712
        %v3007 = vunpack.c.l.b16 %v713
        %v3008 = vunpack.c.h.b16 %v713
        %v3009 = vunpack.c.l.b16 %v714
        %v3010 = vunpack.c.h.b16 %v714
        %v3011 = vunpack.c.l.b16 %v715
        %v3012 = vunpack.c.h.b16 %v715
        %v3013 = vunpack.c.l.b16 %v716
        %v3014 = vunpack.c.h.b16 %v716
        %v3015 = vunpack.c.l.b16 %v717
        %v3016 = vunpack.c.h.b16 %v717
        %v3017 = vunpack.c.l.b16 %v718
        %v3018 = vunpack.c.h.b16 %v718
        %v3019 = vunpack.c.l.b16 %v719
        %v3020 = vunpack.c.h.b16 %v719
        %v3021 = vunpack.c.l.b16 %v720
        %v3022 = vunpack.c.h.b16 %v720
        %v3023 = vunpack.c.l.b16 %v721
        %v3024 = vunpack.c.h.b16 %v721
        %v3025 = vunpack.c.l.b16 %v722
        %v3026 = vunpack.c.h.b16 %v722
        %v3027 = vunpack.c.l.b16 %v723
        %v3028 = vunpack.c.h.b16 %v723
        %v3029 = vunpack.c.l.b16 %v724
        %v3030 = vunpack.c.h.b16 %v724
        %v3031 = vunpack.c.l.b16 %v725
        %v3032 = vunpack.c.h.b16 %v725
        %v3033 = vunpack.c.l.b16 %v726
        %v3034 = vunpack.c.h.b16 %v726
        %v3035 = vunpack.c.l.b16 %v727
        %v3036 = vunpack.c.h.b16 %v727
        %v3037 = vunpack.c.l.b16 %v728
        %v3038 = vunpack.c.h.b16 %v728
        %v3039 = vunpack.c.l.b16 %v729
        %v3040 = vunpack.c.h.b16 %v729
        %v3041 = vunpack.c.l.b16 %v730
        %v3042 = vunpack.c.h.b16 %v730
        %v3043 = vunpack.c.l.b16 %v731
        %v3044 = vunpack.c.h.b16 %v731
        %v3045 = vunpack.c.l.b16 %v732
        %v3046 = vunpack.c.h.b16 %v732
        %v3047 = vunpack.c.l.b16 %v733
        %v3048 = vunpack.c.h.b16 %v733
        %v3049 = vunpack.c.l.b16 %v734
        %v3050 = vunpack.c.h.b16 %v734
        %v3051 = vunpack.c.l.b16 %v735
        %v3052 = vunpack.c.h.b16 %v735
        %v3053 = vunpack.c.l.b16 %v736
        %v3054 = vunpack.c.h.b16 %v736
        %v3055 = vunpack.c.l.b16 %v737
        %v3056 = vunpack.c.h.b16 %v737
        %v3057 = vunpack.c.l.b16 %v738
        %v3058 = vunpack.c.h.b16 %v738
        %v3059 = vunpack.c.l.b16 %v739
        %v3060 = vunpack.c.h.b16 %v739
        %v3061 = vunpack.c.l.b16 %v740
        %v3062 = vunpack.c.h.b16 %v740
        %v3063 = vunpack.c.l.b16 %v741
        %v3064 = vunpack.c.h.b16 %v741
        %v3065 = vunpack.c.l.b16 %v742
        %v3066 = vunpack.c.h.b16 %v742
        %v3067 = vunpack.c.l.b16 %v743
        %v3068 = vunpack.c.h.b16 %v743
        %v3069 = vunpack.c.l.b16 %v744
        %v3070 = vunpack.c.h.b16 %v744
        %v3071 = vunpack.c.l.b16 %v745
        %v3072 = vunpack.c.h.b16 %v745
        %v3073 = vunpack.c.l.b16 %v746
        %v3074 = vunpack.c.h.b16 %v746
        %v3075 = vunpack.c.l.b16 %v747
        %v3076 = vunpack.c.h.b16 %v747
        %v3077 = vunpack.c.l.b16 %v748
        %v3078 = vunpack.c.h.b16 %v748
        %v3079 = vunpack.c.l.b16 %v749
        %v3080 = vunpack.c.h.b16 %v749
        %v3081 = vunpack.c.l.b16 %v750
        %v3082 = vunpack.c.h.b16 %v750
        %v3083 = vunpack.c.l.b16 %v751
        %v3084 = vunpack.c.h.b16 %v751
        %v3085 = vunpack.c.l.b16 %v752
        %v3086 = vunpack.c.h.b16 %v752
        %v3087 = vunpack.c.l.b16 %v753
        %v3088 = vunpack.c.h.b16 %v753
        %v3089 = vunpack.c.l.b16 %v754
        %v3090 = vunpack.c.h.b16 %v754
        %v3091 = vunpack.c.l.b16 %v755
        %v3092 = vunpack.c.h.b16 %v755
        %v3093 = vunpack.c.l.b16 %v756
        %v3094 = vunpack.c.h.b16 %v756
        %v3095 = vunpack.c.l.b16 %v757
        %v3096 = vunpack.c.h.b16 %v757
        %v3097 = vunpack.c.l.b16 %v758
        %v3098 = vunpack.c.h.b16 %v758
        %v3099 = vunpack.c.l.b16 %v759
        %v3100 = vunpack.c.h.b16 %v759
        %v3101 = vunpack.c.l.b16 %v760
        %v3102 = vunpack.c.h.b16 %v760
        %v3103 = vunpack.c.l.b16 %v761
        %v3104 = vunpack.c.h.b16 %v761
        %v3105 = vunpack.c.l.b16 %v762
        %v3106 = vunpack.c.h.b16 %v762
        %v3107 = vunpack.c.l.b16 %v763
        %v3108 = vunpack.c.h.b16 %v763
        %v3109 = vunpack.c.l.b16 %v764
        %v3110 = vunpack.c.h.b16 %v764
        %v3111 = vunpack.c.l.b16 %v765
        %v3112 = vunpack.c.h.b16 %v765
        %v3113 = vunpack.c.l.b16 %v766
        %v3114 = vunpack.c.h.b16 %v766
        %v3115 = vunpack.c.l.b16 %v767
        %v3116 = vunpack.c.h.b16 %v767
        %v3117 = vunpack.c.l.b16 %v768
        %v3118 = vunpack.c.h.b16 %v768
        %v3119 = vunpack.c.l.b16 %v769
        %v3120 = vunpack.c.h.b16 %v769
        %v3121 = vunpack.c.l.b16 %v770
        %v3122 = vunpack.c.h.b16 %v770
        %v3123 = vunpack.c.l.b16 %v771
        %v3124 = vunpack.c.h.b16 %v771
        %v3125 = vunpack.c.l.b16 %v772
        %v3126 = vunpack.c.h.b16 %v772
        %v3127 = vunpack.c.l.b16 %v773
        %v3128 = vunpack.c.h.b16 %v773
        %v3129 = vunpack.c.l.b16 %v774
        %v3130 = vunpack.c.h.b16 %v774
        %v3131 = vunpack.c.l.b16 %v775
        %v3132 = vunpack.c.h.b16 %v775
        %v3133 = vunpack.c.l.b16 %v776
        %v3134 = vunpack.c.h.b16 %v776
        %v3135 = vunpack.c.l.b16 %v777
        %v3136 = vunpack.c.h.b16 %v777
        %v3137 = vunpack.c.l.b16 %v778
        %v3138 = vunpack.c.h.b16 %v778
        %v3139 = vunpack.c.l.b16 %v779
        %v3140 = vunpack.c.h.b16 %v779
        %v3141 = vunpack.c.l.b16 %v780
        %v3142 = vunpack.c.h.b16 %v780
        %v3143 = vunpack.c.l.b16 %v781
        %v3144 = vunpack.c.h.b16 %v781
        %v3145 = vunpack.c.l.b16 %v782
        %v3146 = vunpack.c.h.b16 %v782
        %v3147 = vunpack.c.l.b16 %v783
        %v3148 = vunpack.c.h.b16 %v783
        %v3149 = vunpack.c.l.b16 %v784
        %v3150 = vunpack.c.h.b16 %v784
        %v3151 = vunpack.c.l.b16 %v785
        %v3152 = vunpack.c.h.b16 %v785
        %v3153 = vunpack.c.l.b16 %v786
        %v3154 = vunpack.c.h.b16 %v786
        %v3155 = vunpack.c.l.b16 %v787
        %v3156 = vunpack.c.h.b16 %v787
        %v3157 = vunpack.c.l.b16 %v788
        %v3158 = vunpack.c.h.b16 %v788
        %v3159 = vunpack.c.l.b16 %v789
        %v3160 = vunpack.c.h.b16 %v789
        %v3161 = vunpack.c.l.b16 %v790
        %v3162 = vunpack.c.h.b16 %v790
        %v3163 = vunpack.c.l.b16 %v791
        %v3164 = vunpack.c.h.b16 %v791
        %v3165 = vunpack.c.l.b16 %v792
        %v3166 = vunpack.c.h.b16 %v792
        %v3167 = vunpack.c.l.b16 %v793
        %v3168 = vunpack.c.h.b16 %v793
        %v3169 = vunpack.c.l.b16 %v794
        %v3170 = vunpack.c.h.b16 %v794
        %v3171 = vunpack.c.l.b16 %v795
        %v3172 = vunpack.c.h.b16 %v795
        %v3173 = vunpack.c.l.b16 %v796
        %v3174 = vunpack.c.h.b16 %v796
        %v3175 = vunpack.c.l.b16 %v797
        %v3176 = vunpack.c.h.b16 %v797
        %v3177 = vunpack.c.l.b16 %v798
        %v3178 = vunpack.c.h.b16 %v798
        %v3179 = vunpack.c.l.b16 %v799
        %v3180 = vunpack.c.h.b16 %v799
        %v3181 = vunpack.c.l.b16 %v800
        %v3182 = vunpack.c.h.b16 %v800
        %v3183 = vunpack.c.l.b16 %v801
        %v3184 = vunpack.c.h.b16 %v801
        %v3185 = vunpack.c.l.b16 %v802
        %v3186 = vunpack.c.h.b16 %v802
        %v3187 = vunpack.c.l.b16 %v803
        %v3188 = vunpack.c.h.b16 %v803
        %v3189 = vunpack.c.l.b16 %v804
        %v3190 = vunpack.c.h.b16 %v804
        %v3191 = vunpack.c.l.b16 %v805
        %v3192 = vunpack.c.h.b16 %v805
        %v3193 = vunpack.c.l.b16 %v806
        %v3194 = vunpack.c.h.b16 %v806
        %v3195 = vunpack.c.l.b16 %v807
        %v3196 = vunpack.c.h.b16 %v807
        %v3197 = vunpack.c.l.b16 %v808
        %v3198 = vunpack.c.h.b16 %v808
        %v3199 = vunpack.c.l.b16 %v809
        %v3200 = vunpack.c.h.b16 %v809
        %v3201 = vunpack.c.l.b16 %v810
        %v3202 = vunpack.c.h.b16 %v810
        %v3203 = vunpack.c.l.b16 %v811
        %v3204 = vunpack.c.h.b16 %v811
        %v3205 = vunpack.c.l.b16 %v812
        %v3206 = vunpack.c.h.b16 %v812
        %v3207 = vunpack.c.l.b16 %v813
        %v3208 = vunpack.c.h.b16 %v813
        %v3209 = vunpack.c.l.b16 %v814
        %v3210 = vunpack.c.h.b16 %v814
        %v3211 = vunpack.c.l.b16 %v815
        %v3212 = vunpack.c.h.b16 %v815
        %v3213 = vunpack.c.l.b16 %v816
        %v3214 = vunpack.c.h.b16 %v816
        %v3215 = vunpack.c.l.b16 %v817
        %v3216 = vunpack.c.h.b16 %v817
        %v3217 = vunpack.c.l.b16 %v818
        %v3218 = vunpack.c.h.b16 %v818
        %v3219 = vunpack.c.l.b16 %v819
        %v3220 = vunpack.c.h.b16 %v819
        %v3221 = vunpack.c.l.b16 %v820
        %v3222 = vunpack.c.h.b16 %v820
        %v3223 = vunpack.c.l.b16 %v821
        %v3224 = vunpack.c.h.b16 %v821
        %v3225 = vunpack.c.l.b16 %v822
        %v3226 = vunpack.c.h.b16 %v822
        %v3227 = vunpack.c.l.b16 %v823
        %v3228 = vunpack.c.h.b16 %v823
        %v3229 = vunpack.c.l.b16 %v824
        %v3230 = vunpack.c.h.b16 %v824
        %v3231 = vunpack.c.l.b16 %v825
        %v3232 = vunpack.c.h.b16 %v825
        %v3233 = vunpack.c.l.b16 %v826
        %v3234 = vunpack.c.h.b16 %v826
        %v3235 = vunpack.c.l.b16 %v827
        %v3236 = vunpack.c.h.b16 %v827
        %v3237 = vunpack.c.l.b16 %v828
        %v3238 = vunpack.c.h.b16 %v828
        %v3239 = vunpack.c.l.b16 %v829
        %v3240 = vunpack.c.h.b16 %v829
        %v3241 = vunpack.c.l.b16 %v830
        %v3242 = vunpack.c.h.b16 %v830
        %v3243 = vunpack.c.l.b16 %v831
        %v3244 = vunpack.c.h.b16 %v831
        %v3245 = vunpack.c.l.b16 %v832
        %v3246 = vunpack.c.h.b16 %v832
        %v3247 = vunpack.c.l.b16 %v833
        %v3248 = vunpack.c.h.b16 %v833
        %v3249 = vunpack.c.l.b16 %v834
        %v3250 = vunpack.c.h.b16 %v834
        %v3251 = vunpack.c.l.b16 %v835
        %v3252 = vunpack.c.h.b16 %v835
        %v3253 = vunpack.c.l.b16 %v836
        %v3254 = vunpack.c.h.b16 %v836
        %v3255 = vunpack.c.l.b16 %v837
        %v3256 = vunpack.c.h.b16 %v837
        %v3257 = vunpack.c.l.b16 %v838
        %v3258 = vunpack.c.h.b16 %v838
        %v3259 = vunpack.c.l.b16 %v839
        %v3260 = vunpack.c.h.b16 %v839
        %v3261 = vunpack.c.l.b16 %v840
        %v3262 = vunpack.c.h.b16 %v840
        %v3263 = vunpack.c.l.b16 %v841
        %v3264 = vunpack.c.h.b16 %v841
        %v3265 = vunpack.c.l.b16 %v842
        %v3266 = vunpack.c.h.b16 %v842
        %v3267 = vunpack.c.l.b16 %v843
        %v3268 = vunpack.c.h.b16 %v843
        %v3269 = vunpack.c.l.b16 %v844
        %v3270 = vunpack.c.h.b16 %v844
        %v3271 = vunpack.c.l.b16 %v845
        %v3272 = vunpack.c.h.b16 %v845
        %v3273 = vunpack.c.l.b16 %v846
        %v3274 = vunpack.c.h.b16 %v846
        %v3275 = vunpack.c.l.b16 %v847
        %v3276 = vunpack.c.h.b16 %v847
        %v3277 = vunpack.c.l.b16 %v848
        %v3278 = vunpack.c.h.b16 %v848
        %v3279 = vunpack.c.l.b16 %v849
        %v3280 = vunpack.c.h.b16 %v849
        %v3281 = vunpack.c.l.b16 %v850
        %v3282 = vunpack.c.h.b16 %v850
        %v3283 = vunpack.c.l.b16 %v851
        %v3284 = vunpack.c.h.b16 %v851
        %v3285 = vunpack.c.l.b16 %v852
        %v3286 = vunpack.c.h.b16 %v852
        %v3287 = vunpack.c.l.b16 %v853
        %v3288 = vunpack.c.h.b16 %v853
        %v3289 = vunpack.c.l.b16 %v854
        %v3290 = vunpack.c.h.b16 %v854
        %v3291 = vunpack.c.l.b16 %v855
        %v3292 = vunpack.c.h.b16 %v855
        %v3293 = vunpack.c.l.b16 %v856
        %v3294 = vunpack.c.h.b16 %v856
        %v3295 = vunpack.c.l.b16 %v857
        %v3296 = vunpack.c.h.b16 %v857
        %v3297 = vunpack.c.l.b16 %v858
        %v3298 = vunpack.c.h.b16 %v858
        %v3299 = vunpack.c.l.b16 %v859
        %v3300 = vunpack.c.h.b16 %v859
        %v3301 = vunpack.c.l.b16 %v860
        %v3302 = vunpack.c.h.b16 %v860
        %v3303 = vunpack.c.l.b16 %v861
        %v3304 = vunpack.c.h.b16 %v861
        %v3305 = vunpack.c.l.b16 %v862
        %v3306 = vunpack.c.h.b16 %v862
        %v3307 = vunpack.c.l.b16 %v863
        %v3308 = vunpack.c.h.b16 %v863
        %v3309 = vunpack.c.l.b16 %v864
        %v3310 = vunpack.c.h.b16 %v864
        %v3311 = vunpack.c.l.b16 %v865
        %v3312 = vunpack.c.h.b16 %v865
        %v3313 = vunpack.c.l.b16 %v866
        %v3314 = vunpack.c.h.b16 %v866
        %v3315 = vunpack.c.l.b16 %v867
        %v3316 = vunpack.c.h.b16 %v867
        %v3317 = vunpack.c.l.b16 %v868
        %v3318 = vunpack.c.h.b16 %v868
        %v3319 = vunpack.c.l.b16 %v869
        %v3320 = vunpack.c.h.b16 %v869
        %v3321 = vunpack.c.l.b16 %v870
        %v3322 = vunpack.c.h.b16 %v870
        %v3323 = vunpack.c.l.b16 %v871
        %v3324 = vunpack.c.h.b16 %v871
        %v3325 = vunpack.c.l.b16 %v872
        %v3326 = vunpack.c.h.b16 %v872
        %v3327 = vunpack.c.l.b16 %v873
        %v3328 = vunpack.c.h.b16 %v873
        %v3329 = vunpack.c.l.b16 %v874
        %v3330 = vunpack.c.h.b16 %v874
        %v3331 = vunpack.c.l.b16 %v875
        %v3332 = vunpack.c.h.b16 %v875
        %v3333 = vunpack.c.l.b16 %v876
        %v3334 = vunpack.c.h.b16 %v876
        %v3335 = vunpack.c.l.b16 %v877
        %v3336 = vunpack.c.h.b16 %v877
        %v3337 = vunpack.c.l.b16 %v878
        %v3338 = vunpack.c.h.b16 %v878
        %v3339 = vunpack.c.l.b16 %v879
        %v3340 = vunpack.c.h.b16 %v879
        %v3341 = vunpack.c.l.b16 %v880
        %v3342 = vunpack.c.h.b16 %v880
        %v3343 = vunpack.c.l.b16 %v881
        %v3344 = vunpack.c.h.b16 %v881
        %v3345 = vunpack.c.l.b16 %v882
        %v3346 = vunpack.c.h.b16 %v882
        %v3347 = vunpack.c.l.b16 %v883
        %v3348 = vunpack.c.h.b16 %v883
        %v3349 = vunpack.c.l.b16 %v884
        %v3350 = vunpack.c.h.b16 %v884
        %v3351 = vunpack.c.l.b16 %v885
        %v3352 = vunpack.c.h.b16 %v885
        %v3353 = vunpack.c.l.b16 %v886
        %v3354 = vunpack.c.h.b16 %v886
        %v3355 = vunpack.c.l.b16 %v887
        %v3356 = vunpack.c.h.b16 %v887
        %v3357 = vunpack.c.l.b16 %v888
        %v3358 = vunpack.c.h.b16 %v888
        %v3359 = vunpack.c.l.b16 %v889
        %v3360 = vunpack.c.h.b16 %v889
        %v3361 = vunpack.c.l.b16 %v890
        %v3362 = vunpack.c.h.b16 %v890
        %v3363 = vunpack.c.l.b16 %v891
        %v3364 = vunpack.c.h.b16 %v891
        %v3365 = vunpack.c.l.b16 %v892
        %v3366 = vunpack.c.h.b16 %v892
        %v3367 = vunpack.c.l.b16 %v893
        %v3368 = vunpack.c.h.b16 %v893
        %v3369 = vunpack.c.l.b16 %v894
        %v3370 = vunpack.c.h.b16 %v894
        %v3371 = vunpack.c.l.b16 %v895
        %v3372 = vunpack.c.h.b16 %v895
        %v3373 = vunpack.c.l.b16 %v896
        %v3374 = vunpack.c.h.b16 %v896
        %v3375 = vunpack.c.l.b16 %v897
        %v3376 = vunpack.c.h.b16 %v897
        %v3377 = vunpack.c.l.b16 %v898
        %v3378 = vunpack.c.h.b16 %v898
        %v3379 = vunpack.c.l.b16 %v899
        %v3380 = vunpack.c.h.b16 %v899
        %v3381 = vunpack.c.l.b16 %v900
        %v3382 = vunpack.c.h.b16 %v900
        %v3383 = vunpack.c.l.b16 %v901
        %v3384 = vunpack.c.h.b16 %v901
        %v3385 = vunpack.c.l.b16 %v902
        %v3386 = vunpack.c.h.b16 %v902
        %v3387 = vunpack.c.l.b16 %v903
        %v3388 = vunpack.c.h.b16 %v903
        %v3389 = vunpack.c.l.b16 %v904
        %v3390 = vunpack.c.h.b16 %v904
        %v3391 = vunpack.c.l.b16 %v905
        %v3392 = vunpack.c.h.b16 %v905
        %v3393 = vunpack.c.l.b16 %v906
        %v3394 = vunpack.c.h.b16 %v906
        %v3395 = vunpack.c.l.b16 %v907
        %v3396 = vunpack.c.h.b16 %v907
        %v3397 = vunpack.c.l.b16 %v908
        %v3398 = vunpack.c.h.b16 %v908
        %v3399 = vunpack.c.l.b16 %v909
        %v3400 = vunpack.c.h.b16 %v909
        %v3401 = vunpack.c.l.b16 %v910
        %v3402 = vunpack.c.h.b16 %v910
        %v3403 = vunpack.c.l.b16 %v911
        %v3404 = vunpack.c.h.b16 %v911
        %v3405 = vunpack.c.l.b16 %v912
        %v3406 = vunpack.c.h.b16 %v912
        %v3407 = vunpack.c.l.b16 %v913
        %v3408 = vunpack.c.h.b16 %v913
        %v3409 = vunpack.c.l.b16 %v914
        %v3410 = vunpack.c.h.b16 %v914
        %v3411 = vunpack.c.l.b16 %v915
        %v3412 = vunpack.c.h.b16 %v915
        %v3413 = vunpack.c.l.b16 %v916
        %v3414 = vunpack.c.h.b16 %v916
        %v3415 = vunpack.c.l.b16 %v917
        %v3416 = vunpack.c.h.b16 %v917
        %v3417 = vunpack.c.l.b16 %v918
        %v3418 = vunpack.c.h.b16 %v918
        %v3419 = vunpack.c.l.b16 %v919
        %v3420 = vunpack.c.h.b16 %v919
        %v3421 = vunpack.c.l.b16 %v920
        %v3422 = vunpack.c.h.b16 %v920
        %v3423 = vunpack.c.l.b16 %v921
        %v3424 = vunpack.c.h.b16 %v921
        %v3425 = vunpack.c.l.b16 %v922
        %v3426 = vunpack.c.h.b16 %v922
        %v3427 = vunpack.c.l.b16 %v923
        %v3428 = vunpack.c.h.b16 %v923
        %v3429 = vunpack.c.l.b16 %v924
        %v3430 = vunpack.c.h.b16 %v924
        %v3431 = vunpack.c.l.b16 %v925
        %v3432 = vunpack.c.h.b16 %v925
        %v3433 = vunpack.c.l.b16 %v926
        %v3434 = vunpack.c.h.b16 %v926
        %v3435 = vunpack.c.l.b16 %v927
        %v3436 = vunpack.c.h.b16 %v927
        %v3437 = vunpack.c.l.b16 %v928
        %v3438 = vunpack.c.h.b16 %v928
        %v3439 = vunpack.c.l.b16 %v929
        %v3440 = vunpack.c.h.b16 %v929
        %v3441 = vunpack.c.l.b16 %v930
        %v3442 = vunpack.c.h.b16 %v930
        %v3443 = vunpack.c.l.b16 %v931
        %v3444 = vunpack.c.h.b16 %v931
        %v3445 = vunpack.c.l.b16 %v932
        %v3446 = vunpack.c.h.b16 %v932
        %v3447 = vunpack.c.l.b16 %v933
        %v3448 = vunpack.c.h.b16 %v933
        %v3449 = vunpack.c.l.b16 %v934
        %v3450 = vunpack.c.h.b16 %v934
        %v3451 = vunpack.c.l.b16 %v935
        %v3452 = vunpack.c.h.b16 %v935
        %v3453 = vunpack.c.l.b16 %v936
        %v3454 = vunpack.c.h.b16 %v936
        %v3455 = vunpack.c.l.b16 %v937
        %v3456 = vunpack.c.h.b16 %v937
        %v3457 = vunpack.c.l.b16 %v938
        %v3458 = vunpack.c.h.b16 %v938
        %v3459 = vunpack.c.l.b16 %v939
        %v3460 = vunpack.c.h.b16 %v939
        %v3461 = vunpack.c.l.b16 %v940
        %v3462 = vunpack.c.h.b16 %v940
        %v3463 = vunpack.c.l.b16 %v941
        %v3464 = vunpack.c.h.b16 %v941
        %v3465 = vunpack.c.l.b16 %v942
        %v3466 = vunpack.c.h.b16 %v942
        %v3467 = vunpack.c.l.b16 %v943
        %v3468 = vunpack.c.h.b16 %v943
        %v3469 = vunpack.c.l.b16 %v944
        %v3470 = vunpack.c.h.b16 %v944
        %v3471 = vunpack.c.l.b16 %v945
        %v3472 = vunpack.c.h.b16 %v945
        %v3473 = vunpack.c.l.b16 %v946
        %v3474 = vunpack.c.h.b16 %v946
        %v3475 = vunpack.c.l.b16 %v947
        %v3476 = vunpack.c.h.b16 %v947
        %v3477 = vunpack.c.l.b16 %v948
        %v3478 = vunpack.c.h.b16 %v948
        %v3479 = vunpack.c.l.b16 %v949
        %v3480 = vunpack.c.h.b16 %v949
        %v3481 = vunpack.c.l.b16 %v950
        %v3482 = vunpack.c.h.b16 %v950
        %v3483 = vunpack.c.l.b16 %v951
        %v3484 = vunpack.c.h.b16 %v951
        %v3485 = vunpack.c.l.b16 %v952
        %v3486 = vunpack.c.h.b16 %v952
        %v3487 = vunpack.c.l.b16 %v953
        %v3488 = vunpack.c.h.b16 %v953
        %v3489 = vunpack.c.l.b16 %v954
        %v3490 = vunpack.c.h.b16 %v954
        %v3491 = vunpack.c.l.b16 %v955
        %v3492 = vunpack.c.h.b16 %v955
        %v3493 = vunpack.c.l.b16 %v956
        %v3494 = vunpack.c.h.b16 %v956
        %v3495 = vunpack.c.l.b16 %v957
        %v3496 = vunpack.c.h.b16 %v957
        %v3497 = vunpack.c.l.b16 %v958
        %v3498 = vunpack.c.h.b16 %v958
        %v3499 = vunpack.c.l.b16 %v959
        %v3500 = vunpack.c.h.b16 %v959
        %v3501 = vunpack.c.l.b16 %v960
        %v3502 = vunpack.c.h.b16 %v960
        %v3503 = vunpack.c.l.b16 %v961
        %v3504 = vunpack.c.h.b16 %v961
        %v3505 = vunpack.c.l.b16 %v962
        %v3506 = vunpack.c.h.b16 %v962
        %v3507 = vunpack.c.l.b16 %v963
        %v3508 = vunpack.c.h.b16 %v963
        %v3509 = vunpack.c.l.b16 %v964
        %v3510 = vunpack.c.h.b16 %v964
        %v3511 = vunpack.c.l.b16 %v965
        %v3512 = vunpack.c.h.b16 %v965
        %v3513 = vunpack.c.l.b16 %v966
        %v3514 = vunpack.c.h.b16 %v966
        %v3515 = vunpack.c.l.b16 %v967
        %v3516 = vunpack.c.h.b16 %v967
        %v3517 = vunpack.c.l.b16 %v968
        %v3518 = vunpack.c.h.b16 %v968
        %v3519 = vunpack.c.l.b16 %v969
        %v3520 = vunpack.c.h.b16 %v969
        %v3521 = vunpack.c.l.b16 %v970
        %v3522 = vunpack.c.h.b16 %v970
        %v3523 = vunpack.c.l.b16 %v971
        %v3524 = vunpack.c.h.b16 %v971
        %v3525 = vunpack.c.l.b16 %v972
        %v3526 = vunpack.c.h.b16 %v972
        %v3527 = vunpack.c.l.b16 %v973
        %v3528 = vunpack.c.h.b16 %v973
        %v3529 = vunpack.c.l.b16 %v974
        %v3530 = vunpack.c.h.b16 %v974
        %v3531 = vunpack.c.l.b16 %v975
        %v3532 = vunpack.c.h.b16 %v975
        %v3533 = vunpack.c.l.b16 %v976
        %v3534 = vunpack.c.h.b16 %v976
        %v3535 = vunpack.c.l.b16 %v977
        %v3536 = vunpack.c.h.b16 %v977
        %v3537 = vunpack.c.l.b16 %v978
        %v3538 = vunpack.c.h.b16 %v978
        %v3539 = vunpack.c.l.b16 %v979
        %v3540 = vunpack.c.h.b16 %v979
        %v3541 = vunpack.c.l.b16 %v980
        %v3542 = vunpack.c.h.b16 %v980
        %v3543 = vunpack.c.l.b16 %v981
        %v3544 = vunpack.c.h.b16 %v981
        %v3545 = vunpack.c.l.b16 %v982
        %v3546 = vunpack.c.h.b16 %v982
        %v3547 = vunpack.c.l.b16 %v983
        %v3548 = vunpack.c.h.b16 %v983
        %v3549 = vunpack.c.l.b16 %v984
        %v3550 = vunpack.c.h.b16 %v984
        %v3551 = vunpack.c.l.b16 %v985
        %v3552 = vunpack.c.h.b16 %v985
        %v3553 = vunpack.c.l.b16 %v986
        %v3554 = vunpack.c.h.b16 %v986
        %v3555 = vunpack.c.l.b16 %v987
        %v3556 = vunpack.c.h.b16 %v987
        %v3557 = vunpack.c.l.b16 %v988
        %v3558 = vunpack.c.h.b16 %v988
        %v3559 = vunpack.c.l.b16 %v989
        %v3560 = vunpack.c.h.b16 %v989
        %v3561 = vunpack.c.l.b16 %v990
        %v3562 = vunpack.c.h.b16 %v990
        %v3563 = vunpack.c.l.b16 %v991
        %v3564 = vunpack.c.h.b16 %v991
        %v3565 = vunpack.c.l.b16 %v992
        %v3566 = vunpack.c.h.b16 %v992
        %v3567 = vunpack.c.l.b16 %v993
        %v3568 = vunpack.c.h.b16 %v993
        %v3569 = vunpack.c.l.b16 %v994
        %v3570 = vunpack.c.h.b16 %v994
        %v3571 = vunpack.c.l.b16 %v995
        %v3572 = vunpack.c.h.b16 %v995
        %v3573 = vunpack.c.l.b16 %v996
        %v3574 = vunpack.c.h.b16 %v996
        %v3575 = vunpack.c.l.b16 %v997
        %v3576 = vunpack.c.h.b16 %v997
        %v3577 = vunpack.c.l.b16 %v998
        %v3578 = vunpack.c.h.b16 %v998
        %v3579 = vunpack.c.l.b16 %v999
        %v3580 = vunpack.c.h.b16 %v999
        %v3581 = vunpack.c.l.b16 %v1000
        %v3582 = vunpack.c.h.b16 %v1000
        %v3583 = vunpack.c.l.b16 %v1001
        %v3584 = vunpack.c.h.b16 %v1001
        %v3585 = vunpack.c.l.b16 %v1002
        %v3586 = vunpack.c.h.b16 %v1002
        %v3587 = vunpack.c.l.b16 %v1003
        %v3588 = vunpack.c.h.b16 %v1003
        %v3589 = vunpack.c.l.b16 %v1004
        %v3590 = vunpack.c.h.b16 %v1004
        %v3591 = vunpack.c.l.b16 %v1005
        %v3592 = vunpack.c.h.b16 %v1005
        %v3593 = vunpack.c.l.b16 %v1006
        %v3594 = vunpack.c.h.b16 %v1006
        %v3595 = vunpack.c.l.b16 %v1007
        %v3596 = vunpack.c.h.b16 %v1007
        %v3597 = vunpack.c.l.b16 %v1008
        %v3598 = vunpack.c.h.b16 %v1008
        %v3599 = vunpack.c.l.b16 %v1009
        %v3600 = vunpack.c.h.b16 %v1009
        %v3601 = vunpack.c.l.b16 %v1010
        %v3602 = vunpack.c.h.b16 %v1010
        %v3603 = vunpack.c.l.b16 %v1011
        %v3604 = vunpack.c.h.b16 %v1011
        %v3605 = vunpack.c.l.b16 %v1012
        %v3606 = vunpack.c.h.b16 %v1012
        %v3607 = vunpack.c.l.b16 %v1013
        %v3608 = vunpack.c.h.b16 %v1013
        %v3609 = vunpack.c.l.b16 %v1014
        %v3610 = vunpack.c.h.b16 %v1014
        %v3611 = vunpack.c.l.b16 %v1015
        %v3612 = vunpack.c.h.b16 %v1015
        %v3613 = vunpack.c.l.b16 %v1016
        %v3614 = vunpack.c.h.b16 %v1016
        %v3615 = vunpack.c.l.b16 %v1017
        %v3616 = vunpack.c.h.b16 %v1017
        %v3617 = vunpack.c.l.b16 %v1018
        %v3618 = vunpack.c.h.b16 %v1018
        %v3619 = vunpack.c.l.b16 %v1019
        %v3620 = vunpack.c.h.b16 %v1019
        %v3621 = vunpack.c.l.b16 %v1020
        %v3622 = vunpack.c.h.b16 %v1020
        %v3623 = vunpack.c.l.b16 %v1021
        %v3624 = vunpack.c.h.b16 %v1021
        %v3625 = vunpack.c.l.b16 %v1022
        %v3626 = vunpack.c.h.b16 %v1022
        %v3627 = vunpack.c.l.b16 %v1023
        %v3628 = vunpack.c.h.b16 %v1023
        %v3629 = vunpack.c.l.b16 %v1024
        %v3630 = vunpack.c.h.b16 %v1024
        %v3631 = vunpack.c.l.b16 %v1025
        %v3632 = vunpack.c.h.b16 %v1025
        %v3633 = vunpack.c.l.b16 %v1026
        %v3634 = vunpack.c.h.b16 %v1026
        %v3635 = vunpack.c.l.b16 %v1027
        %v3636 = vunpack.c.h.b16 %v1027
        %v3637 = vunpack.c.l.b16 %v1028
        %v3638 = vunpack.c.h.b16 %v1028
        %v3639 = vunpack.c.l.b16 %v1029
        %v3640 = vunpack.c.h.b16 %v1029
        %v3641 = vunpack.c.l.b16 %v1030
        %v3642 = vunpack.c.h.b16 %v1030
        %v3643 = vunpack.c.l.b16 %v1031
        %v3644 = vunpack.c.h.b16 %v1031
        %v3645 = vunpack.c.l.b16 %v1032
        %v3646 = vunpack.c.h.b16 %v1032
        %v3647 = vunpack.c.l.b16 %v1033
        %v3648 = vunpack.c.h.b16 %v1033
        %v3649 = vunpack.c.l.b16 %v1034
        %v3650 = vunpack.c.h.b16 %v1034
        %v3651 = vunpack.c.l.b16 %v1035
        %v3652 = vunpack.c.h.b16 %v1035
        %v3653 = vunpack.c.l.b16 %v1036
        %v3654 = vunpack.c.h.b16 %v1036
        %v3655 = vunpack.c.l.b16 %v1037
        %v3656 = vunpack.c.h.b16 %v1037
        %v3657 = vunpack.c.l.b16 %v1038
        %v3658 = vunpack.c.h.b16 %v1038
        %v3659 = vunpack.c.l.b16 %v1039
        %v3660 = vunpack.c.h.b16 %v1039
        %v3661 = vunpack.c.l.b16 %v1040
        %v3662 = vunpack.c.h.b16 %v1040
        %v3663 = vunpack.c.l.b16 %v1041
        %v3664 = vunpack.c.h.b16 %v1041
        %v3665 = vunpack.c.l.b16 %v1042
        %v3666 = vunpack.c.h.b16 %v1042
        %v3667 = vunpack.c.l.b16 %v1043
        %v3668 = vunpack.c.h.b16 %v1043
        %v3669 = vunpack.c.l.b16 %v1044
        %v3670 = vunpack.c.h.b16 %v1044
        %v3671 = vunpack.c.l.b16 %v1045
        %v3672 = vunpack.c.h.b16 %v1045
        %v3673 = vunpack.c.l.b16 %v1046
        %v3674 = vunpack.c.h.b16 %v1046
        %v3675 = vunpack.c.l.b16 %v1047
        %v3676 = vunpack.c.h.b16 %v1047
        %v3677 = vunpack.c.l.b16 %v1048
        %v3678 = vunpack.c.h.b16 %v1048
        %v3679 = vunpack.c.l.b16 %v1049
        %v3680 = vunpack.c.h.b16 %v1049
        %v3681 = vunpack.c.l.b16 %v1050
        %v3682 = vunpack.c.h.b16 %v1050
        %v3683 = vunpack.c.l.b16 %v1051
        %v3684 = vunpack.c.h.b16 %v1051
        %v3685 = vunpack.c.l.b16 %v1052
        %v3686 = vunpack.c.h.b16 %v1052
        %v3687 = vunpack.c.l.b16 %v1053
        %v3688 = vunpack.c.h.b16 %v1053
        %v3689 = vunpack.c.l.b16 %v1054
        %v3690 = vunpack.c.h.b16 %v1054
        %v3691 = vunpack.c.l.b16 %v1055
        %v3692 = vunpack.c.h.b16 %v1055
        %v3693 = vunpack.c.l.b16 %v1056
        %v3694 = vunpack.c.h.b16 %v1056
        %v3695 = vunpack.c.l.b16 %v1057
        %v3696 = vunpack.c.h.b16 %v1057
        %v3697 = vunpack.c.l.b16 %v1058
        %v3698 = vunpack.c.h.b16 %v1058
        %v3699 = vunpack.c.l.b16 %v1059
        %v3700 = vunpack.c.h.b16 %v1059
        %v3701 = vunpack.c.l.b16 %v1060
        %v3702 = vunpack.c.h.b16 %v1060
        %v3703 = vunpack.c.l.b16 %v1061
        %v3704 = vunpack.c.h.b16 %v1061
        %v3705 = vunpack.c.l.b16 %v1062
        %v3706 = vunpack.c.h.b16 %v1062
        %v3707 = vunpack.c.l.b16 %v1063
        %v3708 = vunpack.c.h.b16 %v1063
        %v3709 = vunpack.c.l.b16 %v1064
        %v3710 = vunpack.c.h.b16 %v1064
        %v3711 = vunpack.c.l.b16 %v1065
        %v3712 = vunpack.c.h.b16 %v1065
        %v3713 = vunpack.c.l.b16 %v1066
        %v3714 = vunpack.c.h.b16 %v1066
        %v3715 = vunpack.c.l.b16 %v1067
        %v3716 = vunpack.c.h.b16 %v1067
        %v3717 = vunpack.c.l.b16 %v1068
        %v3718 = vunpack.c.h.b16 %v1068
        %v3719 = vunpack.c.l.b16 %v1069
        %v3720 = vunpack.c.h.b16 %v1069
        %v3721 = vunpack.c.l.b16 %v1070
        %v3722 = vunpack.c.h.b16 %v1070
        %v3723 = vunpack.c.l.b16 %v1071
        %v3724 = vunpack.c.h.b16 %v1071
        %v3725 = vunpack.c.l.b16 %v1072
        %v3726 = vunpack.c.h.b16 %v1072
        %v3727 = vunpack.c.l.b16 %v1073
        %v3728 = vunpack.c.h.b16 %v1073
        %v3729 = vunpack.c.l.b16 %v1074
        %v3730 = vunpack.c.h.b16 %v1074
        %v3731 = vunpack.c.l.b16 %v1075
        %v3732 = vunpack.c.h.b16 %v1075
        %v3733 = vunpack.c.l.b16 %v1076
        %v3734 = vunpack.c.h.b16 %v1076
        %v3735 = vunpack.c.l.b16 %v1077
        %v3736 = vunpack.c.h.b16 %v1077
        %v3737 = vunpack.c.l.b16 %v1078
        %v3738 = vunpack.c.h.b16 %v1078
        %v3739 = vunpack.c.l.b16 %v1079
        %v3740 = vunpack.c.h.b16 %v1079
        %v3741 = vunpack.c.l.b16 %v1080
        %v3742 = vunpack.c.h.b16 %v1080
        %v3743 = vunpack.c.l.b16 %v1081
        %v3744 = vunpack.c.h.b16 %v1081
        %v3745 = vunpack.c.l.b16 %v1082
        %v3746 = vunpack.c.h.b16 %v1082
        %v3747 = vunpack.c.l.b16 %v1083
        %v3748 = vunpack.c.h.b16 %v1083
        %v3749 = vunpack.c.l.b16 %v1084
        %v3750 = vunpack.c.h.b16 %v1084
        %v3751 = vunpack.c.l.b16 %v1085
        %v3752 = vunpack.c.h.b16 %v1085
        %v3753 = vunpack.c.l.b16 %v1086
        %v3754 = vunpack.c.h.b16 %v1086
        %v3755 = vunpack.c.l.b16 %v1087
        %v3756 = vunpack.c.h.b16 %v1087
        %v3757 = vunpack.c.l.b16 %v1088
        %v3758 = vunpack.c.h.b16 %v1088
        %v3759 = vunpack.c.l.b16 %v1089
        %v3760 = vunpack.c.h.b16 %v1089
        %v3761 = vunpack.c.l.b16 %v1090
        %v3762 = vunpack.c.h.b16 %v1090
        %v3763 = vunpack.c.l.b16 %v1091
        %v3764 = vunpack.c.h.b16 %v1091
        %v3765 = vunpack.c.l.b16 %v1092
        %v3766 = vunpack.c.h.b16 %v1092
        %v3767 = vunpack.c.l.b16 %v1093
        %v3768 = vunpack.c.h.b16 %v1093
        %v3769 = vunpack.c.l.b16 %v1094
        %v3770 = vunpack.c.h.b16 %v1094
        %v3771 = vunpack.c.l.b16 %v1095
        %v3772 = vunpack.c.h.b16 %v1095
        %v3773 = vunpack.c.l.b16 %v1096
        %v3774 = vunpack.c.h.b16 %v1096
        %v3775 = vunpack.c.l.b16 %v1097
        %v3776 = vunpack.c.h.b16 %v1097
        %v3777 = vunpack.c.l.b16 %v1098
        %v3778 = vunpack.c.h.b16 %v1098
        %v3779 = vunpack.c.l.b16 %v1099
        %v3780 = vunpack.c.h.b16 %v1099
        %v3781 = vunpack.c.l.b16 %v1100
        %v3782 = vunpack.c.h.b16 %v1100
        %v3783 = vunpack.c.l.b16 %v1101
        %v3784 = vunpack.c.h.b16 %v1101
        %v3785 = vunpack.c.l.b16 %v1102
        %v3786 = vunpack.c.h.b16 %v1102
        %v3787 = vunpack.c.l.b16 %v1103
        %v3788 = vunpack.c.h.b16 %v1103
        %v3789 = vunpack.c.l.b16 %v1104
        %v3790 = vunpack.c.h.b16 %v1104
        %v3791 = vunpack.c.l.b16 %v1105
        %v3792 = vunpack.c.h.b16 %v1105
        %v3793 = vunpack.c.l.b16 %v1106
        %v3794 = vunpack.c.h.b16 %v1106
        %v3795 = vunpack.c.l.b16 %v1107
        %v3796 = vunpack.c.h.b16 %v1107
        %v3797 = vunpack.c.l.b16 %v1108
        %v3798 = vunpack.c.h.b16 %v1108
        %v3799 = vunpack.c.l.b16 %v1109
        %v3800 = vunpack.c.h.b16 %v1109
        %v3801 = vunpack.c.l.b16 %v1110
        %v3802 = vunpack.c.h.b16 %v1110
        %v3803 = vunpack.c.l.b16 %v1111
        %v3804 = vunpack.c.h.b16 %v1111
        %v3805 = vunpack.c.l.b16 %v1112
        %v3806 = vunpack.c.h.b16 %v1112
        %v3807 = vunpack.c.l.b16 %v1113
        %v3808 = vunpack.c.h.b16 %v1113
        %v3809 = vunpack.c.l.b16 %v1114
        %v3810 = vunpack.c.h.b16 %v1114
        %v3811 = vunpack.c.l.b16 %v1115
        %v3812 = vunpack.c.h.b16 %v1115
        %v3813 = vunpack.c.l.b16 %v1116
        %v3814 = vunpack.c.h.b16 %v1116
        %v3815 = vunpack.c.l.b16 %v1117
        %v3816 = vunpack.c.h.b16 %v1117
        %v3817 = vunpack.c.l.b16 %v1118
        %v3818 = vunpack.c.h.b16 %v1118
        %v3819 = vunpack.c.l.b16 %v1119
        %v3820 = vunpack.c.h.b16 %v1119
        %v3821 = vunpack.c.l.b16 %v1120
        %v3822 = vunpack.c.h.b16 %v1120
        %v3823 = vunpack.c.l.b16 %v1121
        %v3824 = vunpack.c.h.b16 %v1121
        %v3825 = vunpack.c.l.b16 %v1122
        %v3826 = vunpack.c.h.b16 %v1122
        %v3827 = vunpack.c.l.b16 %v1123
        %v3828 = vunpack.c.h.b16 %v1123
        %v3829 = vunpack.c.l.b16 %v1124
        %v3830 = vunpack.c.h.b16 %v1124
        %v3831 = vunpack.c.l.b16 %v1125
        %v3832 = vunpack.c.h.b16 %v1125
        %v3833 = vunpack.c.l.b16 %v1126
        %v3834 = vunpack.c.h.b16 %v1126
        %v3835 = vunpack.c.l.b16 %v1127
        %v3836 = vunpack.c.h.b16 %v1127
        %v3837 = vunpack.c.l.b16 %v1128
        %v3838 = vunpack.c.h.b16 %v1128
        %v3839 = vunpack.c.l.b16 %v1129
        %v3840 = vunpack.c.h.b16 %v1129
        %v3841 = vunpack.c.l.b16 %v1130
        %v3842 = vunpack.c.h.b16 %v1130
        %v3843 = vunpack.c.l.b16 %v1131
        %v3844 = vunpack.c.h.b16 %v1131
        %v3845 = vunpack.c.l.b16 %v1132
        %v3846 = vunpack.c.h.b16 %v1132
        %v3847 = vunpack.c.l.b16 %v1133
        %v3848 = vunpack.c.h.b16 %v1133
        %v3849 = vunpack.c.l.b16 %v1134
        %v3850 = vunpack.c.h.b16 %v1134
        %v3851 = vunpack.c.l.b16 %v1135
        %v3852 = vunpack.c.h.b16 %v1135
        %v3853 = vunpack.c.l.b16 %v1136
        %v3854 = vunpack.c.h.b16 %v1136
        %v3855 = vunpack.c.l.b16 %v1137
        %v3856 = vunpack.c.h.b16 %v1137
        %v3857 = vunpack.c.l.b16 %v1138
        %v3858 = vunpack.c.h.b16 %v1138
        %v3859 = vunpack.c.l.b16 %v1139
        %v3860 = vunpack.c.h.b16 %v1139
        %v3861 = vunpack.c.l.b16 %v1140
        %v3862 = vunpack.c.h.b16 %v1140
        %v3863 = vunpack.c.l.b16 %v1141
        %v3864 = vunpack.c.h.b16 %v1141
        %v3865 = vunpack.c.l.b16 %v1142
        %v3866 = vunpack.c.h.b16 %v1142
        %v3867 = vunpack.c.l.b16 %v1143
        %v3868 = vunpack.c.h.b16 %v1143
        %v3869 = vunpack.c.l.b16 %v1144
        %v3870 = vunpack.c.h.b16 %v1144
        %v3871 = vunpack.c.l.b16 %v1145
        %v3872 = vunpack.c.h.b16 %v1145
        %v3873 = vunpack.c.l.b16 %v1146
        %v3874 = vunpack.c.h.b16 %v1146
        %v3875 = vunpack.c.l.b16 %v1147
        %v3876 = vunpack.c.h.b16 %v1147
        %v3877 = vunpack.c.l.b16 %v1148
        %v3878 = vunpack.c.h.b16 %v1148
        %v3879 = vunpack.c.l.b16 %v1149
        %v3880 = vunpack.c.h.b16 %v1149
        %v3881 = vunpack.c.l.b16 %v1150
        %v3882 = vunpack.c.h.b16 %v1150
        %v3883 = vunpack.c.l.b16 %v1151
        %v3884 = vunpack.c.h.b16 %v1151
        %v3885 = vunpack.c.l.b16 %v1152
        %v3886 = vunpack.c.h.b16 %v1152
        %v3887 = vunpack.c.l.b16 %v1153
        %v3888 = vunpack.c.h.b16 %v1153
        %v3889 = vunpack.c.l.b16 %v1154
        %v3890 = vunpack.c.h.b16 %v1154
        %v3891 = vunpack.c.l.b16 %v1155
        %v3892 = vunpack.c.h.b16 %v1155
        %v3893 = vunpack.c.l.b16 %v1156
        %v3894 = vunpack.c.h.b16 %v1156
        %v3895 = vunpack.c.l.b16 %v1157
        %v3896 = vunpack.c.h.b16 %v1157
        %v3897 = vunpack.c.l.b16 %v1158
        %v3898 = vunpack.c.h.b16 %v1158
        %v3899 = vunpack.c.l.b16 %v1159
        %v3900 = vunpack.c.h.b16 %v1159
        %v3901 = vunpack.c.l.b16 %v1160
        %v3902 = vunpack.c.h.b16 %v1160
        %v3903 = vunpack.c.l.b16 %v1161
        %v3904 = vunpack.c.h.b16 %v1161
        %v3905 = vunpack.c.l.b16 %v1162
        %v3906 = vunpack.c.h.b16 %v1162
        %v3907 = vunpack.c.l.b16 %v1163
        %v3908 = vunpack.c.h.b16 %v1163
        %v3909 = vunpack.c.l.b16 %v1164
        %v3910 = vunpack.c.h.b16 %v1164
        %v3911 = vunpack.c.l.b16 %v1165
        %v3912 = vunpack.c.h.b16 %v1165
        %v3913 = vunpack.c.l.b16 %v1166
        %v3914 = vunpack.c.h.b16 %v1166
        %v3915 = vunpack.c.l.b16 %v1167
        %v3916 = vunpack.c.h.b16 %v1167
        %v3917 = vunpack.c.l.b16 %v1168
        %v3918 = vunpack.c.h.b16 %v1168
        %v3919 = vunpack.c.l.b16 %v1169
        %v3920 = vunpack.c.h.b16 %v1169
        %v3921 = vunpack.c.l.b16 %v1170
        %v3922 = vunpack.c.h.b16 %v1170
        %v3923 = vunpack.c.l.b16 %v1171
        %v3924 = vunpack.c.h.b16 %v1171
        %v3925 = vunpack.c.l.b16 %v1172
        %v3926 = vunpack.c.h.b16 %v1172
        %v3927 = vunpack.c.l.b16 %v1173
        %v3928 = vunpack.c.h.b16 %v1173
        %v3929 = vunpack.c.l.b16 %v1174
        %v3930 = vunpack.c.h.b16 %v1174
        %v3931 = vunpack.c.l.b16 %v1175
        %v3932 = vunpack.c.h.b16 %v1175
        %v3933 = vunpack.c.l.b16 %v1176
        %v3934 = vunpack.c.h.b16 %v1176
        %v3935 = vunpack.c.l.b16 %v1177
        %v3936 = vunpack.c.h.b16 %v1177
        %v3937 = vunpack.c.l.b16 %v1178
        %v3938 = vunpack.c.h.b16 %v1178
        %v3939 = vunpack.c.l.b16 %v1179
        %v3940 = vunpack.c.h.b16 %v1179
        %v3941 = vunpack.c.l.b16 %v1180
        %v3942 = vunpack.c.h.b16 %v1180
        %v3943 = vunpack.c.l.b16 %v1181
        %v3944 = vunpack.c.h.b16 %v1181
        %v3945 = vunpack.c.l.b16 %v1182
        %v3946 = vunpack.c.h.b16 %v1182
        %v3947 = vunpack.c.l.b16 %v1183
        %v3948 = vunpack.c.h.b16 %v1183
        %v3949 = vunpack.c.l.b16 %v1184
        %v3950 = vunpack.c.h.b16 %v1184
        %v3951 = vunpack.c.l.b16 %v1185
        %v3952 = vunpack.c.h.b16 %v1185
        %v3953 = vunpack.c.l.b16 %v1186
        %v3954 = vunpack.c.h.b16 %v1186
        %v3955 = vunpack.c.l.b16 %v1187
        %v3956 = vunpack.c.h.b16 %v1187
        %v3957 = vunpack.c.l.b16 %v1188
        %v3958 = vunpack.c.h.b16 %v1188
        %v3959 = vunpack.c.l.b16 %v1189
        %v3960 = vunpack.c.h.b16 %v1189
        %v3961 = vunpack.c.l.b16 %v1190
        %v3962 = vunpack.c.h.b16 %v1190
        %v3963 = vunpack.c.l.b16 %v1191
        %v3964 = vunpack.c.h.b16 %v1191
        %v3965 = vunpack.c.l.b16 %v1192
        %v3966 = vunpack.c.h.b16 %v1192
        %v3967 = vunpack.c.l.b16 %v1193
        %v3968 = vunpack.c.h.b16 %v1193
        %v3969 = vunpack.c.l.b16 %v1194
        %v3970 = vunpack.c.h.b16 %v1194
        %v3971 = vunpack.c.l.b16 %v1195
        %v3972 = vunpack.c.h.b16 %v1195
        %v3973 = vunpack.c.l.b16 %v1196
        %v3974 = vunpack.c.h.b16 %v1196
        %v3975 = vunpack.c.l.b16 %v1197
        %v3976 = vunpack.c.h.b16 %v1197
        %v3977 = vunpack.c.l.b16 %v1198
        %v3978 = vunpack.c.h.b16 %v1198
        %v3979 = vunpack.c.l.b16 %v1199
        %v3980 = vunpack.c.h.b16 %v1199
        %v3981 = vunpack.c.l.b16 %v1200
        %v3982 = vunpack.c.h.b16 %v1200
        %v3983 = vunpack.c.l.b16 %v1201
        %v3984 = vunpack.c.h.b16 %v1201
        %v3985 = vunpack.c.l.b16 %v1202
        %v3986 = vunpack.c.h.b16 %v1202
        %v3987 = vunpack.c.l.b16 %v1203
        %v3988 = vunpack.c.h.b16 %v1203
        %v3989 = vunpack.c.l.b16 %v1204
        %v3990 = vunpack.c.h.b16 %v1204
        %v3991 = vpack.c.b16 %v2203, %v2199
        %v3992 = vpack.c.b16 %v2204, %v2200
        %v3993 = vpack.c.b16 %v2205, %v2201
        %v3994 = vpack.c.b16 %v2206, %v2202
        %v3995 = vpack.c.b16 %v2211, %v2207
        %v3996 = vpack.c.b16 %v2212, %v2208
        %v3997 = vpack.c.b16 %v2213, %v2209
        %v3998 = vpack.c.b16 %v2214, %v2210
        %v3999 = vpack.c.b16 %v2219, %v2215
        %v4000 = vpack.c.b16 %v2220, %v2216
        %v4001 = vpack.c.b16 %v2221, %v2217
        %v4002 = vpack.c.b16 %v2222, %v2218
        %v4003 = vpack.c.b16 %v2227, %v2223
        %v4004 = vpack.c.b16 %v2228, %v2224
        %v4005 = vpack.c.b16 %v2229, %v2225
        %v4006 = vpack.c.b16 %v2230, %v2226
        %v4007 = vpack.c.b16 %v2235, %v2231
        %v4008 = vpack.c.b16 %v2236, %v2232
        %v4009 = vpack.c.b16 %v2237, %v2233
        %v4010 = vpack.c.b16 %v2238, %v2234
        %v4011 = vpack.c.b16 %v2243, %v2239
        %v4012 = vpack.c.b16 %v2244, %v2240
        %v4013 = vpack.c.b16 %v2245, %v2241
        %v4014 = vpack.c.b16 %v2246, %v2242
        %v4015 = vpack.c.b16 %v2251, %v2247
        %v4016 = vpack.c.b16 %v2252, %v2248
        %v4017 = vpack.c.b16 %v2253, %v2249
        %v4018 = vpack.c.b16 %v2254, %v2250
        %v4019 = vpack.c.b16 %v2259, %v2255
        %v4020 = vpack.c.b16 %v2260, %v2256
        %v4021 = vpack.c.b16 %v2261, %v2257
        %v4022 = vpack.c.b16 %v2262, %v2258
        %v4023 = vpack.c.b16 %v2267, %v2263
        %v4024 = vpack.c.b16 %v2268, %v2264
        %v4025 = vpack.c.b16 %v2269, %v2265
        %v4026 = vpack.c.b16 %v2270, %v2266
        %v4027 = vpack.c.b16 %v2275, %v2271
        %v4028 = vpack.c.b16 %v2276, %v2272
        %v4029 = vpack.c.b16 %v2277, %v2273
        %v4030 = vpack.c.b16 %v2278, %v2274
        %v4031 = vpack.c.b16 %v2283, %v2279
        %v4032 = vpack.c.b16 %v2284, %v2280
        %v4033 = vpack.c.b16 %v2285, %v2281
        %v4034 = vpack.c.b16 %v2286, %v2282
        %v4035 = vpack.c.b16 %v2291, %v2287
        %v4036 = vpack.c.b16 %v2292, %v2288
        %v4037 = vpack.c.b16 %v2293, %v2289
        %v4038 = vpack.c.b16 %v2294, %v2290
        %v4039 = vpack.c.b16 %v2299, %v2295
        %v4040 = vpack.c.b16 %v2300, %v2296
        %v4041 = vpack.c.b16 %v2301, %v2297
        %v4042 = vpack.c.b16 %v2302, %v2298
        %v4043 = vpack.c.b16 %v2307, %v2303
        %v4044 = vpack.c.b16 %v2308, %v2304
        %v4045 = vpack.c.b16 %v2309, %v2305
        %v4046 = vpack.c.b16 %v2310, %v2306
        %v4047 = vpack.c.b16 %v2315, %v2311
        %v4048 = vpack.c.b16 %v2316, %v2312
        %v4049 = vpack.c.b16 %v2317, %v2313
        %v4050 = vpack.c.b16 %v2318, %v2314
        %v4051 = vpack.c.b16 %v2323, %v2319
        %v4052 = vpack.c.b16 %v2324, %v2320
        %v4053 = vpack.c.b16 %v2325, %v2321
        %v4054 = vpack.c.b16 %v2326, %v2322
        %v4055 = vpack.c.b16 %v2331, %v2327
        %v4056 = vpack.c.b16 %v2332, %v2328
        %v4057 = vpack.c.b16 %v2333, %v2329
        %v4058 = vpack.c.b16 %v2334, %v2330
        %v4059 = vpack.c.b16 %v2339, %v2335
        %v4060 = vpack.c.b16 %v2340, %v2336
        %v4061 = vpack.c.b16 %v2341, %v2337
        %v4062 = vpack.c.b16 %v2342, %v2338
        %v4063 = vpack.c.b16 %v2347, %v2343
        %v4064 = vpack.c.b16 %v2348, %v2344
        %v4065 = vpack.c.b16 %v2349, %v2345
        %v4066 = vpack.c.b16 %v2350, %v2346
        %v4067 = vpack.c.b16 %v2355, %v2351
        %v4068 = vpack.c.b16 %v2356, %v2352
        %v4069 = vpack.c.b16 %v2357, %v2353
        %v4070 = vpack.c.b16 %v2358, %v2354
        %v4071 = vpack.c.b16 %v2363, %v2359
        %v4072 = vpack.c.b16 %v2364, %v2360
        %v4073 = vpack.c.b16 %v2365, %v2361
        %v4074 = vpack.c.b16 %v2366, %v2362
        %v4075 = vpack.c.b16 %v2371, %v2367
        %v4076 = vpack.c.b16 %v2372, %v2368
        %v4077 = vpack.c.b16 %v2373, %v2369
        %v4078 = vpack.c.b16 %v2374, %v2370
        %v4079 = vpack.c.b16 %v2379, %v2375
        %v4080 = vpack.c.b16 %v2380, %v2376
        %v4081 = vpack.c.b16 %v2381, %v2377
        %v4082 = vpack.c.b16 %v2382, %v2378
        %v4083 = vpack.c.b16 %v2387, %v2383
        %v4084 = vpack.c.b16 %v2388, %v2384
        %v4085 = vpack.c.b16 %v2389, %v2385
        %v4086 = vpack.c.b16 %v2390, %v2386
        %v4087 = vpack.c.b16 %v2395, %v2391
        %v4088 = vpack.c.b16 %v2396, %v2392
        %v4089 = vpack.c.b16 %v2397, %v2393
        %v4090 = vpack.c.b16 %v2398, %v2394
        %v4091 = vpack.c.b16 %v2403, %v2399
        %v4092 = vpack.c.b16 %v2404, %v2400
        %v4093 = vpack.c.b16 %v2405, %v2401
        %v4094 = vpack.c.b16 %v2406, %v2402
        %v4095 = vpack.c.b16 %v2411, %v2407
        %v4096 = vpack.c.b16 %v2412, %v2408
        %v4097 = vpack.c.b16 %v2413, %v2409
        %v4098 = vpack.c.b16 %v2414, %v2410
        %v4099 = vpack.c.b16 %v2419, %v2415
        %v4100 = vpack.c.b16 %v2420, %v2416
        %v4101 = vpack.c.b16 %v2421, %v2417
        %v4102 = vpack.c.b16 %v2422, %v2418
        %v4103 = vpack.c.b16 %v2427, %v2423
        %v4104 = vpack.c.b16 %v2428, %v2424
        %v4105 = vpack.c.b16 %v2429, %v2425
        %v4106 = vpack.c.b16 %v2430, %v2426
        %v4107 = vpack.c.b16 %v2435, %v2431
        %v4108 = vpack.c.b16 %v2436, %v2432
        %v4109 = vpack.c.b16 %v2437, %v2433
        %v4110 = vpack.c.b16 %v2438, %v2434
        %v4111 = vpack.c.b16 %v2443, %v2439
        %v4112 = vpack.c.b16 %v2444, %v2440
        %v4113 = vpack.c.b16 %v2445, %v2441
        %v4114 = vpack.c.b16 %v2446, %v2442
        %v4115 = vpack.c.b16 %v2451, %v2447
        %v4116 = vpack.c.b16 %v2452, %v2448
        %v4117 = vpack.c.b16 %v2453, %v2449
        %v4118 = vpack.c.b16 %v2454, %v2450
        %v4119 = vpack.c.b16 %v2459, %v2455
        %v4120 = vpack.c.b16 %v2460, %v2456
        %v4121 = vpack.c.b16 %v2461, %v2457
        %v4122 = vpack.c.b16 %v2462, %v2458
        %v4123 = vpack.c.b16 %v2467, %v2463
        %v4124 = vpack.c.b16 %v2468, %v2464
        %v4125 = vpack.c.b16 %v2469, %v2465
        %v4126 = vpack.c.b16 %v2470, %v2466
        %v4127 = vpack.c.b16 %v2475, %v2471
        %v4128 = vpack.c.b16 %v2476, %v2472
        %v4129 = vpack.c.b16 %v2477, %v2473
        %v4130 = vpack.c.b16 %v2478, %v2474
        %v4131 = vpack.c.b16 %v2483, %v2479
        %v4132 = vpack.c.b16 %v2484, %v2480
        %v4133 = vpack.c.b16 %v2485, %v2481
        %v4134 = vpack.c.b16 %v2486, %v2482
        %v4135 = vpack.c.b16 %v2491, %v2487
        %v4136 = vpack.c.b16 %v2492, %v2488
        %v4137 = vpack.c.b16 %v2493, %v2489
        %v4138 = vpack.c.b16 %v2494, %v2490
        %v4139 = vpack.c.b16 %v2499, %v2495
        %v4140 = vpack.c.b16 %v2500, %v2496
        %v4141 = vpack.c.b16 %v2501, %v2497
        %v4142 = vpack.c.b16 %v2502, %v2498
        %v4143 = vpack.c.b16 %v2507, %v2503
        %v4144 = vpack.c.b16 %v2508, %v2504
        %v4145 = vpack.c.b16 %v2509, %v2505
        %v4146 = vpack.c.b16 %v2510, %v2506
        %v4147 = vpack.c.b16 %v2515, %v2511
        %v4148 = vpack.c.b16 %v2516, %v2512
        %v4149 = vpack.c.b16 %v2517, %v2513
        %v4150 = vpack.c.b16 %v2518, %v2514
        %v4151 = vpack.c.b16 %v2523, %v2519
        %v4152 = vpack.c.b16 %v2524, %v2520
        %v4153 = vpack.c.b16 %v2525, %v2521
        %v4154 = vpack.c.b16 %v2526, %v2522
        %v4155 = vpack.c.b16 %v2531, %v2527
        %v4156 = vpack.c.b16 %v2532, %v2528
        %v4157 = vpack.c.b16 %v2533, %v2529
        %v4158 = vpack.c.b16 %v2534, %v2530
        %v4159 = vpack.c.b16 %v2539, %v2535
        %v4160 = vpack.c.b16 %v2540, %v2536
        %v4161 = vpack.c.b16 %v2541, %v2537
        %v4162 = vpack.c.b16 %v2542, %v2538
        %v4163 = vpack.c.b16 %v2547, %v2543
        %v4164 = vpack.c.b16 %v2548, %v2544
        %v4165 = vpack.c.b16 %v2549, %v2545
        %v4166 = vpack.c.b16 %v2550, %v2546
        %v4167 = vpack.c.b16 %v2555, %v2551
        %v4168 = vpack.c.b16 %v2556, %v2552
        %v4169 = vpack.c.b16 %v2557, %v2553
        %v4170 = vpack.c.b16 %v2558, %v2554
        %v4171 = vpack.c.b16 %v2563, %v2559
        %v4172 = vpack.c.b16 %v2564, %v2560
        %v4173 = vpack.c.b16 %v2565, %v2561
        %v4174 = vpack.c.b16 %v2566, %v2562
        %v4175 = vpack.c.b16 %v2571, %v2567
        %v4176 = vpack.c.b16 %v2572, %v2568
        %v4177 = vpack.c.b16 %v2573, %v2569
        %v4178 = vpack.c.b16 %v2574, %v2570
        %v4179 = vpack.c.b16 %v2579, %v2575
        %v4180 = vpack.c.b16 %v2580, %v2576
        %v4181 = vpack.c.b16 %v2581, %v2577
        %v4182 = vpack.c.b16 %v2582, %v2578
        %v4183 = vpack.c.b16 %v2587, %v2583
        %v4184 = vpack.c.b16 %v2588, %v2584
        %v4185 = vpack.c.b16 %v2589, %v2585
        %v4186 = vpack.c.b16 %v2590, %v2586
        %v4187 = vpack.c.b16 %v2595, %v2591
        %v4188 = vpack.c.b16 %v2596, %v2592
        %v4189 = vpack.c.b16 %v2597, %v2593
        %v4190 = vpack.c.b16 %v2598, %v2594
        %v4191 = vpack.c.b16 %v2603, %v2599
        %v4192 = vpack.c.b16 %v2604, %v2600
        %v4193 = vpack.c.b16 %v2605, %v2601
        %v4194 = vpack.c.b16 %v2606, %v2602
        %v4195 = vpack.c.b16 %v2611, %v2607
        %v4196 = vpack.c.b16 %v2612, %v2608
        %v4197 = vpack.c.b16 %v2613, %v2609
        %v4198 = vpack.c.b16 %v2614, %v2610
        %v4199 = vpack.c.b16 %v2619, %v2615
        %v4200 = vpack.c.b16 %v2620, %v2616
        %v4201 = vpack.c.b16 %v2621, %v2617
        %v4202 = vpack.c.b16 %v2622, %v2618
        %v4203 = vpack.c.b16 %v2627, %v2623
        %v4204 = vpack.c.b16 %v2628, %v2624
        %v4205 = vpack.c.b16 %v2629, %v2625
        %v4206 = vpack.c.b16 %v2630, %v2626
        %v4207 = vpack.c.b16 %v2635, %v2631
        %v4208 = vpack.c.b16 %v2636, %v2632
        %v4209 = vpack.c.b16 %v2637, %v2633
        %v4210 = vpack.c.b16 %v2638, %v2634
        %v4211 = vpack.c.b16 %v2643, %v2639
        %v4212 = vpack.c.b16 %v2644, %v2640
        %v4213 = vpack.c.b16 %v2645, %v2641
        %v4214 = vpack.c.b16 %v2646, %v2642
        %v4215 = vpack.c.b16 %v2651, %v2647
        %v4216 = vpack.c.b16 %v2652, %v2648
        %v4217 = vpack.c.b16 %v2653, %v2649
        %v4218 = vpack.c.b16 %v2654, %v2650
        %v4219 = vpack.c.b16 %v2659, %v2655
        %v4220 = vpack.c.b16 %v2660, %v2656
        %v4221 = vpack.c.b16 %v2661, %v2657
        %v4222 = vpack.c.b16 %v2662, %v2658
        %v4223 = vpack.c.b16 %v2667, %v2663
        %v4224 = vpack.c.b16 %v2668, %v2664
        %v4225 = vpack.c.b16 %v2669, %v2665
        %v4226 = vpack.c.b16 %v2670, %v2666
        %v4227 = vpack.c.b16 %v2675, %v2671
        %v4228 = vpack.c.b16 %v2676, %v2672
        %v4229 = vpack.c.b16 %v2677, %v2673
        %v4230 = vpack.c.b16 %v2678, %v2674
        %v4231 = vpack.c.b16 %v2683, %v2679
        %v4232 = vpack.c.b16 %v2684, %v2680
        %v4233 = vpack.c.b16 %v2685, %v2681
        %v4234 = vpack.c.b16 %v2686, %v2682
        %v4235 = vpack.c.b16 %v2691, %v2687
        %v4236 = vpack.c.b16 %v2692, %v2688
        %v4237 = vpack.c.b16 %v2693, %v2689
        %v4238 = vpack.c.b16 %v2694, %v2690
        %v4239 = vpack.c.b16 %v2699, %v2695
        %v4240 = vpack.c.b16 %v2700, %v2696
        %v4241 = vpack.c.b16 %v2701, %v2697
        %v4242 = vpack.c.b16 %v2702, %v2698
        %v4243 = vpack.c.b16 %v2707, %v2703
        %v4244 = vpack.c.b16 %v2708, %v2704
        %v4245 = vpack.c.b16 %v2709, %v2705
        %v4246 = vpack.c.b16 %v2710, %v2706
        %v4247 = vpack.c.b16 %v2715, %v2711
        %v4248 = vpack.c.b16 %v2716, %v2712
        %v4249 = vpack.c.b16 %v2717, %v2713
        %v4250 = vpack.c.b16 %v2718, %v2714
        %v4251 = vpack.c.b16 %v2723, %v2719
        %v4252 = vpack.c.b16 %v2724, %v2720
        %v4253 = vpack.c.b16 %v2725, %v2721
        %v4254 = vpack.c.b16 %v2726, %v2722
        %v4255 = vpack.c.b16 %v2731, %v2727
        %v4256 = vpack.c.b16 %v2732, %v2728
        %v4257 = vpack.c.b16 %v2733, %v2729
        %v4258 = vpack.c.b16 %v2734, %v2730
        %v4259 = vpack.c.b16 %v2739, %v2735
        %v4260 = vpack.c.b16 %v2740, %v2736
        %v4261 = vpack.c.b16 %v2741, %v2737
        %v4262 = vpack.c.b16 %v2742, %v2738
        %v4263 = vpack.c.b16 %v2747, %v2743
        %v4264 = vpack.c.b16 %v2748, %v2744
        %v4265 = vpack.c.b16 %v2749, %v2745
        %v4266 = vpack.c.b16 %v2750, %v2746
        %v4267 = vpack.c.b16 %v2755, %v2751
        %v4268 = vpack.c.b16 %v2756, %v2752
        %v4269 = vpack.c.b16 %v2757, %v2753
        %v4270 = vpack.c.b16 %v2758, %v2754
        %v4271 = vpack.c.b16 %v2763, %v2759
        %v4272 = vpack.c.b16 %v2764, %v2760
        %v4273 = vpack.c.b16 %v2765, %v2761
        %v4274 = vpack.c.b16 %v2766, %v2762
        %v4275 = vpack.c.b16 %v2771, %v2767
        %v4276 = vpack.c.b16 %v2772, %v2768
        %v4277 = vpack.c.b16 %v2773, %v2769
        %v4278 = vpack.c.b16 %v2774, %v2770
        %v4279 = vpack.c.b16 %v2779, %v2775
        %v4280 = vpack.c.b16 %v2780, %v2776
        %v4281 = vpack.c.b16 %v2781, %v2777
        %v4282 = vpack.c.b16 %v2782, %v2778
        %v4283 = vpack.c.b16 %v2787, %v2783
        %v4284 = vpack.c.b16 %v2788, %v2784
        %v4285 = vpack.c.b16 %v2789, %v2785
        %v4286 = vpack.c.b16 %v2790, %v2786
        %v4287 = vpack.c.b16 %v2795, %v2791
        %v4288 = vpack.c.b16 %v2796, %v2792
        %v4289 = vpack.c.b16 %v2797, %v2793
        %v4290 = vpack.c.b16 %v2798, %v2794
        %v4291 = vpack.c.b16 %v2803, %v2799
        %v4292 = vpack.c.b16 %v2804, %v2800
        %v4293 = vpack.c.b16 %v2805, %v2801
        %v4294 = vpack.c.b16 %v2806, %v2802
        %v4295 = vpack.c.b16 %v2811, %v2807
        %v4296 = vpack.c.b16 %v2812, %v2808
        %v4297 = vpack.c.b16 %v2813, %v2809
        %v4298 = vpack.c.b16 %v2814, %v2810
        %v4299 = vpack.c.b16 %v2819, %v2815
        %v4300 = vpack.c.b16 %v2820, %v2816
        %v4301 = vpack.c.b16 %v2821, %v2817
        %v4302 = vpack.c.b16 %v2822, %v2818
        %v4303 = vpack.c.b16 %v2827, %v2823
        %v4304 = vpack.c.b16 %v2828, %v2824
        %v4305 = vpack.c.b16 %v2829, %v2825
        %v4306 = vpack.c.b16 %v2830, %v2826
        %v4307 = vpack.c.b16 %v2835, %v2831
        %v4308 = vpack.c.b16 %v2836, %v2832
        %v4309 = vpack.c.b16 %v2837, %v2833
        %v4310 = vpack.c.b16 %v2838, %v2834
        %v4311 = vpack.c.b16 %v2843, %v2839
        %v4312 = vpack.c.b16 %v2844, %v2840
        %v4313 = vpack.c.b16 %v2845, %v2841
        %v4314 = vpack.c.b16 %v2846, %v2842
        %v4315 = vpack.c.b16 %v2851, %v2847
        %v4316 = vpack.c.b16 %v2852, %v2848
        %v4317 = vpack.c.b16 %v2853, %v2849
        %v4318 = vpack.c.b16 %v2854, %v2850
        %v4319 = vpack.c.b16 %v2859, %v2855
        %v4320 = vpack.c.b16 %v2860, %v2856
        %v4321 = vpack.c.b16 %v2861, %v2857
        %v4322 = vpack.c.b16 %v2862, %v2858
        %v4323 = vpack.c.b16 %v2867, %v2863
        %v4324 = vpack.c.b16 %v2868, %v2864
        %v4325 = vpack.c.b16 %v2869, %v2865
        %v4326 = vpack.c.b16 %v2870, %v2866
        %v4327 = vpack.c.b16 %v2875, %v2871
        %v4328 = vpack.c.b16 %v2876, %v2872
        %v4329 = vpack.c.b16 %v2877, %v2873
        %v4330 = vpack.c.b16 %v2878, %v2874
        %v4331 = vpack.c.b16 %v2883, %v2879
        %v4332 = vpack.c.b16 %v2884, %v2880
        %v4333 = vpack.c.b16 %v2885, %v2881
        %v4334 = vpack.c.b16 %v2886, %v2882
        %v4335 = vpack.c.b16 %v2891, %v2887
        %v4336 = vpack.c.b16 %v2892, %v2888
        %v4337 = vpack.c.b16 %v2893, %v2889
        %v4338 = vpack.c.b16 %v2894, %v2890
        %v4339 = vpack.c.b16 %v2899, %v2895
        %v4340 = vpack.c.b16 %v2900, %v2896
        %v4341 = vpack.c.b16 %v2901, %v2897
        %v4342 = vpack.c.b16 %v2902, %v2898
        %v4343 = vpack.c.b16 %v2907, %v2903
        %v4344 = vpack.c.b16 %v2908, %v2904
        %v4345 = vpack.c.b16 %v2909, %v2905
        %v4346 = vpack.c.b16 %v2910, %v2906
        %v4347 = vpack.c.b16 %v2915, %v2911
        %v4348 = vpack.c.b16 %v2916, %v2912
        %v4349 = vpack.c.b16 %v2917, %v2913
        %v4350 = vpack.c.b16 %v2918, %v2914
        %v4351 = vpack.c.b16 %v2923, %v2919
        %v4352 = vpack.c.b16 %v2924, %v2920
        %v4353 = vpack.c.b16 %v2925, %v2921
        %v4354 = vpack.c.b16 %v2926, %v2922
        %v4355 = vpack.c.b16 %v2931, %v2927
        %v4356 = vpack.c.b16 %v2932, %v2928
        %v4357 = vpack.c.b16 %v2933, %v2929
        %v4358 = vpack.c.b16 %v2934, %v2930
        %v4359 = vpack.c.b16 %v2939, %v2935
        %v4360 = vpack.c.b16 %v2940, %v2936
        %v4361 = vpack.c.b16 %v2941, %v2937
        %v4362 = vpack.c.b16 %v2942, %v2938
        %v4363 = vpack.c.b16 %v2947, %v2943
        %v4364 = vpack.c.b16 %v2948, %v2944
        %v4365 = vpack.c.b16 %v2949, %v2945
        %v4366 = vpack.c.b16 %v2950, %v2946
        %v4367 = vpack.c.b16 %v2955, %v2951
        %v4368 = vpack.c.b16 %v2956, %v2952
        %v4369 = vpack.c.b16 %v2957, %v2953
        %v4370 = vpack.c.b16 %v2958, %v2954
        %v4371 = vpack.c.b16 %v2963, %v2959
        %v4372 = vpack.c.b16 %v2964, %v2960
        %v4373 = vpack.c.b16 %v2965, %v2961
        %v4374 = vpack.c.b16 %v2966, %v2962
        %v4375 = vpack.c.b16 %v2971, %v2967
        %v4376 = vpack.c.b16 %v2972, %v2968
        %v4377 = vpack.c.b16 %v2973, %v2969
        %v4378 = vpack.c.b16 %v2974, %v2970
        %v4379 = vpack.c.b16 %v2979, %v2975
        %v4380 = vpack.c.b16 %v2980, %v2976
        %v4381 = vpack.c.b16 %v2981, %v2977
        %v4382 = vpack.c.b16 %v2982, %v2978
        %v4383 = vpack.c.b16 %v2987, %v2983
        %v4384 = vpack.c.b16 %v2988, %v2984
        %v4385 = vpack.c.b16 %v2989, %v2985
        %v4386 = vpack.c.b16 %v2990, %v2986
        %v4387 = vpack.c.b16 %v2995, %v2991
        %v4388 = vpack.c.b16 %v2996, %v2992
        %v4389 = vpack.c.b16 %v2997, %v2993
        %v4390 = vpack.c.b16 %v2998, %v2994
        %v4391 = vpack.c.b16 %v3003, %v2999
        %v4392 = vpack.c.b16 %v3004, %v3000
        %v4393 = vpack.c.b16 %v3005, %v3001
        %v4394 = vpack.c.b16 %v3006, %v3002
        %v4395 = vpack.c.b16 %v3011, %v3007
        %v4396 = vpack.c.b16 %v3012, %v3008
        %v4397 = vpack.c.b16 %v3013, %v3009
        %v4398 = vpack.c.b16 %v3014, %v3010
        %v4399 = vpack.c.b16 %v3019, %v3015
        %v4400 = vpack.c.b16 %v3020, %v3016
        %v4401 = vpack.c.b16 %v3021, %v3017
        %v4402 = vpack.c.b16 %v3022, %v3018
        %v4403 = vpack.c.b16 %v3027, %v3023
        %v4404 = vpack.c.b16 %v3028, %v3024
        %v4405 = vpack.c.b16 %v3029, %v3025
        %v4406 = vpack.c.b16 %v3030, %v3026
        %v4407 = vpack.c.b16 %v3035, %v3031
        %v4408 = vpack.c.b16 %v3036, %v3032
        %v4409 = vpack.c.b16 %v3037, %v3033
        %v4410 = vpack.c.b16 %v3038, %v3034
        %v4411 = vpack.c.b16 %v3043, %v3039
        %v4412 = vpack.c.b16 %v3044, %v3040
        %v4413 = vpack.c.b16 %v3045, %v3041
        %v4414 = vpack.c.b16 %v3046, %v3042
        %v4415 = vpack.c.b16 %v3051, %v3047
        %v4416 = vpack.c.b16 %v3052, %v3048
        %v4417 = vpack.c.b16 %v3053, %v3049
        %v4418 = vpack.c.b16 %v3054, %v3050
        %v4419 = vpack.c.b16 %v3059, %v3055
        %v4420 = vpack.c.b16 %v3060, %v3056
        %v4421 = vpack.c.b16 %v3061, %v3057
        %v4422 = vpack.c.b16 %v3062, %v3058
        %v4423 = vpack.c.b16 %v3067, %v3063
        %v4424 = vpack.c.b16 %v3068, %v3064
        %v4425 = vpack.c.b16 %v3069, %v3065
        %v4426 = vpack.c.b16 %v3070, %v3066
        %v4427 = vpack.c.b16 %v3075, %v3071
        %v4428 = vpack.c.b16 %v3076, %v3072
        %v4429 = vpack.c.b16 %v3077, %v3073
        %v4430 = vpack.c.b16 %v3078, %v3074
        %v4431 = vpack.c.b16 %v3083, %v3079
        %v4432 = vpack.c.b16 %v3084, %v3080
        %v4433 = vpack.c.b16 %v3085, %v3081
        %v4434 = vpack.c.b16 %v3086, %v3082
        %v4435 = vpack.c.b16 %v3091, %v3087
        %v4436 = vpack.c.b16 %v3092, %v3088
        %v4437 = vpack.c.b16 %v3093, %v3089
        %v4438 = vpack.c.b16 %v3094, %v3090
        %v4439 = vpack.c.b16 %v3099, %v3095
        %v4440 = vpack.c.b16 %v3100, %v3096
        %v4441 = vpack.c.b16 %v3101, %v3097
        %v4442 = vpack.c.b16 %v3102, %v3098
        %v4443 = vpack.c.b16 %v3107, %v3103
        %v4444 = vpack.c.b16 %v3108, %v3104
        %v4445 = vpack.c.b16 %v3109, %v3105
        %v4446 = vpack.c.b16 %v3110, %v3106
        %v4447 = vpack.c.b16 %v3115, %v3111
        %v4448 = vpack.c.b16 %v3116, %v3112
        %v4449 = vpack.c.b16 %v3117, %v3113
        %v4450 = vpack.c.b16 %v3118, %v3114
        %v4451 = vpack.c.b16 %v3123, %v3119
        %v4452 = vpack.c.b16 %v3124, %v3120
        %v4453 = vpack.c.b16 %v3125, %v3121
        %v4454 = vpack.c.b16 %v3126, %v3122
        %v4455 = vpack.c.b16 %v3131, %v3127
        %v4456 = vpack.c.b16 %v3132, %v3128
        %v4457 = vpack.c.b16 %v3133, %v3129
        %v4458 = vpack.c.b16 %v3134, %v3130
        %v4459 = vpack.c.b16 %v3139, %v3135
        %v4460 = vpack.c.b16 %v3140, %v3136
        %v4461 = vpack.c.b16 %v3141, %v3137
        %v4462 = vpack.c.b16 %v3142, %v3138
        %v4463 = vpack.c.b16 %v3147, %v3143
        %v4464 = vpack.c.b16 %v3148, %v3144
        %v4465 = vpack.c.b16 %v3149, %v3145
        %v4466 = vpack.c.b16 %v3150, %v3146
        %v4467 = vpack.c.b16 %v3155, %v3151
        %v4468 = vpack.c.b16 %v3156, %v3152
        %v4469 = vpack.c.b16 %v3157, %v3153
        %v4470 = vpack.c.b16 %v3158, %v3154
        %v4471 = vpack.c.b16 %v3163, %v3159
        %v4472 = vpack.c.b16 %v3164, %v3160
        %v4473 = vpack.c.b16 %v3165, %v3161
        %v4474 = vpack.c.b16 %v3166, %v3162
        %v4475 = vpack.c.b16 %v3171, %v3167
        %v4476 = vpack.c.b16 %v3172, %v3168
        %v4477 = vpack.c.b16 %v3173, %v3169
        %v4478 = vpack.c.b16 %v3174, %v3170
        %v4479 = vpack.c.b16 %v3179, %v3175
        %v4480 = vpack.c.b16 %v3180, %v3176
        %v4481 = vpack.c.b16 %v3181, %v3177
        %v4482 = vpack.c.b16 %v3182, %v3178
        %v4483 = vpack.c.b16 %v3187, %v3183
        %v4484 = vpack.c.b16 %v3188, %v3184
        %v4485 = vpack.c.b16 %v3189, %v3185
        %v4486 = vpack.c.b16 %v3190, %v3186
        %v4487 = vpack.c.b16 %v3195, %v3191
        %v4488 = vpack.c.b16 %v3196, %v3192
        %v4489 = vpack.c.b16 %v3197, %v3193
        %v4490 = vpack.c.b16 %v3198, %v3194
        %v4491 = vpack.c.b16 %v3203, %v3199
        %v4492 = vpack.c.b16 %v3204, %v3200
        %v4493 = vpack.c.b16 %v3205, %v3201
        %v4494 = vpack.c.b16 %v3206, %v3202
        %v4495 = vpack.c.b16 %v3211, %v3207
        %v4496 = vpack.c.b16 %v3212, %v3208
        %v4497 = vpack.c.b16 %v3213, %v3209
        %v4498 = vpack.c.b16 %v3214, %v3210
        %v4499 = vpack.c.b16 %v3219, %v3215
        %v4500 = vpack.c.b16 %v3220, %v3216
        %v4501 = vpack.c.b16 %v3221, %v3217
        %v4502 = vpack.c.b16 %v3222, %v3218
        %v4503 = vpack.c.b16 %v3227, %v3223
        %v4504 = vpack.c.b16 %v3228, %v3224
        %v4505 = vpack.c.b16 %v3229, %v3225
        %v4506 = vpack.c.b16 %v3230, %v3226
        %v4507 = vpack.c.b16 %v3235, %v3231
        %v4508 = vpack.c.b16 %v3236, %v3232
        %v4509 = vpack.c.b16 %v3237, %v3233
        %v4510 = vpack.c.b16 %v3238, %v3234
        %v4511 = vpack.c.b16 %v3243, %v3239
        %v4512 = vpack.c.b16 %v3244, %v3240
        %v4513 = vpack.c.b16 %v3245, %v3241
        %v4514 = vpack.c.b16 %v3246, %v3242
        %v4515 = vpack.c.b16 %v3251, %v3247
        %v4516 = vpack.c.b16 %v3252, %v3248
        %v4517 = vpack.c.b16 %v3253, %v3249
        %v4518 = vpack.c.b16 %v3254, %v3250
        %v4519 = vpack.c.b16 %v3259, %v3255
        %v4520 = vpack.c.b16 %v3260, %v3256
        %v4521 = vpack.c.b16 %v3261, %v3257
        %v4522 = vpack.c.b16 %v3262, %v3258
        %v4523 = vpack.c.b16 %v3267, %v3263
        %v4524 = vpack.c.b16 %v3268, %v3264
        %v4525 = vpack.c.b16 %v3269, %v3265
        %v4526 = vpack.c.b16 %v3270, %v3266
        %v4527 = vpack.c.b16 %v3275, %v3271
        %v4528 = vpack.c.b16 %v3276, %v3272
        %v4529 = vpack.c.b16 %v3277, %v3273
        %v4530 = vpack.c.b16 %v3278, %v3274
        %v4531 = vpack.c.b16 %v3283, %v3279
        %v4532 = vpack.c.b16 %v3284, %v3280
        %v4533 = vpack.c.b16 %v3285, %v3281
        %v4534 = vpack.c.b16 %v3286, %v3282
        %v4535 = vpack.c.b16 %v3291, %v3287
        %v4536 = vpack.c.b16 %v3292, %v3288
        %v4537 = vpack.c.b16 %v3293, %v3289
        %v4538 = vpack.c.b16 %v3294, %v3290
        %v4539 = vpack.c.b16 %v3299, %v3295
        %v4540 = vpack.c.b16 %v3300, %v3296
        %v4541 = vpack.c.b16 %v3301, %v3297
        %v4542 = vpack.c.b16 %v3302, %v3298
        %v4543 = vpack.c.b16 %v3307, %v3303
        %v4544 = vpack.c.b16 %v3308, %v3304
        %v4545 = vpack.c.b16 %v3309, %v3305
        %v4546 = vpack.c.b16 %v3310, %v3306
        %v4547 = vpack.c.b16 %v3315, %v3311
        %v4548 = vpack.c.b16 %v3316, %v3312
        %v4549 = vpack.c.b16 %v3317, %v3313
        %v4550 = vpack.c.b16 %v3318, %v3314
        %v4551 = vpack.c.b16 %v3323, %v3319
        %v4552 = vpack.c.b16 %v3324, %v3320
        %v4553 = vpack.c.b16 %v3325, %v3321
        %v4554 = vpack.c.b16 %v3326, %v3322
        %v4555 = vpack.c.b16 %v3331, %v3327
        %v4556 = vpack.c.b16 %v3332, %v3328
        %v4557 = vpack.c.b16 %v3333, %v3329
        %v4558 = vpack.c.b16 %v3334, %v3330
        %v4559 = vpack.c.b16 %v3339, %v3335
        %v4560 = vpack.c.b16 %v3340, %v3336
        %v4561 = vpack.c.b16 %v3341, %v3337
        %v4562 = vpack.c.b16 %v3342, %v3338
        %v4563 = vpack.c.b16 %v3347, %v3343
        %v4564 = vpack.c.b16 %v3348, %v3344
        %v4565 = vpack.c.b16 %v3349, %v3345
        %v4566 = vpack.c.b16 %v3350, %v3346
        %v4567 = vpack.c.b16 %v3355, %v3351
        %v4568 = vpack.c.b16 %v3356, %v3352
        %v4569 = vpack.c.b16 %v3357, %v3353
        %v4570 = vpack.c.b16 %v3358, %v3354
        %v4571 = vpack.c.b16 %v3363, %v3359
        %v4572 = vpack.c.b16 %v3364, %v3360
        %v4573 = vpack.c.b16 %v3365, %v3361
        %v4574 = vpack.c.b16 %v3366, %v3362
        %v4575 = vpack.c.b16 %v3371, %v3367
        %v4576 = vpack.c.b16 %v3372, %v3368
        %v4577 = vpack.c.b16 %v3373, %v3369
        %v4578 = vpack.c.b16 %v3374, %v3370
        %v4579 = vpack.c.b16 %v3379, %v3375
        %v4580 = vpack.c.b16 %v3380, %v3376
        %v4581 = vpack.c.b16 %v3381, %v3377
        %v4582 = vpack.c.b16 %v3382, %v3378
        %v4583 = vpack.c.b16 %v3387, %v3383
        %v4584 = vpack.c.b16 %v3388, %v3384
        %v4585 = vpack.c.b16 %v3389, %v3385
        %v4586 = vpack.c.b16 %v3390, %v3386
        %v4587 = vpack.c.b16 %v3395, %v3391
        %v4588 = vpack.c.b16 %v3396, %v3392
        %v4589 = vpack.c.b16 %v3397, %v3393
        %v4590 = vpack.c.b16 %v3398, %v3394
        %v4591 = vpack.c.b16 %v3403, %v3399
        %v4592 = vpack.c.b16 %v3404, %v3400
        %v4593 = vpack.c.b16 %v3405, %v3401
        %v4594 = vpack.c.b16 %v3406, %v3402
        %v4595 = vpack.c.b16 %v3411, %v3407
        %v4596 = vpack.c.b16 %v3412, %v3408
        %v4597 = vpack.c.b16 %v3413, %v3409
        %v4598 = vpack.c.b16 %v3414, %v3410
        %v4599 = vpack.c.b16 %v3419, %v3415
        %v4600 = vpack.c.b16 %v3420, %v3416
        %v4601 = vpack.c.b16 %v3421, %v3417
        %v4602 = vpack.c.b16 %v3422, %v3418
        %v4603 = vpack.c.b16 %v3427, %v3423
        %v4604 = vpack.c.b16 %v3428, %v3424
        %v4605 = vpack.c.b16 %v3429, %v3425
        %v4606 = vpack.c.b16 %v3430, %v3426
        %v4607 = vpack.c.b16 %v3435, %v3431
        %v4608 = vpack.c.b16 %v3436, %v3432
        %v4609 = vpack.c.b16 %v3437, %v3433
        %v4610 = vpack.c.b16 %v3438, %v3434
        %v4611 = vpack.c.b16 %v3443, %v3439
        %v4612 = vpack.c.b16 %v3444, %v3440
        %v4613 = vpack.c.b16 %v3445, %v3441
        %v4614 = vpack.c.b16 %v3446, %v3442
        %v4615 = vpack.c.b16 %v3451, %v3447
        %v4616 = vpack.c.b16 %v3452, %v3448
        %v4617 = vpack.c.b16 %v3453, %v3449
        %v4618 = vpack.c.b16 %v3454, %v3450
        %v4619 = vpack.c.b16 %v3459, %v3455
        %v4620 = vpack.c.b16 %v3460, %v3456
        %v4621 = vpack.c.b16 %v3461, %v3457
        %v4622 = vpack.c.b16 %v3462, %v3458
        %v4623 = vpack.c.b16 %v3467, %v3463
        %v4624 = vpack.c.b16 %v3468, %v3464
        %v4625 = vpack.c.b16 %v3469, %v3465
        %v4626 = vpack.c.b16 %v3470, %v3466
        %v4627 = vpack.c.b16 %v3475, %v3471
        %v4628 = vpack.c.b16 %v3476, %v3472
        %v4629 = vpack.c.b16 %v3477, %v3473
        %v4630 = vpack.c.b16 %v3478, %v3474
        %v4631 = vpack.c.b16 %v3483, %v3479
        %v4632 = vpack.c.b16 %v3484, %v3480
        %v4633 = vpack.c.b16 %v3485, %v3481
        %v4634 = vpack.c.b16 %v3486, %v3482
        %v4635 = vpack.c.b16 %v3491, %v3487
        %v4636 = vpack.c.b16 %v3492, %v3488
        %v4637 = vpack.c.b16 %v3493, %v3489
        %v4638 = vpack.c.b16 %v3494, %v3490
        %v4639 = vpack.c.b16 %v3499, %v3495
        %v4640 = vpack.c.b16 %v3500, %v3496
        %v4641 = vpack.c.b16 %v3501, %v3497
        %v4642 = vpack.c.b16 %v3502, %v3498
        %v4643 = vpack.c.b16 %v3507, %v3503
        %v4644 = vpack.c.b16 %v3508, %v3504
        %v4645 = vpack.c.b16 %v3509, %v3505
        %v4646 = vpack.c.b16 %v3510, %v3506
        %v4647 = vpack.c.b16 %v3515, %v3511
        %v4648 = vpack.c.b16 %v3516, %v3512
        %v4649 = vpack.c.b16 %v3517, %v3513
        %v4650 = vpack.c.b16 %v3518, %v3514
        %v4651 = vpack.c.b16 %v3523, %v3519
        %v4652 = vpack.c.b16 %v3524, %v3520
        %v4653 = vpack.c.b16 %v3525, %v3521
        %v4654 = vpack.c.b16 %v3526, %v3522
        %v4655 = vpack.c.b16 %v3531, %v3527
        %v4656 = vpack.c.b16 %v3532, %v3528
        %v4657 = vpack.c.b16 %v3533, %v3529
        %v4658 = vpack.c.b16 %v3534, %v3530
        %v4659 = vpack.c.b16 %v3539, %v3535
        %v4660 = vpack.c.b16 %v3540, %v3536
        %v4661 = vpack.c.b16 %v3541, %v3537
        %v4662 = vpack.c.b16 %v3542, %v3538
        %v4663 = vpack.c.b16 %v3547, %v3543
        %v4664 = vpack.c.b16 %v3548, %v3544
        %v4665 = vpack.c.b16 %v3549, %v3545
        %v4666 = vpack.c.b16 %v3550, %v3546
        %v4667 = vpack.c.b16 %v3555, %v3551
        %v4668 = vpack.c.b16 %v3556, %v3552
        %v4669 = vpack.c.b16 %v3557, %v3553
        %v4670 = vpack.c.b16 %v3558, %v3554
        %v4671 = vpack.c.b16 %v3563, %v3559
        %v4672 = vpack.c.b16 %v3564, %v3560
        %v4673 = vpack.c.b16 %v3565, %v3561
        %v4674 = vpack.c.b16 %v3566, %v3562
        %v4675 = vpack.c.b16 %v3571, %v3567
        %v4676 = vpack.c.b16 %v3572, %v3568
        %v4677 = vpack.c.b16 %v3573, %v3569
        %v4678 = vpack.c.b16 %v3574, %v3570
        %v4679 = vpack.c.b16 %v3579, %v3575
        %v4680 = vpack.c.b16 %v3580, %v3576
        %v4681 = vpack.c.b16 %v3581, %v3577
        %v4682 = vpack.c.b16 %v3582, %v3578
        %v4683 = vpack.c.b16 %v3587, %v3583
        %v4684 = vpack.c.b16 %v3588, %v3584
        %v4685 = vpack.c.b16 %v3589, %v3585
        %v4686 = vpack.c.b16 %v3590, %v3586
        %v4687 = vpack.c.b16 %v3595, %v3591
        %v4688 = vpack.c.b16 %v3596, %v3592
        %v4689 = vpack.c.b16 %v3597, %v3593
        %v4690 = vpack.c.b16 %v3598, %v3594
        %v4691 = vpack.c.b16 %v3603, %v3599
        %v4692 = vpack.c.b16 %v3604, %v3600
        %v4693 = vpack.c.b16 %v3605, %v3601
        %v4694 = vpack.c.b16 %v3606, %v3602
        %v4695 = vpack.c.b16 %v3611, %v3607
        %v4696 = vpack.c.b16 %v3612, %v3608
        %v4697 = vpack.c.b16 %v3613, %v3609
        %v4698 = vpack.c.b16 %v3614, %v3610
        %v4699 = vpack.c.b16 %v3619, %v3615
        %v4700 = vpack.c.b16 %v3620, %v3616
        %v4701 = vpack.c.b16 %v3621, %v3617
        %v4702 = vpack.c.b16 %v3622, %v3618
        %v4703 = vpack.c.b16 %v3627, %v3623
        %v4704 = vpack.c.b16 %v3628, %v3624
        %v4705 = vpack.c.b16 %v3629, %v3625
        %v4706 = vpack.c.b16 %v3630, %v3626
        %v4707 = vpack.c.b16 %v3635, %v3631
        %v4708 = vpack.c.b16 %v3636, %v3632
        %v4709 = vpack.c.b16 %v3637, %v3633
        %v4710 = vpack.c.b16 %v3638, %v3634
        %v4711 = vpack.c.b16 %v3643, %v3639
        %v4712 = vpack.c.b16 %v3644, %v3640
        %v4713 = vpack.c.b16 %v3645, %v3641
        %v4714 = vpack.c.b16 %v3646, %v3642
        %v4715 = vpack.c.b16 %v3651, %v3647
        %v4716 = vpack.c.b16 %v3652, %v3648
        %v4717 = vpack.c.b16 %v3653, %v3649
        %v4718 = vpack.c.b16 %v3654, %v3650
        %v4719 = vpack.c.b16 %v3659, %v3655
        %v4720 = vpack.c.b16 %v3660, %v3656
        %v4721 = vpack.c.b16 %v3661, %v3657
        %v4722 = vpack.c.b16 %v3662, %v3658
        %v4723 = vpack.c.b16 %v3667, %v3663
        %v4724 = vpack.c.b16 %v3668, %v3664
        %v4725 = vpack.c.b16 %v3669, %v3665
        %v4726 = vpack.c.b16 %v3670, %v3666
        %v4727 = vpack.c.b16 %v3675, %v3671
        %v4728 = vpack.c.b16 %v3676, %v3672
        %v4729 = vpack.c.b16 %v3677, %v3673
        %v4730 = vpack.c.b16 %v3678, %v3674
        %v4731 = vpack.c.b16 %v3683, %v3679
        %v4732 = vpack.c.b16 %v3684, %v3680
        %v4733 = vpack.c.b16 %v3685, %v3681
        %v4734 = vpack.c.b16 %v3686, %v3682
        %v4735 = vpack.c.b16 %v3691, %v3687
        %v4736 = vpack.c.b16 %v3692, %v3688
        %v4737 = vpack.c.b16 %v3693, %v3689
        %v4738 = vpack.c.b16 %v3694, %v3690
        %v4739 = vpack.c.b16 %v3699, %v3695
        %v4740 = vpack.c.b16 %v3700, %v3696
        %v4741 = vpack.c.b16 %v3701, %v3697
        %v4742 = vpack.c.b16 %v3702, %v3698
        %v4743 = vpack.c.b16 %v3707, %v3703
        %v4744 = vpack.c.b16 %v3708, %v3704
        %v4745 = vpack.c.b16 %v3709, %v3705
        %v4746 = vpack.c.b16 %v3710, %v3706
        %v4747 = vpack.c.b16 %v3715, %v3711
        %v4748 = vpack.c.b16 %v3716, %v3712
        %v4749 = vpack.c.b16 %v3717, %v3713
        %v4750 = vpack.c.b16 %v3718, %v3714
        %v4751 = vpack.c.b16 %v3723, %v3719
        %v4752 = vpack.c.b16 %v3724, %v3720
        %v4753 = vpack.c.b16 %v3725, %v3721
        %v4754 = vpack.c.b16 %v3726, %v3722
        %v4755 = vpack.c.b16 %v3731, %v3727
        %v4756 = vpack.c.b16 %v3732, %v3728
        %v4757 = vpack.c.b16 %v3733, %v3729
        %v4758 = vpack.c.b16 %v3734, %v3730
        %v4759 = vpack.c.b16 %v3739, %v3735
        %v4760 = vpack.c.b16 %v3740, %v3736
        %v4761 = vpack.c.b16 %v3741, %v3737
        %v4762 = vpack.c.b16 %v3742, %v3738
        %v4763 = vpack.c.b16 %v3747, %v3743
        %v4764 = vpack.c.b16 %v3748, %v3744
        %v4765 = vpack.c.b16 %v3749, %v3745
        %v4766 = vpack.c.b16 %v3750, %v3746
        %v4767 = vpack.c.b16 %v3755, %v3751
        %v4768 = vpack.c.b16 %v3756, %v3752
        %v4769 = vpack.c.b16 %v3757, %v3753
        %v4770 = vpack.c.b16 %v3758, %v3754
        %v4771 = vpack.c.b16 %v3763, %v3759
        %v4772 = vpack.c.b16 %v3764, %v3760
        %v4773 = vpack.c.b16 %v3765, %v3761
        %v4774 = vpack.c.b16 %v3766, %v3762
        %v4775 = vpack.c.b16 %v3771, %v3767
        %v4776 = vpack.c.b16 %v3772, %v3768
        %v4777 = vpack.c.b16 %v3773, %v3769
        %v4778 = vpack.c.b16 %v3774, %v3770
        %v4779 = vpack.c.b16 %v3779, %v3775
        %v4780 = vpack.c.b16 %v3780, %v3776
        %v4781 = vpack.c.b16 %v3781, %v3777
        %v4782 = vpack.c.b16 %v3782, %v3778
        %v4783 = vpack.c.b16 %v3787, %v3783
        %v4784 = vpack.c.b16 %v3788, %v3784
        %v4785 = vpack.c.b16 %v3789, %v3785
        %v4786 = vpack.c.b16 %v3790, %v3786
        %v4787 = vpack.c.b16 %v3795, %v3791
        %v4788 = vpack.c.b16 %v3796, %v3792
        %v4789 = vpack.c.b16 %v3797, %v3793
        %v4790 = vpack.c.b16 %v3798, %v3794
        %v4791 = vpack.c.b16 %v3803, %v3799
        %v4792 = vpack.c.b16 %v3804, %v3800
        %v4793 = vpack.c.b16 %v3805, %v3801
        %v4794 = vpack.c.b16 %v3806, %v3802
        %v4795 = vpack.c.b16 %v3811, %v3807
        %v4796 = vpack.c.b16 %v3812, %v3808
        %v4797 = vpack.c.b16 %v3813, %v3809
        %v4798 = vpack.c.b16 %v3814, %v3810
        %v4799 = vpack.c.b16 %v3819, %v3815
        %v4800 = vpack.c.b16 %v3820, %v3816
        %v4801 = vpack.c.b16 %v3821, %v3817
        %v4802 = vpack.c.b16 %v3822, %v3818
        %v4803 = vpack.c.b16 %v3827, %v3823
        %v4804 = vpack.c.b16 %v3828, %v3824
        %v4805 = vpack.c.b16 %v3829, %v3825
        %v4806 = vpack.c.b16 %v3830, %v3826
        %v4807 = vpack.c.b16 %v3835, %v3831
        %v4808 = vpack.c.b16 %v3836, %v3832
        %v4809 = vpack.c.b16 %v3837, %v3833
        %v4810 = vpack.c.b16 %v3838, %v3834
        %v4811 = vpack.c.b16 %v3843, %v3839
        %v4812 = vpack.c.b16 %v3844, %v3840
        %v4813 = vpack.c.b16 %v3845, %v3841
        %v4814 = vpack.c.b16 %v3846, %v3842
        %v4815 = vpack.c.b16 %v3851, %v3847
        %v4816 = vpack.c.b16 %v3852, %v3848
        %v4817 = vpack.c.b16 %v3853, %v3849
        %v4818 = vpack.c.b16 %v3854, %v3850
        %v4819 = vpack.c.b16 %v3859, %v3855
        %v4820 = vpack.c.b16 %v3860, %v3856
        %v4821 = vpack.c.b16 %v3861, %v3857
        %v4822 = vpack.c.b16 %v3862, %v3858
        %v4823 = vpack.c.b16 %v3867, %v3863
        %v4824 = vpack.c.b16 %v3868, %v3864
        %v4825 = vpack.c.b16 %v3869, %v3865
        %v4826 = vpack.c.b16 %v3870, %v3866
        %v4827 = vpack.c.b16 %v3875, %v3871
        %v4828 = vpack.c.b16 %v3876, %v3872
        %v4829 = vpack.c.b16 %v3877, %v3873
        %v4830 = vpack.c.b16 %v3878, %v3874
        %v4831 = vpack.c.b16 %v3883, %v3879
        %v4832 = vpack.c.b16 %v3884, %v3880
        %v4833 = vpack.c.b16 %v3885, %v3881
        %v4834 = vpack.c.b16 %v3886, %v3882
        %v4835 = vpack.c.b16 %v3891, %v3887
        %v4836 = vpack.c.b16 %v3892, %v3888
        %v4837 = vpack.c.b16 %v3893, %v3889
        %v4838 = vpack.c.b16 %v3894, %v3890
        %v4839 = vpack.c.b16 %v3899, %v3895
        %v4840 = vpack.c.b16 %v3900, %v3896
        %v4841 = vpack.c.b16 %v3901, %v3897
        %v4842 = vpack.c.b16 %v3902, %v3898
        %v4843 = vpack.c.b16 %v3907, %v3903
        %v4844 = vpack.c.b16 %v3908, %v3904
        %v4845 = vpack.c.b16 %v3909, %v3905
        %v4846 = vpack.c.b16 %v3910, %v3906
        %v4847 = vpack.c.b16 %v3915, %v3911
        %v4848 = vpack.c.b16 %v3916, %v3912
        %v4849 = vpack.c.b16 %v3917, %v3913
        %v4850 = vpack.c.b16 %v3918, %v3914
        %v4851 = vpack.c.b16 %v3923, %v3919
        %v4852 = vpack.c.b16 %v3924, %v3920
        %v4853 = vpack.c.b16 %v3925, %v3921
        %v4854 = vpack.c.b16 %v3926, %v3922
        %v4855 = vpack.c.b16 %v3931, %v3927
        %v4856 = vpack.c.b16 %v3932, %v3928
        %v4857 = vpack.c.b16 %v3933, %v3929
        %v4858 = vpack.c.b16 %v3934, %v3930
        %v4859 = vpack.c.b16 %v3939, %v3935
        %v4860 = vpack.c.b16 %v3940, %v3936
        %v4861 = vpack.c.b16 %v3941, %v3937
        %v4862 = vpack.c.b16 %v3942, %v3938
        %v4863 = vpack.c.b16 %v3947, %v3943
        %v4864 = vpack.c.b16 %v3948, %v3944
        %v4865 = vpack.c.b16 %v3949, %v3945
        %v4866 = vpack.c.b16 %v3950, %v3946
        %v4867 = vpack.c.b16 %v3955, %v3951
        %v4868 = vpack.c.b16 %v3956, %v3952
        %v4869 = vpack.c.b16 %v3957, %v3953
        %v4870 = vpack.c.b16 %v3958, %v3954
        %v4871 = vpack.c.b16 %v3963, %v3959
        %v4872 = vpack.c.b16 %v3964, %v3960
        %v4873 = vpack.c.b16 %v3965, %v3961
        %v4874 = vpack.c.b16 %v3966, %v3962
        %v4875 = vpack.c.b16 %v3971, %v3967
        %v4876 = vpack.c.b16 %v3972, %v3968
        %v4877 = vpack.c.b16 %v3973, %v3969
        %v4878 = vpack.c.b16 %v3974, %v3970
        %v4879 = vpack.c.b16 %v3979, %v3975
        %v4880 = vpack.c.b16 %v3980, %v3976
        %v4881 = vpack.c.b16 %v3981, %v3977
        %v4882 = vpack.c.b16 %v3982, %v3978
        %v4883 = vpack.c.b16 %v3987, %v3983
        %v4884 = vpack.c.b16 %v3988, %v3984
        %v4885 = vpack.c.b16 %v3989, %v3985
        %v4886 = vpack.c.b16 %v3990, %v3986
        %5783 = vmatprep.subr.bf16.mxu0 %v4020
        %5784 = vmatpush1.bf16.msra.mxu0 %v4019
        %5785 = vmatprep.subr.bf16.mxu0 %v4016
        %5786 = vmatpush1.bf16.msra.mxu0 %v4015
        %5787 = vmatprep.subr.bf16.mxu0 %v4012
        %5788 = vmatpush1.bf16.msra.mxu0 %v4011
        %5789 = vmatprep.subr.bf16.mxu0 %v4008
        %5790 = vmatpush1.bf16.msra.mxu0 %v4007
        %5791 = vmatprep.subr.bf16.mxu0 %v4004
        %5792 = vmatpush1.bf16.msra.mxu0 %v4003
        %5793 = vmatprep.subr.bf16.mxu0 %v4000
        %5794 = vmatpush1.bf16.msra.mxu0 %v3999
        %5795 = vmatprep.subr.bf16.mxu0 %v3996
        %5796 = vmatpush1.bf16.msra.mxu0 %v3995
        %5797 = vmatprep.subr.bf16.mxu0 %v3992
        %5798 = vmatpush1.bf16.msra.mxu0 %v3991
        %5799 = vmatprep.subr.bf16.mxu0 %v4052
        %5800 = vmatpush2.bf16.msra.mxu0 %v4051
        %5801 = vmatprep.subr.bf16.mxu0 %v4048
        %5802 = vmatpush2.bf16.msra.mxu0 %v4047
        %5803 = vmatprep.subr.bf16.mxu0 %v4044
        %5804 = vmatpush2.bf16.msra.mxu0 %v4043
        %5805 = vmatprep.subr.bf16.mxu0 %v4040
        %5806 = vmatpush2.bf16.msra.mxu0 %v4039
        %5807 = vmatprep.subr.bf16.mxu0 %v4036
        %5808 = vmatpush2.bf16.msra.mxu0 %v4035
        %5809 = vmatprep.subr.bf16.mxu0 %v4032
        %5810 = vmatpush2.bf16.msra.mxu0 %v4031
        %5811 = vmatprep.subr.bf16.mxu0 %v4028
        %5812 = vmatpush2.bf16.msra.mxu0 %v4027
        %5813 = vmatprep.subr.bf16.mxu0 %v4024
        %5814 = vmatpush2.bf16.msra.mxu0 %v4023
        %5815 = vmatprep.mubr.bf16.mxu0 %v1248
        %5816 = vmatmul.mubr.bf16.gmra.mxu0 %v1247
        %v5817 = vpop.f32.mrf.mxu0
        %v5818 = vadd.f32 0.0, %v5817
        %v5819 = vpop.f32.mrf.mxu0
        %v5820 = vadd.f32 0.0, %v5819
        %v5821 = vpop.f32.mrf.mxu0
        %v5822 = vpop.f32.mrf.mxu0
        %5823 = vdwg.mxu0
        %5824 = vmatprep.subr.bf16.mxu0 %v4084
        %5825 = vmatpush1.bf16.msra.mxu0 %v4083
        %5826 = vmatprep.subr.bf16.mxu0 %v4080
        %5827 = vmatpush1.bf16.msra.mxu0 %v4079
        %5828 = vmatprep.subr.bf16.mxu0 %v4076
        %5829 = vmatpush1.bf16.msra.mxu0 %v4075
        %5830 = vmatprep.subr.bf16.mxu0 %v4072
        %5831 = vmatpush1.bf16.msra.mxu0 %v4071
        %5832 = vmatprep.subr.bf16.mxu0 %v4068
        %5833 = vmatpush1.bf16.msra.mxu0 %v4067
        %5834 = vmatprep.subr.bf16.mxu0 %v4064
        %5835 = vmatpush1.bf16.msra.mxu0 %v4063
        %5836 = vmatprep.subr.bf16.mxu0 %v4060
        %5837 = vmatpush1.bf16.msra.mxu0 %v4059
        %5838 = vmatprep.subr.bf16.mxu0 %v4056
        %5839 = vmatpush1.bf16.msra.mxu0 %v4055
        %5840 = vmatprep.subr.bf16.mxu0 %v4116
        %5841 = vmatpush2.bf16.msra.mxu0 %v4115
        %5842 = vmatprep.subr.bf16.mxu0 %v4112
        %5843 = vmatpush2.bf16.msra.mxu0 %v4111
        %5844 = vmatprep.subr.bf16.mxu0 %v4108
        %5845 = vmatpush2.bf16.msra.mxu0 %v4107
        %5846 = vmatprep.subr.bf16.mxu0 %v4104
        %5847 = vmatpush2.bf16.msra.mxu0 %v4103
        %5848 = vmatprep.subr.bf16.mxu0 %v4100
        %5849 = vmatpush2.bf16.msra.mxu0 %v4099
        %5850 = vmatprep.subr.bf16.mxu0 %v4096
        %5851 = vmatpush2.bf16.msra.mxu0 %v4095
        %5852 = vmatprep.subr.bf16.mxu0 %v4092
        %5853 = vmatpush2.bf16.msra.mxu0 %v4091
        %5854 = vmatprep.subr.bf16.mxu0 %v4088
        %5855 = vmatpush2.bf16.msra.mxu0 %v4087
        %5856 = vmatprep.mubr.bf16.mxu0 %v1250
        %5857 = vmatmul.mubr.bf16.gmra.mxu0 %v1249
        %v5858 = vpop.f32.mrf.mxu0
        %v5859 = vadd.f32 %v5818, %v5858
        %v5860 = vpop.f32.mrf.mxu0
        %v5861 = vadd.f32 %v5820, %v5860
        %v5862 = vpop.f32.mrf.mxu0
        %v5863 = vpop.f32.mrf.mxu0
        %5864 = vdwg.mxu0
        %5865 = vmatprep.subr.bf16.mxu0 %v4148
        %5866 = vmatpush1.bf16.msra.mxu0 %v4147
        %5867 = vmatprep.subr.bf16.mxu0 %v4144
        %5868 = vmatpush1.bf16.msra.mxu0 %v4143
        %5869 = vmatprep.subr.bf16.mxu0 %v4140
        %5870 = vmatpush1.bf16.msra.mxu0 %v4139
        %5871 = vmatprep.subr.bf16.mxu0 %v4136
        %5872 = vmatpush1.bf16.msra.mxu0 %v4135
        %5873 = vmatprep.subr.bf16.mxu0 %v4132
        %5874 = vmatpush1.bf16.msra.mxu0 %v4131
        %5875 = vmatprep.subr.bf16.mxu0 %v4128
        %5876 = vmatpush1.bf16.msra.mxu0 %v4127
        %5877 = vmatprep.subr.bf16.mxu0 %v4124
        %5878 = vmatpush1.bf16.msra.mxu0 %v4123
        %5879 = vmatprep.subr.bf16.mxu0 %v4120
        %5880 = vmatpush1.bf16.msra.mxu0 %v4119
        %5881 = vmatprep.subr.bf16.mxu0 %v4180
        %5882 = vmatpush2.bf16.msra.mxu0 %v4179
        %5883 = vmatprep.subr.bf16.mxu0 %v4176
        %5884 = vmatpush2.bf16.msra.mxu0 %v4175
        %5885 = vmatprep.subr.bf16.mxu0 %v4172
        %5886 = vmatpush2.bf16.msra.mxu0 %v4171
        %5887 = vmatprep.subr.bf16.mxu0 %v4168
        %5888 = vmatpush2.bf16.msra.mxu0 %v4167
        %5889 = vmatprep.subr.bf16.mxu0 %v4164
        %5890 = vmatpush2.bf16.msra.mxu0 %v4163
        %5891 = vmatprep.subr.bf16.mxu0 %v4160
        %5892 = vmatpush2.bf16.msra.mxu0 %v4159
        %5893 = vmatprep.subr.bf16.mxu0 %v4156
        %5894 = vmatpush2.bf16.msra.mxu0 %v4155
        %5895 = vmatprep.subr.bf16.mxu0 %v4152
        %5896 = vmatpush2.bf16.msra.mxu0 %v4151
        %5897 = vmatprep.mubr.bf16.mxu0 %v1252
        %5898 = vmatmul.mubr.bf16.gmra.mxu0 %v1251
        %v5899 = vpop.f32.mrf.mxu0
        %v5900 = vadd.f32 %v5859, %v5899
        %v5901 = vpop.f32.mrf.mxu0
        %v5902 = vadd.f32 %v5861, %v5901
        %v5903 = vpop.f32.mrf.mxu0
        %v5904 = vpop.f32.mrf.mxu0
        %5905 = vdwg.mxu0
        %5906 = vmatprep.subr.bf16.mxu0 %v4212
        %5907 = vmatpush1.bf16.msra.mxu0 %v4211
        %5908 = vmatprep.subr.bf16.mxu0 %v4208
        %5909 = vmatpush1.bf16.msra.mxu0 %v4207
        %5910 = vmatprep.subr.bf16.mxu0 %v4204
        %5911 = vmatpush1.bf16.msra.mxu0 %v4203
        %5912 = vmatprep.subr.bf16.mxu0 %v4200
        %5913 = vmatpush1.bf16.msra.mxu0 %v4199
        %5914 = vmatprep.subr.bf16.mxu0 %v4196
        %5915 = vmatpush1.bf16.msra.mxu0 %v4195
        %5916 = vmatprep.subr.bf16.mxu0 %v4192
        %5917 = vmatpush1.bf16.msra.mxu0 %v4191
        %5918 = vmatprep.subr.bf16.mxu0 %v4188
        %5919 = vmatpush1.bf16.msra.mxu0 %v4187
        %5920 = vmatprep.subr.bf16.mxu0 %v4184
        %5921 = vmatpush1.bf16.msra.mxu0 %v4183
        %5922 = vmatprep.subr.bf16.mxu0 %v4244
        %5923 = vmatpush2.bf16.msra.mxu0 %v4243
        %5924 = vmatprep.subr.bf16.mxu0 %v4240
        %5925 = vmatpush2.bf16.msra.mxu0 %v4239
        %5926 = vmatprep.subr.bf16.mxu0 %v4236
        %5927 = vmatpush2.bf16.msra.mxu0 %v4235
        %5928 = vmatprep.subr.bf16.mxu0 %v4232
        %5929 = vmatpush2.bf16.msra.mxu0 %v4231
        %5930 = vmatprep.subr.bf16.mxu0 %v4228
        %5931 = vmatpush2.bf16.msra.mxu0 %v4227
        %5932 = vmatprep.subr.bf16.mxu0 %v4224
        %5933 = vmatpush2.bf16.msra.mxu0 %v4223
        %5934 = vmatprep.subr.bf16.mxu0 %v4220
        %5935 = vmatpush2.bf16.msra.mxu0 %v4219
        %5936 = vmatprep.subr.bf16.mxu0 %v4216
        %5937 = vmatpush2.bf16.msra.mxu0 %v4215
        %5938 = vmatprep.mubr.bf16.mxu0 %v1254
        %5939 = vmatmul.mubr.bf16.gmra.mxu0 %v1253
        %v5940 = vpop.f32.mrf.mxu0
        %v5941 = vadd.f32 %v5900, %v5940
        %v5942 = vpop.f32.mrf.mxu0
        %v5943 = vadd.f32 %v5902, %v5942
        %v5944 = vpop.f32.mrf.mxu0
        %v5945 = vpop.f32.mrf.mxu0
        %5946 = vdwg.mxu0
        %5947 = vmatprep.subr.bf16.mxu0 %v4276
        %5948 = vmatpush1.bf16.msra.mxu0 %v4275
        %5949 = vmatprep.subr.bf16.mxu0 %v4272
        %5950 = vmatpush1.bf16.msra.mxu0 %v4271
        %5951 = vmatprep.subr.bf16.mxu0 %v4268
        %5952 = vmatpush1.bf16.msra.mxu0 %v4267
        %5953 = vmatprep.subr.bf16.mxu0 %v4264
        %5954 = vmatpush1.bf16.msra.mxu0 %v4263
        %5955 = vmatprep.subr.bf16.mxu0 %v4260
        %5956 = vmatpush1.bf16.msra.mxu0 %v4259
        %5957 = vmatprep.subr.bf16.mxu0 %v4256
        %5958 = vmatpush1.bf16.msra.mxu0 %v4255
        %5959 = vmatprep.subr.bf16.mxu0 %v4252
        %5960 = vmatpush1.bf16.msra.mxu0 %v4251
        %5961 = vmatprep.subr.bf16.mxu0 %v4248
        %5962 = vmatpush1.bf16.msra.mxu0 %v4247
        %5963 = vmatprep.subr.bf16.mxu0 %v4308
        %5964 = vmatpush2.bf16.msra.mxu0 %v4307
        %5965 = vmatprep.subr.bf16.mxu0 %v4304
        %5966 = vmatpush2.bf16.msra.mxu0 %v4303
        %5967 = vmatprep.subr.bf16.mxu0 %v4300
        %5968 = vmatpush2.bf16.msra.mxu0 %v4299
        %5969 = vmatprep.subr.bf16.mxu0 %v4296
        %5970 = vmatpush2.bf16.msra.mxu0 %v4295
        %5971 = vmatprep.subr.bf16.mxu0 %v4292
        %5972 = vmatpush2.bf16.msra.mxu0 %v4291
        %5973 = vmatprep.subr.bf16.mxu0 %v4288
        %5974 = vmatpush2.bf16.msra.mxu0 %v4287
        %5975 = vmatprep.subr.bf16.mxu0 %v4284
        %5976 = vmatpush2.bf16.msra.mxu0 %v4283
        %5977 = vmatprep.subr.bf16.mxu0 %v4280
        %5978 = vmatpush2.bf16.msra.mxu0 %v4279
        %5979 = vmatprep.mubr.bf16.mxu0 %v1256
        %5980 = vmatmul.mubr.bf16.gmra.mxu0 %v1255
        %v5981 = vpop.f32.mrf.mxu0
        %v5982 = vadd.f32 %v5941, %v5981
        %v5983 = vpop.f32.mrf.mxu0
        %v5984 = vadd.f32 %v5943, %v5983
        %v5985 = vpop.f32.mrf.mxu0
        %v5986 = vpop.f32.mrf.mxu0
        %5987 = vdwg.mxu0
        %5988 = vmatprep.subr.bf16.mxu0 %v4340
        %5989 = vmatpush1.bf16.msra.mxu0 %v4339
        %5990 = vmatprep.subr.bf16.mxu0 %v4336
        %5991 = vmatpush1.bf16.msra.mxu0 %v4335
        %5992 = vmatprep.subr.bf16.mxu0 %v4332
        %5993 = vmatpush1.bf16.msra.mxu0 %v4331
        %5994 = vmatprep.subr.bf16.mxu0 %v4328
        %5995 = vmatpush1.bf16.msra.mxu0 %v4327
        %5996 = vmatprep.subr.bf16.mxu0 %v4324
        %5997 = vmatpush1.bf16.msra.mxu0 %v4323
        %5998 = vmatprep.subr.bf16.mxu0 %v4320
        %5999 = vmatpush1.bf16.msra.mxu0 %v4319
        %6000 = vmatprep.subr.bf16.mxu0 %v4316
        %6001 = vmatpush1.bf16.msra.mxu0 %v4315
        %6002 = vmatprep.subr.bf16.mxu0 %v4312
        %6003 = vmatpush1.bf16.msra.mxu0 %v4311
        %6004 = vmatprep.subr.bf16.mxu0 %v4372
        %6005 = vmatpush2.bf16.msra.mxu0 %v4371
        %6006 = vmatprep.subr.bf16.mxu0 %v4368
        %6007 = vmatpush2.bf16.msra.mxu0 %v4367
        %6008 = vmatprep.subr.bf16.mxu0 %v4364
        %6009 = vmatpush2.bf16.msra.mxu0 %v4363
        %6010 = vmatprep.subr.bf16.mxu0 %v4360
        %6011 = vmatpush2.bf16.msra.mxu0 %v4359
        %6012 = vmatprep.subr.bf16.mxu0 %v4356
        %6013 = vmatpush2.bf16.msra.mxu0 %v4355
        %6014 = vmatprep.subr.bf16.mxu0 %v4352
        %6015 = vmatpush2.bf16.msra.mxu0 %v4351
        %6016 = vmatprep.subr.bf16.mxu0 %v4348
        %6017 = vmatpush2.bf16.msra.mxu0 %v4347
        %6018 = vmatprep.subr.bf16.mxu0 %v4344
        %6019 = vmatpush2.bf16.msra.mxu0 %v4343
        %6020 = vmatprep.mubr.bf16.mxu0 %v1258
        %6021 = vmatmul.mubr.bf16.gmra.mxu0 %v1257
        %v6022 = vpop.f32.mrf.mxu0
        %v6023 = vadd.f32 %v5982, %v6022
        %v6024 = vpop.f32.mrf.mxu0
        %v6025 = vadd.f32 %v5984, %v6024
        %v6026 = vpop.f32.mrf.mxu0
        %v6027 = vpop.f32.mrf.mxu0
        %6028 = vdwg.mxu0
        %6029 = vmatprep.subr.bf16.mxu0 %v4404
        %6030 = vmatpush1.bf16.msra.mxu0 %v4403
        %6031 = vmatprep.subr.bf16.mxu0 %v4400
        %6032 = vmatpush1.bf16.msra.mxu0 %v4399
        %6033 = vmatprep.subr.bf16.mxu0 %v4396
        %6034 = vmatpush1.bf16.msra.mxu0 %v4395
        %6035 = vmatprep.subr.bf16.mxu0 %v4392
        %6036 = vmatpush1.bf16.msra.mxu0 %v4391
        %6037 = vmatprep.subr.bf16.mxu0 %v4388
        %6038 = vmatpush1.bf16.msra.mxu0 %v4387
        %6039 = vmatprep.subr.bf16.mxu0 %v4384
        %6040 = vmatpush1.bf16.msra.mxu0 %v4383
        %6041 = vmatprep.subr.bf16.mxu0 %v4380
        %6042 = vmatpush1.bf16.msra.mxu0 %v4379
        %6043 = vmatprep.subr.bf16.mxu0 %v4376
        %6044 = vmatpush1.bf16.msra.mxu0 %v4375
        %6045 = vmatprep.subr.bf16.mxu0 %v4436
        %6046 = vmatpush2.bf16.msra.mxu0 %v4435
        %6047 = vmatprep.subr.bf16.mxu0 %v4432
        %6048 = vmatpush2.bf16.msra.mxu0 %v4431
        %6049 = vmatprep.subr.bf16.mxu0 %v4428
        %6050 = vmatpush2.bf16.msra.mxu0 %v4427
        %6051 = vmatprep.subr.bf16.mxu0 %v4424
        %6052 = vmatpush2.bf16.msra.mxu0 %v4423
        %6053 = vmatprep.subr.bf16.mxu0 %v4420
        %6054 = vmatpush2.bf16.msra.mxu0 %v4419
        %6055 = vmatprep.subr.bf16.mxu0 %v4416
        %6056 = vmatpush2.bf16.msra.mxu0 %v4415
        %6057 = vmatprep.subr.bf16.mxu0 %v4412
        %6058 = vmatpush2.bf16.msra.mxu0 %v4411
        %6059 = vmatprep.subr.bf16.mxu0 %v4408
        %6060 = vmatpush2.bf16.msra.mxu0 %v4407
        %6061 = vmatprep.mubr.bf16.mxu0 %v1260
        %6062 = vmatmul.mubr.bf16.gmra.mxu0 %v1259
        %v6063 = vpop.f32.mrf.mxu0
        %v6064 = vadd.f32 %v6023, %v6063
        %v6065 = vpop.f32.mrf.mxu0
        %v6066 = vadd.f32 %v6025, %v6065
        %v6067 = vpop.f32.mrf.mxu0
        %v6068 = vpop.f32.mrf.mxu0
        %6069 = vdwg.mxu0
        %6070 = vmatprep.subr.bf16.mxu0 %v4468
        %6071 = vmatpush1.bf16.msra.mxu0 %v4467
        %6072 = vmatprep.subr.bf16.mxu0 %v4464
        %6073 = vmatpush1.bf16.msra.mxu0 %v4463
        %6074 = vmatprep.subr.bf16.mxu0 %v4460
        %6075 = vmatpush1.bf16.msra.mxu0 %v4459
        %6076 = vmatprep.subr.bf16.mxu0 %v4456
        %6077 = vmatpush1.bf16.msra.mxu0 %v4455
        %6078 = vmatprep.subr.bf16.mxu0 %v4452
        %6079 = vmatpush1.bf16.msra.mxu0 %v4451
        %6080 = vmatprep.subr.bf16.mxu0 %v4448
        %6081 = vmatpush1.bf16.msra.mxu0 %v4447
        %6082 = vmatprep.subr.bf16.mxu0 %v4444
        %6083 = vmatpush1.bf16.msra.mxu0 %v4443
        %6084 = vmatprep.subr.bf16.mxu0 %v4440
        %6085 = vmatpush1.bf16.msra.mxu0 %v4439
        %6086 = vmatprep.subr.bf16.mxu0 %v4500
        %6087 = vmatpush2.bf16.msra.mxu0 %v4499
        %6088 = vmatprep.subr.bf16.mxu0 %v4496
        %6089 = vmatpush2.bf16.msra.mxu0 %v4495
        %6090 = vmatprep.subr.bf16.mxu0 %v4492
        %6091 = vmatpush2.bf16.msra.mxu0 %v4491
        %6092 = vmatprep.subr.bf16.mxu0 %v4488
        %6093 = vmatpush2.bf16.msra.mxu0 %v4487
        %6094 = vmatprep.subr.bf16.mxu0 %v4484
        %6095 = vmatpush2.bf16.msra.mxu0 %v4483
        %6096 = vmatprep.subr.bf16.mxu0 %v4480
        %6097 = vmatpush2.bf16.msra.mxu0 %v4479
        %6098 = vmatprep.subr.bf16.mxu0 %v4476
        %6099 = vmatpush2.bf16.msra.mxu0 %v4475
        %6100 = vmatprep.subr.bf16.mxu0 %v4472
        %6101 = vmatpush2.bf16.msra.mxu0 %v4471
        %6102 = vmatprep.mubr.bf16.mxu0 %v1262
        %6103 = vmatmul.mubr.bf16.gmra.mxu0 %v1261
        %v6104 = vpop.f32.mrf.mxu0
        %v6105 = vadd.f32 %v6064, %v6104
        %v6106 = vpop.f32.mrf.mxu0
        %v6107 = vadd.f32 %v6066, %v6106
        %v6108 = vpop.f32.mrf.mxu0
        %v6109 = vpop.f32.mrf.mxu0
        %6110 = vdwg.mxu0
        %6111 = vmatprep.subr.bf16.mxu0 %v4532
        %6112 = vmatpush1.bf16.msra.mxu0 %v4531
        %6113 = vmatprep.subr.bf16.mxu0 %v4528
        %6114 = vmatpush1.bf16.msra.mxu0 %v4527
        %6115 = vmatprep.subr.bf16.mxu0 %v4524
        %6116 = vmatpush1.bf16.msra.mxu0 %v4523
        %6117 = vmatprep.subr.bf16.mxu0 %v4520
        %6118 = vmatpush1.bf16.msra.mxu0 %v4519
        %6119 = vmatprep.subr.bf16.mxu0 %v4516
        %6120 = vmatpush1.bf16.msra.mxu0 %v4515
        %6121 = vmatprep.subr.bf16.mxu0 %v4512
        %6122 = vmatpush1.bf16.msra.mxu0 %v4511
        %6123 = vmatprep.subr.bf16.mxu0 %v4508
        %6124 = vmatpush1.bf16.msra.mxu0 %v4507
        %6125 = vmatprep.subr.bf16.mxu0 %v4504
        %6126 = vmatpush1.bf16.msra.mxu0 %v4503
        %6127 = vmatprep.subr.bf16.mxu0 %v4564
        %6128 = vmatpush2.bf16.msra.mxu0 %v4563
        %6129 = vmatprep.subr.bf16.mxu0 %v4560
        %6130 = vmatpush2.bf16.msra.mxu0 %v4559
        %6131 = vmatprep.subr.bf16.mxu0 %v4556
        %6132 = vmatpush2.bf16.msra.mxu0 %v4555
        %6133 = vmatprep.subr.bf16.mxu0 %v4552
        %6134 = vmatpush2.bf16.msra.mxu0 %v4551
        %6135 = vmatprep.subr.bf16.mxu0 %v4548
        %6136 = vmatpush2.bf16.msra.mxu0 %v4547
        %6137 = vmatprep.subr.bf16.mxu0 %v4544
        %6138 = vmatpush2.bf16.msra.mxu0 %v4543
        %6139 = vmatprep.subr.bf16.mxu0 %v4540
        %6140 = vmatpush2.bf16.msra.mxu0 %v4539
        %6141 = vmatprep.subr.bf16.mxu0 %v4536
        %6142 = vmatpush2.bf16.msra.mxu0 %v4535
        %6143 = vmatprep.mubr.bf16.mxu0 %v1264
        %6144 = vmatmul.mubr.bf16.gmra.mxu0 %v1263
        %v6145 = vpop.f32.mrf.mxu0
        %v6146 = vadd.f32 %v6105, %v6145
        %v6147 = vpop.f32.mrf.mxu0
        %v6148 = vadd.f32 %v6107, %v6147
        %v6149 = vpop.f32.mrf.mxu0
        %v6150 = vpop.f32.mrf.mxu0
        %6151 = vdwg.mxu0
        %6152 = vmatprep.subr.bf16.mxu0 %v4596
        %6153 = vmatpush1.bf16.msra.mxu0 %v4595
        %6154 = vmatprep.subr.bf16.mxu0 %v4592
        %6155 = vmatpush1.bf16.msra.mxu0 %v4591
        %6156 = vmatprep.subr.bf16.mxu0 %v4588
        %6157 = vmatpush1.bf16.msra.mxu0 %v4587
        %6158 = vmatprep.subr.bf16.mxu0 %v4584
        %6159 = vmatpush1.bf16.msra.mxu0 %v4583
        %6160 = vmatprep.subr.bf16.mxu0 %v4580
        %6161 = vmatpush1.bf16.msra.mxu0 %v4579
        %6162 = vmatprep.subr.bf16.mxu0 %v4576
        %6163 = vmatpush1.bf16.msra.mxu0 %v4575
        %6164 = vmatprep.subr.bf16.mxu0 %v4572
        %6165 = vmatpush1.bf16.msra.mxu0 %v4571
        %6166 = vmatprep.subr.bf16.mxu0 %v4568
        %6167 = vmatpush1.bf16.msra.mxu0 %v4567
        %6168 = vmatprep.subr.bf16.mxu0 %v4628
        %6169 = vmatpush2.bf16.msra.mxu0 %v4627
        %6170 = vmatprep.subr.bf16.mxu0 %v4624
        %6171 = vmatpush2.bf16.msra.mxu0 %v4623
        %6172 = vmatprep.subr.bf16.mxu0 %v4620
        %6173 = vmatpush2.bf16.msra.mxu0 %v4619
        %6174 = vmatprep.subr.bf16.mxu0 %v4616
        %6175 = vmatpush2.bf16.msra.mxu0 %v4615
        %6176 = vmatprep.subr.bf16.mxu0 %v4612
        %6177 = vmatpush2.bf16.msra.mxu0 %v4611
        %6178 = vmatprep.subr.bf16.mxu0 %v4608
        %6179 = vmatpush2.bf16.msra.mxu0 %v4607
        %6180 = vmatprep.subr.bf16.mxu0 %v4604
        %6181 = vmatpush2.bf16.msra.mxu0 %v4603
        %6182 = vmatprep.subr.bf16.mxu0 %v4600
        %6183 = vmatpush2.bf16.msra.mxu0 %v4599
        %6184 = vmatprep.mubr.bf16.mxu0 %v1266
        %6185 = vmatmul.mubr.bf16.gmra.mxu0 %v1265
        %v6186 = vpop.f32.mrf.mxu0
        %v6187 = vadd.f32 %v6146, %v6186
        %v6188 = vpop.f32.mrf.mxu0
        %v6189 = vadd.f32 %v6148, %v6188
        %v6190 = vpop.f32.mrf.mxu0
        %v6191 = vpop.f32.mrf.mxu0
        %6192 = vdwg.mxu0
        %6193 = vmatprep.subr.bf16.mxu0 %v4660
        %6194 = vmatpush1.bf16.msra.mxu0 %v4659
        %6195 = vmatprep.subr.bf16.mxu0 %v4656
        %6196 = vmatpush1.bf16.msra.mxu0 %v4655
        %6197 = vmatprep.subr.bf16.mxu0 %v4652
        %6198 = vmatpush1.bf16.msra.mxu0 %v4651
        %6199 = vmatprep.subr.bf16.mxu0 %v4648
        %6200 = vmatpush1.bf16.msra.mxu0 %v4647
        %6201 = vmatprep.subr.bf16.mxu0 %v4644
        %6202 = vmatpush1.bf16.msra.mxu0 %v4643
        %6203 = vmatprep.subr.bf16.mxu0 %v4640
        %6204 = vmatpush1.bf16.msra.mxu0 %v4639
        %6205 = vmatprep.subr.bf16.mxu0 %v4636
        %6206 = vmatpush1.bf16.msra.mxu0 %v4635
        %6207 = vmatprep.subr.bf16.mxu0 %v4632
        %6208 = vmatpush1.bf16.msra.mxu0 %v4631
        %6209 = vmatprep.subr.bf16.mxu0 %v4692
        %6210 = vmatpush2.bf16.msra.mxu0 %v4691
        %6211 = vmatprep.subr.bf16.mxu0 %v4688
        %6212 = vmatpush2.bf16.msra.mxu0 %v4687
        %6213 = vmatprep.subr.bf16.mxu0 %v4684
        %6214 = vmatpush2.bf16.msra.mxu0 %v4683
        %6215 = vmatprep.subr.bf16.mxu0 %v4680
        %6216 = vmatpush2.bf16.msra.mxu0 %v4679
        %6217 = vmatprep.subr.bf16.mxu0 %v4676
        %6218 = vmatpush2.bf16.msra.mxu0 %v4675
        %6219 = vmatprep.subr.bf16.mxu0 %v4672
        %6220 = vmatpush2.bf16.msra.mxu0 %v4671
        %6221 = vmatprep.subr.bf16.mxu0 %v4668
        %6222 = vmatpush2.bf16.msra.mxu0 %v4667
        %6223 = vmatprep.subr.bf16.mxu0 %v4664
        %6224 = vmatpush2.bf16.msra.mxu0 %v4663
        %6225 = vmatprep.mubr.bf16.mxu0 %v1268
        %6226 = vmatmul.mubr.bf16.gmra.mxu0 %v1267
        %v6227 = vpop.f32.mrf.mxu0
        %v6228 = vadd.f32 %v6187, %v6227
        %v6229 = vpop.f32.mrf.mxu0
        %v6230 = vadd.f32 %v6189, %v6229
        %v6231 = vpop.f32.mrf.mxu0
        %v6232 = vpop.f32.mrf.mxu0
        %6233 = vdwg.mxu0
        %6234 = vmatprep.subr.bf16.mxu0 %v4724
        %6235 = vmatpush1.bf16.msra.mxu0 %v4723
        %6236 = vmatprep.subr.bf16.mxu0 %v4720
        %6237 = vmatpush1.bf16.msra.mxu0 %v4719
        %6238 = vmatprep.subr.bf16.mxu0 %v4716
        %6239 = vmatpush1.bf16.msra.mxu0 %v4715
        %6240 = vmatprep.subr.bf16.mxu0 %v4712
        %6241 = vmatpush1.bf16.msra.mxu0 %v4711
        %6242 = vmatprep.subr.bf16.mxu0 %v4708
        %6243 = vmatpush1.bf16.msra.mxu0 %v4707
        %6244 = vmatprep.subr.bf16.mxu0 %v4704
        %6245 = vmatpush1.bf16.msra.mxu0 %v4703
        %6246 = vmatprep.subr.bf16.mxu0 %v4700
        %6247 = vmatpush1.bf16.msra.mxu0 %v4699
        %6248 = vmatprep.subr.bf16.mxu0 %v4696
        %6249 = vmatpush1.bf16.msra.mxu0 %v4695
        %6250 = vmatprep.subr.bf16.mxu0 %v4756
        %6251 = vmatpush2.bf16.msra.mxu0 %v4755
        %6252 = vmatprep.subr.bf16.mxu0 %v4752
        %6253 = vmatpush2.bf16.msra.mxu0 %v4751
        %6254 = vmatprep.subr.bf16.mxu0 %v4748
        %6255 = vmatpush2.bf16.msra.mxu0 %v4747
        %6256 = vmatprep.subr.bf16.mxu0 %v4744
        %6257 = vmatpush2.bf16.msra.mxu0 %v4743
        %6258 = vmatprep.subr.bf16.mxu0 %v4740
        %6259 = vmatpush2.bf16.msra.mxu0 %v4739
        %6260 = vmatprep.subr.bf16.mxu0 %v4736
        %6261 = vmatpush2.bf16.msra.mxu0 %v4735
        %6262 = vmatprep.subr.bf16.mxu0 %v4732
        %6263 = vmatpush2.bf16.msra.mxu0 %v4731
        %6264 = vmatprep.subr.bf16.mxu0 %v4728
        %6265 = vmatpush2.bf16.msra.mxu0 %v4727
        %6266 = vmatprep.mubr.bf16.mxu0 %v1270
        %6267 = vmatmul.mubr.bf16.gmra.mxu0 %v1269
        %v6268 = vpop.f32.mrf.mxu0
        %v6269 = vadd.f32 %v6228, %v6268
        %v6270 = vpop.f32.mrf.mxu0
        %v6271 = vadd.f32 %v6230, %v6270
        %v6272 = vpop.f32.mrf.mxu0
        %v6273 = vpop.f32.mrf.mxu0
        %6274 = vdwg.mxu0
        %6275 = vmatprep.subr.bf16.mxu0 %v4788
        %6276 = vmatpush1.bf16.msra.mxu0 %v4787
        %6277 = vmatprep.subr.bf16.mxu0 %v4784
        %6278 = vmatpush1.bf16.msra.mxu0 %v4783
        %6279 = vmatprep.subr.bf16.mxu0 %v4780
        %6280 = vmatpush1.bf16.msra.mxu0 %v4779
        %6281 = vmatprep.subr.bf16.mxu0 %v4776
        %6282 = vmatpush1.bf16.msra.mxu0 %v4775
        %6283 = vmatprep.subr.bf16.mxu0 %v4772
        %6284 = vmatpush1.bf16.msra.mxu0 %v4771
        %6285 = vmatprep.subr.bf16.mxu0 %v4768
        %6286 = vmatpush1.bf16.msra.mxu0 %v4767
        %6287 = vmatprep.subr.bf16.mxu0 %v4764
        %6288 = vmatpush1.bf16.msra.mxu0 %v4763
        %6289 = vmatprep.subr.bf16.mxu0 %v4760
        %6290 = vmatpush1.bf16.msra.mxu0 %v4759
        %6291 = vmatprep.subr.bf16.mxu0 %v4820
        %6292 = vmatpush2.bf16.msra.mxu0 %v4819
        %6293 = vmatprep.subr.bf16.mxu0 %v4816
        %6294 = vmatpush2.bf16.msra.mxu0 %v4815
        %6295 = vmatprep.subr.bf16.mxu0 %v4812
        %6296 = vmatpush2.bf16.msra.mxu0 %v4811
        %6297 = vmatprep.subr.bf16.mxu0 %v4808
        %6298 = vmatpush2.bf16.msra.mxu0 %v4807
        %6299 = vmatprep.subr.bf16.mxu0 %v4804
        %6300 = vmatpush2.bf16.msra.mxu0 %v4803
        %6301 = vmatprep.subr.bf16.mxu0 %v4800
        %6302 = vmatpush2.bf16.msra.mxu0 %v4799
        %6303 = vmatprep.subr.bf16.mxu0 %v4796
        %6304 = vmatpush2.bf16.msra.mxu0 %v4795
        %6305 = vmatprep.subr.bf16.mxu0 %v4792
        %6306 = vmatpush2.bf16.msra.mxu0 %v4791
        %6307 = vmatprep.mubr.bf16.mxu0 %v1272
        %6308 = vmatmul.mubr.bf16.gmra.mxu0 %v1271
        %v6309 = vpop.f32.mrf.mxu0
        %v6310 = vadd.f32 %v6269, %v6309
        %v6311 = vpop.f32.mrf.mxu0
        %v6312 = vadd.f32 %v6271, %v6311
        %v6313 = vpop.f32.mrf.mxu0
        %v6314 = vpop.f32.mrf.mxu0
        %6315 = vdwg.mxu0
        %6316 = vmatprep.subr.bf16.mxu0 %v4852
        %6317 = vmatpush1.bf16.msra.mxu0 %v4851
        %6318 = vmatprep.subr.bf16.mxu0 %v4848
        %6319 = vmatpush1.bf16.msra.mxu0 %v4847
        %6320 = vmatprep.subr.bf16.mxu0 %v4844
        %6321 = vmatpush1.bf16.msra.mxu0 %v4843
        %6322 = vmatprep.subr.bf16.mxu0 %v4840
        %6323 = vmatpush1.bf16.msra.mxu0 %v4839
        %6324 = vmatprep.subr.bf16.mxu0 %v4836
        %6325 = vmatpush1.bf16.msra.mxu0 %v4835
        %6326 = vmatprep.subr.bf16.mxu0 %v4832
        %6327 = vmatpush1.bf16.msra.mxu0 %v4831
        %6328 = vmatprep.subr.bf16.mxu0 %v4828
        %6329 = vmatpush1.bf16.msra.mxu0 %v4827
        %6330 = vmatprep.subr.bf16.mxu0 %v4824
        %6331 = vmatpush1.bf16.msra.mxu0 %v4823
        %6332 = vmatprep.subr.bf16.mxu0 %v4884
        %6333 = vmatpush2.bf16.msra.mxu0 %v4883
        %6334 = vmatprep.subr.bf16.mxu0 %v4880
        %6335 = vmatpush2.bf16.msra.mxu0 %v4879
        %6336 = vmatprep.subr.bf16.mxu0 %v4876
        %6337 = vmatpush2.bf16.msra.mxu0 %v4875
        %6338 = vmatprep.subr.bf16.mxu0 %v4872
        %6339 = vmatpush2.bf16.msra.mxu0 %v4871
        %6340 = vmatprep.subr.bf16.mxu0 %v4868
        %6341 = vmatpush2.bf16.msra.mxu0 %v4867
        %6342 = vmatprep.subr.bf16.mxu0 %v4864
        %6343 = vmatpush2.bf16.msra.mxu0 %v4863
        %6344 = vmatprep.subr.bf16.mxu0 %v4860
        %6345 = vmatpush2.bf16.msra.mxu0 %v4859
        %6346 = vmatprep.subr.bf16.mxu0 %v4856
        %6347 = vmatpush2.bf16.msra.mxu0 %v4855
        %6348 = vmatprep.mubr.bf16.mxu0 %v1274
        %6349 = vmatmul.mubr.bf16.gmra.mxu0 %v1273
        %v6350 = vpop.f32.mrf.mxu0
        %v6351 = vadd.f32 %v6310, %v6350
        %v6352 = vpop.f32.mrf.mxu0
        %v6353 = vadd.f32 %v6312, %v6352
        %v6354 = vpop.f32.mrf.mxu0
        %v6355 = vpop.f32.mrf.mxu0
        %6356 = vdwg.mxu0
        %6357 = vmatprep.subr.bf16.mxu0 %v4022
        %6358 = vmatpush1.bf16.msra.mxu0 %v4021
        %6359 = vmatprep.subr.bf16.mxu0 %v4018
        %6360 = vmatpush1.bf16.msra.mxu0 %v4017
        %6361 = vmatprep.subr.bf16.mxu0 %v4014
        %6362 = vmatpush1.bf16.msra.mxu0 %v4013
        %6363 = vmatprep.subr.bf16.mxu0 %v4010
        %6364 = vmatpush1.bf16.msra.mxu0 %v4009
        %6365 = vmatprep.subr.bf16.mxu0 %v4006
        %6366 = vmatpush1.bf16.msra.mxu0 %v4005
        %6367 = vmatprep.subr.bf16.mxu0 %v4002
        %6368 = vmatpush1.bf16.msra.mxu0 %v4001
        %6369 = vmatprep.subr.bf16.mxu0 %v3998
        %6370 = vmatpush1.bf16.msra.mxu0 %v3997
        %6371 = vmatprep.subr.bf16.mxu0 %v3994
        %6372 = vmatpush1.bf16.msra.mxu0 %v3993
        %6373 = vmatprep.subr.bf16.mxu0 %v4054
        %6374 = vmatpush2.bf16.msra.mxu0 %v4053
        %6375 = vmatprep.subr.bf16.mxu0 %v4050
        %6376 = vmatpush2.bf16.msra.mxu0 %v4049
        %6377 = vmatprep.subr.bf16.mxu0 %v4046
        %6378 = vmatpush2.bf16.msra.mxu0 %v4045
        %6379 = vmatprep.subr.bf16.mxu0 %v4042
        %6380 = vmatpush2.bf16.msra.mxu0 %v4041
        %6381 = vmatprep.subr.bf16.mxu0 %v4038
        %6382 = vmatpush2.bf16.msra.mxu0 %v4037
        %6383 = vmatprep.subr.bf16.mxu0 %v4034
        %6384 = vmatpush2.bf16.msra.mxu0 %v4033
        %6385 = vmatprep.subr.bf16.mxu0 %v4030
        %6386 = vmatpush2.bf16.msra.mxu0 %v4029
        %6387 = vmatprep.subr.bf16.mxu0 %v4026
        %6388 = vmatpush2.bf16.msra.mxu0 %v4025
        %6389 = vmatprep.mubr.bf16.mxu0 %v1248
        %6390 = vmatmul.mubr.bf16.gmra.mxu0 %v1247
        %v6391 = vpop.f32.mrf.mxu0
        %v6392 = vadd.f32 0.0, %v6391
        %v6393 = vpop.f32.mrf.mxu0
        %v6394 = vadd.f32 0.0, %v6393
        %v6395 = vpop.f32.mrf.mxu0
        %v6396 = vpop.f32.mrf.mxu0
        %6397 = vdwg.mxu0
        %6398 = vmatprep.subr.bf16.mxu0 %v4086
        %6399 = vmatpush1.bf16.msra.mxu0 %v4085
        %6400 = vmatprep.subr.bf16.mxu0 %v4082
        %6401 = vmatpush1.bf16.msra.mxu0 %v4081
        %6402 = vmatprep.subr.bf16.mxu0 %v4078
        %6403 = vmatpush1.bf16.msra.mxu0 %v4077
        %6404 = vmatprep.subr.bf16.mxu0 %v4074
        %6405 = vmatpush1.bf16.msra.mxu0 %v4073
        %6406 = vmatprep.subr.bf16.mxu0 %v4070
        %6407 = vmatpush1.bf16.msra.mxu0 %v4069
        %6408 = vmatprep.subr.bf16.mxu0 %v4066
        %6409 = vmatpush1.bf16.msra.mxu0 %v4065
        %6410 = vmatprep.subr.bf16.mxu0 %v4062
        %6411 = vmatpush1.bf16.msra.mxu0 %v4061
        %6412 = vmatprep.subr.bf16.mxu0 %v4058
        %6413 = vmatpush1.bf16.msra.mxu0 %v4057
        %6414 = vmatprep.subr.bf16.mxu0 %v4118
        %6415 = vmatpush2.bf16.msra.mxu0 %v4117
        %6416 = vmatprep.subr.bf16.mxu0 %v4114
        %6417 = vmatpush2.bf16.msra.mxu0 %v4113
        %6418 = vmatprep.subr.bf16.mxu0 %v4110
        %6419 = vmatpush2.bf16.msra.mxu0 %v4109
        %6420 = vmatprep.subr.bf16.mxu0 %v4106
        %6421 = vmatpush2.bf16.msra.mxu0 %v4105
        %6422 = vmatprep.subr.bf16.mxu0 %v4102
        %6423 = vmatpush2.bf16.msra.mxu0 %v4101
        %6424 = vmatprep.subr.bf16.mxu0 %v4098
        %6425 = vmatpush2.bf16.msra.mxu0 %v4097
        %6426 = vmatprep.subr.bf16.mxu0 %v4094
        %6427 = vmatpush2.bf16.msra.mxu0 %v4093
        %6428 = vmatprep.subr.bf16.mxu0 %v4090
        %6429 = vmatpush2.bf16.msra.mxu0 %v4089
        %6430 = vmatprep.mubr.bf16.mxu0 %v1250
        %6431 = vmatmul.mubr.bf16.gmra.mxu0 %v1249
        %v6432 = vpop.f32.mrf.mxu0
        %v6433 = vadd.f32 %v6392, %v6432
        %v6434 = vpop.f32.mrf.mxu0
        %v6435 = vadd.f32 %v6394, %v6434
        %v6436 = vpop.f32.mrf.mxu0
        %v6437 = vpop.f32.mrf.mxu0
        %6438 = vdwg.mxu0
        %6439 = vmatprep.subr.bf16.mxu0 %v4150
        %6440 = vmatpush1.bf16.msra.mxu0 %v4149
        %6441 = vmatprep.subr.bf16.mxu0 %v4146
        %6442 = vmatpush1.bf16.msra.mxu0 %v4145
        %6443 = vmatprep.subr.bf16.mxu0 %v4142
        %6444 = vmatpush1.bf16.msra.mxu0 %v4141
        %6445 = vmatprep.subr.bf16.mxu0 %v4138
        %6446 = vmatpush1.bf16.msra.mxu0 %v4137
        %6447 = vmatprep.subr.bf16.mxu0 %v4134
        %6448 = vmatpush1.bf16.msra.mxu0 %v4133
        %6449 = vmatprep.subr.bf16.mxu0 %v4130
        %6450 = vmatpush1.bf16.msra.mxu0 %v4129
        %6451 = vmatprep.subr.bf16.mxu0 %v4126
        %6452 = vmatpush1.bf16.msra.mxu0 %v4125
        %6453 = vmatprep.subr.bf16.mxu0 %v4122
        %6454 = vmatpush1.bf16.msra.mxu0 %v4121
        %6455 = vmatprep.subr.bf16.mxu0 %v4182
        %6456 = vmatpush2.bf16.msra.mxu0 %v4181
        %6457 = vmatprep.subr.bf16.mxu0 %v4178
        %6458 = vmatpush2.bf16.msra.mxu0 %v4177
        %6459 = vmatprep.subr.bf16.mxu0 %v4174
        %6460 = vmatpush2.bf16.msra.mxu0 %v4173
        %6461 = vmatprep.subr.bf16.mxu0 %v4170
        %6462 = vmatpush2.bf16.msra.mxu0 %v4169
        %6463 = vmatprep.subr.bf16.mxu0 %v4166
        %6464 = vmatpush2.bf16.msra.mxu0 %v4165
        %6465 = vmatprep.subr.bf16.mxu0 %v4162
        %6466 = vmatpush2.bf16.msra.mxu0 %v4161
        %6467 = vmatprep.subr.bf16.mxu0 %v4158
        %6468 = vmatpush2.bf16.msra.mxu0 %v4157
        %6469 = vmatprep.subr.bf16.mxu0 %v4154
        %6470 = vmatpush2.bf16.msra.mxu0 %v4153
        %6471 = vmatprep.mubr.bf16.mxu0 %v1252
        %6472 = vmatmul.mubr.bf16.gmra.mxu0 %v1251
        %v6473 = vpop.f32.mrf.mxu0
        %v6474 = vadd.f32 %v6433, %v6473
        %v6475 = vpop.f32.mrf.mxu0
        %v6476 = vadd.f32 %v6435, %v6475
        %v6477 = vpop.f32.mrf.mxu0
        %v6478 = vpop.f32.mrf.mxu0
        %6479 = vdwg.mxu0
        %6480 = vmatprep.subr.bf16.mxu0 %v4214
        %6481 = vmatpush1.bf16.msra.mxu0 %v4213
        %6482 = vmatprep.subr.bf16.mxu0 %v4210
        %6483 = vmatpush1.bf16.msra.mxu0 %v4209
        %6484 = vmatprep.subr.bf16.mxu0 %v4206
        %6485 = vmatpush1.bf16.msra.mxu0 %v4205
        %6486 = vmatprep.subr.bf16.mxu0 %v4202
        %6487 = vmatpush1.bf16.msra.mxu0 %v4201
        %6488 = vmatprep.subr.bf16.mxu0 %v4198
        %6489 = vmatpush1.bf16.msra.mxu0 %v4197
        %6490 = vmatprep.subr.bf16.mxu0 %v4194
        %6491 = vmatpush1.bf16.msra.mxu0 %v4193
        %6492 = vmatprep.subr.bf16.mxu0 %v4190
        %6493 = vmatpush1.bf16.msra.mxu0 %v4189
        %6494 = vmatprep.subr.bf16.mxu0 %v4186
        %6495 = vmatpush1.bf16.msra.mxu0 %v4185
        %6496 = vmatprep.subr.bf16.mxu0 %v4246
        %6497 = vmatpush2.bf16.msra.mxu0 %v4245
        %6498 = vmatprep.subr.bf16.mxu0 %v4242
        %6499 = vmatpush2.bf16.msra.mxu0 %v4241
        %6500 = vmatprep.subr.bf16.mxu0 %v4238
        %6501 = vmatpush2.bf16.msra.mxu0 %v4237
        %6502 = vmatprep.subr.bf16.mxu0 %v4234
        %6503 = vmatpush2.bf16.msra.mxu0 %v4233
        %6504 = vmatprep.subr.bf16.mxu0 %v4230
        %6505 = vmatpush2.bf16.msra.mxu0 %v4229
        %6506 = vmatprep.subr.bf16.mxu0 %v4226
        %6507 = vmatpush2.bf16.msra.mxu0 %v4225
        %6508 = vmatprep.subr.bf16.mxu0 %v4222
        %6509 = vmatpush2.bf16.msra.mxu0 %v4221
        %6510 = vmatprep.subr.bf16.mxu0 %v4218
        %6511 = vmatpush2.bf16.msra.mxu0 %v4217
        %6512 = vmatprep.mubr.bf16.mxu0 %v1254
        %6513 = vmatmul.mubr.bf16.gmra.mxu0 %v1253
        %v6514 = vpop.f32.mrf.mxu0
        %v6515 = vadd.f32 %v6474, %v6514
        %v6516 = vpop.f32.mrf.mxu0
        %v6517 = vadd.f32 %v6476, %v6516
        %v6518 = vpop.f32.mrf.mxu0
        %v6519 = vpop.f32.mrf.mxu0
        %6520 = vdwg.mxu0
        %6521 = vmatprep.subr.bf16.mxu0 %v4278
        %6522 = vmatpush1.bf16.msra.mxu0 %v4277
        %6523 = vmatprep.subr.bf16.mxu0 %v4274
        %6524 = vmatpush1.bf16.msra.mxu0 %v4273
        %6525 = vmatprep.subr.bf16.mxu0 %v4270
        %6526 = vmatpush1.bf16.msra.mxu0 %v4269
        %6527 = vmatprep.subr.bf16.mxu0 %v4266
        %6528 = vmatpush1.bf16.msra.mxu0 %v4265
        %6529 = vmatprep.subr.bf16.mxu0 %v4262
        %6530 = vmatpush1.bf16.msra.mxu0 %v4261
        %6531 = vmatprep.subr.bf16.mxu0 %v4258
        %6532 = vmatpush1.bf16.msra.mxu0 %v4257
        %6533 = vmatprep.subr.bf16.mxu0 %v4254
        %6534 = vmatpush1.bf16.msra.mxu0 %v4253
        %6535 = vmatprep.subr.bf16.mxu0 %v4250
        %6536 = vmatpush1.bf16.msra.mxu0 %v4249
        %6537 = vmatprep.subr.bf16.mxu0 %v4310
        %6538 = vmatpush2.bf16.msra.mxu0 %v4309
        %6539 = vmatprep.subr.bf16.mxu0 %v4306
        %6540 = vmatpush2.bf16.msra.mxu0 %v4305
        %6541 = vmatprep.subr.bf16.mxu0 %v4302
        %6542 = vmatpush2.bf16.msra.mxu0 %v4301
        %6543 = vmatprep.subr.bf16.mxu0 %v4298
        %6544 = vmatpush2.bf16.msra.mxu0 %v4297
        %6545 = vmatprep.subr.bf16.mxu0 %v4294
        %6546 = vmatpush2.bf16.msra.mxu0 %v4293
        %6547 = vmatprep.subr.bf16.mxu0 %v4290
        %6548 = vmatpush2.bf16.msra.mxu0 %v4289
        %6549 = vmatprep.subr.bf16.mxu0 %v4286
        %6550 = vmatpush2.bf16.msra.mxu0 %v4285
        %6551 = vmatprep.subr.bf16.mxu0 %v4282
        %6552 = vmatpush2.bf16.msra.mxu0 %v4281
        %6553 = vmatprep.mubr.bf16.mxu0 %v1256
        %6554 = vmatmul.mubr.bf16.gmra.mxu0 %v1255
        %v6555 = vpop.f32.mrf.mxu0
        %v6556 = vadd.f32 %v6515, %v6555
        %v6557 = vpop.f32.mrf.mxu0
        %v6558 = vadd.f32 %v6517, %v6557
        %v6559 = vpop.f32.mrf.mxu0
        %v6560 = vpop.f32.mrf.mxu0
        %6561 = vdwg.mxu0
        %6562 = vmatprep.subr.bf16.mxu0 %v4342
        %6563 = vmatpush1.bf16.msra.mxu0 %v4341
        %6564 = vmatprep.subr.bf16.mxu0 %v4338
        %6565 = vmatpush1.bf16.msra.mxu0 %v4337
        %6566 = vmatprep.subr.bf16.mxu0 %v4334
        %6567 = vmatpush1.bf16.msra.mxu0 %v4333
        %6568 = vmatprep.subr.bf16.mxu0 %v4330
        %6569 = vmatpush1.bf16.msra.mxu0 %v4329
        %6570 = vmatprep.subr.bf16.mxu0 %v4326
        %6571 = vmatpush1.bf16.msra.mxu0 %v4325
        %6572 = vmatprep.subr.bf16.mxu0 %v4322
        %6573 = vmatpush1.bf16.msra.mxu0 %v4321
        %6574 = vmatprep.subr.bf16.mxu0 %v4318
        %6575 = vmatpush1.bf16.msra.mxu0 %v4317
        %6576 = vmatprep.subr.bf16.mxu0 %v4314
        %6577 = vmatpush1.bf16.msra.mxu0 %v4313
        %6578 = vmatprep.subr.bf16.mxu0 %v4374
        %6579 = vmatpush2.bf16.msra.mxu0 %v4373
        %6580 = vmatprep.subr.bf16.mxu0 %v4370
        %6581 = vmatpush2.bf16.msra.mxu0 %v4369
        %6582 = vmatprep.subr.bf16.mxu0 %v4366
        %6583 = vmatpush2.bf16.msra.mxu0 %v4365
        %6584 = vmatprep.subr.bf16.mxu0 %v4362
        %6585 = vmatpush2.bf16.msra.mxu0 %v4361
        %6586 = vmatprep.subr.bf16.mxu0 %v4358
        %6587 = vmatpush2.bf16.msra.mxu0 %v4357
        %6588 = vmatprep.subr.bf16.mxu0 %v4354
        %6589 = vmatpush2.bf16.msra.mxu0 %v4353
        %6590 = vmatprep.subr.bf16.mxu0 %v4350
        %6591 = vmatpush2.bf16.msra.mxu0 %v4349
        %6592 = vmatprep.subr.bf16.mxu0 %v4346
        %6593 = vmatpush2.bf16.msra.mxu0 %v4345
        %6594 = vmatprep.mubr.bf16.mxu0 %v1258
        %6595 = vmatmul.mubr.bf16.gmra.mxu0 %v1257
        %v6596 = vpop.f32.mrf.mxu0
        %v6597 = vadd.f32 %v6556, %v6596
        %v6598 = vpop.f32.mrf.mxu0
        %v6599 = vadd.f32 %v6558, %v6598
        %v6600 = vpop.f32.mrf.mxu0
        %v6601 = vpop.f32.mrf.mxu0
        %6602 = vdwg.mxu0
        %6603 = vmatprep.subr.bf16.mxu0 %v4406
        %6604 = vmatpush1.bf16.msra.mxu0 %v4405
        %6605 = vmatprep.subr.bf16.mxu0 %v4402
        %6606 = vmatpush1.bf16.msra.mxu0 %v4401
        %6607 = vmatprep.subr.bf16.mxu0 %v4398
        %6608 = vmatpush1.bf16.msra.mxu0 %v4397
        %6609 = vmatprep.subr.bf16.mxu0 %v4394
        %6610 = vmatpush1.bf16.msra.mxu0 %v4393
        %6611 = vmatprep.subr.bf16.mxu0 %v4390
        %6612 = vmatpush1.bf16.msra.mxu0 %v4389
        %6613 = vmatprep.subr.bf16.mxu0 %v4386
        %6614 = vmatpush1.bf16.msra.mxu0 %v4385
        %6615 = vmatprep.subr.bf16.mxu0 %v4382
        %6616 = vmatpush1.bf16.msra.mxu0 %v4381
        %6617 = vmatprep.subr.bf16.mxu0 %v4378
        %6618 = vmatpush1.bf16.msra.mxu0 %v4377
        %6619 = vmatprep.subr.bf16.mxu0 %v4438
        %6620 = vmatpush2.bf16.msra.mxu0 %v4437
        %6621 = vmatprep.subr.bf16.mxu0 %v4434
        %6622 = vmatpush2.bf16.msra.mxu0 %v4433
        %6623 = vmatprep.subr.bf16.mxu0 %v4430
        %6624 = vmatpush2.bf16.msra.mxu0 %v4429
        %6625 = vmatprep.subr.bf16.mxu0 %v4426
        %6626 = vmatpush2.bf16.msra.mxu0 %v4425
        %6627 = vmatprep.subr.bf16.mxu0 %v4422
        %6628 = vmatpush2.bf16.msra.mxu0 %v4421
        %6629 = vmatprep.subr.bf16.mxu0 %v4418
        %6630 = vmatpush2.bf16.msra.mxu0 %v4417
        %6631 = vmatprep.subr.bf16.mxu0 %v4414
        %6632 = vmatpush2.bf16.msra.mxu0 %v4413
        %6633 = vmatprep.subr.bf16.mxu0 %v4410
        %6634 = vmatpush2.bf16.msra.mxu0 %v4409
        %6635 = vmatprep.mubr.bf16.mxu0 %v1260
        %6636 = vmatmul.mubr.bf16.gmra.mxu0 %v1259
        %v6637 = vpop.f32.mrf.mxu0
        %v6638 = vadd.f32 %v6597, %v6637
        %v6639 = vpop.f32.mrf.mxu0
        %v6640 = vadd.f32 %v6599, %v6639
        %v6641 = vpop.f32.mrf.mxu0
        %v6642 = vpop.f32.mrf.mxu0
        %6643 = vdwg.mxu0
        %6644 = vmatprep.subr.bf16.mxu0 %v4470
        %6645 = vmatpush1.bf16.msra.mxu0 %v4469
        %6646 = vmatprep.subr.bf16.mxu0 %v4466
        %6647 = vmatpush1.bf16.msra.mxu0 %v4465
        %6648 = vmatprep.subr.bf16.mxu0 %v4462
        %6649 = vmatpush1.bf16.msra.mxu0 %v4461
        %6650 = vmatprep.subr.bf16.mxu0 %v4458
        %6651 = vmatpush1.bf16.msra.mxu0 %v4457
        %6652 = vmatprep.subr.bf16.mxu0 %v4454
        %6653 = vmatpush1.bf16.msra.mxu0 %v4453
        %6654 = vmatprep.subr.bf16.mxu0 %v4450
        %6655 = vmatpush1.bf16.msra.mxu0 %v4449
        %6656 = vmatprep.subr.bf16.mxu0 %v4446
        %6657 = vmatpush1.bf16.msra.mxu0 %v4445
        %6658 = vmatprep.subr.bf16.mxu0 %v4442
        %6659 = vmatpush1.bf16.msra.mxu0 %v4441
        %6660 = vmatprep.subr.bf16.mxu0 %v4502
        %6661 = vmatpush2.bf16.msra.mxu0 %v4501
        %6662 = vmatprep.subr.bf16.mxu0 %v4498
        %6663 = vmatpush2.bf16.msra.mxu0 %v4497
        %6664 = vmatprep.subr.bf16.mxu0 %v4494
        %6665 = vmatpush2.bf16.msra.mxu0 %v4493
        %6666 = vmatprep.subr.bf16.mxu0 %v4490
        %6667 = vmatpush2.bf16.msra.mxu0 %v4489
        %6668 = vmatprep.subr.bf16.mxu0 %v4486
        %6669 = vmatpush2.bf16.msra.mxu0 %v4485
        %6670 = vmatprep.subr.bf16.mxu0 %v4482
        %6671 = vmatpush2.bf16.msra.mxu0 %v4481
        %6672 = vmatprep.subr.bf16.mxu0 %v4478
        %6673 = vmatpush2.bf16.msra.mxu0 %v4477
        %6674 = vmatprep.subr.bf16.mxu0 %v4474
        %6675 = vmatpush2.bf16.msra.mxu0 %v4473
        %6676 = vmatprep.mubr.bf16.mxu0 %v1262
        %6677 = vmatmul.mubr.bf16.gmra.mxu0 %v1261
        %v6678 = vpop.f32.mrf.mxu0
        %v6679 = vadd.f32 %v6638, %v6678
        %v6680 = vpop.f32.mrf.mxu0
        %v6681 = vadd.f32 %v6640, %v6680
        %v6682 = vpop.f32.mrf.mxu0
        %v6683 = vpop.f32.mrf.mxu0
        %6684 = vdwg.mxu0
        %6685 = vmatprep.subr.bf16.mxu0 %v4534
        %6686 = vmatpush1.bf16.msra.mxu0 %v4533
        %6687 = vmatprep.subr.bf16.mxu0 %v4530
        %6688 = vmatpush1.bf16.msra.mxu0 %v4529
        %6689 = vmatprep.subr.bf16.mxu0 %v4526
        %6690 = vmatpush1.bf16.msra.mxu0 %v4525
        %6691 = vmatprep.subr.bf16.mxu0 %v4522
        %6692 = vmatpush1.bf16.msra.mxu0 %v4521
        %6693 = vmatprep.subr.bf16.mxu0 %v4518
        %6694 = vmatpush1.bf16.msra.mxu0 %v4517
        %6695 = vmatprep.subr.bf16.mxu0 %v4514
        %6696 = vmatpush1.bf16.msra.mxu0 %v4513
        %6697 = vmatprep.subr.bf16.mxu0 %v4510
        %6698 = vmatpush1.bf16.msra.mxu0 %v4509
        %6699 = vmatprep.subr.bf16.mxu0 %v4506
        %6700 = vmatpush1.bf16.msra.mxu0 %v4505
        %6701 = vmatprep.subr.bf16.mxu0 %v4566
        %6702 = vmatpush2.bf16.msra.mxu0 %v4565
        %6703 = vmatprep.subr.bf16.mxu0 %v4562
        %6704 = vmatpush2.bf16.msra.mxu0 %v4561
        %6705 = vmatprep.subr.bf16.mxu0 %v4558
        %6706 = vmatpush2.bf16.msra.mxu0 %v4557
        %6707 = vmatprep.subr.bf16.mxu0 %v4554
        %6708 = vmatpush2.bf16.msra.mxu0 %v4553
        %6709 = vmatprep.subr.bf16.mxu0 %v4550
        %6710 = vmatpush2.bf16.msra.mxu0 %v4549
        %6711 = vmatprep.subr.bf16.mxu0 %v4546
        %6712 = vmatpush2.bf16.msra.mxu0 %v4545
        %6713 = vmatprep.subr.bf16.mxu0 %v4542
        %6714 = vmatpush2.bf16.msra.mxu0 %v4541
        %6715 = vmatprep.subr.bf16.mxu0 %v4538
        %6716 = vmatpush2.bf16.msra.mxu0 %v4537
        %6717 = vmatprep.mubr.bf16.mxu0 %v1264
        %6718 = vmatmul.mubr.bf16.gmra.mxu0 %v1263
        %v6719 = vpop.f32.mrf.mxu0
        %v6720 = vadd.f32 %v6679, %v6719
        %v6721 = vpop.f32.mrf.mxu0
        %v6722 = vadd.f32 %v6681, %v6721
        %v6723 = vpop.f32.mrf.mxu0
        %v6724 = vpop.f32.mrf.mxu0
        %6725 = vdwg.mxu0
        %6726 = vmatprep.subr.bf16.mxu0 %v4598
        %6727 = vmatpush1.bf16.msra.mxu0 %v4597
        %6728 = vmatprep.subr.bf16.mxu0 %v4594
        %6729 = vmatpush1.bf16.msra.mxu0 %v4593
        %6730 = vmatprep.subr.bf16.mxu0 %v4590
        %6731 = vmatpush1.bf16.msra.mxu0 %v4589
        %6732 = vmatprep.subr.bf16.mxu0 %v4586
        %6733 = vmatpush1.bf16.msra.mxu0 %v4585
        %6734 = vmatprep.subr.bf16.mxu0 %v4582
        %6735 = vmatpush1.bf16.msra.mxu0 %v4581
        %6736 = vmatprep.subr.bf16.mxu0 %v4578
        %6737 = vmatpush1.bf16.msra.mxu0 %v4577
        %6738 = vmatprep.subr.bf16.mxu0 %v4574
        %6739 = vmatpush1.bf16.msra.mxu0 %v4573
        %6740 = vmatprep.subr.bf16.mxu0 %v4570
        %6741 = vmatpush1.bf16.msra.mxu0 %v4569
        %6742 = vmatprep.subr.bf16.mxu0 %v4630
        %6743 = vmatpush2.bf16.msra.mxu0 %v4629
        %6744 = vmatprep.subr.bf16.mxu0 %v4626
        %6745 = vmatpush2.bf16.msra.mxu0 %v4625
        %6746 = vmatprep.subr.bf16.mxu0 %v4622
        %6747 = vmatpush2.bf16.msra.mxu0 %v4621
        %6748 = vmatprep.subr.bf16.mxu0 %v4618
        %6749 = vmatpush2.bf16.msra.mxu0 %v4617
        %6750 = vmatprep.subr.bf16.mxu0 %v4614
        %6751 = vmatpush2.bf16.msra.mxu0 %v4613
        %6752 = vmatprep.subr.bf16.mxu0 %v4610
        %6753 = vmatpush2.bf16.msra.mxu0 %v4609
        %6754 = vmatprep.subr.bf16.mxu0 %v4606
        %6755 = vmatpush2.bf16.msra.mxu0 %v4605
        %6756 = vmatprep.subr.bf16.mxu0 %v4602
        %6757 = vmatpush2.bf16.msra.mxu0 %v4601
        %6758 = vmatprep.mubr.bf16.mxu0 %v1266
        %6759 = vmatmul.mubr.bf16.gmra.mxu0 %v1265
        %v6760 = vpop.f32.mrf.mxu0
        %v6761 = vadd.f32 %v6720, %v6760
        %v6762 = vpop.f32.mrf.mxu0
        %v6763 = vadd.f32 %v6722, %v6762
        %v6764 = vpop.f32.mrf.mxu0
        %v6765 = vpop.f32.mrf.mxu0
        %6766 = vdwg.mxu0
        %6767 = vmatprep.subr.bf16.mxu0 %v4662
        %6768 = vmatpush1.bf16.msra.mxu0 %v4661
        %6769 = vmatprep.subr.bf16.mxu0 %v4658
        %6770 = vmatpush1.bf16.msra.mxu0 %v4657
        %6771 = vmatprep.subr.bf16.mxu0 %v4654
        %6772 = vmatpush1.bf16.msra.mxu0 %v4653
        %6773 = vmatprep.subr.bf16.mxu0 %v4650
        %6774 = vmatpush1.bf16.msra.mxu0 %v4649
        %6775 = vmatprep.subr.bf16.mxu0 %v4646
        %6776 = vmatpush1.bf16.msra.mxu0 %v4645
        %6777 = vmatprep.subr.bf16.mxu0 %v4642
        %6778 = vmatpush1.bf16.msra.mxu0 %v4641
        %6779 = vmatprep.subr.bf16.mxu0 %v4638
        %6780 = vmatpush1.bf16.msra.mxu0 %v4637
        %6781 = vmatprep.subr.bf16.mxu0 %v4634
        %6782 = vmatpush1.bf16.msra.mxu0 %v4633
        %6783 = vmatprep.subr.bf16.mxu0 %v4694
        %6784 = vmatpush2.bf16.msra.mxu0 %v4693
        %6785 = vmatprep.subr.bf16.mxu0 %v4690
        %6786 = vmatpush2.bf16.msra.mxu0 %v4689
        %6787 = vmatprep.subr.bf16.mxu0 %v4686
        %6788 = vmatpush2.bf16.msra.mxu0 %v4685
        %6789 = vmatprep.subr.bf16.mxu0 %v4682
        %6790 = vmatpush2.bf16.msra.mxu0 %v4681
        %6791 = vmatprep.subr.bf16.mxu0 %v4678
        %6792 = vmatpush2.bf16.msra.mxu0 %v4677
        %6793 = vmatprep.subr.bf16.mxu0 %v4674
        %6794 = vmatpush2.bf16.msra.mxu0 %v4673
        %6795 = vmatprep.subr.bf16.mxu0 %v4670
        %6796 = vmatpush2.bf16.msra.mxu0 %v4669
        %6797 = vmatprep.subr.bf16.mxu0 %v4666
        %6798 = vmatpush2.bf16.msra.mxu0 %v4665
        %6799 = vmatprep.mubr.bf16.mxu0 %v1268
        %6800 = vmatmul.mubr.bf16.gmra.mxu0 %v1267
        %v6801 = vpop.f32.mrf.mxu0
        %v6802 = vadd.f32 %v6761, %v6801
        %v6803 = vpop.f32.mrf.mxu0
        %v6804 = vadd.f32 %v6763, %v6803
        %v6805 = vpop.f32.mrf.mxu0
        %v6806 = vpop.f32.mrf.mxu0
        %6807 = vdwg.mxu0
        %6808 = vmatprep.subr.bf16.mxu0 %v4726
        %6809 = vmatpush1.bf16.msra.mxu0 %v4725
        %6810 = vmatprep.subr.bf16.mxu0 %v4722
        %6811 = vmatpush1.bf16.msra.mxu0 %v4721
        %6812 = vmatprep.subr.bf16.mxu0 %v4718
        %6813 = vmatpush1.bf16.msra.mxu0 %v4717
        %6814 = vmatprep.subr.bf16.mxu0 %v4714
        %6815 = vmatpush1.bf16.msra.mxu0 %v4713
        %6816 = vmatprep.subr.bf16.mxu0 %v4710
        %6817 = vmatpush1.bf16.msra.mxu0 %v4709
        %6818 = vmatprep.subr.bf16.mxu0 %v4706
        %6819 = vmatpush1.bf16.msra.mxu0 %v4705
        %6820 = vmatprep.subr.bf16.mxu0 %v4702
        %6821 = vmatpush1.bf16.msra.mxu0 %v4701
        %6822 = vmatprep.subr.bf16.mxu0 %v4698
        %6823 = vmatpush1.bf16.msra.mxu0 %v4697
        %6824 = vmatprep.subr.bf16.mxu0 %v4758
        %6825 = vmatpush2.bf16.msra.mxu0 %v4757
        %6826 = vmatprep.subr.bf16.mxu0 %v4754
        %6827 = vmatpush2.bf16.msra.mxu0 %v4753
        %6828 = vmatprep.subr.bf16.mxu0 %v4750
        %6829 = vmatpush2.bf16.msra.mxu0 %v4749
        %6830 = vmatprep.subr.bf16.mxu0 %v4746
        %6831 = vmatpush2.bf16.msra.mxu0 %v4745
        %6832 = vmatprep.subr.bf16.mxu0 %v4742
        %6833 = vmatpush2.bf16.msra.mxu0 %v4741
        %6834 = vmatprep.subr.bf16.mxu0 %v4738
        %6835 = vmatpush2.bf16.msra.mxu0 %v4737
        %6836 = vmatprep.subr.bf16.mxu0 %v4734
        %6837 = vmatpush2.bf16.msra.mxu0 %v4733
        %6838 = vmatprep.subr.bf16.mxu0 %v4730
        %6839 = vmatpush2.bf16.msra.mxu0 %v4729
        %6840 = vmatprep.mubr.bf16.mxu0 %v1270
        %6841 = vmatmul.mubr.bf16.gmra.mxu0 %v1269
        %v6842 = vpop.f32.mrf.mxu0
        %v6843 = vadd.f32 %v6802, %v6842
        %v6844 = vpop.f32.mrf.mxu0
        %v6845 = vadd.f32 %v6804, %v6844
        %v6846 = vpop.f32.mrf.mxu0
        %v6847 = vpop.f32.mrf.mxu0
        %6848 = vdwg.mxu0
        %6849 = vmatprep.subr.bf16.mxu0 %v4790
        %6850 = vmatpush1.bf16.msra.mxu0 %v4789
        %6851 = vmatprep.subr.bf16.mxu0 %v4786
        %6852 = vmatpush1.bf16.msra.mxu0 %v4785
        %6853 = vmatprep.subr.bf16.mxu0 %v4782
        %6854 = vmatpush1.bf16.msra.mxu0 %v4781
        %6855 = vmatprep.subr.bf16.mxu0 %v4778
        %6856 = vmatpush1.bf16.msra.mxu0 %v4777
        %6857 = vmatprep.subr.bf16.mxu0 %v4774
        %6858 = vmatpush1.bf16.msra.mxu0 %v4773
        %6859 = vmatprep.subr.bf16.mxu0 %v4770
        %6860 = vmatpush1.bf16.msra.mxu0 %v4769
        %6861 = vmatprep.subr.bf16.mxu0 %v4766
        %6862 = vmatpush1.bf16.msra.mxu0 %v4765
        %6863 = vmatprep.subr.bf16.mxu0 %v4762
        %6864 = vmatpush1.bf16.msra.mxu0 %v4761
        %6865 = vmatprep.subr.bf16.mxu0 %v4822
        %6866 = vmatpush2.bf16.msra.mxu0 %v4821
        %6867 = vmatprep.subr.bf16.mxu0 %v4818
        %6868 = vmatpush2.bf16.msra.mxu0 %v4817
        %6869 = vmatprep.subr.bf16.mxu0 %v4814
        %6870 = vmatpush2.bf16.msra.mxu0 %v4813
        %6871 = vmatprep.subr.bf16.mxu0 %v4810
        %6872 = vmatpush2.bf16.msra.mxu0 %v4809
        %6873 = vmatprep.subr.bf16.mxu0 %v4806
        %6874 = vmatpush2.bf16.msra.mxu0 %v4805
        %6875 = vmatprep.subr.bf16.mxu0 %v4802
        %6876 = vmatpush2.bf16.msra.mxu0 %v4801
        %6877 = vmatprep.subr.bf16.mxu0 %v4798
        %6878 = vmatpush2.bf16.msra.mxu0 %v4797
        %6879 = vmatprep.subr.bf16.mxu0 %v4794
        %6880 = vmatpush2.bf16.msra.mxu0 %v4793
        %6881 = vmatprep.mubr.bf16.mxu0 %v1272
        %6882 = vmatmul.mubr.bf16.gmra.mxu0 %v1271
        %v6883 = vpop.f32.mrf.mxu0
        %v6884 = vadd.f32 %v6843, %v6883
        %v6885 = vpop.f32.mrf.mxu0
        %v6886 = vadd.f32 %v6845, %v6885
        %v6887 = vpop.f32.mrf.mxu0
        %v6888 = vpop.f32.mrf.mxu0
        %6889 = vdwg.mxu0
        %6890 = vmatprep.subr.bf16.mxu0 %v4854
        %6891 = vmatpush1.bf16.msra.mxu0 %v4853
        %6892 = vmatprep.subr.bf16.mxu0 %v4850
        %6893 = vmatpush1.bf16.msra.mxu0 %v4849
        %6894 = vmatprep.subr.bf16.mxu0 %v4846
        %6895 = vmatpush1.bf16.msra.mxu0 %v4845
        %6896 = vmatprep.subr.bf16.mxu0 %v4842
        %6897 = vmatpush1.bf16.msra.mxu0 %v4841
        %6898 = vmatprep.subr.bf16.mxu0 %v4838
        %6899 = vmatpush1.bf16.msra.mxu0 %v4837
        %6900 = vmatprep.subr.bf16.mxu0 %v4834
        %6901 = vmatpush1.bf16.msra.mxu0 %v4833
        %6902 = vmatprep.subr.bf16.mxu0 %v4830
        %6903 = vmatpush1.bf16.msra.mxu0 %v4829
        %6904 = vmatprep.subr.bf16.mxu0 %v4826
        %6905 = vmatpush1.bf16.msra.mxu0 %v4825
        %6906 = vmatprep.subr.bf16.mxu0 %v4886
        %6907 = vmatpush2.bf16.msra.mxu0 %v4885
        %6908 = vmatprep.subr.bf16.mxu0 %v4882
        %6909 = vmatpush2.bf16.msra.mxu0 %v4881
        %6910 = vmatprep.subr.bf16.mxu0 %v4878
        %6911 = vmatpush2.bf16.msra.mxu0 %v4877
        %6912 = vmatprep.subr.bf16.mxu0 %v4874
        %6913 = vmatpush2.bf16.msra.mxu0 %v4873
        %6914 = vmatprep.subr.bf16.mxu0 %v4870
        %6915 = vmatpush2.bf16.msra.mxu0 %v4869
        %6916 = vmatprep.subr.bf16.mxu0 %v4866
        %6917 = vmatpush2.bf16.msra.mxu0 %v4865
        %6918 = vmatprep.subr.bf16.mxu0 %v4862
        %6919 = vmatpush2.bf16.msra.mxu0 %v4861
        %6920 = vmatprep.subr.bf16.mxu0 %v4858
        %6921 = vmatpush2.bf16.msra.mxu0 %v4857
        %6922 = vmatprep.mubr.bf16.mxu0 %v1274
        %6923 = vmatmul.mubr.bf16.gmra.mxu0 %v1273
        %v6924 = vpop.f32.mrf.mxu0
        %v6925 = vadd.f32 %v6884, %v6924
        %v6926 = vpop.f32.mrf.mxu0
        %v6927 = vadd.f32 %v6886, %v6926
        %v6928 = vpop.f32.mrf.mxu0
        %v6929 = vpop.f32.mrf.mxu0
        %6930 = vdwg.mxu0
        %v6931 = vadd.f32 %v291, %v6351
        %v6932 = vadd.f32 %v292, %v6353
        %v6933 = vadd.f32 %v293, %v6925
        %v6934 = vadd.f32 %v294, %v6927
        %6935 = vst [vmem:[#allocation2] sm:$0xff] %v6931
        %6936 = vst [vmem:[#allocation2 + $0x8] sm:$0xff] %v6932
        %6937 = vst [vmem:[#allocation2 + $0x10] sm:$0xff] %v6933
        %6938 = vst [vmem:[#allocation2 + $0x18] sm:$0xff] %v6934
        %p6939 = scmp.eq.s32.totalorder %s24, 6
        // Predicated region
        $region41: #{simplenet_forward.8} parent=31 // pred_check
          %p6940 = pneg %p6939
        $region42: #{simplenet_forward.8} parent=31 // pred_check_branch
          %6942 = sbr.rel (%p6940) target = $region44
        $region43: #{simplenet_forward.8} parent=31 // pred_region
          %v6943 = vld [vmem:[#allocation2] sm:$0xff]
          %v6944 = vld [vmem:[#allocation2 + $0x8] sm:$0xff]
          %v6945 = vld [vmem:[#allocation2 + $0x10] sm:$0xff]
          %v6946 = vld [vmem:[#allocation2 + $0x18] sm:$0xff]
          %v6947 = vld [vmem:[%s271] sm:$0xf]
          %v6949 = vlaneseq
          %v6950 = vshrl.u32 %v6949, 7
          %v6951 = vsub.s32 0, %v6950
          %v6952 = vrot.slane %v6947, %v6951
          %v6953 = vlaneseq
          %v6954 = vshrl.u32 %v6953, 7
          %v6955 = vsub.s32 1, %v6954
          %v6956 = vrot.slane %v6947, %v6955
          %v6957 = vlaneseq
          %v6958 = vshrl.u32 %v6957, 7
          %v6959 = vsub.s32 2, %v6958
          %v6960 = vrot.slane %v6947, %v6959
          %v6961 = vlaneseq
          %v6962 = vshrl.u32 %v6961, 7
          %v6963 = vsub.s32 3, %v6962
          %v6964 = vrot.slane %v6947, %v6963
          %v6969 = vadd.f32 %v6943, %v6952
          %v6970 = vadd.f32 %v6944, %v6956
          %v6971 = vadd.f32 %v6945, %v6960
          %v6972 = vadd.f32 %v6946, %v6964
          %v6973 = vmax.f32 %v6969, 0.0
          %v6974 = vmax.f32 %v6970, 0.0
          %v6975 = vmax.f32 %v6971, 0.0
          %v6976 = vmax.f32 %v6972, 0.0
          %6977 = vst [vmem:[%s281] sm:$0xff] %v6973
          %6978 = vst [vmem:[%s281 + $0x8] sm:$0xff] %v6974
          %6979 = vst [vmem:[%s281 + $0x10] sm:$0xff] %v6975
          %6980 = vst [vmem:[%s281 + $0x18] sm:$0xff] %v6976
        $region44: #{simplenet_forward.8} parent=31 // pred_fallthru
          _
        %s6981 = smul.u32 4, %s23
        %p6982 = scmp.lt.s32.totalorder %s22, 0
        %s6983 = scalar_select %p6982, %s22, 0
        %p6984 = scmp.lt.s32.totalorder %s6981, 7
        %s6985 = scalar_select %p6984, %s6981, 7
        %s6986 = smul.addr %s6983, 8
        %s6987 = sadd.s32 %s6985, %s6986
        %s6988 = smul.addr %s6987, 8
        %s6989 = scalar_lea.vmem %s3, %s6988
        // Predicated region
        $region45: #{simplenet_forward.8} parent=31 // pred_check
          %p6990 = pneg %p138
        $region46: #{simplenet_forward.8} parent=31 // pred_check_branch
          %6992 = sbr.rel (%p6990) target = $region48
        $region47: #{simplenet_forward.8} parent=31 // pred_region
          %s6993 = smul.u32 4, %s23
        $region48: #{simplenet_forward.8} parent=31 // pred_fallthru
          _
      $region32: #{simplenet_forward.8} parent=5 // pred_fallthru
        _
      %p6994 = scmp.le.s32.totalorder 2, %s12
      // Predicated region
      $region49: #{simplenet_forward.8} parent=5 // pred_check
        %p6995 = pneg %p6994
      $region50: #{simplenet_forward.8} parent=5 // pred_check_branch
        %6997 = sbr.rel (%p6995) target = $region52
      $region51: #{simplenet_forward.8} parent=5 // pred_region
        %s6998 = ssub.s32 %s12, 2
        // Predicated region
        $region53: #{simplenet_forward.8} parent=51 // pred_check
          %p6999 = pneg %p144
        $region54: #{simplenet_forward.8} parent=51 // pred_check_branch
          %7001 = sbr.rel (%p6999) target = $region56
        $region55: #{simplenet_forward.8} parent=51 // pred_region
          %s7002 = smul.u32 4, %s26
          %p7003 = scmp.lt.s32.totalorder %s25, 0
          %s7004 = scalar_select %p7003, %s25, 0
          %p7005 = scmp.lt.s32.totalorder %s7002, 7
          %s7006 = scalar_select %p7005, %s7002, 7
          %s7007 = smul.addr %s7004, 8
          %s7008 = sadd.s32 %s7006, %s7007
          %s7009 = smul.addr %s7008, 8
          %s7010 = scalar_lea.vmem %s3, %s7009
        $region56: #{simplenet_forward.8} parent=51 // pred_fallthru
          _
      $region52: #{simplenet_forward.8} parent=5 // pred_fallthru
        _
    $region6: #{simplenet_forward.8} parent=1 // loop_footer
      %s16 = sadd.s32 1, %s12
    $region7: #{simplenet_forward.8} parent=1 // loop_footer_branch
      %11 = sbr.rel target = $region3
    $region8: #{simplenet_forward.8} parent=1 // loop_exit
      _
    %7011 = vsyncpa [#allocation4], 1
    %s7012 = scalar_lea.sflag [#allocation4], 1
    %7013 = vsyncpa %s7012, 1

// kernel: simplenet_forward.9
$region0: #{simplenet_forward.9}
  #allocation0 [shape = 'u32[]', space=smem, size = 0x4, offset = 0x4, fixed_abs, tag = 'smem constant byte address 0x4 - core index']
  #allocation1 [shape = 'u32[144,128]{1,0:T(1,128)}', space=vmem, size = 0x12000, scoped, tag = 'internal scratch']
  %s0 = inlined_call_operand.vmem [shape: f32[8,1024], index: 0, kind: input, shape index: {}]
  %s1 = inlined_call_operand.vmem [shape: f32[1024,128], index: 1, kind: input, shape index: {}]
  %s2 = inlined_call_operand.vmem [shape: f32[1,128], index: 2, kind: input, shape index: {}]
  %s3 = inlined_call_operand.vmem [shape: f32[8,128], index: 3, kind: output, shape index: {}]
  %s4 = sld [smem:[#allocation0]]
  $region22: #{simplenet_forward.9} parent=0
    _
  %s6 = ssub.s32 1, %s4
  %s7 = scalar_select 0, %s6, %s4
  // Predicated region
  $region2: #{simplenet_forward.9} parent=0 // pred_check
    _
  $region3: #{simplenet_forward.9} parent=0 // pred_check_branch
    %9 = sbr.rel (0) target = $region5
  $region4: #{simplenet_forward.9} parent=0 // pred_region
    _
  $region5: #{simplenet_forward.9} parent=0 // pred_fallthru
    _
  // Predicated region
  $region6: #{simplenet_forward.9} parent=0 // pred_check
    _
  $region7: #{simplenet_forward.9} parent=0 // pred_check_branch
    %11 = sbr.rel (0) target = $region9
  $region8: #{simplenet_forward.9} parent=0 // pred_region
    _
  $region9: #{simplenet_forward.9} parent=0 // pred_fallthru
    _
  // Predicated region
  $region10: #{simplenet_forward.9} parent=0 // pred_check
    _
  $region11: #{simplenet_forward.9} parent=0 // pred_check_branch
    %13 = sbr.rel (0) target = $region13
  $region12: #{simplenet_forward.9} parent=0 // pred_region
    _
  $region13: #{simplenet_forward.9} parent=0 // pred_fallthru
    _
  %v14 = vld [vmem:[%s0] sm:$0xff]
  %v15 = vld [vmem:[%s0 + $0x8] sm:$0xff]
  %v16 = vld [vmem:[%s0 + $0x10] sm:$0xff]
  %v17 = vld [vmem:[%s0 + $0x18] sm:$0xff]
  %v18 = vld [vmem:[%s0 + $0x20] sm:$0xff]
  %v19 = vld [vmem:[%s0 + $0x28] sm:$0xff]
  %v20 = vld [vmem:[%s0 + $0x30] sm:$0xff]
  %v21 = vld [vmem:[%s0 + $0x38] sm:$0xff]
  %v22 = vld [vmem:[%s1] sm:$0xff]
  %v23 = vld [vmem:[%s1 + $0x8] sm:$0xff]
  %v24 = vld [vmem:[%s1 + $0x10] sm:$0xff]
  %v25 = vld [vmem:[%s1 + $0x18] sm:$0xff]
  %v26 = vld [vmem:[%s1 + $0x20] sm:$0xff]
  %v27 = vld [vmem:[%s1 + $0x28] sm:$0xff]
  %v28 = vld [vmem:[%s1 + $0x30] sm:$0xff]
  %v29 = vld [vmem:[%s1 + $0x38] sm:$0xff]
  %v30 = vld [vmem:[%s1 + $0x40] sm:$0xff]
  %v31 = vld [vmem:[%s1 + $0x48] sm:$0xff]
  %v32 = vld [vmem:[%s1 + $0x50] sm:$0xff]
  %v33 = vld [vmem:[%s1 + $0x58] sm:$0xff]
  %v34 = vld [vmem:[%s1 + $0x60] sm:$0xff]
  %v35 = vld [vmem:[%s1 + $0x68] sm:$0xff]
  %v36 = vld [vmem:[%s1 + $0x70] sm:$0xff]
  %v37 = vld [vmem:[%s1 + $0x78] sm:$0xff]
  %v38 = vld [vmem:[%s1 + $0x80] sm:$0xff]
  %v39 = vld [vmem:[%s1 + $0x88] sm:$0xff]
  %v40 = vld [vmem:[%s1 + $0x90] sm:$0xff]
  %v41 = vld [vmem:[%s1 + $0x98] sm:$0xff]
  %v42 = vld [vmem:[%s1 + $0xa0] sm:$0xff]
  %v43 = vld [vmem:[%s1 + $0xa8] sm:$0xff]
  %v44 = vld [vmem:[%s1 + $0xb0] sm:$0xff]
  %v45 = vld [vmem:[%s1 + $0xb8] sm:$0xff]
  %v46 = vld [vmem:[%s1 + $0xc0] sm:$0xff]
  %v47 = vld [vmem:[%s1 + $0xc8] sm:$0xff]
  %v48 = vld [vmem:[%s1 + $0xd0] sm:$0xff]
  %v49 = vld [vmem:[%s1 + $0xd8] sm:$0xff]
  %v50 = vld [vmem:[%s1 + $0xe0] sm:$0xff]
  %v51 = vld [vmem:[%s1 + $0xe8] sm:$0xff]
  %v52 = vld [vmem:[%s1 + $0xf0] sm:$0xff]
  %v53 = vld [vmem:[%s1 + $0xf8] sm:$0xff]
  %v54 = vld [vmem:[%s1 + $0x100] sm:$0xff]
  %v55 = vld [vmem:[%s1 + $0x108] sm:$0xff]
  %v56 = vld [vmem:[%s1 + $0x110] sm:$0xff]
  %v57 = vld [vmem:[%s1 + $0x118] sm:$0xff]
  %v58 = vld [vmem:[%s1 + $0x120] sm:$0xff]
  %v59 = vld [vmem:[%s1 + $0x128] sm:$0xff]
  %v60 = vld [vmem:[%s1 + $0x130] sm:$0xff]
  %v61 = vld [vmem:[%s1 + $0x138] sm:$0xff]
  %v62 = vld [vmem:[%s1 + $0x140] sm:$0xff]
  %v63 = vld [vmem:[%s1 + $0x148] sm:$0xff]
  %v64 = vld [vmem:[%s1 + $0x150] sm:$0xff]
  %v65 = vld [vmem:[%s1 + $0x158] sm:$0xff]
  %v66 = vld [vmem:[%s1 + $0x160] sm:$0xff]
  %v67 = vld [vmem:[%s1 + $0x168] sm:$0xff]
  %v68 = vld [vmem:[%s1 + $0x170] sm:$0xff]
  %v69 = vld [vmem:[%s1 + $0x178] sm:$0xff]
  %v70 = vld [vmem:[%s1 + $0x180] sm:$0xff]
  %v71 = vld [vmem:[%s1 + $0x188] sm:$0xff]
  %v72 = vld [vmem:[%s1 + $0x190] sm:$0xff]
  %v73 = vld [vmem:[%s1 + $0x198] sm:$0xff]
  %v74 = vld [vmem:[%s1 + $0x1a0] sm:$0xff]
  %v75 = vld [vmem:[%s1 + $0x1a8] sm:$0xff]
  %v76 = vld [vmem:[%s1 + $0x1b0] sm:$0xff]
  %v77 = vld [vmem:[%s1 + $0x1b8] sm:$0xff]
  %v78 = vld [vmem:[%s1 + $0x1c0] sm:$0xff]
  %v79 = vld [vmem:[%s1 + $0x1c8] sm:$0xff]
  %v80 = vld [vmem:[%s1 + $0x1d0] sm:$0xff]
  %v81 = vld [vmem:[%s1 + $0x1d8] sm:$0xff]
  %v82 = vld [vmem:[%s1 + $0x1e0] sm:$0xff]
  %v83 = vld [vmem:[%s1 + $0x1e8] sm:$0xff]
  %v84 = vld [vmem:[%s1 + $0x1f0] sm:$0xff]
  %v85 = vld [vmem:[%s1 + $0x1f8] sm:$0xff]
  %v86 = vld [vmem:[%s1 + $0x200] sm:$0xff]
  %v87 = vld [vmem:[%s1 + $0x208] sm:$0xff]
  %v88 = vld [vmem:[%s1 + $0x210] sm:$0xff]
  %v89 = vld [vmem:[%s1 + $0x218] sm:$0xff]
  %v90 = vld [vmem:[%s1 + $0x220] sm:$0xff]
  %v91 = vld [vmem:[%s1 + $0x228] sm:$0xff]
  %v92 = vld [vmem:[%s1 + $0x230] sm:$0xff]
  %v93 = vld [vmem:[%s1 + $0x238] sm:$0xff]
  %v94 = vld [vmem:[%s1 + $0x240] sm:$0xff]
  %v95 = vld [vmem:[%s1 + $0x248] sm:$0xff]
  %v96 = vld [vmem:[%s1 + $0x250] sm:$0xff]
  %v97 = vld [vmem:[%s1 + $0x258] sm:$0xff]
  %v98 = vld [vmem:[%s1 + $0x260] sm:$0xff]
  %v99 = vld [vmem:[%s1 + $0x268] sm:$0xff]
  %v100 = vld [vmem:[%s1 + $0x270] sm:$0xff]
  %v101 = vld [vmem:[%s1 + $0x278] sm:$0xff]
  %v102 = vld [vmem:[%s1 + $0x280] sm:$0xff]
  %v103 = vld [vmem:[%s1 + $0x288] sm:$0xff]
  %v104 = vld [vmem:[%s1 + $0x290] sm:$0xff]
  %v105 = vld [vmem:[%s1 + $0x298] sm:$0xff]
  %v106 = vld [vmem:[%s1 + $0x2a0] sm:$0xff]
  %v107 = vld [vmem:[%s1 + $0x2a8] sm:$0xff]
  %v108 = vld [vmem:[%s1 + $0x2b0] sm:$0xff]
  %v109 = vld [vmem:[%s1 + $0x2b8] sm:$0xff]
  %v110 = vld [vmem:[%s1 + $0x2c0] sm:$0xff]
  %v111 = vld [vmem:[%s1 + $0x2c8] sm:$0xff]
  %v112 = vld [vmem:[%s1 + $0x2d0] sm:$0xff]
  %v113 = vld [vmem:[%s1 + $0x2d8] sm:$0xff]
  %v114 = vld [vmem:[%s1 + $0x2e0] sm:$0xff]
  %v115 = vld [vmem:[%s1 + $0x2e8] sm:$0xff]
  %v116 = vld [vmem:[%s1 + $0x2f0] sm:$0xff]
  %v117 = vld [vmem:[%s1 + $0x2f8] sm:$0xff]
  %v118 = vld [vmem:[%s1 + $0x300] sm:$0xff]
  %v119 = vld [vmem:[%s1 + $0x308] sm:$0xff]
  %v120 = vld [vmem:[%s1 + $0x310] sm:$0xff]
  %v121 = vld [vmem:[%s1 + $0x318] sm:$0xff]
  %v122 = vld [vmem:[%s1 + $0x320] sm:$0xff]
  %v123 = vld [vmem:[%s1 + $0x328] sm:$0xff]
  %v124 = vld [vmem:[%s1 + $0x330] sm:$0xff]
  %v125 = vld [vmem:[%s1 + $0x338] sm:$0xff]
  %v126 = vld [vmem:[%s1 + $0x340] sm:$0xff]
  %v127 = vld [vmem:[%s1 + $0x348] sm:$0xff]
  %v128 = vld [vmem:[%s1 + $0x350] sm:$0xff]
  %v129 = vld [vmem:[%s1 + $0x358] sm:$0xff]
  %v130 = vld [vmem:[%s1 + $0x360] sm:$0xff]
  %v131 = vld [vmem:[%s1 + $0x368] sm:$0xff]
  %v132 = vld [vmem:[%s1 + $0x370] sm:$0xff]
  %v133 = vld [vmem:[%s1 + $0x378] sm:$0xff]
  %v134 = vld [vmem:[%s1 + $0x380] sm:$0xff]
  %v135 = vld [vmem:[%s1 + $0x388] sm:$0xff]
  %v136 = vld [vmem:[%s1 + $0x390] sm:$0xff]
  %v137 = vld [vmem:[%s1 + $0x398] sm:$0xff]
  %v138 = vld [vmem:[%s1 + $0x3a0] sm:$0xff]
  %v139 = vld [vmem:[%s1 + $0x3a8] sm:$0xff]
  %v140 = vld [vmem:[%s1 + $0x3b0] sm:$0xff]
  %v141 = vld [vmem:[%s1 + $0x3b8] sm:$0xff]
  %v142 = vld [vmem:[%s1 + $0x3c0] sm:$0xff]
  %v143 = vld [vmem:[%s1 + $0x3c8] sm:$0xff]
  %v144 = vld [vmem:[%s1 + $0x3d0] sm:$0xff]
  %v145 = vld [vmem:[%s1 + $0x3d8] sm:$0xff]
  %v146 = vld [vmem:[%s1 + $0x3e0] sm:$0xff]
  %v147 = vld [vmem:[%s1 + $0x3e8] sm:$0xff]
  %v148 = vld [vmem:[%s1 + $0x3f0] sm:$0xff]
  %v149 = vld [vmem:[%s1 + $0x3f8] sm:$0xff]
  %v150 = vld [vmem:[%s2] sm:$0x1]
  %v152 = vlaneseq
  %v153 = vshrl.u32 %v152, 7
  %v154 = vsub.s32 0, %v153
  %v155 = vrot.slane %v150, %v154
  %157 = vmatprep.subr.mxu0 0.0
  %158 = vmatpush1.msra.mxu0 %v37
  %159 = vmatprep.subr.mxu0 0.0
  %160 = vmatpush1.msra.mxu0 %v36
  %161 = vmatprep.subr.mxu0 0.0
  %162 = vmatpush1.msra.mxu0 %v35
  %163 = vmatprep.subr.mxu0 0.0
  %164 = vmatpush1.msra.mxu0 %v34
  %165 = vmatprep.subr.mxu0 0.0
  %166 = vmatpush1.msra.mxu0 %v33
  %167 = vmatprep.subr.mxu0 0.0
  %168 = vmatpush1.msra.mxu0 %v32
  %169 = vmatprep.subr.mxu0 0.0
  %170 = vmatpush1.msra.mxu0 %v31
  %171 = vmatprep.subr.mxu0 0.0
  %172 = vmatpush1.msra.mxu0 %v30
  %173 = vmatprep.subr.mxu0 0.0
  %174 = vmatpush1.msra.mxu0 %v29
  %175 = vmatprep.subr.mxu0 0.0
  %176 = vmatpush1.msra.mxu0 %v28
  %177 = vmatprep.subr.mxu0 0.0
  %178 = vmatpush1.msra.mxu0 %v27
  %179 = vmatprep.subr.mxu0 0.0
  %180 = vmatpush1.msra.mxu0 %v26
  %181 = vmatprep.subr.mxu0 0.0
  %182 = vmatpush1.msra.mxu0 %v25
  %183 = vmatprep.subr.mxu0 0.0
  %184 = vmatpush1.msra.mxu0 %v24
  %185 = vmatprep.subr.mxu0 0.0
  %186 = vmatpush1.msra.mxu0 %v23
  %187 = vmatprep.subr.mxu0 0.0
  %188 = vmatpush1.msra.mxu0 %v22
  %189 = vmatprep.subr.mxu0 0.0
  %190 = vmatpush2.msra.mxu0 %v53
  %191 = vmatprep.subr.mxu0 0.0
  %192 = vmatpush2.msra.mxu0 %v52
  %193 = vmatprep.subr.mxu0 0.0
  %194 = vmatpush2.msra.mxu0 %v51
  %195 = vmatprep.subr.mxu0 0.0
  %196 = vmatpush2.msra.mxu0 %v50
  %197 = vmatprep.subr.mxu0 0.0
  %198 = vmatpush2.msra.mxu0 %v49
  %199 = vmatprep.subr.mxu0 0.0
  %200 = vmatpush2.msra.mxu0 %v48
  %201 = vmatprep.subr.mxu0 0.0
  %202 = vmatpush2.msra.mxu0 %v47
  %203 = vmatprep.subr.mxu0 0.0
  %204 = vmatpush2.msra.mxu0 %v46
  %205 = vmatprep.subr.mxu0 0.0
  %206 = vmatpush2.msra.mxu0 %v45
  %207 = vmatprep.subr.mxu0 0.0
  %208 = vmatpush2.msra.mxu0 %v44
  %209 = vmatprep.subr.mxu0 0.0
  %210 = vmatpush2.msra.mxu0 %v43
  %211 = vmatprep.subr.mxu0 0.0
  %212 = vmatpush2.msra.mxu0 %v42
  %213 = vmatprep.subr.mxu0 0.0
  %214 = vmatpush2.msra.mxu0 %v41
  %215 = vmatprep.subr.mxu0 0.0
  %216 = vmatpush2.msra.mxu0 %v40
  %217 = vmatprep.subr.mxu0 0.0
  %218 = vmatpush2.msra.mxu0 %v39
  %219 = vmatprep.subr.mxu0 0.0
  %220 = vmatpush2.msra.mxu0 %v38
  %221 = vmatprep.mubr.f32.mxu0 %v15
  %222 = vmatmul.mubr.f32.gmra.mxu0 %v14
  %v223 = vpop.f32.mrf.mxu0
  %v224 = vadd.f32 %v155, %v223
  %v225 = vpop.f32.mrf.mxu0
  %226 = vdwg.mxu0
  %227 = vmatprep.subr.mxu0 0.0
  %228 = vmatpush1.msra.mxu0 %v69
  %229 = vmatprep.subr.mxu0 0.0
  %230 = vmatpush1.msra.mxu0 %v68
  %231 = vmatprep.subr.mxu0 0.0
  %232 = vmatpush1.msra.mxu0 %v67
  %233 = vmatprep.subr.mxu0 0.0
  %234 = vmatpush1.msra.mxu0 %v66
  %235 = vmatprep.subr.mxu0 0.0
  %236 = vmatpush1.msra.mxu0 %v65
  %237 = vmatprep.subr.mxu0 0.0
  %238 = vmatpush1.msra.mxu0 %v64
  %239 = vmatprep.subr.mxu0 0.0
  %240 = vmatpush1.msra.mxu0 %v63
  %241 = vmatprep.subr.mxu0 0.0
  %242 = vmatpush1.msra.mxu0 %v62
  %243 = vmatprep.subr.mxu0 0.0
  %244 = vmatpush1.msra.mxu0 %v61
  %245 = vmatprep.subr.mxu0 0.0
  %246 = vmatpush1.msra.mxu0 %v60
  %247 = vmatprep.subr.mxu0 0.0
  %248 = vmatpush1.msra.mxu0 %v59
  %249 = vmatprep.subr.mxu0 0.0
  %250 = vmatpush1.msra.mxu0 %v58
  %251 = vmatprep.subr.mxu0 0.0
  %252 = vmatpush1.msra.mxu0 %v57
  %253 = vmatprep.subr.mxu0 0.0
  %254 = vmatpush1.msra.mxu0 %v56
  %255 = vmatprep.subr.mxu0 0.0
  %256 = vmatpush1.msra.mxu0 %v55
  %257 = vmatprep.subr.mxu0 0.0
  %258 = vmatpush1.msra.mxu0 %v54
  %259 = vmatprep.subr.mxu0 0.0
  %260 = vmatpush2.msra.mxu0 %v85
  %261 = vmatprep.subr.mxu0 0.0
  %262 = vmatpush2.msra.mxu0 %v84
  %263 = vmatprep.subr.mxu0 0.0
  %264 = vmatpush2.msra.mxu0 %v83
  %265 = vmatprep.subr.mxu0 0.0
  %266 = vmatpush2.msra.mxu0 %v82
  %267 = vmatprep.subr.mxu0 0.0
  %268 = vmatpush2.msra.mxu0 %v81
  %269 = vmatprep.subr.mxu0 0.0
  %270 = vmatpush2.msra.mxu0 %v80
  %271 = vmatprep.subr.mxu0 0.0
  %272 = vmatpush2.msra.mxu0 %v79
  %273 = vmatprep.subr.mxu0 0.0
  %274 = vmatpush2.msra.mxu0 %v78
  %275 = vmatprep.subr.mxu0 0.0
  %276 = vmatpush2.msra.mxu0 %v77
  %277 = vmatprep.subr.mxu0 0.0
  %278 = vmatpush2.msra.mxu0 %v76
  %279 = vmatprep.subr.mxu0 0.0
  %280 = vmatpush2.msra.mxu0 %v75
  %281 = vmatprep.subr.mxu0 0.0
  %282 = vmatpush2.msra.mxu0 %v74
  %283 = vmatprep.subr.mxu0 0.0
  %284 = vmatpush2.msra.mxu0 %v73
  %285 = vmatprep.subr.mxu0 0.0
  %286 = vmatpush2.msra.mxu0 %v72
  %287 = vmatprep.subr.mxu0 0.0
  %288 = vmatpush2.msra.mxu0 %v71
  %289 = vmatprep.subr.mxu0 0.0
  %290 = vmatpush2.msra.mxu0 %v70
  %291 = vmatprep.mubr.f32.mxu0 %v17
  %292 = vmatmul.mubr.f32.gmra.mxu0 %v16
  %v293 = vpop.f32.mrf.mxu0
  %v294 = vadd.f32 %v224, %v293
  %v295 = vpop.f32.mrf.mxu0
  %296 = vdwg.mxu0
  %297 = vmatprep.subr.mxu0 0.0
  %298 = vmatpush1.msra.mxu0 %v101
  %299 = vmatprep.subr.mxu0 0.0
  %300 = vmatpush1.msra.mxu0 %v100
  %301 = vmatprep.subr.mxu0 0.0
  %302 = vmatpush1.msra.mxu0 %v99
  %303 = vmatprep.subr.mxu0 0.0
  %304 = vmatpush1.msra.mxu0 %v98
  %305 = vmatprep.subr.mxu0 0.0
  %306 = vmatpush1.msra.mxu0 %v97
  %307 = vmatprep.subr.mxu0 0.0
  %308 = vmatpush1.msra.mxu0 %v96
  %309 = vmatprep.subr.mxu0 0.0
  %310 = vmatpush1.msra.mxu0 %v95
  %311 = vmatprep.subr.mxu0 0.0
  %312 = vmatpush1.msra.mxu0 %v94
  %313 = vmatprep.subr.mxu0 0.0
  %314 = vmatpush1.msra.mxu0 %v93
  %315 = vmatprep.subr.mxu0 0.0
  %316 = vmatpush1.msra.mxu0 %v92
  %317 = vmatprep.subr.mxu0 0.0
  %318 = vmatpush1.msra.mxu0 %v91
  %319 = vmatprep.subr.mxu0 0.0
  %320 = vmatpush1.msra.mxu0 %v90
  %321 = vmatprep.subr.mxu0 0.0
  %322 = vmatpush1.msra.mxu0 %v89
  %323 = vmatprep.subr.mxu0 0.0
  %324 = vmatpush1.msra.mxu0 %v88
  %325 = vmatprep.subr.mxu0 0.0
  %326 = vmatpush1.msra.mxu0 %v87
  %327 = vmatprep.subr.mxu0 0.0
  %328 = vmatpush1.msra.mxu0 %v86
  %329 = vmatprep.subr.mxu0 0.0
  %330 = vmatpush2.msra.mxu0 %v117
  %331 = vmatprep.subr.mxu0 0.0
  %332 = vmatpush2.msra.mxu0 %v116
  %333 = vmatprep.subr.mxu0 0.0
  %334 = vmatpush2.msra.mxu0 %v115
  %335 = vmatprep.subr.mxu0 0.0
  %336 = vmatpush2.msra.mxu0 %v114
  %337 = vmatprep.subr.mxu0 0.0
  %338 = vmatpush2.msra.mxu0 %v113
  %339 = vmatprep.subr.mxu0 0.0
  %340 = vmatpush2.msra.mxu0 %v112
  %341 = vmatprep.subr.mxu0 0.0
  %342 = vmatpush2.msra.mxu0 %v111
  %343 = vmatprep.subr.mxu0 0.0
  %344 = vmatpush2.msra.mxu0 %v110
  %345 = vmatprep.subr.mxu0 0.0
  %346 = vmatpush2.msra.mxu0 %v109
  %347 = vmatprep.subr.mxu0 0.0
  %348 = vmatpush2.msra.mxu0 %v108
  %349 = vmatprep.subr.mxu0 0.0
  %350 = vmatpush2.msra.mxu0 %v107
  %351 = vmatprep.subr.mxu0 0.0
  %352 = vmatpush2.msra.mxu0 %v106
  %353 = vmatprep.subr.mxu0 0.0
  %354 = vmatpush2.msra.mxu0 %v105
  %355 = vmatprep.subr.mxu0 0.0
  %356 = vmatpush2.msra.mxu0 %v104
  %357 = vmatprep.subr.mxu0 0.0
  %358 = vmatpush2.msra.mxu0 %v103
  %359 = vmatprep.subr.mxu0 0.0
  %360 = vmatpush2.msra.mxu0 %v102
  %361 = vmatprep.mubr.f32.mxu0 %v19
  %362 = vmatmul.mubr.f32.gmra.mxu0 %v18
  %v363 = vpop.f32.mrf.mxu0
  %v364 = vadd.f32 %v294, %v363
  %v365 = vpop.f32.mrf.mxu0
  %366 = vdwg.mxu0
  %367 = vmatprep.subr.mxu0 0.0
  %368 = vmatpush1.msra.mxu0 %v133
  %369 = vmatprep.subr.mxu0 0.0
  %370 = vmatpush1.msra.mxu0 %v132
  %371 = vmatprep.subr.mxu0 0.0
  %372 = vmatpush1.msra.mxu0 %v131
  %373 = vmatprep.subr.mxu0 0.0
  %374 = vmatpush1.msra.mxu0 %v130
  %375 = vmatprep.subr.mxu0 0.0
  %376 = vmatpush1.msra.mxu0 %v129
  %377 = vmatprep.subr.mxu0 0.0
  %378 = vmatpush1.msra.mxu0 %v128
  %379 = vmatprep.subr.mxu0 0.0
  %380 = vmatpush1.msra.mxu0 %v127
  %381 = vmatprep.subr.mxu0 0.0
  %382 = vmatpush1.msra.mxu0 %v126
  %383 = vmatprep.subr.mxu0 0.0
  %384 = vmatpush1.msra.mxu0 %v125
  %385 = vmatprep.subr.mxu0 0.0
  %386 = vmatpush1.msra.mxu0 %v124
  %387 = vmatprep.subr.mxu0 0.0
  %388 = vmatpush1.msra.mxu0 %v123
  %389 = vmatprep.subr.mxu0 0.0
  %390 = vmatpush1.msra.mxu0 %v122
  %391 = vmatprep.subr.mxu0 0.0
  %392 = vmatpush1.msra.mxu0 %v121
  %393 = vmatprep.subr.mxu0 0.0
  %394 = vmatpush1.msra.mxu0 %v120
  %395 = vmatprep.subr.mxu0 0.0
  %396 = vmatpush1.msra.mxu0 %v119
  %397 = vmatprep.subr.mxu0 0.0
  %398 = vmatpush1.msra.mxu0 %v118
  %399 = vmatprep.subr.mxu0 0.0
  %400 = vmatpush2.msra.mxu0 %v149
  %401 = vmatprep.subr.mxu0 0.0
  %402 = vmatpush2.msra.mxu0 %v148
  %403 = vmatprep.subr.mxu0 0.0
  %404 = vmatpush2.msra.mxu0 %v147
  %405 = vmatprep.subr.mxu0 0.0
  %406 = vmatpush2.msra.mxu0 %v146
  %407 = vmatprep.subr.mxu0 0.0
  %408 = vmatpush2.msra.mxu0 %v145
  %409 = vmatprep.subr.mxu0 0.0
  %410 = vmatpush2.msra.mxu0 %v144
  %411 = vmatprep.subr.mxu0 0.0
  %412 = vmatpush2.msra.mxu0 %v143
  %413 = vmatprep.subr.mxu0 0.0
  %414 = vmatpush2.msra.mxu0 %v142
  %415 = vmatprep.subr.mxu0 0.0
  %416 = vmatpush2.msra.mxu0 %v141
  %417 = vmatprep.subr.mxu0 0.0
  %418 = vmatpush2.msra.mxu0 %v140
  %419 = vmatprep.subr.mxu0 0.0
  %420 = vmatpush2.msra.mxu0 %v139
  %421 = vmatprep.subr.mxu0 0.0
  %422 = vmatpush2.msra.mxu0 %v138
  %423 = vmatprep.subr.mxu0 0.0
  %424 = vmatpush2.msra.mxu0 %v137
  %425 = vmatprep.subr.mxu0 0.0
  %426 = vmatpush2.msra.mxu0 %v136
  %427 = vmatprep.subr.mxu0 0.0
  %428 = vmatpush2.msra.mxu0 %v135
  %429 = vmatprep.subr.mxu0 0.0
  %430 = vmatpush2.msra.mxu0 %v134
  %431 = vmatprep.mubr.f32.mxu0 %v21
  %432 = vmatmul.mubr.f32.gmra.mxu0 %v20
  %v433 = vpop.f32.mrf.mxu0
  %v434 = vadd.f32 %v364, %v433
  %v435 = vpop.f32.mrf.mxu0
  %436 = vdwg.mxu0
  %437 = vst [vmem:[%s3] sm:$0xff] %v434
  // Predicated region
  $region14: #{simplenet_forward.9} parent=0 // pred_check
    _
  $region15: #{simplenet_forward.9} parent=0 // pred_check_branch
    %439 = sbr.rel (0) target = $region17
  $region16: #{simplenet_forward.9} parent=0 // pred_region
    _
  $region17: #{simplenet_forward.9} parent=0 // pred_fallthru
    _
  // Predicated region
  $region18: #{simplenet_forward.9} parent=0 // pred_check
    _
  $region19: #{simplenet_forward.9} parent=0 // pred_check_branch
    %441 = sbr.rel (0) target = $region21
  $region20: #{simplenet_forward.9} parent=0 // pred_region
    _
  $region21: #{simplenet_forward.9} parent=0 // pred_fallthru
    _

</llo_original>
